<compile_context>
chip_gen: v6e
topology: v6e:2x2x1
jax: 0.10.0
libtpu: 0.0.40
codegen_flags: <defaults>
</compile_context>

<pallas_src>
import functools

import jax
import jax.numpy as jnp
from jax import lax
from jax.experimental import pallas as pl
from jax.experimental.pallas import tpu as pltpu

HIDDEN = 512            # hidden_layer in the PyTorch script
NUM_OUTPUTS = 6         # Pong: env.action_space.n == 6
FLAT_K = 7 * 7 * 64     # 3136 features after the conv3 flatten
MAX_CONV_ROWS = 1024    # M tile for the conv matmuls (VMEM-safe at big batch)


# ---------------------------------------------------------------------------
# Pallas kernels
# ---------------------------------------------------------------------------
def _matmul_bias_kernel(x_ref, w_ref, b_ref, o_ref, *, relu):
    """One M-tile of y = relu?(x @ w + b); bias is a (1, N) broadcast row."""
    acc = jnp.dot(x_ref[...], w_ref[...], preferred_element_type=jnp.float32)
    acc = acc + b_ref[...]
    if relu:
        acc = jnp.maximum(acc, 0.0)
    o_ref[...] = acc.astype(o_ref.dtype)


def matmul_bias(x, w, b, *, relu, out_dtype=jnp.float32):
    """Fused matmul + bias (+ReLU) on the MXU, tiled over rows.

    Weight / bias block indices are constant across the grid, so they are
    DMA'd into VMEM once and stay resident; only activation rows stream.
    """
    M, K = x.shape
    K2, N = w.shape
    assert K == K2
    tm = M if M <= MAX_CONV_ROWS else MAX_CONV_ROWS
    return pl.pallas_call(
        functools.partial(_matmul_bias_kernel, relu=relu),
        out_shape=jax.ShapeDtypeStruct((M, N), out_dtype),
        grid_spec=pltpu.PrefetchScalarGridSpec(
            num_scalar_prefetch=0,
            grid=(pl.cdiv(M, tm),),
            in_specs=[
                pl.BlockSpec((tm, K), lambda i: (i, 0)),   # activations (stream)
                pl.BlockSpec((K, N), lambda i: (0, 0)),    # weights (resident)
                pl.BlockSpec((1, N), lambda i: (0, 0)),    # bias (resident)
            ],
            out_specs=pl.BlockSpec((tm, N), lambda i: (i, 0)),
        ),
        compiler_params=pltpu.CompilerParams(
            dimension_semantics=("parallel",)),
    )(x, w, b.reshape(1, N))


def _head_dueling_kernel(x_ref, w1_ref, b1_ref, wa_ref, ba_ref,
                         wv_ref, bv_ref, o_ref):
    """Whole dueling head in one program (everything resident in VMEM).

      h   = relu(flat @ [adv1_w | val1_w] + [adv1_b | val1_b])   (M, 1024)
      adv = h[:, :512] @ adv2_w + adv2_b                          (M, 6)
      val = h[:, 512:] @ val2_w + val2_b                          (M, 1)
      out = val + adv - adv.mean()   # global mean over batch AND actions,
                                     # exactly as PyTorch `advantage.mean()`
    """
    h = jnp.dot(x_ref[...], w1_ref[...], preferred_element_type=jnp.float32)
    h = jnp.maximum(h + b1_ref[...], 0.0)
    adv = jnp.dot(h[:, :HIDDEN], wa_ref[...],
                  preferred_element_type=jnp.float32) + ba_ref[...]
    val = jnp.dot(h[:, HIDDEN:], wv_ref[...],
                  preferred_element_type=jnp.float32) + bv_ref[...]
    o_ref[...] = val + adv - jnp.mean(adv)


def head_dueling(flat_bf16, params):
    """advantage1+value1 (bf16 weights, f32 accumulate) + heads + combine.

    Grid-less: the ~6.5 MB bf16 weight plus small activations sit in VMEM for
    a single program — no K pipeline, no accumulator scratch, no HBM
    round-trip for h, and one kernel launch instead of two.
    NOTE: the dueling combine uses a *global* mean (it couples samples), so
    this kernel deliberately keeps the whole batch in one block; for very
    large batches split the batch outside or use a two-pass mean.
    """
    M = flat_bf16.shape[0]
    return pl.pallas_call(
        _head_dueling_kernel,
        out_shape=jax.ShapeDtypeStruct((M, NUM_OUTPUTS), jnp.float32),
        in_specs=[pl.BlockSpec(memory_space=pltpu.MemorySpace.VMEM)] * 7,
        out_specs=pl.BlockSpec(memory_space=pltpu.MemorySpace.VMEM),
    )(flat_bf16, params["head1_w"], params["head1_b"],
      params["adv2_w"], params["adv2_b"],
      params["val2_w"], params["val2_b"])


# ---------------------------------------------------------------------------
# Conv-as-matmul glue (im2col) — pure data movement, fused by XLA
# ---------------------------------------------------------------------------
def im2col(x_nhwc, kh, kw, stride):
    N, H, W, C = x_nhwc.shape
    oh = (H - kh) // stride + 1
    ow = (W - kw) // stride + 1
    patches = []
    for i in range(kh):
        for j in range(kw):
            patches.append(
                x_nhwc[:, i:i + stride * oh:stride, j:j + stride * ow:stride, :])
    p = jnp.stack(patches, axis=3)                 # (N, oh, ow, kh*kw, C)
    return p.reshape(N * oh * ow, kh * kw * C), oh, ow


def conv2d(x_nhwc, w_mat, b, kh, kw, stride, *, relu, out_dtype=jnp.float32):
    """Valid conv via im2col + Pallas matmul. w_mat is pre-reordered (K, OC)."""
    patches, oh, ow = im2col(x_nhwc, kh, kw, stride)
    out = matmul_bias(patches, w_mat, b, relu=relu, out_dtype=out_dtype)
    N = x_nhwc.shape[0]
    OC = w_mat.shape[1]
    return out.reshape(N, oh, ow, OC)


# ---------------------------------------------------------------------------
# Parameters: PyTorch-layout init, then one-time packing for inference
# ---------------------------------------------------------------------------
def init_params(key):
    """Synthetic PyTorch-layout params (Conv2d: OIHW, Linear: (out, in))."""
    ks = jax.random.split(key, 14)

    def lin(kw_, kb_, shape):                      # shape = (out, in)
        bound = 1.0 / (shape[1] ** 0.5)
        w = jax.random.uniform(kw_, shape, jnp.float32, -bound, bound)
        b = jax.random.uniform(kb_, (shape[0],), jnp.float32, -bound, bound)
        return w, b

    def conv(kw_, kb_, oc, ic, k):
        bound = 1.0 / ((ic * k * k) ** 0.5)
        w = jax.random.uniform(kw_, (oc, ic, k, k), jnp.float32, -bound, bound)
        b = jax.random.uniform(kb_, (oc,), jnp.float32, -bound, bound)
        return w, b

    p = {}
    p["conv1_w"], p["conv1_b"] = conv(ks[0], ks[1], 32, 1, 8)
    p["conv2_w"], p["conv2_b"] = conv(ks[2], ks[3], 64, 32, 4)
    p["conv3_w"], p["conv3_b"] = conv(ks[4], ks[5], 64, 64, 3)
    p["adv1_w"], p["adv1_b"] = lin(ks[6], ks[7], (HIDDEN, FLAT_K))
    p["adv2_w"], p["adv2_b"] = lin(ks[8], ks[9], (NUM_OUTPUTS, HIDDEN))
    p["val1_w"], p["val1_b"] = lin(ks[10], ks[11], (HIDDEN, FLAT_K))
    p["val2_w"], p["val2_b"] = lin(ks[12], ks[13], (1, HIDDEN))
    return p


def prepare_params(raw):
    """One-time (outside jit) layout packing so forward() does zero reshuffles."""
    def conv_mat(w_oihw):                          # OIHW -> (KH*KW*IC, OC)
        OC, IC, KH, KW = w_oihw.shape
        return jnp.transpose(w_oihw, (2, 3, 1, 0)).reshape(KH * KW * IC, OC)

    def head1_kn(w_torch):
        # (512, 3136) with PyTorch channel-major (c,h,w) feature order
        #   -> (3136, 512) reordered for the NHWC (h,w,c) flatten.
        w = w_torch.reshape(HIDDEN, 64, 7, 7)      # (out, c, h, w)
        w = jnp.transpose(w, (2, 3, 1, 0))         # (h, w, c, out)
        return w.reshape(FLAT_K, HIDDEN)

    p = {}
    # fold the x/255 normalization into conv1's weights (bias unchanged)
    p["conv1_w"] = conv_mat(raw["conv1_w"]) * (1.0 / 255.0)
    p["conv1_b"] = raw["conv1_b"]
    p["conv2_w"] = conv_mat(raw["conv2_w"])
    p["conv2_b"] = raw["conv2_b"]
    p["conv3_w"] = conv_mat(raw["conv3_w"])
    p["conv3_b"] = raw["conv3_b"]

    # fused advantage1 | value1 : (3136, 1024), stored bf16 (f32 accumulation
    # in-kernel).  No K padding needed — the head kernel takes whole arrays.
    w1 = jnp.concatenate([head1_kn(raw["adv1_w"]), head1_kn(raw["val1_w"])],
                         axis=1)
    p["head1_w"] = w1.astype(jnp.bfloat16)                    # (3136, 1024)
    p["head1_b"] = jnp.concatenate([raw["adv1_b"],
                                    raw["val1_b"]]).reshape(1, 2 * HIDDEN)

    # advantage2 / value2 stored pre-transposed in (K, N) layout
    p["adv2_w"] = raw["adv2_w"].T                  # (512, 6)
    p["adv2_b"] = raw["adv2_b"].reshape(1, NUM_OUTPUTS)
    p["val2_w"] = raw["val2_w"].T                  # (512, 1)
    p["val2_b"] = raw["val2_b"].reshape(1, 1)
    return p


# ---------------------------------------------------------------------------
# Forward pass (mirrors NeuralNetwork.forward)
# ---------------------------------------------------------------------------
def forward(params, x_nchw):
    # NCHW -> NHWC; the 1/255 normalization is folded into conv1's weights.
    x = jnp.transpose(x_nchw.astype(jnp.float32), (0, 2, 3, 1))
    x = conv2d(x, params["conv1_w"], params["conv1_b"], 8, 8, 4, relu=True)  # 20x20x32
    x = conv2d(x, params["conv2_w"], params["conv2_b"], 4, 4, 2, relu=True)  # 9x9x64
    x = conv2d(x, params["conv3_w"], params["conv3_b"], 3, 3, 1, relu=True,
               out_dtype=jnp.bfloat16)                                       # 7x7x64
    N = x.shape[0]
    # NHWC flatten (free, row-major); the (c,h,w)->(h,w,c) permutation is baked
    # into head1_w so this matches PyTorch's .view(N, -1) on NCHW exactly.
    flat = x.reshape(N, FLAT_K)                    # bf16 already (from conv3)
    return head_dueling(flat, params)              # (N, 6)


# ---------------------------------------------------------------------------
# Pure-JAX f32 reference (PyTorch layouts) for correctness validation
# ---------------------------------------------------------------------------
def reference_forward(raw, x_nchw):
    dn = ("NCHW", "OIHW", "NCHW")
    x = x_nchw.astype(jnp.float32) / 255.0
    x = lax.conv_general_dilated(x, raw["conv1_w"], (4, 4), "VALID",
                                 dimension_numbers=dn)
    x = jnp.maximum(x + raw["conv1_b"].reshape(1, -1, 1, 1), 0.0)
    x = lax.conv_general_dilated(x, raw["conv2_w"], (2, 2), "VALID",
                                 dimension_numbers=dn)
    x = jnp.maximum(x + raw["conv2_b"].reshape(1, -1, 1, 1), 0.0)
    x = lax.conv_general_dilated(x, raw["conv3_w"], (1, 1), "VALID",
                                 dimension_numbers=dn)
    x = jnp.maximum(x + raw["conv3_b"].reshape(1, -1, 1, 1), 0.0)
    flat = x.reshape(x.shape[0], -1)               # NCHW flatten == .view(N,-1)
    adv = jnp.maximum(flat @ raw["adv1_w"].T + raw["adv1_b"], 0.0)
    adv = adv @ raw["adv2_w"].T + raw["adv2_b"]
    val = jnp.maximum(flat @ raw["val1_w"].T + raw["val1_b"], 0.0)
    val = val @ raw["val2_w"].T + raw["val2_b"]
    return val + adv - adv.mean()


if __name__ == "__main__":
    key = jax.random.PRNGKey(0)
    pk, xk = jax.random.split(key)
    raw = init_params(pk)
    params = prepare_params(raw)                   # one-time packing, no jit

    # Atari frame: batch=2, 1 channel, 84x84 (84 is required by the 7*7*64
    # flatten in the architecture).  Larger batches run unchanged and are
    # strongly preferred for throughput (the head weight stream amortizes).
    x = jax.random.uniform(xk, (2, 1, 84, 84), jnp.float32, 0.0, 255.0)

    out = jax.jit(forward)(params, x)
    jax.block_until_ready(out)
    assert out.shape == (2, NUM_OUTPUTS)
    assert bool(jnp.all(jnp.isfinite(out)))

    # Validate against the f32 reference (bf16 head1 weights are the only
    # reduced-precision step; tolerance sized accordingly).
    ref = reference_forward(raw, x)
    err = float(jnp.max(jnp.abs(out - ref)))
    scale = float(jnp.max(jnp.abs(ref)))
    assert err <= 1e-3 + 3e-2 * scale, (err, scale)
    print("KERNEL_OK")
</pallas_src>

<mosaic_0001>
module attributes {stable_mosaic.version = 11 : i64} {
  func.func @_matmul_bias_kernel(%arg0: i32, %arg1: memref<800x64xf32, #tpu.memory_space<vmem>>, %arg2: memref<64x32xf32, #tpu.memory_space<vmem>>, %arg3: memref<1x32xf32, #tpu.memory_space<vmem>>, %arg4: memref<800x32xf32, #tpu.memory_space<vmem>>) attributes {dimension_semantics = [#tpu.dimension_semantics<parallel>], iteration_bounds = array<i64: 1>, scalar_prefetch = 0 : i64, scratch_operands = 0 : i64, tpu.core_type = #tpu.core_type<tc>, window_params = [{transform_indices = @transform_0, window_bounds = array<i64: 800, 64>}, {pipeline_mode = #tpu.pipeline_mode<synchronous>, transform_indices = @transform_1, window_bounds = array<i64: 64, 32>}, {pipeline_mode = #tpu.pipeline_mode<synchronous>, transform_indices = @transform_2, window_bounds = array<i64: 1, 32>}, {transform_indices = @transform_3, window_bounds = array<i64: 800, 32>}]} {
    %c0 = arith.constant 0 : index
    %c0_0 = arith.constant 0 : index
    %0 = vector.load %arg1[%c0, %c0_0] : memref<800x64xf32, #tpu.memory_space<vmem>>, vector<800x64xf32>
    %c0_1 = arith.constant 0 : index
    %c0_2 = arith.constant 0 : index
    %1 = vector.load %arg2[%c0_1, %c0_2] : memref<64x32xf32, #tpu.memory_space<vmem>>, vector<64x32xf32>
    %cst = arith.constant dense<0.000000e+00> : vector<800x32xf32>
    %2 = tpu.matmul %0, %1, %cst {dimension_numbers = #tpu.dot_dimension_numbers<[1], [0], [0], [1], [0, 0, 1, 1], [], []>} : vector<800x64xf32>, vector<64x32xf32>, vector<800x32xf32> -> vector<800x32xf32>
    %c0_3 = arith.constant 0 : index
    %c0_4 = arith.constant 0 : index
    %3 = vector.load %arg3[%c0_3, %c0_4] : memref<1x32xf32, #tpu.memory_space<vmem>>, vector<1x32xf32>
    %4 = vector.broadcast %3 : vector<1x32xf32> to vector<800x32xf32>
    %5 = arith.addf %2, %4 : vector<800x32xf32>
    %cst_5 = arith.constant 0.000000e+00 : f32
    %6 = vector.broadcast %cst_5 : f32 to vector<800x32xf32>
    %7 = arith.maximumf %5, %6 : vector<800x32xf32>
    %c0_6 = arith.constant 0 : index
    %c0_7 = arith.constant 0 : index
    %8 = vector.load %arg4[%c0_6, %c0_7] : memref<800x32xf32, #tpu.memory_space<vmem>>, vector<800x32xf32>
    tpu.vector_store %arg4[%c0_6, %c0_7], %7 {strides = array<i32>} : memref<800x32xf32, #tpu.memory_space<vmem>>, vector<800x32xf32>,
    return
  }
  func.func @transform_0(%arg0: i32) -> (i32, i32) {
    %c0_i32 = arith.constant 0 : i32
    %c0_i32_0 = arith.constant 0 : i32
    return %arg0, %c0_i32 : i32, i32
  }
  func.func @transform_1(%arg0: i32) -> (i32, i32) {
    %c0_i32 = arith.constant 0 : i32
    %c0_i32_0 = arith.constant 0 : i32
    %c0_i32_1 = arith.constant 0 : i32
    return %c0_i32, %c0_i32_0 : i32, i32
  }
  func.func @transform_2(%arg0: i32) -> (i32, i32) {
    %c0_i32 = arith.constant 0 : i32
    %c0_i32_0 = arith.constant 0 : i32
    %c0_i32_1 = arith.constant 0 : i32
    return %c0_i32, %c0_i32_0 : i32, i32
  }
  func.func @transform_3(%arg0: i32) -> (i32, i32) {
    %c0_i32 = arith.constant 0 : i32
    %c0_i32_0 = arith.constant 0 : i32
    return %arg0, %c0_i32 : i32, i32
  }
}

module attributes {stable_mosaic.version = 11 : i64} {
  func.func @_matmul_bias_kernel(%arg0: i32, %arg1: memref<162x512xf32, #tpu.memory_space<vmem>>, %arg2: memref<512x64xf32, #tpu.memory_space<vmem>>, %arg3: memref<1x64xf32, #tpu.memory_space<vmem>>, %arg4: memref<162x64xf32, #tpu.memory_space<vmem>>) attributes {dimension_semantics = [#tpu.dimension_semantics<parallel>], iteration_bounds = array<i64: 1>, scalar_prefetch = 0 : i64, scratch_operands = 0 : i64, tpu.core_type = #tpu.core_type<tc>, window_params = [{transform_indices = @transform_0, window_bounds = array<i64: 162, 512>}, {pipeline_mode = #tpu.pipeline_mode<synchronous>, transform_indices = @transform_1, window_bounds = array<i64: 512, 64>}, {pipeline_mode = #tpu.pipeline_mode<synchronous>, transform_indices = @transform_2, window_bounds = array<i64: 1, 64>}, {transform_indices = @transform_3, window_bounds = array<i64: 162, 64>}]} {
    %c0 = arith.constant 0 : index
    %c0_0 = arith.constant 0 : index
    %0 = vector.load %arg1[%c0, %c0_0] : memref<162x512xf32, #tpu.memory_space<vmem>>, vector<162x512xf32>
    %c0_1 = arith.constant 0 : index
    %c0_2 = arith.constant 0 : index
    %1 = vector.load %arg2[%c0_1, %c0_2] : memref<512x64xf32, #tpu.memory_space<vmem>>, vector<512x64xf32>
    %cst = arith.constant dense<0.000000e+00> : vector<162x64xf32>
    %2 = tpu.matmul %0, %1, %cst {dimension_numbers = #tpu.dot_dimension_numbers<[1], [0], [0], [1], [0, 0, 1, 1], [], []>} : vector<162x512xf32>, vector<512x64xf32>, vector<162x64xf32> -> vector<162x64xf32>
    %c0_3 = arith.constant 0 : index
    %c0_4 = arith.constant 0 : index
    %3 = vector.load %arg3[%c0_3, %c0_4] : memref<1x64xf32, #tpu.memory_space<vmem>>, vector<1x64xf32>
    %4 = vector.broadcast %3 : vector<1x64xf32> to vector<162x64xf32>
    %5 = arith.addf %2, %4 : vector<162x64xf32>
    %cst_5 = arith.constant 0.000000e+00 : f32
    %6 = vector.broadcast %cst_5 : f32 to vector<162x64xf32>
    %7 = arith.maximumf %5, %6 : vector<162x64xf32>
    %c0_6 = arith.constant 0 : index
    %c0_7 = arith.constant 0 : index
    %8 = vector.load %arg4[%c0_6, %c0_7] : memref<162x64xf32, #tpu.memory_space<vmem>>, vector<162x64xf32>
    tpu.vector_store %arg4[%c0_6, %c0_7], %7 {strides = array<i32>} : memref<162x64xf32, #tpu.memory_space<vmem>>, vector<162x64xf32>,
    return
  }
  func.func @transform_0(%arg0: i32) -> (i32, i32) {
    %c0_i32 = arith.constant 0 : i32
    %c0_i32_0 = arith.constant 0 : i32
    return %arg0, %c0_i32 : i32, i32
  }
  func.func @transform_1(%arg0: i32) -> (i32, i32) {
    %c0_i32 = arith.constant 0 : i32
    %c0_i32_0 = arith.constant 0 : i32
    %c0_i32_1 = arith.constant 0 : i32
    return %c0_i32, %c0_i32_0 : i32, i32
  }
  func.func @transform_2(%arg0: i32) -> (i32, i32) {
    %c0_i32 = arith.constant 0 : i32
    %c0_i32_0 = arith.constant 0 : i32
    %c0_i32_1 = arith.constant 0 : i32
    return %c0_i32, %c0_i32_0 : i32, i32
  }
  func.func @transform_3(%arg0: i32) -> (i32, i32) {
    %c0_i32 = arith.constant 0 : i32
    %c0_i32_0 = arith.constant 0 : i32
    return %arg0, %c0_i32 : i32, i32
  }
}

module attributes {stable_mosaic.version = 11 : i64} {
  func.func @_matmul_bias_kernel(%arg0: i32, %arg1: memref<98x576xf32, #tpu.memory_space<vmem>>, %arg2: memref<576x64xf32, #tpu.memory_space<vmem>>, %arg3: memref<1x64xf32, #tpu.memory_space<vmem>>, %arg4: memref<98x64xbf16, #tpu.memory_space<vmem>>) attributes {dimension_semantics = [#tpu.dimension_semantics<parallel>], iteration_bounds = array<i64: 1>, scalar_prefetch = 0 : i64, scratch_operands = 0 : i64, tpu.core_type = #tpu.core_type<tc>, window_params = [{transform_indices = @transform_0, window_bounds = array<i64: 98, 576>}, {pipeline_mode = #tpu.pipeline_mode<synchronous>, transform_indices = @transform_1, window_bounds = array<i64: 576, 64>}, {pipeline_mode = #tpu.pipeline_mode<synchronous>, transform_indices = @transform_2, window_bounds = array<i64: 1, 64>}, {transform_indices = @transform_3, window_bounds = array<i64: 98, 64>}]} {
    %c0 = arith.constant 0 : index
    %c0_0 = arith.constant 0 : index
    %0 = vector.load %arg1[%c0, %c0_0] : memref<98x576xf32, #tpu.memory_space<vmem>>, vector<98x576xf32>
    %c0_1 = arith.constant 0 : index
    %c0_2 = arith.constant 0 : index
    %1 = vector.load %arg2[%c0_1, %c0_2] : memref<576x64xf32, #tpu.memory_space<vmem>>, vector<576x64xf32>
    %cst = arith.constant dense<0.000000e+00> : vector<98x64xf32>
    %2 = tpu.matmul %0, %1, %cst {dimension_numbers = #tpu.dot_dimension_numbers<[1], [0], [0], [1], [0, 0, 1, 1], [], []>} : vector<98x576xf32>, vector<576x64xf32>, vector<98x64xf32> -> vector<98x64xf32>
    %c0_3 = arith.constant 0 : index
    %c0_4 = arith.constant 0 : index
    %3 = vector.load %arg3[%c0_3, %c0_4] : memref<1x64xf32, #tpu.memory_space<vmem>>, vector<1x64xf32>
    %4 = vector.broadcast %3 : vector<1x64xf32> to vector<98x64xf32>
    %5 = arith.addf %2, %4 : vector<98x64xf32>
    %cst_5 = arith.constant 0.000000e+00 : f32
    %6 = vector.broadcast %cst_5 : f32 to vector<98x64xf32>
    %7 = arith.maximumf %5, %6 : vector<98x64xf32>
    %8 = arith.truncf %7 : vector<98x64xf32> to vector<98x64xbf16>
    %c0_6 = arith.constant 0 : index
    %c0_7 = arith.constant 0 : index
    %9 = vector.load %arg4[%c0_6, %c0_7] : memref<98x64xbf16, #tpu.memory_space<vmem>>, vector<98x64xbf16>
    tpu.vector_store %arg4[%c0_6, %c0_7], %8 {strides = array<i32>} : memref<98x64xbf16, #tpu.memory_space<vmem>>, vector<98x64xbf16>,
    return
  }
  func.func @transform_0(%arg0: i32) -> (i32, i32) {
    %c0_i32 = arith.constant 0 : i32
    %c0_i32_0 = arith.constant 0 : i32
    return %arg0, %c0_i32 : i32, i32
  }
  func.func @transform_1(%arg0: i32) -> (i32, i32) {
    %c0_i32 = arith.constant 0 : i32
    %c0_i32_0 = arith.constant 0 : i32
    %c0_i32_1 = arith.constant 0 : i32
    return %c0_i32, %c0_i32_0 : i32, i32
  }
  func.func @transform_2(%arg0: i32) -> (i32, i32) {
    %c0_i32 = arith.constant 0 : i32
    %c0_i32_0 = arith.constant 0 : i32
    %c0_i32_1 = arith.constant 0 : i32
    return %c0_i32, %c0_i32_0 : i32, i32
  }
  func.func @transform_3(%arg0: i32) -> (i32, i32) {
    %c0_i32 = arith.constant 0 : i32
    %c0_i32_0 = arith.constant 0 : i32
    return %arg0, %c0_i32 : i32, i32
  }
}

module attributes {stable_mosaic.version = 11 : i64} {
  func.func @_head_dueling_kernel(%arg0: memref<2x3136xbf16, #tpu.memory_space<vmem>>, %arg1: memref<3136x1024xbf16, #tpu.memory_space<vmem>>, %arg2: memref<1x1024xf32, #tpu.memory_space<vmem>>, %arg3: memref<512x6xf32, #tpu.memory_space<vmem>>, %arg4: memref<1x6xf32, #tpu.memory_space<vmem>>, %arg5: memref<512x1xf32, #tpu.memory_space<vmem>>, %arg6: memref<1x1xf32, #tpu.memory_space<vmem>>, %arg7: memref<2x6xf32, #tpu.memory_space<vmem>>) attributes {dimension_semantics = [], scalar_prefetch = 0 : i64, scratch_operands = 0 : i64, tpu.core_type = #tpu.core_type<tc>} {
    %c0 = arith.constant 0 : index
    %c0_0 = arith.constant 0 : index
    %0 = vector.load %arg0[%c0, %c0_0] : memref<2x3136xbf16, #tpu.memory_space<vmem>>, vector<2x3136xbf16>
    %c0_1 = arith.constant 0 : index
    %c0_2 = arith.constant 0 : index
    %1 = vector.load %arg1[%c0_1, %c0_2] : memref<3136x1024xbf16, #tpu.memory_space<vmem>>, vector<3136x1024xbf16>
    %cst = arith.constant dense<0.000000e+00> : vector<2x1024xf32>
    %2 = tpu.matmul %0, %1, %cst {dimension_numbers = #tpu.dot_dimension_numbers<[1], [0], [0], [1], [0, 0, 1, 1], [], []>} : vector<2x3136xbf16>, vector<3136x1024xbf16>, vector<2x1024xf32> -> vector<2x1024xf32>
    %c0_3 = arith.constant 0 : index
    %c0_4 = arith.constant 0 : index
    %3 = vector.load %arg2[%c0_3, %c0_4] : memref<1x1024xf32, #tpu.memory_space<vmem>>, vector<1x1024xf32>
    %4 = vector.broadcast %3 : vector<1x1024xf32> to vector<2x1024xf32>
    %5 = arith.addf %2, %4 : vector<2x1024xf32>
    %cst_5 = arith.constant 0.000000e+00 : f32
    %6 = vector.broadcast %cst_5 : f32 to vector<2x1024xf32>
    %7 = arith.maximumf %5, %6 : vector<2x1024xf32>
    %8 = vector.extract_strided_slice %7 {offsets = [0, 0], sizes = [2, 512], strides = [1, 1]} : vector<2x1024xf32> to vector<2x512xf32>
    %c0_6 = arith.constant 0 : index
    %c0_7 = arith.constant 0 : index
    %9 = vector.load %arg3[%c0_6, %c0_7] : memref<512x6xf32, #tpu.memory_space<vmem>>, vector<512x6xf32>
    %cst_8 = arith.constant dense<0.000000e+00> : vector<2x6xf32>
    %10 = tpu.matmul %8, %9, %cst_8 {dimension_numbers = #tpu.dot_dimension_numbers<[1], [0], [0], [1], [0, 0, 1, 1], [], []>} : vector<2x512xf32>, vector<512x6xf32>, vector<2x6xf32> -> vector<2x6xf32>
    %c0_9 = arith.constant 0 : index
    %c0_10 = arith.constant 0 : index
    %11 = vector.load %arg4[%c0_9, %c0_10] : memref<1x6xf32, #tpu.memory_space<vmem>>, vector<1x6xf32>
    %12 = vector.broadcast %11 : vector<1x6xf32> to vector<2x6xf32>
    %13 = arith.addf %10, %12 : vector<2x6xf32>
    %14 = vector.extract_strided_slice %7 {offsets = [0, 512], sizes = [2, 512], strides = [1, 1]} : vector<2x1024xf32> to vector<2x512xf32>
    %c0_11 = arith.constant 0 : index
    %c0_12 = arith.constant 0 : index
    %15 = vector.load %arg5[%c0_11, %c0_12] : memref<512x1xf32, #tpu.memory_space<vmem>>, vector<512x1xf32>
    %cst_13 = arith.constant dense<0.000000e+00> : vector<2x1xf32>
    %16 = tpu.matmul %14, %15, %cst_13 {dimension_numbers = #tpu.dot_dimension_numbers<[1], [0], [0], [1], [0, 0, 1, 1], [], []>} : vector<2x512xf32>, vector<512x1xf32>, vector<2x1xf32> -> vector<2x1xf32>
    %c0_14 = arith.constant 0 : index
    %c0_15 = arith.constant 0 : index
    %17 = vector.load %arg6[%c0_14, %c0_15] : memref<1x1xf32, #tpu.memory_space<vmem>>, vector<1x1xf32>
    %18 = vector.broadcast %17 : vector<1x1xf32> to vector<2x1xf32>
    %19 = arith.addf %16, %18 : vector<2x1xf32>
    %20 = vector.broadcast %19 : vector<2x1xf32> to vector<2x6xf32>
    %21 = arith.addf %20, %13 : vector<2x6xf32>
    %22 = vector.shape_cast %13 : vector<2x6xf32> to vector<1x2x6xf32>
    %cst_16 = arith.constant dense<0.000000e+00> : vector<1xf32>
    %23 = vector.multi_reduction <add>, %22, %cst_16 [1, 2] : vector<1x2x6xf32> to vector<1xf32>
    %24 = vector.shape_cast %23 : vector<1xf32> to vector<1x1x1xf32>
    %25 = vector.extract %24[0, 0, 0] : f32 from vector<1x1x1xf32>
    %cst_17 = arith.constant 1.200000e+01 : f32
    %26 = arith.divf %25, %cst_17 : f32
    %27 = vector.broadcast %26 : f32 to vector<2x6xf32>
    %28 = arith.subf %21, %27 : vector<2x6xf32>
    %c0_18 = arith.constant 0 : index
    %c0_19 = arith.constant 0 : index
    %29 = vector.load %arg7[%c0_18, %c0_19] : memref<2x6xf32, #tpu.memory_space<vmem>>, vector<2x6xf32>
    tpu.vector_store %arg7[%c0_18, %c0_19], %28 {strides = array<i32>} : memref<2x6xf32, #tpu.memory_space<vmem>>, vector<2x6xf32>,
    return
  }
}

</mosaic_0001>

<llo_original>
// kernel: forward.4
$region0: #{forward.4}
  #allocation0 [shape = 'u32[]', space=smem, size = 0x4, offset = 0x4, fixed_abs, tag = 'smem constant byte address 0x4 - core index']
  #allocation1 [shape = 'u32[144,128]{1,0:T(1,128)}', space=vmem, size = 0x12000, scoped, tag = 'internal scratch']
  %s0 = inlined_call_operand.vmem [shape: f32[800,64], index: 0, kind: input, shape index: {}]
  %s1 = inlined_call_operand.vmem [shape: f32[64,32], index: 1, kind: input, shape index: {}]
  %s2 = inlined_call_operand.vmem [shape: f32[1,32], index: 2, kind: input, shape index: {}]
  %s3 = inlined_call_operand.vmem [shape: f32[800,32], index: 3, kind: output, shape index: {}]
  %s4 = sld [smem:[#allocation0]]
  $region22: #{forward.4} parent=0
    _
  %s6 = ssub.s32 1, %s4
  %s7 = scalar_select 0, %s6, %s4
  // Predicated region
  $region2: #{forward.4} parent=0 // pred_check
    _
  $region3: #{forward.4} parent=0 // pred_check_branch
    %9 = sbr.rel (0) target = $region5
  $region4: #{forward.4} parent=0 // pred_region
    _
  $region5: #{forward.4} parent=0 // pred_fallthru
    _
  // Predicated region
  $region6: #{forward.4} parent=0 // pred_check
    _
  $region7: #{forward.4} parent=0 // pred_check_branch
    %11 = sbr.rel (0) target = $region9
  $region8: #{forward.4} parent=0 // pred_region
    _
  $region9: #{forward.4} parent=0 // pred_fallthru
    _
  // Predicated region
  $region10: #{forward.4} parent=0 // pred_check
    _
  $region11: #{forward.4} parent=0 // pred_check_branch
    %13 = sbr.rel (0) target = $region13
  $region12: #{forward.4} parent=0 // pred_region
    _
  $region13: #{forward.4} parent=0 // pred_fallthru
    _
  %v14 = vld [vmem:[%s0] sm:$0xff]
  %v15 = vld [vmem:[%s0 + $0x8] sm:$0xff]
  %v16 = vld [vmem:[%s0 + $0x10] sm:$0xff]
  %v17 = vld [vmem:[%s0 + $0x18] sm:$0xff]
  %v18 = vld [vmem:[%s0 + $0x20] sm:$0xff]
  %v19 = vld [vmem:[%s0 + $0x28] sm:$0xff]
  %v20 = vld [vmem:[%s0 + $0x30] sm:$0xff]
  %v21 = vld [vmem:[%s0 + $0x38] sm:$0xff]
  %v22 = vld [vmem:[%s0 + $0x40] sm:$0xff]
  %v23 = vld [vmem:[%s0 + $0x48] sm:$0xff]
  %v24 = vld [vmem:[%s0 + $0x50] sm:$0xff]
  %v25 = vld [vmem:[%s0 + $0x58] sm:$0xff]
  %v26 = vld [vmem:[%s0 + $0x60] sm:$0xff]
  %v27 = vld [vmem:[%s0 + $0x68] sm:$0xff]
  %v28 = vld [vmem:[%s0 + $0x70] sm:$0xff]
  %v29 = vld [vmem:[%s0 + $0x78] sm:$0xff]
  %v30 = vld [vmem:[%s0 + $0x80] sm:$0xff]
  %v31 = vld [vmem:[%s0 + $0x88] sm:$0xff]
  %v32 = vld [vmem:[%s0 + $0x90] sm:$0xff]
  %v33 = vld [vmem:[%s0 + $0x98] sm:$0xff]
  %v34 = vld [vmem:[%s0 + $0xa0] sm:$0xff]
  %v35 = vld [vmem:[%s0 + $0xa8] sm:$0xff]
  %v36 = vld [vmem:[%s0 + $0xb0] sm:$0xff]
  %v37 = vld [vmem:[%s0 + $0xb8] sm:$0xff]
  %v38 = vld [vmem:[%s0 + $0xc0] sm:$0xff]
  %v39 = vld [vmem:[%s0 + $0xc8] sm:$0xff]
  %v40 = vld [vmem:[%s0 + $0xd0] sm:$0xff]
  %v41 = vld [vmem:[%s0 + $0xd8] sm:$0xff]
  %v42 = vld [vmem:[%s0 + $0xe0] sm:$0xff]
  %v43 = vld [vmem:[%s0 + $0xe8] sm:$0xff]
  %v44 = vld [vmem:[%s0 + $0xf0] sm:$0xff]
  %v45 = vld [vmem:[%s0 + $0xf8] sm:$0xff]
  %v46 = vld [vmem:[%s0 + $0x100] sm:$0xff]
  %v47 = vld [vmem:[%s0 + $0x108] sm:$0xff]
  %v48 = vld [vmem:[%s0 + $0x110] sm:$0xff]
  %v49 = vld [vmem:[%s0 + $0x118] sm:$0xff]
  %v50 = vld [vmem:[%s0 + $0x120] sm:$0xff]
  %v51 = vld [vmem:[%s0 + $0x128] sm:$0xff]
  %v52 = vld [vmem:[%s0 + $0x130] sm:$0xff]
  %v53 = vld [vmem:[%s0 + $0x138] sm:$0xff]
  %v54 = vld [vmem:[%s0 + $0x140] sm:$0xff]
  %v55 = vld [vmem:[%s0 + $0x148] sm:$0xff]
  %v56 = vld [vmem:[%s0 + $0x150] sm:$0xff]
  %v57 = vld [vmem:[%s0 + $0x158] sm:$0xff]
  %v58 = vld [vmem:[%s0 + $0x160] sm:$0xff]
  %v59 = vld [vmem:[%s0 + $0x168] sm:$0xff]
  %v60 = vld [vmem:[%s0 + $0x170] sm:$0xff]
  %v61 = vld [vmem:[%s0 + $0x178] sm:$0xff]
  %v62 = vld [vmem:[%s0 + $0x180] sm:$0xff]
  %v63 = vld [vmem:[%s0 + $0x188] sm:$0xff]
  %v64 = vld [vmem:[%s0 + $0x190] sm:$0xff]
  %v65 = vld [vmem:[%s0 + $0x198] sm:$0xff]
  %v66 = vld [vmem:[%s0 + $0x1a0] sm:$0xff]
  %v67 = vld [vmem:[%s0 + $0x1a8] sm:$0xff]
  %v68 = vld [vmem:[%s0 + $0x1b0] sm:$0xff]
  %v69 = vld [vmem:[%s0 + $0x1b8] sm:$0xff]
  %v70 = vld [vmem:[%s0 + $0x1c0] sm:$0xff]
  %v71 = vld [vmem:[%s0 + $0x1c8] sm:$0xff]
  %v72 = vld [vmem:[%s0 + $0x1d0] sm:$0xff]
  %v73 = vld [vmem:[%s0 + $0x1d8] sm:$0xff]
  %v74 = vld [vmem:[%s0 + $0x1e0] sm:$0xff]
  %v75 = vld [vmem:[%s0 + $0x1e8] sm:$0xff]
  %v76 = vld [vmem:[%s0 + $0x1f0] sm:$0xff]
  %v77 = vld [vmem:[%s0 + $0x1f8] sm:$0xff]
  %v78 = vld [vmem:[%s0 + $0x200] sm:$0xff]
  %v79 = vld [vmem:[%s0 + $0x208] sm:$0xff]
  %v80 = vld [vmem:[%s0 + $0x210] sm:$0xff]
  %v81 = vld [vmem:[%s0 + $0x218] sm:$0xff]
  %v82 = vld [vmem:[%s0 + $0x220] sm:$0xff]
  %v83 = vld [vmem:[%s0 + $0x228] sm:$0xff]
  %v84 = vld [vmem:[%s0 + $0x230] sm:$0xff]
  %v85 = vld [vmem:[%s0 + $0x238] sm:$0xff]
  %v86 = vld [vmem:[%s0 + $0x240] sm:$0xff]
  %v87 = vld [vmem:[%s0 + $0x248] sm:$0xff]
  %v88 = vld [vmem:[%s0 + $0x250] sm:$0xff]
  %v89 = vld [vmem:[%s0 + $0x258] sm:$0xff]
  %v90 = vld [vmem:[%s0 + $0x260] sm:$0xff]
  %v91 = vld [vmem:[%s0 + $0x268] sm:$0xff]
  %v92 = vld [vmem:[%s0 + $0x270] sm:$0xff]
  %v93 = vld [vmem:[%s0 + $0x278] sm:$0xff]
  %v94 = vld [vmem:[%s0 + $0x280] sm:$0xff]
  %v95 = vld [vmem:[%s0 + $0x288] sm:$0xff]
  %v96 = vld [vmem:[%s0 + $0x290] sm:$0xff]
  %v97 = vld [vmem:[%s0 + $0x298] sm:$0xff]
  %v98 = vld [vmem:[%s0 + $0x2a0] sm:$0xff]
  %v99 = vld [vmem:[%s0 + $0x2a8] sm:$0xff]
  %v100 = vld [vmem:[%s0 + $0x2b0] sm:$0xff]
  %v101 = vld [vmem:[%s0 + $0x2b8] sm:$0xff]
  %v102 = vld [vmem:[%s0 + $0x2c0] sm:$0xff]
  %v103 = vld [vmem:[%s0 + $0x2c8] sm:$0xff]
  %v104 = vld [vmem:[%s0 + $0x2d0] sm:$0xff]
  %v105 = vld [vmem:[%s0 + $0x2d8] sm:$0xff]
  %v106 = vld [vmem:[%s0 + $0x2e0] sm:$0xff]
  %v107 = vld [vmem:[%s0 + $0x2e8] sm:$0xff]
  %v108 = vld [vmem:[%s0 + $0x2f0] sm:$0xff]
  %v109 = vld [vmem:[%s0 + $0x2f8] sm:$0xff]
  %v110 = vld [vmem:[%s0 + $0x300] sm:$0xff]
  %v111 = vld [vmem:[%s0 + $0x308] sm:$0xff]
  %v112 = vld [vmem:[%s0 + $0x310] sm:$0xff]
  %v113 = vld [vmem:[%s0 + $0x318] sm:$0xff]
  %v114 = vld [vmem:[%s1] sm:$0xff]
  %v115 = vld [vmem:[%s1 + $0x8] sm:$0xff]
  %v116 = vld [vmem:[%s1 + $0x10] sm:$0xff]
  %v117 = vld [vmem:[%s1 + $0x18] sm:$0xff]
  %v118 = vld [vmem:[%s1 + $0x20] sm:$0xff]
  %v119 = vld [vmem:[%s1 + $0x28] sm:$0xff]
  %v120 = vld [vmem:[%s1 + $0x30] sm:$0xff]
  %v121 = vld [vmem:[%s1 + $0x38] sm:$0xff]
  %v122 = vld [vmem:[%s2] sm:$0x1]
  %v124 = vlaneseq
  %v125 = vshrl.u32 %v124, 7
  %v126 = vsub.s32 0, %v125
  %v127 = vrot.slane %v122, %v126
  %vm129 = vcmask 523264
  %v131 = vsel %vm129, %v14, 0
  %v134 = vsel %vm129, %v15, 0
  %v137 = vsel %vm129, %v16, 0
  %v140 = vsel %vm129, %v17, 0
  %v143 = vsel %vm129, %v18, 0
  %v146 = vsel %vm129, %v19, 0
  %v149 = vsel %vm129, %v20, 0
  %v152 = vsel %vm129, %v21, 0
  %v155 = vsel %vm129, %v22, 0
  %v158 = vsel %vm129, %v23, 0
  %v161 = vsel %vm129, %v24, 0
  %v164 = vsel %vm129, %v25, 0
  %v167 = vsel %vm129, %v26, 0
  %v170 = vsel %vm129, %v27, 0
  %v173 = vsel %vm129, %v28, 0
  %v176 = vsel %vm129, %v29, 0
  %v179 = vsel %vm129, %v30, 0
  %v182 = vsel %vm129, %v31, 0
  %v185 = vsel %vm129, %v32, 0
  %v188 = vsel %vm129, %v33, 0
  %v191 = vsel %vm129, %v34, 0
  %v194 = vsel %vm129, %v35, 0
  %v197 = vsel %vm129, %v36, 0
  %v200 = vsel %vm129, %v37, 0
  %v203 = vsel %vm129, %v38, 0
  %v206 = vsel %vm129, %v39, 0
  %v209 = vsel %vm129, %v40, 0
  %v212 = vsel %vm129, %v41, 0
  %v215 = vsel %vm129, %v42, 0
  %v218 = vsel %vm129, %v43, 0
  %v221 = vsel %vm129, %v44, 0
  %v224 = vsel %vm129, %v45, 0
  %v227 = vsel %vm129, %v46, 0
  %v230 = vsel %vm129, %v47, 0
  %v233 = vsel %vm129, %v48, 0
  %v236 = vsel %vm129, %v49, 0
  %v239 = vsel %vm129, %v50, 0
  %v242 = vsel %vm129, %v51, 0
  %v245 = vsel %vm129, %v52, 0
  %v248 = vsel %vm129, %v53, 0
  %v251 = vsel %vm129, %v54, 0
  %v254 = vsel %vm129, %v55, 0
  %v257 = vsel %vm129, %v56, 0
  %v260 = vsel %vm129, %v57, 0
  %v263 = vsel %vm129, %v58, 0
  %v266 = vsel %vm129, %v59, 0
  %v269 = vsel %vm129, %v60, 0
  %v272 = vsel %vm129, %v61, 0
  %v275 = vsel %vm129, %v62, 0
  %v278 = vsel %vm129, %v63, 0
  %v281 = vsel %vm129, %v64, 0
  %v284 = vsel %vm129, %v65, 0
  %v287 = vsel %vm129, %v66, 0
  %v290 = vsel %vm129, %v67, 0
  %v293 = vsel %vm129, %v68, 0
  %v296 = vsel %vm129, %v69, 0
  %v299 = vsel %vm129, %v70, 0
  %v302 = vsel %vm129, %v71, 0
  %v305 = vsel %vm129, %v72, 0
  %v308 = vsel %vm129, %v73, 0
  %v311 = vsel %vm129, %v74, 0
  %v314 = vsel %vm129, %v75, 0
  %v317 = vsel %vm129, %v76, 0
  %v320 = vsel %vm129, %v77, 0
  %v323 = vsel %vm129, %v78, 0
  %v326 = vsel %vm129, %v79, 0
  %v329 = vsel %vm129, %v80, 0
  %v332 = vsel %vm129, %v81, 0
  %v335 = vsel %vm129, %v82, 0
  %v338 = vsel %vm129, %v83, 0
  %v341 = vsel %vm129, %v84, 0
  %v344 = vsel %vm129, %v85, 0
  %v347 = vsel %vm129, %v86, 0
  %v350 = vsel %vm129, %v87, 0
  %v353 = vsel %vm129, %v88, 0
  %v356 = vsel %vm129, %v89, 0
  %v359 = vsel %vm129, %v90, 0
  %v362 = vsel %vm129, %v91, 0
  %v365 = vsel %vm129, %v92, 0
  %v368 = vsel %vm129, %v93, 0
  %v371 = vsel %vm129, %v94, 0
  %v374 = vsel %vm129, %v95, 0
  %v377 = vsel %vm129, %v96, 0
  %v380 = vsel %vm129, %v97, 0
  %v383 = vsel %vm129, %v98, 0
  %v386 = vsel %vm129, %v99, 0
  %v389 = vsel %vm129, %v100, 0
  %v392 = vsel %vm129, %v101, 0
  %v395 = vsel %vm129, %v102, 0
  %v398 = vsel %vm129, %v103, 0
  %v401 = vsel %vm129, %v104, 0
  %v404 = vsel %vm129, %v105, 0
  %v407 = vsel %vm129, %v106, 0
  %v410 = vsel %vm129, %v107, 0
  %v413 = vsel %vm129, %v108, 0
  %v416 = vsel %vm129, %v109, 0
  %v419 = vsel %vm129, %v110, 0
  %v422 = vsel %vm129, %v111, 0
  %v425 = vsel %vm129, %v112, 0
  %v428 = vsel %vm129, %v113, 0
  %430 = vmatprep.subr.mxu0 0.0
  %431 = vmatpush1.msra.mxu0 0.0
  %432 = vmatprep.subr.mxu0 0.0
  %433 = vmatpush1.msra.mxu0 0.0
  %434 = vmatprep.subr.mxu0 0.0
  %435 = vmatpush1.msra.mxu0 0.0
  %436 = vmatprep.subr.mxu0 0.0
  %437 = vmatpush1.msra.mxu0 0.0
  %438 = vmatprep.subr.mxu0 0.0
  %439 = vmatpush1.msra.mxu0 0.0
  %440 = vmatprep.subr.mxu0 0.0
  %441 = vmatpush1.msra.mxu0 0.0
  %442 = vmatprep.subr.mxu0 0.0
  %443 = vmatpush1.msra.mxu0 0.0
  %444 = vmatprep.subr.mxu0 0.0
  %445 = vmatpush1.msra.mxu0 0.0
  %446 = vmatprep.subr.mxu0 0.0
  %447 = vmatpush1.msra.mxu0 %v121
  %448 = vmatprep.subr.mxu0 0.0
  %449 = vmatpush1.msra.mxu0 %v120
  %450 = vmatprep.subr.mxu0 0.0
  %451 = vmatpush1.msra.mxu0 %v119
  %452 = vmatprep.subr.mxu0 0.0
  %453 = vmatpush1.msra.mxu0 %v118
  %454 = vmatprep.subr.mxu0 0.0
  %455 = vmatpush1.msra.mxu0 %v117
  %456 = vmatprep.subr.mxu0 0.0
  %457 = vmatpush1.msra.mxu0 %v116
  %458 = vmatprep.subr.mxu0 0.0
  %459 = vmatpush1.msra.mxu0 %v115
  %460 = vmatprep.subr.mxu0 0.0
  %461 = vmatpush1.msra.mxu0 %v114
  %462 = vmatprep.subr.mxu0 0.0
  %463 = vmatpush2.msra.mxu0 0.0
  %464 = vmatprep.subr.mxu0 0.0
  %465 = vmatpush2.msra.mxu0 0.0
  %466 = vmatprep.subr.mxu0 0.0
  %467 = vmatpush2.msra.mxu0 0.0
  %468 = vmatprep.subr.mxu0 0.0
  %469 = vmatpush2.msra.mxu0 0.0
  %470 = vmatprep.subr.mxu0 0.0
  %471 = vmatpush2.msra.mxu0 0.0
  %472 = vmatprep.subr.mxu0 0.0
  %473 = vmatpush2.msra.mxu0 0.0
  %474 = vmatprep.subr.mxu0 0.0
  %475 = vmatpush2.msra.mxu0 0.0
  %476 = vmatprep.subr.mxu0 0.0
  %477 = vmatpush2.msra.mxu0 0.0
  %478 = vmatprep.subr.mxu0 0.0
  %479 = vmatpush2.msra.mxu0 0.0
  %480 = vmatprep.subr.mxu0 0.0
  %481 = vmatpush2.msra.mxu0 0.0
  %482 = vmatprep.subr.mxu0 0.0
  %483 = vmatpush2.msra.mxu0 0.0
  %484 = vmatprep.subr.mxu0 0.0
  %485 = vmatpush2.msra.mxu0 0.0
  %486 = vmatprep.subr.mxu0 0.0
  %487 = vmatpush2.msra.mxu0 0.0
  %488 = vmatprep.subr.mxu0 0.0
  %489 = vmatpush2.msra.mxu0 0.0
  %490 = vmatprep.subr.mxu0 0.0
  %491 = vmatpush2.msra.mxu0 0.0
  %492 = vmatprep.subr.mxu0 0.0
  %493 = vmatpush2.msra.mxu0 0.0
  %494 = vmatprep.mubr.f32.mxu0 0.0
  %495 = vmatmul.mubr.f32.gmra.mxu0 %v131
  %v496 = vpop.f32.mrf.mxu0
  %v497 = vadd.f32 %v127, %v496
  %v498 = vpop.f32.mrf.mxu0
  %499 = vmatprep.mubr.f32.mxu0 0.0
  %500 = vmatmul.mubr.f32.gmra.mxu0 %v134
  %v501 = vpop.f32.mrf.mxu0
  %v502 = vadd.f32 %v127, %v501
  %v503 = vpop.f32.mrf.mxu0
  %504 = vmatprep.mubr.f32.mxu0 0.0
  %505 = vmatmul.mubr.f32.gmra.mxu0 %v137
  %v506 = vpop.f32.mrf.mxu0
  %v507 = vadd.f32 %v127, %v506
  %v508 = vpop.f32.mrf.mxu0
  %509 = vmatprep.mubr.f32.mxu0 0.0
  %510 = vmatmul.mubr.f32.gmra.mxu0 %v140
  %v511 = vpop.f32.mrf.mxu0
  %v512 = vadd.f32 %v127, %v511
  %v513 = vpop.f32.mrf.mxu0
  %514 = vmatprep.mubr.f32.mxu0 0.0
  %515 = vmatmul.mubr.f32.gmra.mxu0 %v143
  %v516 = vpop.f32.mrf.mxu0
  %v517 = vadd.f32 %v127, %v516
  %v518 = vpop.f32.mrf.mxu0
  %519 = vmatprep.mubr.f32.mxu0 0.0
  %520 = vmatmul.mubr.f32.gmra.mxu0 %v146
  %v521 = vpop.f32.mrf.mxu0
  %v522 = vadd.f32 %v127, %v521
  %v523 = vpop.f32.mrf.mxu0
  %524 = vmatprep.mubr.f32.mxu0 0.0
  %525 = vmatmul.mubr.f32.gmra.mxu0 %v149
  %v526 = vpop.f32.mrf.mxu0
  %v527 = vadd.f32 %v127, %v526
  %v528 = vpop.f32.mrf.mxu0
  %529 = vmatprep.mubr.f32.mxu0 0.0
  %530 = vmatmul.mubr.f32.gmra.mxu0 %v152
  %v531 = vpop.f32.mrf.mxu0
  %v532 = vadd.f32 %v127, %v531
  %v533 = vpop.f32.mrf.mxu0
  %534 = vmatprep.mubr.f32.mxu0 0.0
  %535 = vmatmul.mubr.f32.gmra.mxu0 %v155
  %v536 = vpop.f32.mrf.mxu0
  %v537 = vadd.f32 %v127, %v536
  %v538 = vpop.f32.mrf.mxu0
  %539 = vmatprep.mubr.f32.mxu0 0.0
  %540 = vmatmul.mubr.f32.gmra.mxu0 %v158
  %v541 = vpop.f32.mrf.mxu0
  %v542 = vadd.f32 %v127, %v541
  %v543 = vpop.f32.mrf.mxu0
  %544 = vmatprep.mubr.f32.mxu0 0.0
  %545 = vmatmul.mubr.f32.gmra.mxu0 %v161
  %v546 = vpop.f32.mrf.mxu0
  %v547 = vadd.f32 %v127, %v546
  %v548 = vpop.f32.mrf.mxu0
  %549 = vmatprep.mubr.f32.mxu0 0.0
  %550 = vmatmul.mubr.f32.gmra.mxu0 %v164
  %v551 = vpop.f32.mrf.mxu0
  %v552 = vadd.f32 %v127, %v551
  %v553 = vpop.f32.mrf.mxu0
  %554 = vmatprep.mubr.f32.mxu0 0.0
  %555 = vmatmul.mubr.f32.gmra.mxu0 %v167
  %v556 = vpop.f32.mrf.mxu0
  %v557 = vadd.f32 %v127, %v556
  %v558 = vpop.f32.mrf.mxu0
  %559 = vmatprep.mubr.f32.mxu0 0.0
  %560 = vmatmul.mubr.f32.gmra.mxu0 %v170
  %v561 = vpop.f32.mrf.mxu0
  %v562 = vadd.f32 %v127, %v561
  %v563 = vpop.f32.mrf.mxu0
  %564 = vmatprep.mubr.f32.mxu0 0.0
  %565 = vmatmul.mubr.f32.gmra.mxu0 %v173
  %v566 = vpop.f32.mrf.mxu0
  %v567 = vadd.f32 %v127, %v566
  %v568 = vpop.f32.mrf.mxu0
  %569 = vmatprep.mubr.f32.mxu0 0.0
  %570 = vmatmul.mubr.f32.gmra.mxu0 %v176
  %v571 = vpop.f32.mrf.mxu0
  %v572 = vadd.f32 %v127, %v571
  %v573 = vpop.f32.mrf.mxu0
  %574 = vmatprep.mubr.f32.mxu0 0.0
  %575 = vmatmul.mubr.f32.gmra.mxu0 %v179
  %v576 = vpop.f32.mrf.mxu0
  %v577 = vadd.f32 %v127, %v576
  %v578 = vpop.f32.mrf.mxu0
  %579 = vmatprep.mubr.f32.mxu0 0.0
  %580 = vmatmul.mubr.f32.gmra.mxu0 %v182
  %v581 = vpop.f32.mrf.mxu0
  %v582 = vadd.f32 %v127, %v581
  %v583 = vpop.f32.mrf.mxu0
  %584 = vmatprep.mubr.f32.mxu0 0.0
  %585 = vmatmul.mubr.f32.gmra.mxu0 %v185
  %v586 = vpop.f32.mrf.mxu0
  %v587 = vadd.f32 %v127, %v586
  %v588 = vpop.f32.mrf.mxu0
  %589 = vmatprep.mubr.f32.mxu0 0.0
  %590 = vmatmul.mubr.f32.gmra.mxu0 %v188
  %v591 = vpop.f32.mrf.mxu0
  %v592 = vadd.f32 %v127, %v591
  %v593 = vpop.f32.mrf.mxu0
  %594 = vmatprep.mubr.f32.mxu0 0.0
  %595 = vmatmul.mubr.f32.gmra.mxu0 %v191
  %v596 = vpop.f32.mrf.mxu0
  %v597 = vadd.f32 %v127, %v596
  %v598 = vpop.f32.mrf.mxu0
  %599 = vmatprep.mubr.f32.mxu0 0.0
  %600 = vmatmul.mubr.f32.gmra.mxu0 %v194
  %v601 = vpop.f32.mrf.mxu0
  %v602 = vadd.f32 %v127, %v601
  %v603 = vpop.f32.mrf.mxu0
  %604 = vmatprep.mubr.f32.mxu0 0.0
  %605 = vmatmul.mubr.f32.gmra.mxu0 %v197
  %v606 = vpop.f32.mrf.mxu0
  %v607 = vadd.f32 %v127, %v606
  %v608 = vpop.f32.mrf.mxu0
  %609 = vmatprep.mubr.f32.mxu0 0.0
  %610 = vmatmul.mubr.f32.gmra.mxu0 %v200
  %v611 = vpop.f32.mrf.mxu0
  %v612 = vadd.f32 %v127, %v611
  %v613 = vpop.f32.mrf.mxu0
  %614 = vmatprep.mubr.f32.mxu0 0.0
  %615 = vmatmul.mubr.f32.gmra.mxu0 %v203
  %v616 = vpop.f32.mrf.mxu0
  %v617 = vadd.f32 %v127, %v616
  %v618 = vpop.f32.mrf.mxu0
  %619 = vmatprep.mubr.f32.mxu0 0.0
  %620 = vmatmul.mubr.f32.gmra.mxu0 %v206
  %v621 = vpop.f32.mrf.mxu0
  %v622 = vadd.f32 %v127, %v621
  %v623 = vpop.f32.mrf.mxu0
  %624 = vmatprep.mubr.f32.mxu0 0.0
  %625 = vmatmul.mubr.f32.gmra.mxu0 %v209
  %v626 = vpop.f32.mrf.mxu0
  %v627 = vadd.f32 %v127, %v626
  %v628 = vpop.f32.mrf.mxu0
  %629 = vmatprep.mubr.f32.mxu0 0.0
  %630 = vmatmul.mubr.f32.gmra.mxu0 %v212
  %v631 = vpop.f32.mrf.mxu0
  %v632 = vadd.f32 %v127, %v631
  %v633 = vpop.f32.mrf.mxu0
  %634 = vmatprep.mubr.f32.mxu0 0.0
  %635 = vmatmul.mubr.f32.gmra.mxu0 %v215
  %v636 = vpop.f32.mrf.mxu0
  %v637 = vadd.f32 %v127, %v636
  %v638 = vpop.f32.mrf.mxu0
  %639 = vmatprep.mubr.f32.mxu0 0.0
  %640 = vmatmul.mubr.f32.gmra.mxu0 %v218
  %v641 = vpop.f32.mrf.mxu0
  %v642 = vadd.f32 %v127, %v641
  %v643 = vpop.f32.mrf.mxu0
  %644 = vmatprep.mubr.f32.mxu0 0.0
  %645 = vmatmul.mubr.f32.gmra.mxu0 %v221
  %v646 = vpop.f32.mrf.mxu0
  %v647 = vadd.f32 %v127, %v646
  %v648 = vpop.f32.mrf.mxu0
  %649 = vmatprep.mubr.f32.mxu0 0.0
  %650 = vmatmul.mubr.f32.gmra.mxu0 %v224
  %v651 = vpop.f32.mrf.mxu0
  %v652 = vadd.f32 %v127, %v651
  %v653 = vpop.f32.mrf.mxu0
  %654 = vmatprep.mubr.f32.mxu0 0.0
  %655 = vmatmul.mubr.f32.gmra.mxu0 %v227
  %v656 = vpop.f32.mrf.mxu0
  %v657 = vadd.f32 %v127, %v656
  %v658 = vpop.f32.mrf.mxu0
  %659 = vmatprep.mubr.f32.mxu0 0.0
  %660 = vmatmul.mubr.f32.gmra.mxu0 %v230
  %v661 = vpop.f32.mrf.mxu0
  %v662 = vadd.f32 %v127, %v661
  %v663 = vpop.f32.mrf.mxu0
  %664 = vmatprep.mubr.f32.mxu0 0.0
  %665 = vmatmul.mubr.f32.gmra.mxu0 %v233
  %v666 = vpop.f32.mrf.mxu0
  %v667 = vadd.f32 %v127, %v666
  %v668 = vpop.f32.mrf.mxu0
  %669 = vmatprep.mubr.f32.mxu0 0.0
  %670 = vmatmul.mubr.f32.gmra.mxu0 %v236
  %v671 = vpop.f32.mrf.mxu0
  %v672 = vadd.f32 %v127, %v671
  %v673 = vpop.f32.mrf.mxu0
  %674 = vmatprep.mubr.f32.mxu0 0.0
  %675 = vmatmul.mubr.f32.gmra.mxu0 %v239
  %v676 = vpop.f32.mrf.mxu0
  %v677 = vadd.f32 %v127, %v676
  %v678 = vpop.f32.mrf.mxu0
  %679 = vmatprep.mubr.f32.mxu0 0.0
  %680 = vmatmul.mubr.f32.gmra.mxu0 %v242
  %v681 = vpop.f32.mrf.mxu0
  %v682 = vadd.f32 %v127, %v681
  %v683 = vpop.f32.mrf.mxu0
  %684 = vmatprep.mubr.f32.mxu0 0.0
  %685 = vmatmul.mubr.f32.gmra.mxu0 %v245
  %v686 = vpop.f32.mrf.mxu0
  %v687 = vadd.f32 %v127, %v686
  %v688 = vpop.f32.mrf.mxu0
  %689 = vmatprep.mubr.f32.mxu0 0.0
  %690 = vmatmul.mubr.f32.gmra.mxu0 %v248
  %v691 = vpop.f32.mrf.mxu0
  %v692 = vadd.f32 %v127, %v691
  %v693 = vpop.f32.mrf.mxu0
  %694 = vmatprep.mubr.f32.mxu0 0.0
  %695 = vmatmul.mubr.f32.gmra.mxu0 %v251
  %v696 = vpop.f32.mrf.mxu0
  %v697 = vadd.f32 %v127, %v696
  %v698 = vpop.f32.mrf.mxu0
  %699 = vmatprep.mubr.f32.mxu0 0.0
  %700 = vmatmul.mubr.f32.gmra.mxu0 %v254
  %v701 = vpop.f32.mrf.mxu0
  %v702 = vadd.f32 %v127, %v701
  %v703 = vpop.f32.mrf.mxu0
  %704 = vmatprep.mubr.f32.mxu0 0.0
  %705 = vmatmul.mubr.f32.gmra.mxu0 %v257
  %v706 = vpop.f32.mrf.mxu0
  %v707 = vadd.f32 %v127, %v706
  %v708 = vpop.f32.mrf.mxu0
  %709 = vmatprep.mubr.f32.mxu0 0.0
  %710 = vmatmul.mubr.f32.gmra.mxu0 %v260
  %v711 = vpop.f32.mrf.mxu0
  %v712 = vadd.f32 %v127, %v711
  %v713 = vpop.f32.mrf.mxu0
  %714 = vmatprep.mubr.f32.mxu0 0.0
  %715 = vmatmul.mubr.f32.gmra.mxu0 %v263
  %v716 = vpop.f32.mrf.mxu0
  %v717 = vadd.f32 %v127, %v716
  %v718 = vpop.f32.mrf.mxu0
  %719 = vmatprep.mubr.f32.mxu0 0.0
  %720 = vmatmul.mubr.f32.gmra.mxu0 %v266
  %v721 = vpop.f32.mrf.mxu0
  %v722 = vadd.f32 %v127, %v721
  %v723 = vpop.f32.mrf.mxu0
  %724 = vmatprep.mubr.f32.mxu0 0.0
  %725 = vmatmul.mubr.f32.gmra.mxu0 %v269
  %v726 = vpop.f32.mrf.mxu0
  %v727 = vadd.f32 %v127, %v726
  %v728 = vpop.f32.mrf.mxu0
  %729 = vmatprep.mubr.f32.mxu0 0.0
  %730 = vmatmul.mubr.f32.gmra.mxu0 %v272
  %v731 = vpop.f32.mrf.mxu0
  %v732 = vadd.f32 %v127, %v731
  %v733 = vpop.f32.mrf.mxu0
  %734 = vmatprep.mubr.f32.mxu0 0.0
  %735 = vmatmul.mubr.f32.gmra.mxu0 %v275
  %v736 = vpop.f32.mrf.mxu0
  %v737 = vadd.f32 %v127, %v736
  %v738 = vpop.f32.mrf.mxu0
  %739 = vmatprep.mubr.f32.mxu0 0.0
  %740 = vmatmul.mubr.f32.gmra.mxu0 %v278
  %v741 = vpop.f32.mrf.mxu0
  %v742 = vadd.f32 %v127, %v741
  %v743 = vpop.f32.mrf.mxu0
  %744 = vmatprep.mubr.f32.mxu0 0.0
  %745 = vmatmul.mubr.f32.gmra.mxu0 %v281
  %v746 = vpop.f32.mrf.mxu0
  %v747 = vadd.f32 %v127, %v746
  %v748 = vpop.f32.mrf.mxu0
  %749 = vmatprep.mubr.f32.mxu0 0.0
  %750 = vmatmul.mubr.f32.gmra.mxu0 %v284
  %v751 = vpop.f32.mrf.mxu0
  %v752 = vadd.f32 %v127, %v751
  %v753 = vpop.f32.mrf.mxu0
  %754 = vmatprep.mubr.f32.mxu0 0.0
  %755 = vmatmul.mubr.f32.gmra.mxu0 %v287
  %v756 = vpop.f32.mrf.mxu0
  %v757 = vadd.f32 %v127, %v756
  %v758 = vpop.f32.mrf.mxu0
  %759 = vmatprep.mubr.f32.mxu0 0.0
  %760 = vmatmul.mubr.f32.gmra.mxu0 %v290
  %v761 = vpop.f32.mrf.mxu0
  %v762 = vadd.f32 %v127, %v761
  %v763 = vpop.f32.mrf.mxu0
  %764 = vmatprep.mubr.f32.mxu0 0.0
  %765 = vmatmul.mubr.f32.gmra.mxu0 %v293
  %v766 = vpop.f32.mrf.mxu0
  %v767 = vadd.f32 %v127, %v766
  %v768 = vpop.f32.mrf.mxu0
  %769 = vmatprep.mubr.f32.mxu0 0.0
  %770 = vmatmul.mubr.f32.gmra.mxu0 %v296
  %v771 = vpop.f32.mrf.mxu0
  %v772 = vadd.f32 %v127, %v771
  %v773 = vpop.f32.mrf.mxu0
  %774 = vmatprep.mubr.f32.mxu0 0.0
  %775 = vmatmul.mubr.f32.gmra.mxu0 %v299
  %v776 = vpop.f32.mrf.mxu0
  %v777 = vadd.f32 %v127, %v776
  %v778 = vpop.f32.mrf.mxu0
  %779 = vmatprep.mubr.f32.mxu0 0.0
  %780 = vmatmul.mubr.f32.gmra.mxu0 %v302
  %v781 = vpop.f32.mrf.mxu0
  %v782 = vadd.f32 %v127, %v781
  %v783 = vpop.f32.mrf.mxu0
  %784 = vmatprep.mubr.f32.mxu0 0.0
  %785 = vmatmul.mubr.f32.gmra.mxu0 %v305
  %v786 = vpop.f32.mrf.mxu0
  %v787 = vadd.f32 %v127, %v786
  %v788 = vpop.f32.mrf.mxu0
  %789 = vmatprep.mubr.f32.mxu0 0.0
  %790 = vmatmul.mubr.f32.gmra.mxu0 %v308
  %v791 = vpop.f32.mrf.mxu0
  %v792 = vadd.f32 %v127, %v791
  %v793 = vpop.f32.mrf.mxu0
  %794 = vmatprep.mubr.f32.mxu0 0.0
  %795 = vmatmul.mubr.f32.gmra.mxu0 %v311
  %v796 = vpop.f32.mrf.mxu0
  %v797 = vadd.f32 %v127, %v796
  %v798 = vpop.f32.mrf.mxu0
  %799 = vmatprep.mubr.f32.mxu0 0.0
  %800 = vmatmul.mubr.f32.gmra.mxu0 %v314
  %v801 = vpop.f32.mrf.mxu0
  %v802 = vadd.f32 %v127, %v801
  %v803 = vpop.f32.mrf.mxu0
  %804 = vmatprep.mubr.f32.mxu0 0.0
  %805 = vmatmul.mubr.f32.gmra.mxu0 %v317
  %v806 = vpop.f32.mrf.mxu0
  %v807 = vadd.f32 %v127, %v806
  %v808 = vpop.f32.mrf.mxu0
  %809 = vmatprep.mubr.f32.mxu0 0.0
  %810 = vmatmul.mubr.f32.gmra.mxu0 %v320
  %v811 = vpop.f32.mrf.mxu0
  %v812 = vadd.f32 %v127, %v811
  %v813 = vpop.f32.mrf.mxu0
  %814 = vmatprep.mubr.f32.mxu0 0.0
  %815 = vmatmul.mubr.f32.gmra.mxu0 %v323
  %v816 = vpop.f32.mrf.mxu0
  %v817 = vadd.f32 %v127, %v816
  %v818 = vpop.f32.mrf.mxu0
  %819 = vmatprep.mubr.f32.mxu0 0.0
  %820 = vmatmul.mubr.f32.gmra.mxu0 %v326
  %v821 = vpop.f32.mrf.mxu0
  %v822 = vadd.f32 %v127, %v821
  %v823 = vpop.f32.mrf.mxu0
  %824 = vmatprep.mubr.f32.mxu0 0.0
  %825 = vmatmul.mubr.f32.gmra.mxu0 %v329
  %v826 = vpop.f32.mrf.mxu0
  %v827 = vadd.f32 %v127, %v826
  %v828 = vpop.f32.mrf.mxu0
  %829 = vmatprep.mubr.f32.mxu0 0.0
  %830 = vmatmul.mubr.f32.gmra.mxu0 %v332
  %v831 = vpop.f32.mrf.mxu0
  %v832 = vadd.f32 %v127, %v831
  %v833 = vpop.f32.mrf.mxu0
  %834 = vmatprep.mubr.f32.mxu0 0.0
  %835 = vmatmul.mubr.f32.gmra.mxu0 %v335
  %v836 = vpop.f32.mrf.mxu0
  %v837 = vadd.f32 %v127, %v836
  %v838 = vpop.f32.mrf.mxu0
  %839 = vmatprep.mubr.f32.mxu0 0.0
  %840 = vmatmul.mubr.f32.gmra.mxu0 %v338
  %v841 = vpop.f32.mrf.mxu0
  %v842 = vadd.f32 %v127, %v841
  %v843 = vpop.f32.mrf.mxu0
  %844 = vmatprep.mubr.f32.mxu0 0.0
  %845 = vmatmul.mubr.f32.gmra.mxu0 %v341
  %v846 = vpop.f32.mrf.mxu0
  %v847 = vadd.f32 %v127, %v846
  %v848 = vpop.f32.mrf.mxu0
  %849 = vmatprep.mubr.f32.mxu0 0.0
  %850 = vmatmul.mubr.f32.gmra.mxu0 %v344
  %v851 = vpop.f32.mrf.mxu0
  %v852 = vadd.f32 %v127, %v851
  %v853 = vpop.f32.mrf.mxu0
  %854 = vmatprep.mubr.f32.mxu0 0.0
  %855 = vmatmul.mubr.f32.gmra.mxu0 %v347
  %v856 = vpop.f32.mrf.mxu0
  %v857 = vadd.f32 %v127, %v856
  %v858 = vpop.f32.mrf.mxu0
  %859 = vmatprep.mubr.f32.mxu0 0.0
  %860 = vmatmul.mubr.f32.gmra.mxu0 %v350
  %v861 = vpop.f32.mrf.mxu0
  %v862 = vadd.f32 %v127, %v861
  %v863 = vpop.f32.mrf.mxu0
  %864 = vmatprep.mubr.f32.mxu0 0.0
  %865 = vmatmul.mubr.f32.gmra.mxu0 %v353
  %v866 = vpop.f32.mrf.mxu0
  %v867 = vadd.f32 %v127, %v866
  %v868 = vpop.f32.mrf.mxu0
  %869 = vmatprep.mubr.f32.mxu0 0.0
  %870 = vmatmul.mubr.f32.gmra.mxu0 %v356
  %v871 = vpop.f32.mrf.mxu0
  %v872 = vadd.f32 %v127, %v871
  %v873 = vpop.f32.mrf.mxu0
  %874 = vmatprep.mubr.f32.mxu0 0.0
  %875 = vmatmul.mubr.f32.gmra.mxu0 %v359
  %v876 = vpop.f32.mrf.mxu0
  %v877 = vadd.f32 %v127, %v876
  %v878 = vpop.f32.mrf.mxu0
  %879 = vmatprep.mubr.f32.mxu0 0.0
  %880 = vmatmul.mubr.f32.gmra.mxu0 %v362
  %v881 = vpop.f32.mrf.mxu0
  %v882 = vadd.f32 %v127, %v881
  %v883 = vpop.f32.mrf.mxu0
  %884 = vmatprep.mubr.f32.mxu0 0.0
  %885 = vmatmul.mubr.f32.gmra.mxu0 %v365
  %v886 = vpop.f32.mrf.mxu0
  %v887 = vadd.f32 %v127, %v886
  %v888 = vpop.f32.mrf.mxu0
  %889 = vmatprep.mubr.f32.mxu0 0.0
  %890 = vmatmul.mubr.f32.gmra.mxu0 %v368
  %v891 = vpop.f32.mrf.mxu0
  %v892 = vadd.f32 %v127, %v891
  %v893 = vpop.f32.mrf.mxu0
  %894 = vmatprep.mubr.f32.mxu0 0.0
  %895 = vmatmul.mubr.f32.gmra.mxu0 %v371
  %v896 = vpop.f32.mrf.mxu0
  %v897 = vadd.f32 %v127, %v896
  %v898 = vpop.f32.mrf.mxu0
  %899 = vmatprep.mubr.f32.mxu0 0.0
  %900 = vmatmul.mubr.f32.gmra.mxu0 %v374
  %v901 = vpop.f32.mrf.mxu0
  %v902 = vadd.f32 %v127, %v901
  %v903 = vpop.f32.mrf.mxu0
  %904 = vmatprep.mubr.f32.mxu0 0.0
  %905 = vmatmul.mubr.f32.gmra.mxu0 %v377
  %v906 = vpop.f32.mrf.mxu0
  %v907 = vadd.f32 %v127, %v906
  %v908 = vpop.f32.mrf.mxu0
  %909 = vmatprep.mubr.f32.mxu0 0.0
  %910 = vmatmul.mubr.f32.gmra.mxu0 %v380
  %v911 = vpop.f32.mrf.mxu0
  %v912 = vadd.f32 %v127, %v911
  %v913 = vpop.f32.mrf.mxu0
  %914 = vmatprep.mubr.f32.mxu0 0.0
  %915 = vmatmul.mubr.f32.gmra.mxu0 %v383
  %v916 = vpop.f32.mrf.mxu0
  %v917 = vadd.f32 %v127, %v916
  %v918 = vpop.f32.mrf.mxu0
  %919 = vmatprep.mubr.f32.mxu0 0.0
  %920 = vmatmul.mubr.f32.gmra.mxu0 %v386
  %v921 = vpop.f32.mrf.mxu0
  %v922 = vadd.f32 %v127, %v921
  %v923 = vpop.f32.mrf.mxu0
  %924 = vmatprep.mubr.f32.mxu0 0.0
  %925 = vmatmul.mubr.f32.gmra.mxu0 %v389
  %v926 = vpop.f32.mrf.mxu0
  %v927 = vadd.f32 %v127, %v926
  %v928 = vpop.f32.mrf.mxu0
  %929 = vmatprep.mubr.f32.mxu0 0.0
  %930 = vmatmul.mubr.f32.gmra.mxu0 %v392
  %v931 = vpop.f32.mrf.mxu0
  %v932 = vadd.f32 %v127, %v931
  %v933 = vpop.f32.mrf.mxu0
  %934 = vmatprep.mubr.f32.mxu0 0.0
  %935 = vmatmul.mubr.f32.gmra.mxu0 %v395
  %v936 = vpop.f32.mrf.mxu0
  %v937 = vadd.f32 %v127, %v936
  %v938 = vpop.f32.mrf.mxu0
  %939 = vmatprep.mubr.f32.mxu0 0.0
  %940 = vmatmul.mubr.f32.gmra.mxu0 %v398
  %v941 = vpop.f32.mrf.mxu0
  %v942 = vadd.f32 %v127, %v941
  %v943 = vpop.f32.mrf.mxu0
  %944 = vmatprep.mubr.f32.mxu0 0.0
  %945 = vmatmul.mubr.f32.gmra.mxu0 %v401
  %v946 = vpop.f32.mrf.mxu0
  %v947 = vadd.f32 %v127, %v946
  %v948 = vpop.f32.mrf.mxu0
  %949 = vmatprep.mubr.f32.mxu0 0.0
  %950 = vmatmul.mubr.f32.gmra.mxu0 %v404
  %v951 = vpop.f32.mrf.mxu0
  %v952 = vadd.f32 %v127, %v951
  %v953 = vpop.f32.mrf.mxu0
  %954 = vmatprep.mubr.f32.mxu0 0.0
  %955 = vmatmul.mubr.f32.gmra.mxu0 %v407
  %v956 = vpop.f32.mrf.mxu0
  %v957 = vadd.f32 %v127, %v956
  %v958 = vpop.f32.mrf.mxu0
  %959 = vmatprep.mubr.f32.mxu0 0.0
  %960 = vmatmul.mubr.f32.gmra.mxu0 %v410
  %v961 = vpop.f32.mrf.mxu0
  %v962 = vadd.f32 %v127, %v961
  %v963 = vpop.f32.mrf.mxu0
  %964 = vmatprep.mubr.f32.mxu0 0.0
  %965 = vmatmul.mubr.f32.gmra.mxu0 %v413
  %v966 = vpop.f32.mrf.mxu0
  %v967 = vadd.f32 %v127, %v966
  %v968 = vpop.f32.mrf.mxu0
  %969 = vmatprep.mubr.f32.mxu0 0.0
  %970 = vmatmul.mubr.f32.gmra.mxu0 %v416
  %v971 = vpop.f32.mrf.mxu0
  %v972 = vadd.f32 %v127, %v971
  %v973 = vpop.f32.mrf.mxu0
  %974 = vmatprep.mubr.f32.mxu0 0.0
  %975 = vmatmul.mubr.f32.gmra.mxu0 %v419
  %v976 = vpop.f32.mrf.mxu0
  %v977 = vadd.f32 %v127, %v976
  %v978 = vpop.f32.mrf.mxu0
  %979 = vmatprep.mubr.f32.mxu0 0.0
  %980 = vmatmul.mubr.f32.gmra.mxu0 %v422
  %v981 = vpop.f32.mrf.mxu0
  %v982 = vadd.f32 %v127, %v981
  %v983 = vpop.f32.mrf.mxu0
  %984 = vmatprep.mubr.f32.mxu0 0.0
  %985 = vmatmul.mubr.f32.gmra.mxu0 %v425
  %v986 = vpop.f32.mrf.mxu0
  %v987 = vadd.f32 %v127, %v986
  %v988 = vpop.f32.mrf.mxu0
  %989 = vmatprep.mubr.f32.mxu0 0.0
  %990 = vmatmul.mubr.f32.gmra.mxu0 %v428
  %v991 = vpop.f32.mrf.mxu0
  %v992 = vadd.f32 %v127, %v991
  %v993 = vpop.f32.mrf.mxu0
  %994 = vdwg.mxu0
  %v995 = vmax.f32 %v497, 0.0
  %v996 = vmax.f32 %v502, 0.0
  %v997 = vmax.f32 %v507, 0.0
  %v998 = vmax.f32 %v512, 0.0
  %v999 = vmax.f32 %v517, 0.0
  %v1000 = vmax.f32 %v522, 0.0
  %v1001 = vmax.f32 %v527, 0.0
  %v1002 = vmax.f32 %v532, 0.0
  %v1003 = vmax.f32 %v537, 0.0
  %v1004 = vmax.f32 %v542, 0.0
  %v1005 = vmax.f32 %v547, 0.0
  %v1006 = vmax.f32 %v552, 0.0
  %v1007 = vmax.f32 %v557, 0.0
  %v1008 = vmax.f32 %v562, 0.0
  %v1009 = vmax.f32 %v567, 0.0
  %v1010 = vmax.f32 %v572, 0.0
  %v1011 = vmax.f32 %v577, 0.0
  %v1012 = vmax.f32 %v582, 0.0
  %v1013 = vmax.f32 %v587, 0.0
  %v1014 = vmax.f32 %v592, 0.0
  %v1015 = vmax.f32 %v597, 0.0
  %v1016 = vmax.f32 %v602, 0.0
  %v1017 = vmax.f32 %v607, 0.0
  %v1018 = vmax.f32 %v612, 0.0
  %v1019 = vmax.f32 %v617, 0.0
  %v1020 = vmax.f32 %v622, 0.0
  %v1021 = vmax.f32 %v627, 0.0
  %v1022 = vmax.f32 %v632, 0.0
  %v1023 = vmax.f32 %v637, 0.0
  %v1024 = vmax.f32 %v642, 0.0
  %v1025 = vmax.f32 %v647, 0.0
  %v1026 = vmax.f32 %v652, 0.0
  %v1027 = vmax.f32 %v657, 0.0
  %v1028 = vmax.f32 %v662, 0.0
  %v1029 = vmax.f32 %v667, 0.0
  %v1030 = vmax.f32 %v672, 0.0
  %v1031 = vmax.f32 %v677, 0.0
  %v1032 = vmax.f32 %v682, 0.0
  %v1033 = vmax.f32 %v687, 0.0
  %v1034 = vmax.f32 %v692, 0.0
  %v1035 = vmax.f32 %v697, 0.0
  %v1036 = vmax.f32 %v702, 0.0
  %v1037 = vmax.f32 %v707, 0.0
  %v1038 = vmax.f32 %v712, 0.0
  %v1039 = vmax.f32 %v717, 0.0
  %v1040 = vmax.f32 %v722, 0.0
  %v1041 = vmax.f32 %v727, 0.0
  %v1042 = vmax.f32 %v732, 0.0
  %v1043 = vmax.f32 %v737, 0.0
  %v1044 = vmax.f32 %v742, 0.0
  %v1045 = vmax.f32 %v747, 0.0
  %v1046 = vmax.f32 %v752, 0.0
  %v1047 = vmax.f32 %v757, 0.0
  %v1048 = vmax.f32 %v762, 0.0
  %v1049 = vmax.f32 %v767, 0.0
  %v1050 = vmax.f32 %v772, 0.0
  %v1051 = vmax.f32 %v777, 0.0
  %v1052 = vmax.f32 %v782, 0.0
  %v1053 = vmax.f32 %v787, 0.0
  %v1054 = vmax.f32 %v792, 0.0
  %v1055 = vmax.f32 %v797, 0.0
  %v1056 = vmax.f32 %v802, 0.0
  %v1057 = vmax.f32 %v807, 0.0
  %v1058 = vmax.f32 %v812, 0.0
  %v1059 = vmax.f32 %v817, 0.0
  %v1060 = vmax.f32 %v822, 0.0
  %v1061 = vmax.f32 %v827, 0.0
  %v1062 = vmax.f32 %v832, 0.0
  %v1063 = vmax.f32 %v837, 0.0
  %v1064 = vmax.f32 %v842, 0.0
  %v1065 = vmax.f32 %v847, 0.0
  %v1066 = vmax.f32 %v852, 0.0
  %v1067 = vmax.f32 %v857, 0.0
  %v1068 = vmax.f32 %v862, 0.0
  %v1069 = vmax.f32 %v867, 0.0
  %v1070 = vmax.f32 %v872, 0.0
  %v1071 = vmax.f32 %v877, 0.0
  %v1072 = vmax.f32 %v882, 0.0
  %v1073 = vmax.f32 %v887, 0.0
  %v1074 = vmax.f32 %v892, 0.0
  %v1075 = vmax.f32 %v897, 0.0
  %v1076 = vmax.f32 %v902, 0.0
  %v1077 = vmax.f32 %v907, 0.0
  %v1078 = vmax.f32 %v912, 0.0
  %v1079 = vmax.f32 %v917, 0.0
  %v1080 = vmax.f32 %v922, 0.0
  %v1081 = vmax.f32 %v927, 0.0
  %v1082 = vmax.f32 %v932, 0.0
  %v1083 = vmax.f32 %v937, 0.0
  %v1084 = vmax.f32 %v942, 0.0
  %v1085 = vmax.f32 %v947, 0.0
  %v1086 = vmax.f32 %v952, 0.0
  %v1087 = vmax.f32 %v957, 0.0
  %v1088 = vmax.f32 %v962, 0.0
  %v1089 = vmax.f32 %v967, 0.0
  %v1090 = vmax.f32 %v972, 0.0
  %v1091 = vmax.f32 %v977, 0.0
  %v1092 = vmax.f32 %v982, 0.0
  %v1093 = vmax.f32 %v987, 0.0
  %v1094 = vmax.f32 %v992, 0.0
  %vm1095 = vcmask 261120
  %1096 = vst.msk [vmem:[%s3] sm:$0xff] %vm1095, %v995
  %1097 = vst.msk [vmem:[%s3 + $0x8] sm:$0xff] %vm1095, %v996
  %1098 = vst.msk [vmem:[%s3 + $0x10] sm:$0xff] %vm1095, %v997
  %1099 = vst.msk [vmem:[%s3 + $0x18] sm:$0xff] %vm1095, %v998
  %1100 = vst.msk [vmem:[%s3 + $0x20] sm:$0xff] %vm1095, %v999
  %1101 = vst.msk [vmem:[%s3 + $0x28] sm:$0xff] %vm1095, %v1000
  %1102 = vst.msk [vmem:[%s3 + $0x30] sm:$0xff] %vm1095, %v1001
  %1103 = vst.msk [vmem:[%s3 + $0x38] sm:$0xff] %vm1095, %v1002
  %1104 = vst.msk [vmem:[%s3 + $0x40] sm:$0xff] %vm1095, %v1003
  %1105 = vst.msk [vmem:[%s3 + $0x48] sm:$0xff] %vm1095, %v1004
  %1106 = vst.msk [vmem:[%s3 + $0x50] sm:$0xff] %vm1095, %v1005
  %1107 = vst.msk [vmem:[%s3 + $0x58] sm:$0xff] %vm1095, %v1006
  %1108 = vst.msk [vmem:[%s3 + $0x60] sm:$0xff] %vm1095, %v1007
  %1109 = vst.msk [vmem:[%s3 + $0x68] sm:$0xff] %vm1095, %v1008
  %1110 = vst.msk [vmem:[%s3 + $0x70] sm:$0xff] %vm1095, %v1009
  %1111 = vst.msk [vmem:[%s3 + $0x78] sm:$0xff] %vm1095, %v1010
  %1112 = vst.msk [vmem:[%s3 + $0x80] sm:$0xff] %vm1095, %v1011
  %1113 = vst.msk [vmem:[%s3 + $0x88] sm:$0xff] %vm1095, %v1012
  %1114 = vst.msk [vmem:[%s3 + $0x90] sm:$0xff] %vm1095, %v1013
  %1115 = vst.msk [vmem:[%s3 + $0x98] sm:$0xff] %vm1095, %v1014
  %1116 = vst.msk [vmem:[%s3 + $0xa0] sm:$0xff] %vm1095, %v1015
  %1117 = vst.msk [vmem:[%s3 + $0xa8] sm:$0xff] %vm1095, %v1016
  %1118 = vst.msk [vmem:[%s3 + $0xb0] sm:$0xff] %vm1095, %v1017
  %1119 = vst.msk [vmem:[%s3 + $0xb8] sm:$0xff] %vm1095, %v1018
  %1120 = vst.msk [vmem:[%s3 + $0xc0] sm:$0xff] %vm1095, %v1019
  %1121 = vst.msk [vmem:[%s3 + $0xc8] sm:$0xff] %vm1095, %v1020
  %1122 = vst.msk [vmem:[%s3 + $0xd0] sm:$0xff] %vm1095, %v1021
  %1123 = vst.msk [vmem:[%s3 + $0xd8] sm:$0xff] %vm1095, %v1022
  %1124 = vst.msk [vmem:[%s3 + $0xe0] sm:$0xff] %vm1095, %v1023
  %1125 = vst.msk [vmem:[%s3 + $0xe8] sm:$0xff] %vm1095, %v1024
  %1126 = vst.msk [vmem:[%s3 + $0xf0] sm:$0xff] %vm1095, %v1025
  %1127 = vst.msk [vmem:[%s3 + $0xf8] sm:$0xff] %vm1095, %v1026
  %1128 = vst.msk [vmem:[%s3 + $0x100] sm:$0xff] %vm1095, %v1027
  %1129 = vst.msk [vmem:[%s3 + $0x108] sm:$0xff] %vm1095, %v1028
  %1130 = vst.msk [vmem:[%s3 + $0x110] sm:$0xff] %vm1095, %v1029
  %1131 = vst.msk [vmem:[%s3 + $0x118] sm:$0xff] %vm1095, %v1030
  %1132 = vst.msk [vmem:[%s3 + $0x120] sm:$0xff] %vm1095, %v1031
  %1133 = vst.msk [vmem:[%s3 + $0x128] sm:$0xff] %vm1095, %v1032
  %1134 = vst.msk [vmem:[%s3 + $0x130] sm:$0xff] %vm1095, %v1033
  %1135 = vst.msk [vmem:[%s3 + $0x138] sm:$0xff] %vm1095, %v1034
  %1136 = vst.msk [vmem:[%s3 + $0x140] sm:$0xff] %vm1095, %v1035
  %1137 = vst.msk [vmem:[%s3 + $0x148] sm:$0xff] %vm1095, %v1036
  %1138 = vst.msk [vmem:[%s3 + $0x150] sm:$0xff] %vm1095, %v1037
  %1139 = vst.msk [vmem:[%s3 + $0x158] sm:$0xff] %vm1095, %v1038
  %1140 = vst.msk [vmem:[%s3 + $0x160] sm:$0xff] %vm1095, %v1039
  %1141 = vst.msk [vmem:[%s3 + $0x168] sm:$0xff] %vm1095, %v1040
  %1142 = vst.msk [vmem:[%s3 + $0x170] sm:$0xff] %vm1095, %v1041
  %1143 = vst.msk [vmem:[%s3 + $0x178] sm:$0xff] %vm1095, %v1042
  %1144 = vst.msk [vmem:[%s3 + $0x180] sm:$0xff] %vm1095, %v1043
  %1145 = vst.msk [vmem:[%s3 + $0x188] sm:$0xff] %vm1095, %v1044
  %1146 = vst.msk [vmem:[%s3 + $0x190] sm:$0xff] %vm1095, %v1045
  %1147 = vst.msk [vmem:[%s3 + $0x198] sm:$0xff] %vm1095, %v1046
  %1148 = vst.msk [vmem:[%s3 + $0x1a0] sm:$0xff] %vm1095, %v1047
  %1149 = vst.msk [vmem:[%s3 + $0x1a8] sm:$0xff] %vm1095, %v1048
  %1150 = vst.msk [vmem:[%s3 + $0x1b0] sm:$0xff] %vm1095, %v1049
  %1151 = vst.msk [vmem:[%s3 + $0x1b8] sm:$0xff] %vm1095, %v1050
  %1152 = vst.msk [vmem:[%s3 + $0x1c0] sm:$0xff] %vm1095, %v1051
  %1153 = vst.msk [vmem:[%s3 + $0x1c8] sm:$0xff] %vm1095, %v1052
  %1154 = vst.msk [vmem:[%s3 + $0x1d0] sm:$0xff] %vm1095, %v1053
  %1155 = vst.msk [vmem:[%s3 + $0x1d8] sm:$0xff] %vm1095, %v1054
  %1156 = vst.msk [vmem:[%s3 + $0x1e0] sm:$0xff] %vm1095, %v1055
  %1157 = vst.msk [vmem:[%s3 + $0x1e8] sm:$0xff] %vm1095, %v1056
  %1158 = vst.msk [vmem:[%s3 + $0x1f0] sm:$0xff] %vm1095, %v1057
  %1159 = vst.msk [vmem:[%s3 + $0x1f8] sm:$0xff] %vm1095, %v1058
  %1160 = vst.msk [vmem:[%s3 + $0x200] sm:$0xff] %vm1095, %v1059
  %1161 = vst.msk [vmem:[%s3 + $0x208] sm:$0xff] %vm1095, %v1060
  %1162 = vst.msk [vmem:[%s3 + $0x210] sm:$0xff] %vm1095, %v1061
  %1163 = vst.msk [vmem:[%s3 + $0x218] sm:$0xff] %vm1095, %v1062
  %1164 = vst.msk [vmem:[%s3 + $0x220] sm:$0xff] %vm1095, %v1063
  %1165 = vst.msk [vmem:[%s3 + $0x228] sm:$0xff] %vm1095, %v1064
  %1166 = vst.msk [vmem:[%s3 + $0x230] sm:$0xff] %vm1095, %v1065
  %1167 = vst.msk [vmem:[%s3 + $0x238] sm:$0xff] %vm1095, %v1066
  %1168 = vst.msk [vmem:[%s3 + $0x240] sm:$0xff] %vm1095, %v1067
  %1169 = vst.msk [vmem:[%s3 + $0x248] sm:$0xff] %vm1095, %v1068
  %1170 = vst.msk [vmem:[%s3 + $0x250] sm:$0xff] %vm1095, %v1069
  %1171 = vst.msk [vmem:[%s3 + $0x258] sm:$0xff] %vm1095, %v1070
  %1172 = vst.msk [vmem:[%s3 + $0x260] sm:$0xff] %vm1095, %v1071
  %1173 = vst.msk [vmem:[%s3 + $0x268] sm:$0xff] %vm1095, %v1072
  %1174 = vst.msk [vmem:[%s3 + $0x270] sm:$0xff] %vm1095, %v1073
  %1175 = vst.msk [vmem:[%s3 + $0x278] sm:$0xff] %vm1095, %v1074
  %1176 = vst.msk [vmem:[%s3 + $0x280] sm:$0xff] %vm1095, %v1075
  %1177 = vst.msk [vmem:[%s3 + $0x288] sm:$0xff] %vm1095, %v1076
  %1178 = vst.msk [vmem:[%s3 + $0x290] sm:$0xff] %vm1095, %v1077
  %1179 = vst.msk [vmem:[%s3 + $0x298] sm:$0xff] %vm1095, %v1078
  %1180 = vst.msk [vmem:[%s3 + $0x2a0] sm:$0xff] %vm1095, %v1079
  %1181 = vst.msk [vmem:[%s3 + $0x2a8] sm:$0xff] %vm1095, %v1080
  %1182 = vst.msk [vmem:[%s3 + $0x2b0] sm:$0xff] %vm1095, %v1081
  %1183 = vst.msk [vmem:[%s3 + $0x2b8] sm:$0xff] %vm1095, %v1082
  %1184 = vst.msk [vmem:[%s3 + $0x2c0] sm:$0xff] %vm1095, %v1083
  %1185 = vst.msk [vmem:[%s3 + $0x2c8] sm:$0xff] %vm1095, %v1084
  %1186 = vst.msk [vmem:[%s3 + $0x2d0] sm:$0xff] %vm1095, %v1085
  %1187 = vst.msk [vmem:[%s3 + $0x2d8] sm:$0xff] %vm1095, %v1086
  %1188 = vst.msk [vmem:[%s3 + $0x2e0] sm:$0xff] %vm1095, %v1087
  %1189 = vst.msk [vmem:[%s3 + $0x2e8] sm:$0xff] %vm1095, %v1088
  %1190 = vst.msk [vmem:[%s3 + $0x2f0] sm:$0xff] %vm1095, %v1089
  %1191 = vst.msk [vmem:[%s3 + $0x2f8] sm:$0xff] %vm1095, %v1090
  %1192 = vst.msk [vmem:[%s3 + $0x300] sm:$0xff] %vm1095, %v1091
  %1193 = vst.msk [vmem:[%s3 + $0x308] sm:$0xff] %vm1095, %v1092
  %1194 = vst.msk [vmem:[%s3 + $0x310] sm:$0xff] %vm1095, %v1093
  %1195 = vst.msk [vmem:[%s3 + $0x318] sm:$0xff] %vm1095, %v1094
  // Predicated region
  $region14: #{forward.4} parent=0 // pred_check
    _
  $region15: #{forward.4} parent=0 // pred_check_branch
    %1197 = sbr.rel (0) target = $region17
  $region16: #{forward.4} parent=0 // pred_region
    _
  $region17: #{forward.4} parent=0 // pred_fallthru
    _
  // Predicated region
  $region18: #{forward.4} parent=0 // pred_check
    _
  $region19: #{forward.4} parent=0 // pred_check_branch
    %1199 = sbr.rel (0) target = $region21
  $region20: #{forward.4} parent=0 // pred_region
    _
  $region21: #{forward.4} parent=0 // pred_fallthru
    _

// kernel: forward.5
$region0: #{forward.5}
  #allocation0 [shape = 'u32[]', space=smem, size = 0x4, offset = 0x4, fixed_abs, tag = 'smem constant byte address 0x4 - core index']
  #allocation1 [shape = 'u32[144,128]{1,0:T(1,128)}', space=vmem, size = 0x12000, scoped, tag = 'internal scratch']
  %s0 = inlined_call_operand.vmem [shape: f32[162,512], index: 0, kind: input, shape index: {}]
  %s1 = inlined_call_operand.vmem [shape: f32[512,64], index: 1, kind: input, shape index: {}]
  %s2 = inlined_call_operand.vmem [shape: f32[1,64], index: 2, kind: input, shape index: {}]
  %s3 = inlined_call_operand.vmem [shape: f32[162,64], index: 3, kind: output, shape index: {}]
  %s4 = sld [smem:[#allocation0]]
  $region22: #{forward.5} parent=0
    _
  %s6 = ssub.s32 1, %s4
  %s7 = scalar_select 0, %s6, %s4
  // Predicated region
  $region2: #{forward.5} parent=0 // pred_check
    _
  $region3: #{forward.5} parent=0 // pred_check_branch
    %9 = sbr.rel (0) target = $region5
  $region4: #{forward.5} parent=0 // pred_region
    _
  $region5: #{forward.5} parent=0 // pred_fallthru
    _
  // Predicated region
  $region6: #{forward.5} parent=0 // pred_check
    _
  $region7: #{forward.5} parent=0 // pred_check_branch
    %11 = sbr.rel (0) target = $region9
  $region8: #{forward.5} parent=0 // pred_region
    _
  $region9: #{forward.5} parent=0 // pred_fallthru
    _
  // Predicated region
  $region10: #{forward.5} parent=0 // pred_check
    _
  $region11: #{forward.5} parent=0 // pred_check_branch
    %13 = sbr.rel (0) target = $region13
  $region12: #{forward.5} parent=0 // pred_region
    _
  $region13: #{forward.5} parent=0 // pred_fallthru
    _
  %v14 = vld [vmem:[%s0] sm:$0xff]
  %v15 = vld [vmem:[%s0 + $0x8] sm:$0xff]
  %v16 = vld [vmem:[%s0 + $0x10] sm:$0xff]
  %v17 = vld [vmem:[%s0 + $0x18] sm:$0xff]
  %v18 = vld [vmem:[%s0 + $0x20] sm:$0xff]
  %v19 = vld [vmem:[%s0 + $0x28] sm:$0xff]
  %v20 = vld [vmem:[%s0 + $0x30] sm:$0xff]
  %v21 = vld [vmem:[%s0 + $0x38] sm:$0xff]
  %v22 = vld [vmem:[%s0 + $0x40] sm:$0xff]
  %v23 = vld [vmem:[%s0 + $0x48] sm:$0xff]
  %v24 = vld [vmem:[%s0 + $0x50] sm:$0xff]
  %v25 = vld [vmem:[%s0 + $0x58] sm:$0xff]
  %v26 = vld [vmem:[%s0 + $0x60] sm:$0xff]
  %v27 = vld [vmem:[%s0 + $0x68] sm:$0xff]
  %v28 = vld [vmem:[%s0 + $0x70] sm:$0xff]
  %v29 = vld [vmem:[%s0 + $0x78] sm:$0xff]
  %v30 = vld [vmem:[%s0 + $0x80] sm:$0xff]
  %v31 = vld [vmem:[%s0 + $0x88] sm:$0xff]
  %v32 = vld [vmem:[%s0 + $0x90] sm:$0xff]
  %v33 = vld [vmem:[%s0 + $0x98] sm:$0xff]
  %v34 = vld [vmem:[%s0 + $0xa0] sm:$0xff]
  %v35 = vld [vmem:[%s0 + $0xa8] sm:$0xff]
  %v36 = vld [vmem:[%s0 + $0xb0] sm:$0xff]
  %v37 = vld [vmem:[%s0 + $0xb8] sm:$0xff]
  %v38 = vld [vmem:[%s0 + $0xc0] sm:$0xff]
  %v39 = vld [vmem:[%s0 + $0xc8] sm:$0xff]
  %v40 = vld [vmem:[%s0 + $0xd0] sm:$0xff]
  %v41 = vld [vmem:[%s0 + $0xd8] sm:$0xff]
  %v42 = vld [vmem:[%s0 + $0xe0] sm:$0xff]
  %v43 = vld [vmem:[%s0 + $0xe8] sm:$0xff]
  %v44 = vld [vmem:[%s0 + $0xf0] sm:$0xff]
  %v45 = vld [vmem:[%s0 + $0xf8] sm:$0xff]
  %v46 = vld [vmem:[%s0 + $0x100] sm:$0xff]
  %v47 = vld [vmem:[%s0 + $0x108] sm:$0xff]
  %v48 = vld [vmem:[%s0 + $0x110] sm:$0xff]
  %v49 = vld [vmem:[%s0 + $0x118] sm:$0xff]
  %v50 = vld [vmem:[%s0 + $0x120] sm:$0xff]
  %v51 = vld [vmem:[%s0 + $0x128] sm:$0xff]
  %v52 = vld [vmem:[%s0 + $0x130] sm:$0xff]
  %v53 = vld [vmem:[%s0 + $0x138] sm:$0xff]
  %v54 = vld [vmem:[%s0 + $0x140] sm:$0xff]
  %v55 = vld [vmem:[%s0 + $0x148] sm:$0xff]
  %v56 = vld [vmem:[%s0 + $0x150] sm:$0xff]
  %v57 = vld [vmem:[%s0 + $0x158] sm:$0xff]
  %v58 = vld [vmem:[%s0 + $0x160] sm:$0xff]
  %v59 = vld [vmem:[%s0 + $0x168] sm:$0xff]
  %v60 = vld [vmem:[%s0 + $0x170] sm:$0xff]
  %v61 = vld [vmem:[%s0 + $0x178] sm:$0xff]
  %v62 = vld [vmem:[%s0 + $0x180] sm:$0xff]
  %v63 = vld [vmem:[%s0 + $0x188] sm:$0xff]
  %v64 = vld [vmem:[%s0 + $0x190] sm:$0xff]
  %v65 = vld [vmem:[%s0 + $0x198] sm:$0xff]
  %v66 = vld [vmem:[%s0 + $0x1a0] sm:$0xff]
  %v67 = vld [vmem:[%s0 + $0x1a8] sm:$0xff]
  %v68 = vld [vmem:[%s0 + $0x1b0] sm:$0xff]
  %v69 = vld [vmem:[%s0 + $0x1b8] sm:$0xff]
  %v70 = vld [vmem:[%s0 + $0x1c0] sm:$0xff]
  %v71 = vld [vmem:[%s0 + $0x1c8] sm:$0xff]
  %v72 = vld [vmem:[%s0 + $0x1d0] sm:$0xff]
  %v73 = vld [vmem:[%s0 + $0x1d8] sm:$0xff]
  %v74 = vld [vmem:[%s0 + $0x1e0] sm:$0xff]
  %v75 = vld [vmem:[%s0 + $0x1e8] sm:$0xff]
  %v76 = vld [vmem:[%s0 + $0x1f0] sm:$0xff]
  %v77 = vld [vmem:[%s0 + $0x1f8] sm:$0xff]
  %v78 = vld [vmem:[%s0 + $0x200] sm:$0xff]
  %v79 = vld [vmem:[%s0 + $0x208] sm:$0xff]
  %v80 = vld [vmem:[%s0 + $0x210] sm:$0xff]
  %v81 = vld [vmem:[%s0 + $0x218] sm:$0xff]
  %v82 = vld [vmem:[%s0 + $0x220] sm:$0xff]
  %v83 = vld [vmem:[%s0 + $0x228] sm:$0xff]
  %v84 = vld [vmem:[%s0 + $0x230] sm:$0xff]
  %v85 = vld [vmem:[%s0 + $0x238] sm:$0xff]
  %v86 = vld [vmem:[%s0 + $0x240] sm:$0xff]
  %v87 = vld [vmem:[%s0 + $0x248] sm:$0xff]
  %v88 = vld [vmem:[%s0 + $0x250] sm:$0xff]
  %v89 = vld [vmem:[%s0 + $0x258] sm:$0xff]
  %v90 = vld [vmem:[%s0 + $0x260] sm:$0xff]
  %v91 = vld [vmem:[%s0 + $0x268] sm:$0xff]
  %v92 = vld [vmem:[%s0 + $0x270] sm:$0xff]
  %v93 = vld [vmem:[%s0 + $0x278] sm:$0xff]
  %v94 = vld [vmem:[%s0 + $0x280] sm:$0x3]
  %v95 = vld [vmem:[%s0 + $0x288] sm:$0x3]
  %v96 = vld [vmem:[%s0 + $0x290] sm:$0x3]
  %v97 = vld [vmem:[%s0 + $0x298] sm:$0x3]
  %v98 = vld [vmem:[%s1] sm:$0xff]
  %v99 = vld [vmem:[%s1 + $0x8] sm:$0xff]
  %v100 = vld [vmem:[%s1 + $0x10] sm:$0xff]
  %v101 = vld [vmem:[%s1 + $0x18] sm:$0xff]
  %v102 = vld [vmem:[%s1 + $0x20] sm:$0xff]
  %v103 = vld [vmem:[%s1 + $0x28] sm:$0xff]
  %v104 = vld [vmem:[%s1 + $0x30] sm:$0xff]
  %v105 = vld [vmem:[%s1 + $0x38] sm:$0xff]
  %v106 = vld [vmem:[%s1 + $0x40] sm:$0xff]
  %v107 = vld [vmem:[%s1 + $0x48] sm:$0xff]
  %v108 = vld [vmem:[%s1 + $0x50] sm:$0xff]
  %v109 = vld [vmem:[%s1 + $0x58] sm:$0xff]
  %v110 = vld [vmem:[%s1 + $0x60] sm:$0xff]
  %v111 = vld [vmem:[%s1 + $0x68] sm:$0xff]
  %v112 = vld [vmem:[%s1 + $0x70] sm:$0xff]
  %v113 = vld [vmem:[%s1 + $0x78] sm:$0xff]
  %v114 = vld [vmem:[%s1 + $0x80] sm:$0xff]
  %v115 = vld [vmem:[%s1 + $0x88] sm:$0xff]
  %v116 = vld [vmem:[%s1 + $0x90] sm:$0xff]
  %v117 = vld [vmem:[%s1 + $0x98] sm:$0xff]
  %v118 = vld [vmem:[%s1 + $0xa0] sm:$0xff]
  %v119 = vld [vmem:[%s1 + $0xa8] sm:$0xff]
  %v120 = vld [vmem:[%s1 + $0xb0] sm:$0xff]
  %v121 = vld [vmem:[%s1 + $0xb8] sm:$0xff]
  %v122 = vld [vmem:[%s1 + $0xc0] sm:$0xff]
  %v123 = vld [vmem:[%s1 + $0xc8] sm:$0xff]
  %v124 = vld [vmem:[%s1 + $0xd0] sm:$0xff]
  %v125 = vld [vmem:[%s1 + $0xd8] sm:$0xff]
  %v126 = vld [vmem:[%s1 + $0xe0] sm:$0xff]
  %v127 = vld [vmem:[%s1 + $0xe8] sm:$0xff]
  %v128 = vld [vmem:[%s1 + $0xf0] sm:$0xff]
  %v129 = vld [vmem:[%s1 + $0xf8] sm:$0xff]
  %v130 = vld [vmem:[%s1 + $0x100] sm:$0xff]
  %v131 = vld [vmem:[%s1 + $0x108] sm:$0xff]
  %v132 = vld [vmem:[%s1 + $0x110] sm:$0xff]
  %v133 = vld [vmem:[%s1 + $0x118] sm:$0xff]
  %v134 = vld [vmem:[%s1 + $0x120] sm:$0xff]
  %v135 = vld [vmem:[%s1 + $0x128] sm:$0xff]
  %v136 = vld [vmem:[%s1 + $0x130] sm:$0xff]
  %v137 = vld [vmem:[%s1 + $0x138] sm:$0xff]
  %v138 = vld [vmem:[%s1 + $0x140] sm:$0xff]
  %v139 = vld [vmem:[%s1 + $0x148] sm:$0xff]
  %v140 = vld [vmem:[%s1 + $0x150] sm:$0xff]
  %v141 = vld [vmem:[%s1 + $0x158] sm:$0xff]
  %v142 = vld [vmem:[%s1 + $0x160] sm:$0xff]
  %v143 = vld [vmem:[%s1 + $0x168] sm:$0xff]
  %v144 = vld [vmem:[%s1 + $0x170] sm:$0xff]
  %v145 = vld [vmem:[%s1 + $0x178] sm:$0xff]
  %v146 = vld [vmem:[%s1 + $0x180] sm:$0xff]
  %v147 = vld [vmem:[%s1 + $0x188] sm:$0xff]
  %v148 = vld [vmem:[%s1 + $0x190] sm:$0xff]
  %v149 = vld [vmem:[%s1 + $0x198] sm:$0xff]
  %v150 = vld [vmem:[%s1 + $0x1a0] sm:$0xff]
  %v151 = vld [vmem:[%s1 + $0x1a8] sm:$0xff]
  %v152 = vld [vmem:[%s1 + $0x1b0] sm:$0xff]
  %v153 = vld [vmem:[%s1 + $0x1b8] sm:$0xff]
  %v154 = vld [vmem:[%s1 + $0x1c0] sm:$0xff]
  %v155 = vld [vmem:[%s1 + $0x1c8] sm:$0xff]
  %v156 = vld [vmem:[%s1 + $0x1d0] sm:$0xff]
  %v157 = vld [vmem:[%s1 + $0x1d8] sm:$0xff]
  %v158 = vld [vmem:[%s1 + $0x1e0] sm:$0xff]
  %v159 = vld [vmem:[%s1 + $0x1e8] sm:$0xff]
  %v160 = vld [vmem:[%s1 + $0x1f0] sm:$0xff]
  %v161 = vld [vmem:[%s1 + $0x1f8] sm:$0xff]
  %v162 = vld [vmem:[%s2] sm:$0x1]
  %v164 = vlaneseq
  %v165 = vshrl.u32 %v164, 7
  %v166 = vsub.s32 0, %v165
  %v167 = vrot.slane %v162, %v166
  %169 = vmatprep.subr.mxu0 0.0
  %170 = vmatpush1.msra.mxu0 %v113
  %171 = vmatprep.subr.mxu0 0.0
  %172 = vmatpush1.msra.mxu0 %v112
  %173 = vmatprep.subr.mxu0 0.0
  %174 = vmatpush1.msra.mxu0 %v111
  %175 = vmatprep.subr.mxu0 0.0
  %176 = vmatpush1.msra.mxu0 %v110
  %177 = vmatprep.subr.mxu0 0.0
  %178 = vmatpush1.msra.mxu0 %v109
  %179 = vmatprep.subr.mxu0 0.0
  %180 = vmatpush1.msra.mxu0 %v108
  %181 = vmatprep.subr.mxu0 0.0
  %182 = vmatpush1.msra.mxu0 %v107
  %183 = vmatprep.subr.mxu0 0.0
  %184 = vmatpush1.msra.mxu0 %v106
  %185 = vmatprep.subr.mxu0 0.0
  %186 = vmatpush1.msra.mxu0 %v105
  %187 = vmatprep.subr.mxu0 0.0
  %188 = vmatpush1.msra.mxu0 %v104
  %189 = vmatprep.subr.mxu0 0.0
  %190 = vmatpush1.msra.mxu0 %v103
  %191 = vmatprep.subr.mxu0 0.0
  %192 = vmatpush1.msra.mxu0 %v102
  %193 = vmatprep.subr.mxu0 0.0
  %194 = vmatpush1.msra.mxu0 %v101
  %195 = vmatprep.subr.mxu0 0.0
  %196 = vmatpush1.msra.mxu0 %v100
  %197 = vmatprep.subr.mxu0 0.0
  %198 = vmatpush1.msra.mxu0 %v99
  %199 = vmatprep.subr.mxu0 0.0
  %200 = vmatpush1.msra.mxu0 %v98
  %201 = vmatprep.subr.mxu0 0.0
  %202 = vmatpush2.msra.mxu0 %v129
  %203 = vmatprep.subr.mxu0 0.0
  %204 = vmatpush2.msra.mxu0 %v128
  %205 = vmatprep.subr.mxu0 0.0
  %206 = vmatpush2.msra.mxu0 %v127
  %207 = vmatprep.subr.mxu0 0.0
  %208 = vmatpush2.msra.mxu0 %v126
  %209 = vmatprep.subr.mxu0 0.0
  %210 = vmatpush2.msra.mxu0 %v125
  %211 = vmatprep.subr.mxu0 0.0
  %212 = vmatpush2.msra.mxu0 %v124
  %213 = vmatprep.subr.mxu0 0.0
  %214 = vmatpush2.msra.mxu0 %v123
  %215 = vmatprep.subr.mxu0 0.0
  %216 = vmatpush2.msra.mxu0 %v122
  %217 = vmatprep.subr.mxu0 0.0
  %218 = vmatpush2.msra.mxu0 %v121
  %219 = vmatprep.subr.mxu0 0.0
  %220 = vmatpush2.msra.mxu0 %v120
  %221 = vmatprep.subr.mxu0 0.0
  %222 = vmatpush2.msra.mxu0 %v119
  %223 = vmatprep.subr.mxu0 0.0
  %224 = vmatpush2.msra.mxu0 %v118
  %225 = vmatprep.subr.mxu0 0.0
  %226 = vmatpush2.msra.mxu0 %v117
  %227 = vmatprep.subr.mxu0 0.0
  %228 = vmatpush2.msra.mxu0 %v116
  %229 = vmatprep.subr.mxu0 0.0
  %230 = vmatpush2.msra.mxu0 %v115
  %231 = vmatprep.subr.mxu0 0.0
  %232 = vmatpush2.msra.mxu0 %v114
  %233 = vmatprep.mubr.f32.mxu0 %v15
  %234 = vmatmul.mubr.f32.gmra.mxu0 %v14
  %v235 = vpop.f32.mrf.mxu0
  %v236 = vadd.f32 %v167, %v235
  %v237 = vpop.f32.mrf.mxu0
  %238 = vmatprep.mubr.f32.mxu0 %v19
  %239 = vmatmul.mubr.f32.gmra.mxu0 %v18
  %v240 = vpop.f32.mrf.mxu0
  %v241 = vadd.f32 %v167, %v240
  %v242 = vpop.f32.mrf.mxu0
  %243 = vmatprep.mubr.f32.mxu0 %v23
  %244 = vmatmul.mubr.f32.gmra.mxu0 %v22
  %v245 = vpop.f32.mrf.mxu0
  %v246 = vadd.f32 %v167, %v245
  %v247 = vpop.f32.mrf.mxu0
  %248 = vmatprep.mubr.f32.mxu0 %v27
  %249 = vmatmul.mubr.f32.gmra.mxu0 %v26
  %v250 = vpop.f32.mrf.mxu0
  %v251 = vadd.f32 %v167, %v250
  %v252 = vpop.f32.mrf.mxu0
  %253 = vmatprep.mubr.f32.mxu0 %v31
  %254 = vmatmul.mubr.f32.gmra.mxu0 %v30
  %v255 = vpop.f32.mrf.mxu0
  %v256 = vadd.f32 %v167, %v255
  %v257 = vpop.f32.mrf.mxu0
  %258 = vmatprep.mubr.f32.mxu0 %v35
  %259 = vmatmul.mubr.f32.gmra.mxu0 %v34
  %v260 = vpop.f32.mrf.mxu0
  %v261 = vadd.f32 %v167, %v260
  %v262 = vpop.f32.mrf.mxu0
  %263 = vmatprep.mubr.f32.mxu0 %v39
  %264 = vmatmul.mubr.f32.gmra.mxu0 %v38
  %v265 = vpop.f32.mrf.mxu0
  %v266 = vadd.f32 %v167, %v265
  %v267 = vpop.f32.mrf.mxu0
  %268 = vmatprep.mubr.f32.mxu0 %v43
  %269 = vmatmul.mubr.f32.gmra.mxu0 %v42
  %v270 = vpop.f32.mrf.mxu0
  %v271 = vadd.f32 %v167, %v270
  %v272 = vpop.f32.mrf.mxu0
  %273 = vmatprep.mubr.f32.mxu0 %v47
  %274 = vmatmul.mubr.f32.gmra.mxu0 %v46
  %v275 = vpop.f32.mrf.mxu0
  %v276 = vadd.f32 %v167, %v275
  %v277 = vpop.f32.mrf.mxu0
  %278 = vmatprep.mubr.f32.mxu0 %v51
  %279 = vmatmul.mubr.f32.gmra.mxu0 %v50
  %v280 = vpop.f32.mrf.mxu0
  %v281 = vadd.f32 %v167, %v280
  %v282 = vpop.f32.mrf.mxu0
  %283 = vmatprep.mubr.f32.mxu0 %v55
  %284 = vmatmul.mubr.f32.gmra.mxu0 %v54
  %v285 = vpop.f32.mrf.mxu0
  %v286 = vadd.f32 %v167, %v285
  %v287 = vpop.f32.mrf.mxu0
  %288 = vmatprep.mubr.f32.mxu0 %v59
  %289 = vmatmul.mubr.f32.gmra.mxu0 %v58
  %v290 = vpop.f32.mrf.mxu0
  %v291 = vadd.f32 %v167, %v290
  %v292 = vpop.f32.mrf.mxu0
  %293 = vmatprep.mubr.f32.mxu0 %v63
  %294 = vmatmul.mubr.f32.gmra.mxu0 %v62
  %v295 = vpop.f32.mrf.mxu0
  %v296 = vadd.f32 %v167, %v295
  %v297 = vpop.f32.mrf.mxu0
  %298 = vmatprep.mubr.f32.mxu0 %v67
  %299 = vmatmul.mubr.f32.gmra.mxu0 %v66
  %v300 = vpop.f32.mrf.mxu0
  %v301 = vadd.f32 %v167, %v300
  %v302 = vpop.f32.mrf.mxu0
  %303 = vmatprep.mubr.f32.mxu0 %v71
  %304 = vmatmul.mubr.f32.gmra.mxu0 %v70
  %v305 = vpop.f32.mrf.mxu0
  %v306 = vadd.f32 %v167, %v305
  %v307 = vpop.f32.mrf.mxu0
  %308 = vmatprep.mubr.f32.mxu0 %v75
  %309 = vmatmul.mubr.f32.gmra.mxu0 %v74
  %v310 = vpop.f32.mrf.mxu0
  %v311 = vadd.f32 %v167, %v310
  %v312 = vpop.f32.mrf.mxu0
  %313 = vmatprep.mubr.f32.mxu0 %v79
  %314 = vmatmul.mubr.f32.gmra.mxu0 %v78
  %v315 = vpop.f32.mrf.mxu0
  %v316 = vadd.f32 %v167, %v315
  %v317 = vpop.f32.mrf.mxu0
  %318 = vmatprep.mubr.f32.mxu0 %v83
  %319 = vmatmul.mubr.f32.gmra.mxu0 %v82
  %v320 = vpop.f32.mrf.mxu0
  %v321 = vadd.f32 %v167, %v320
  %v322 = vpop.f32.mrf.mxu0
  %323 = vmatprep.mubr.f32.mxu0 %v87
  %324 = vmatmul.mubr.f32.gmra.mxu0 %v86
  %v325 = vpop.f32.mrf.mxu0
  %v326 = vadd.f32 %v167, %v325
  %v327 = vpop.f32.mrf.mxu0
  %328 = vmatprep.mubr.f32.mxu0 %v91
  %329 = vmatmul.mubr.f32.gmra.mxu0 %v90
  %v330 = vpop.f32.mrf.mxu0
  %v331 = vadd.f32 %v167, %v330
  %v332 = vpop.f32.mrf.mxu0
  %333 = vmatprep.mubr.f32.mxu0 %v95
  %334 = vmatmul.mubr.f32.gmra.mxu0 %v94
  %v335 = vpop.f32.mrf.mxu0
  %v336 = vadd.f32 %v167, %v335
  %v337 = vpop.f32.mrf.mxu0
  %338 = vdwg.mxu0
  %339 = vmatprep.subr.mxu0 0.0
  %340 = vmatpush1.msra.mxu0 %v145
  %341 = vmatprep.subr.mxu0 0.0
  %342 = vmatpush1.msra.mxu0 %v144
  %343 = vmatprep.subr.mxu0 0.0
  %344 = vmatpush1.msra.mxu0 %v143
  %345 = vmatprep.subr.mxu0 0.0
  %346 = vmatpush1.msra.mxu0 %v142
  %347 = vmatprep.subr.mxu0 0.0
  %348 = vmatpush1.msra.mxu0 %v141
  %349 = vmatprep.subr.mxu0 0.0
  %350 = vmatpush1.msra.mxu0 %v140
  %351 = vmatprep.subr.mxu0 0.0
  %352 = vmatpush1.msra.mxu0 %v139
  %353 = vmatprep.subr.mxu0 0.0
  %354 = vmatpush1.msra.mxu0 %v138
  %355 = vmatprep.subr.mxu0 0.0
  %356 = vmatpush1.msra.mxu0 %v137
  %357 = vmatprep.subr.mxu0 0.0
  %358 = vmatpush1.msra.mxu0 %v136
  %359 = vmatprep.subr.mxu0 0.0
  %360 = vmatpush1.msra.mxu0 %v135
  %361 = vmatprep.subr.mxu0 0.0
  %362 = vmatpush1.msra.mxu0 %v134
  %363 = vmatprep.subr.mxu0 0.0
  %364 = vmatpush1.msra.mxu0 %v133
  %365 = vmatprep.subr.mxu0 0.0
  %366 = vmatpush1.msra.mxu0 %v132
  %367 = vmatprep.subr.mxu0 0.0
  %368 = vmatpush1.msra.mxu0 %v131
  %369 = vmatprep.subr.mxu0 0.0
  %370 = vmatpush1.msra.mxu0 %v130
  %371 = vmatprep.subr.mxu0 0.0
  %372 = vmatpush2.msra.mxu0 %v161
  %373 = vmatprep.subr.mxu0 0.0
  %374 = vmatpush2.msra.mxu0 %v160
  %375 = vmatprep.subr.mxu0 0.0
  %376 = vmatpush2.msra.mxu0 %v159
  %377 = vmatprep.subr.mxu0 0.0
  %378 = vmatpush2.msra.mxu0 %v158
  %379 = vmatprep.subr.mxu0 0.0
  %380 = vmatpush2.msra.mxu0 %v157
  %381 = vmatprep.subr.mxu0 0.0
  %382 = vmatpush2.msra.mxu0 %v156
  %383 = vmatprep.subr.mxu0 0.0
  %384 = vmatpush2.msra.mxu0 %v155
  %385 = vmatprep.subr.mxu0 0.0
  %386 = vmatpush2.msra.mxu0 %v154
  %387 = vmatprep.subr.mxu0 0.0
  %388 = vmatpush2.msra.mxu0 %v153
  %389 = vmatprep.subr.mxu0 0.0
  %390 = vmatpush2.msra.mxu0 %v152
  %391 = vmatprep.subr.mxu0 0.0
  %392 = vmatpush2.msra.mxu0 %v151
  %393 = vmatprep.subr.mxu0 0.0
  %394 = vmatpush2.msra.mxu0 %v150
  %395 = vmatprep.subr.mxu0 0.0
  %396 = vmatpush2.msra.mxu0 %v149
  %397 = vmatprep.subr.mxu0 0.0
  %398 = vmatpush2.msra.mxu0 %v148
  %399 = vmatprep.subr.mxu0 0.0
  %400 = vmatpush2.msra.mxu0 %v147
  %401 = vmatprep.subr.mxu0 0.0
  %402 = vmatpush2.msra.mxu0 %v146
  %403 = vmatprep.mubr.f32.mxu0 %v17
  %404 = vmatmul.mubr.f32.gmra.mxu0 %v16
  %v405 = vpop.f32.mrf.mxu0
  %v406 = vadd.f32 %v236, %v405
  %v407 = vpop.f32.mrf.mxu0
  %408 = vmatprep.mubr.f32.mxu0 %v21
  %409 = vmatmul.mubr.f32.gmra.mxu0 %v20
  %v410 = vpop.f32.mrf.mxu0
  %v411 = vadd.f32 %v241, %v410
  %v412 = vpop.f32.mrf.mxu0
  %413 = vmatprep.mubr.f32.mxu0 %v25
  %414 = vmatmul.mubr.f32.gmra.mxu0 %v24
  %v415 = vpop.f32.mrf.mxu0
  %v416 = vadd.f32 %v246, %v415
  %v417 = vpop.f32.mrf.mxu0
  %418 = vmatprep.mubr.f32.mxu0 %v29
  %419 = vmatmul.mubr.f32.gmra.mxu0 %v28
  %v420 = vpop.f32.mrf.mxu0
  %v421 = vadd.f32 %v251, %v420
  %v422 = vpop.f32.mrf.mxu0
  %423 = vmatprep.mubr.f32.mxu0 %v33
  %424 = vmatmul.mubr.f32.gmra.mxu0 %v32
  %v425 = vpop.f32.mrf.mxu0
  %v426 = vadd.f32 %v256, %v425
  %v427 = vpop.f32.mrf.mxu0
  %428 = vmatprep.mubr.f32.mxu0 %v37
  %429 = vmatmul.mubr.f32.gmra.mxu0 %v36
  %v430 = vpop.f32.mrf.mxu0
  %v431 = vadd.f32 %v261, %v430
  %v432 = vpop.f32.mrf.mxu0
  %433 = vmatprep.mubr.f32.mxu0 %v41
  %434 = vmatmul.mubr.f32.gmra.mxu0 %v40
  %v435 = vpop.f32.mrf.mxu0
  %v436 = vadd.f32 %v266, %v435
  %v437 = vpop.f32.mrf.mxu0
  %438 = vmatprep.mubr.f32.mxu0 %v45
  %439 = vmatmul.mubr.f32.gmra.mxu0 %v44
  %v440 = vpop.f32.mrf.mxu0
  %v441 = vadd.f32 %v271, %v440
  %v442 = vpop.f32.mrf.mxu0
  %443 = vmatprep.mubr.f32.mxu0 %v49
  %444 = vmatmul.mubr.f32.gmra.mxu0 %v48
  %v445 = vpop.f32.mrf.mxu0
  %v446 = vadd.f32 %v276, %v445
  %v447 = vpop.f32.mrf.mxu0
  %448 = vmatprep.mubr.f32.mxu0 %v53
  %449 = vmatmul.mubr.f32.gmra.mxu0 %v52
  %v450 = vpop.f32.mrf.mxu0
  %v451 = vadd.f32 %v281, %v450
  %v452 = vpop.f32.mrf.mxu0
  %453 = vmatprep.mubr.f32.mxu0 %v57
  %454 = vmatmul.mubr.f32.gmra.mxu0 %v56
  %v455 = vpop.f32.mrf.mxu0
  %v456 = vadd.f32 %v286, %v455
  %v457 = vpop.f32.mrf.mxu0
  %458 = vmatprep.mubr.f32.mxu0 %v61
  %459 = vmatmul.mubr.f32.gmra.mxu0 %v60
  %v460 = vpop.f32.mrf.mxu0
  %v461 = vadd.f32 %v291, %v460
  %v462 = vpop.f32.mrf.mxu0
  %463 = vmatprep.mubr.f32.mxu0 %v65
  %464 = vmatmul.mubr.f32.gmra.mxu0 %v64
  %v465 = vpop.f32.mrf.mxu0
  %v466 = vadd.f32 %v296, %v465
  %v467 = vpop.f32.mrf.mxu0
  %468 = vmatprep.mubr.f32.mxu0 %v69
  %469 = vmatmul.mubr.f32.gmra.mxu0 %v68
  %v470 = vpop.f32.mrf.mxu0
  %v471 = vadd.f32 %v301, %v470
  %v472 = vpop.f32.mrf.mxu0
  %473 = vmatprep.mubr.f32.mxu0 %v73
  %474 = vmatmul.mubr.f32.gmra.mxu0 %v72
  %v475 = vpop.f32.mrf.mxu0
  %v476 = vadd.f32 %v306, %v475
  %v477 = vpop.f32.mrf.mxu0
  %478 = vmatprep.mubr.f32.mxu0 %v77
  %479 = vmatmul.mubr.f32.gmra.mxu0 %v76
  %v480 = vpop.f32.mrf.mxu0
  %v481 = vadd.f32 %v311, %v480
  %v482 = vpop.f32.mrf.mxu0
  %483 = vmatprep.mubr.f32.mxu0 %v81
  %484 = vmatmul.mubr.f32.gmra.mxu0 %v80
  %v485 = vpop.f32.mrf.mxu0
  %v486 = vadd.f32 %v316, %v485
  %v487 = vpop.f32.mrf.mxu0
  %488 = vmatprep.mubr.f32.mxu0 %v85
  %489 = vmatmul.mubr.f32.gmra.mxu0 %v84
  %v490 = vpop.f32.mrf.mxu0
  %v491 = vadd.f32 %v321, %v490
  %v492 = vpop.f32.mrf.mxu0
  %493 = vmatprep.mubr.f32.mxu0 %v89
  %494 = vmatmul.mubr.f32.gmra.mxu0 %v88
  %v495 = vpop.f32.mrf.mxu0
  %v496 = vadd.f32 %v326, %v495
  %v497 = vpop.f32.mrf.mxu0
  %498 = vmatprep.mubr.f32.mxu0 %v93
  %499 = vmatmul.mubr.f32.gmra.mxu0 %v92
  %v500 = vpop.f32.mrf.mxu0
  %v501 = vadd.f32 %v331, %v500
  %v502 = vpop.f32.mrf.mxu0
  %503 = vmatprep.mubr.f32.mxu0 %v97
  %504 = vmatmul.mubr.f32.gmra.mxu0 %v96
  %v505 = vpop.f32.mrf.mxu0
  %v506 = vadd.f32 %v336, %v505
  %v507 = vpop.f32.mrf.mxu0
  %508 = vdwg.mxu0
  %v509 = vmax.f32 %v406, 0.0
  %v510 = vmax.f32 %v411, 0.0
  %v511 = vmax.f32 %v416, 0.0
  %v512 = vmax.f32 %v421, 0.0
  %v513 = vmax.f32 %v426, 0.0
  %v514 = vmax.f32 %v431, 0.0
  %v515 = vmax.f32 %v436, 0.0
  %v516 = vmax.f32 %v441, 0.0
  %v517 = vmax.f32 %v446, 0.0
  %v518 = vmax.f32 %v451, 0.0
  %v519 = vmax.f32 %v456, 0.0
  %v520 = vmax.f32 %v461, 0.0
  %v521 = vmax.f32 %v466, 0.0
  %v522 = vmax.f32 %v471, 0.0
  %v523 = vmax.f32 %v476, 0.0
  %v524 = vmax.f32 %v481, 0.0
  %v525 = vmax.f32 %v486, 0.0
  %v526 = vmax.f32 %v491, 0.0
  %v527 = vmax.f32 %v496, 0.0
  %v528 = vmax.f32 %v501, 0.0
  %v529 = vmax.f32 %v506, 0.0
  %vm530 = vcmask 523264
  %531 = vst.msk [vmem:[%s3] sm:$0xff] %vm530, %v509
  %532 = vst.msk [vmem:[%s3 + $0x8] sm:$0xff] %vm530, %v510
  %533 = vst.msk [vmem:[%s3 + $0x10] sm:$0xff] %vm530, %v511
  %534 = vst.msk [vmem:[%s3 + $0x18] sm:$0xff] %vm530, %v512
  %535 = vst.msk [vmem:[%s3 + $0x20] sm:$0xff] %vm530, %v513
  %536 = vst.msk [vmem:[%s3 + $0x28] sm:$0xff] %vm530, %v514
  %537 = vst.msk [vmem:[%s3 + $0x30] sm:$0xff] %vm530, %v515
  %538 = vst.msk [vmem:[%s3 + $0x38] sm:$0xff] %vm530, %v516
  %539 = vst.msk [vmem:[%s3 + $0x40] sm:$0xff] %vm530, %v517
  %540 = vst.msk [vmem:[%s3 + $0x48] sm:$0xff] %vm530, %v518
  %541 = vst.msk [vmem:[%s3 + $0x50] sm:$0xff] %vm530, %v519
  %542 = vst.msk [vmem:[%s3 + $0x58] sm:$0xff] %vm530, %v520
  %543 = vst.msk [vmem:[%s3 + $0x60] sm:$0xff] %vm530, %v521
  %544 = vst.msk [vmem:[%s3 + $0x68] sm:$0xff] %vm530, %v522
  %545 = vst.msk [vmem:[%s3 + $0x70] sm:$0xff] %vm530, %v523
  %546 = vst.msk [vmem:[%s3 + $0x78] sm:$0xff] %vm530, %v524
  %547 = vst.msk [vmem:[%s3 + $0x80] sm:$0xff] %vm530, %v525
  %548 = vst.msk [vmem:[%s3 + $0x88] sm:$0xff] %vm530, %v526
  %549 = vst.msk [vmem:[%s3 + $0x90] sm:$0xff] %vm530, %v527
  %550 = vst.msk [vmem:[%s3 + $0x98] sm:$0xff] %vm530, %v528
  %vm551 = vcmask 517120
  %552 = vst.msk [vmem:[%s3 + $0xa0] sm:$0x3] %vm551, %v529
  // Predicated region
  $region14: #{forward.5} parent=0 // pred_check
    _
  $region15: #{forward.5} parent=0 // pred_check_branch
    %554 = sbr.rel (0) target = $region17
  $region16: #{forward.5} parent=0 // pred_region
    _
  $region17: #{forward.5} parent=0 // pred_fallthru
    _
  // Predicated region
  $region18: #{forward.5} parent=0 // pred_check
    _
  $region19: #{forward.5} parent=0 // pred_check_branch
    %556 = sbr.rel (0) target = $region21
  $region20: #{forward.5} parent=0 // pred_region
    _
  $region21: #{forward.5} parent=0 // pred_fallthru
    _

// kernel: forward.6
$region0: #{forward.6}
  #allocation0 [shape = 'u32[]', space=smem, size = 0x4, offset = 0x4, fixed_abs, tag = 'smem constant byte address 0x4 - core index']
  #allocation1 [shape = 'u32[144,128]{1,0:T(1,128)}', space=vmem, size = 0x12000, scoped, tag = 'internal scratch']
  %s0 = inlined_call_operand.vmem [shape: f32[98,576], index: 0, kind: input, shape index: {}]
  %s1 = inlined_call_operand.vmem [shape: f32[576,64], index: 1, kind: input, shape index: {}]
  %s2 = inlined_call_operand.vmem [shape: f32[1,64], index: 2, kind: input, shape index: {}]
  %s3 = inlined_call_operand.vmem [shape: bf16[98,64], index: 3, kind: output, shape index: {}]
  %s4 = sld [smem:[#allocation0]]
  $region22: #{forward.6} parent=0
    _
  %s6 = ssub.s32 1, %s4
  %s7 = scalar_select 0, %s6, %s4
  // Predicated region
  $region2: #{forward.6} parent=0 // pred_check
    _
  $region3: #{forward.6} parent=0 // pred_check_branch
    %9 = sbr.rel (0) target = $region5
  $region4: #{forward.6} parent=0 // pred_region
    _
  $region5: #{forward.6} parent=0 // pred_fallthru
    _
  // Predicated region
  $region6: #{forward.6} parent=0 // pred_check
    _
  $region7: #{forward.6} parent=0 // pred_check_branch
    %11 = sbr.rel (0) target = $region9
  $region8: #{forward.6} parent=0 // pred_region
    _
  $region9: #{forward.6} parent=0 // pred_fallthru
    _
  // Predicated region
  $region10: #{forward.6} parent=0 // pred_check
    _
  $region11: #{forward.6} parent=0 // pred_check_branch
    %13 = sbr.rel (0) target = $region13
  $region12: #{forward.6} parent=0 // pred_region
    _
  $region13: #{forward.6} parent=0 // pred_fallthru
    _
  %v14 = vld [vmem:[%s0] sm:$0xff]
  %v15 = vld [vmem:[%s0 + $0x8] sm:$0xff]
  %v16 = vld [vmem:[%s0 + $0x10] sm:$0xff]
  %v17 = vld [vmem:[%s0 + $0x18] sm:$0xff]
  %v18 = vld [vmem:[%s0 + $0x20] sm:$0xff]
  %v19 = vld [vmem:[%s0 + $0x28] sm:$0xff]
  %v20 = vld [vmem:[%s0 + $0x30] sm:$0xff]
  %v21 = vld [vmem:[%s0 + $0x38] sm:$0xff]
  %v22 = vld [vmem:[%s0 + $0x40] sm:$0xff]
  %v23 = vld [vmem:[%s0 + $0x48] sm:$0xff]
  %v24 = vld [vmem:[%s0 + $0x50] sm:$0xff]
  %v25 = vld [vmem:[%s0 + $0x58] sm:$0xff]
  %v26 = vld [vmem:[%s0 + $0x60] sm:$0xff]
  %v27 = vld [vmem:[%s0 + $0x68] sm:$0xff]
  %v28 = vld [vmem:[%s0 + $0x70] sm:$0xff]
  %v29 = vld [vmem:[%s0 + $0x78] sm:$0xff]
  %v30 = vld [vmem:[%s0 + $0x80] sm:$0xff]
  %v31 = vld [vmem:[%s0 + $0x88] sm:$0xff]
  %v32 = vld [vmem:[%s0 + $0x90] sm:$0xff]
  %v33 = vld [vmem:[%s0 + $0x98] sm:$0xff]
  %v34 = vld [vmem:[%s0 + $0xa0] sm:$0xff]
  %v35 = vld [vmem:[%s0 + $0xa8] sm:$0xff]
  %v36 = vld [vmem:[%s0 + $0xb0] sm:$0xff]
  %v37 = vld [vmem:[%s0 + $0xb8] sm:$0xff]
  %v38 = vld [vmem:[%s0 + $0xc0] sm:$0xff]
  %v39 = vld [vmem:[%s0 + $0xc8] sm:$0xff]
  %v40 = vld [vmem:[%s0 + $0xd0] sm:$0xff]
  %v41 = vld [vmem:[%s0 + $0xd8] sm:$0xff]
  %v42 = vld [vmem:[%s0 + $0xe0] sm:$0xff]
  %v43 = vld [vmem:[%s0 + $0xe8] sm:$0xff]
  %v44 = vld [vmem:[%s0 + $0xf0] sm:$0xff]
  %v45 = vld [vmem:[%s0 + $0xf8] sm:$0xff]
  %v46 = vld [vmem:[%s0 + $0x100] sm:$0xff]
  %v47 = vld [vmem:[%s0 + $0x108] sm:$0xff]
  %v48 = vld [vmem:[%s0 + $0x110] sm:$0xff]
  %v49 = vld [vmem:[%s0 + $0x118] sm:$0xff]
  %v50 = vld [vmem:[%s0 + $0x120] sm:$0xff]
  %v51 = vld [vmem:[%s0 + $0x128] sm:$0xff]
  %v52 = vld [vmem:[%s0 + $0x130] sm:$0xff]
  %v53 = vld [vmem:[%s0 + $0x138] sm:$0xff]
  %v54 = vld [vmem:[%s0 + $0x140] sm:$0xff]
  %v55 = vld [vmem:[%s0 + $0x148] sm:$0xff]
  %v56 = vld [vmem:[%s0 + $0x150] sm:$0xff]
  %v57 = vld [vmem:[%s0 + $0x158] sm:$0xff]
  %v58 = vld [vmem:[%s0 + $0x160] sm:$0xff]
  %v59 = vld [vmem:[%s0 + $0x168] sm:$0xff]
  %v60 = vld [vmem:[%s0 + $0x170] sm:$0xff]
  %v61 = vld [vmem:[%s0 + $0x178] sm:$0xff]
  %v62 = vld [vmem:[%s0 + $0x180] sm:$0xff]
  %v63 = vld [vmem:[%s0 + $0x188] sm:$0xff]
  %v64 = vld [vmem:[%s0 + $0x190] sm:$0xff]
  %v65 = vld [vmem:[%s0 + $0x198] sm:$0xff]
  %v66 = vld [vmem:[%s0 + $0x1a0] sm:$0xff]
  %v67 = vld [vmem:[%s0 + $0x1a8] sm:$0xff]
  %v68 = vld [vmem:[%s0 + $0x1b0] sm:$0xff]
  %v69 = vld [vmem:[%s0 + $0x1b8] sm:$0xff]
  %v70 = vld [vmem:[%s0 + $0x1c0] sm:$0xff]
  %v71 = vld [vmem:[%s0 + $0x1c8] sm:$0xff]
  %v72 = vld [vmem:[%s0 + $0x1d0] sm:$0xff]
  %v73 = vld [vmem:[%s0 + $0x1d8] sm:$0xff]
  %v74 = vld [vmem:[%s0 + $0x1e0] sm:$0x3]
  %v75 = vld [vmem:[%s0 + $0x1e8] sm:$0x3]
  %v76 = vld [vmem:[%s0 + $0x1f0] sm:$0x3]
  %v77 = vld [vmem:[%s0 + $0x1f8] sm:$0x3]
  %v78 = vld [vmem:[%s0 + $0x200] sm:$0x3]
  %v79 = vld [vmem:[%s1] sm:$0xff]
  %v80 = vld [vmem:[%s1 + $0x8] sm:$0xff]
  %v81 = vld [vmem:[%s1 + $0x10] sm:$0xff]
  %v82 = vld [vmem:[%s1 + $0x18] sm:$0xff]
  %v83 = vld [vmem:[%s1 + $0x20] sm:$0xff]
  %v84 = vld [vmem:[%s1 + $0x28] sm:$0xff]
  %v85 = vld [vmem:[%s1 + $0x30] sm:$0xff]
  %v86 = vld [vmem:[%s1 + $0x38] sm:$0xff]
  %v87 = vld [vmem:[%s1 + $0x40] sm:$0xff]
  %v88 = vld [vmem:[%s1 + $0x48] sm:$0xff]
  %v89 = vld [vmem:[%s1 + $0x50] sm:$0xff]
  %v90 = vld [vmem:[%s1 + $0x58] sm:$0xff]
  %v91 = vld [vmem:[%s1 + $0x60] sm:$0xff]
  %v92 = vld [vmem:[%s1 + $0x68] sm:$0xff]
  %v93 = vld [vmem:[%s1 + $0x70] sm:$0xff]
  %v94 = vld [vmem:[%s1 + $0x78] sm:$0xff]
  %v95 = vld [vmem:[%s1 + $0x80] sm:$0xff]
  %v96 = vld [vmem:[%s1 + $0x88] sm:$0xff]
  %v97 = vld [vmem:[%s1 + $0x90] sm:$0xff]
  %v98 = vld [vmem:[%s1 + $0x98] sm:$0xff]
  %v99 = vld [vmem:[%s1 + $0xa0] sm:$0xff]
  %v100 = vld [vmem:[%s1 + $0xa8] sm:$0xff]
  %v101 = vld [vmem:[%s1 + $0xb0] sm:$0xff]
  %v102 = vld [vmem:[%s1 + $0xb8] sm:$0xff]
  %v103 = vld [vmem:[%s1 + $0xc0] sm:$0xff]
  %v104 = vld [vmem:[%s1 + $0xc8] sm:$0xff]
  %v105 = vld [vmem:[%s1 + $0xd0] sm:$0xff]
  %v106 = vld [vmem:[%s1 + $0xd8] sm:$0xff]
  %v107 = vld [vmem:[%s1 + $0xe0] sm:$0xff]
  %v108 = vld [vmem:[%s1 + $0xe8] sm:$0xff]
  %v109 = vld [vmem:[%s1 + $0xf0] sm:$0xff]
  %v110 = vld [vmem:[%s1 + $0xf8] sm:$0xff]
  %v111 = vld [vmem:[%s1 + $0x100] sm:$0xff]
  %v112 = vld [vmem:[%s1 + $0x108] sm:$0xff]
  %v113 = vld [vmem:[%s1 + $0x110] sm:$0xff]
  %v114 = vld [vmem:[%s1 + $0x118] sm:$0xff]
  %v115 = vld [vmem:[%s1 + $0x120] sm:$0xff]
  %v116 = vld [vmem:[%s1 + $0x128] sm:$0xff]
  %v117 = vld [vmem:[%s1 + $0x130] sm:$0xff]
  %v118 = vld [vmem:[%s1 + $0x138] sm:$0xff]
  %v119 = vld [vmem:[%s1 + $0x140] sm:$0xff]
  %v120 = vld [vmem:[%s1 + $0x148] sm:$0xff]
  %v121 = vld [vmem:[%s1 + $0x150] sm:$0xff]
  %v122 = vld [vmem:[%s1 + $0x158] sm:$0xff]
  %v123 = vld [vmem:[%s1 + $0x160] sm:$0xff]
  %v124 = vld [vmem:[%s1 + $0x168] sm:$0xff]
  %v125 = vld [vmem:[%s1 + $0x170] sm:$0xff]
  %v126 = vld [vmem:[%s1 + $0x178] sm:$0xff]
  %v127 = vld [vmem:[%s1 + $0x180] sm:$0xff]
  %v128 = vld [vmem:[%s1 + $0x188] sm:$0xff]
  %v129 = vld [vmem:[%s1 + $0x190] sm:$0xff]
  %v130 = vld [vmem:[%s1 + $0x198] sm:$0xff]
  %v131 = vld [vmem:[%s1 + $0x1a0] sm:$0xff]
  %v132 = vld [vmem:[%s1 + $0x1a8] sm:$0xff]
  %v133 = vld [vmem:[%s1 + $0x1b0] sm:$0xff]
  %v134 = vld [vmem:[%s1 + $0x1b8] sm:$0xff]
  %v135 = vld [vmem:[%s1 + $0x1c0] sm:$0xff]
  %v136 = vld [vmem:[%s1 + $0x1c8] sm:$0xff]
  %v137 = vld [vmem:[%s1 + $0x1d0] sm:$0xff]
  %v138 = vld [vmem:[%s1 + $0x1d8] sm:$0xff]
  %v139 = vld [vmem:[%s1 + $0x1e0] sm:$0xff]
  %v140 = vld [vmem:[%s1 + $0x1e8] sm:$0xff]
  %v141 = vld [vmem:[%s1 + $0x1f0] sm:$0xff]
  %v142 = vld [vmem:[%s1 + $0x1f8] sm:$0xff]
  %v143 = vld [vmem:[%s1 + $0x200] sm:$0xff]
  %v144 = vld [vmem:[%s1 + $0x208] sm:$0xff]
  %v145 = vld [vmem:[%s1 + $0x210] sm:$0xff]
  %v146 = vld [vmem:[%s1 + $0x218] sm:$0xff]
  %v147 = vld [vmem:[%s1 + $0x220] sm:$0xff]
  %v148 = vld [vmem:[%s1 + $0x228] sm:$0xff]
  %v149 = vld [vmem:[%s1 + $0x230] sm:$0xff]
  %v150 = vld [vmem:[%s1 + $0x238] sm:$0xff]
  %v151 = vld [vmem:[%s2] sm:$0x1]
  %v153 = vlaneseq
  %v154 = vshrl.u32 %v153, 7
  %v155 = vsub.s32 0, %v154
  %v156 = vrot.slane %v151, %v155
  %vm158 = vcmask 523264
  %v160 = vsel %vm158, %v18, 0
  %v163 = vsel %vm158, %v23, 0
  %v166 = vsel %vm158, %v28, 0
  %v169 = vsel %vm158, %v33, 0
  %v172 = vsel %vm158, %v38, 0
  %v175 = vsel %vm158, %v43, 0
  %v178 = vsel %vm158, %v48, 0
  %v181 = vsel %vm158, %v53, 0
  %v184 = vsel %vm158, %v58, 0
  %v187 = vsel %vm158, %v63, 0
  %v190 = vsel %vm158, %v68, 0
  %v193 = vsel %vm158, %v73, 0
  %v196 = vsel %vm158, %v78, 0
  %198 = vmatprep.subr.mxu0 0.0
  %199 = vmatpush1.msra.mxu0 %v94
  %200 = vmatprep.subr.mxu0 0.0
  %201 = vmatpush1.msra.mxu0 %v93
  %202 = vmatprep.subr.mxu0 0.0
  %203 = vmatpush1.msra.mxu0 %v92
  %204 = vmatprep.subr.mxu0 0.0
  %205 = vmatpush1.msra.mxu0 %v91
  %206 = vmatprep.subr.mxu0 0.0
  %207 = vmatpush1.msra.mxu0 %v90
  %208 = vmatprep.subr.mxu0 0.0
  %209 = vmatpush1.msra.mxu0 %v89
  %210 = vmatprep.subr.mxu0 0.0
  %211 = vmatpush1.msra.mxu0 %v88
  %212 = vmatprep.subr.mxu0 0.0
  %213 = vmatpush1.msra.mxu0 %v87
  %214 = vmatprep.subr.mxu0 0.0
  %215 = vmatpush1.msra.mxu0 %v86
  %216 = vmatprep.subr.mxu0 0.0
  %217 = vmatpush1.msra.mxu0 %v85
  %218 = vmatprep.subr.mxu0 0.0
  %219 = vmatpush1.msra.mxu0 %v84
  %220 = vmatprep.subr.mxu0 0.0
  %221 = vmatpush1.msra.mxu0 %v83
  %222 = vmatprep.subr.mxu0 0.0
  %223 = vmatpush1.msra.mxu0 %v82
  %224 = vmatprep.subr.mxu0 0.0
  %225 = vmatpush1.msra.mxu0 %v81
  %226 = vmatprep.subr.mxu0 0.0
  %227 = vmatpush1.msra.mxu0 %v80
  %228 = vmatprep.subr.mxu0 0.0
  %229 = vmatpush1.msra.mxu0 %v79
  %230 = vmatprep.subr.mxu0 0.0
  %231 = vmatpush2.msra.mxu0 %v110
  %232 = vmatprep.subr.mxu0 0.0
  %233 = vmatpush2.msra.mxu0 %v109
  %234 = vmatprep.subr.mxu0 0.0
  %235 = vmatpush2.msra.mxu0 %v108
  %236 = vmatprep.subr.mxu0 0.0
  %237 = vmatpush2.msra.mxu0 %v107
  %238 = vmatprep.subr.mxu0 0.0
  %239 = vmatpush2.msra.mxu0 %v106
  %240 = vmatprep.subr.mxu0 0.0
  %241 = vmatpush2.msra.mxu0 %v105
  %242 = vmatprep.subr.mxu0 0.0
  %243 = vmatpush2.msra.mxu0 %v104
  %244 = vmatprep.subr.mxu0 0.0
  %245 = vmatpush2.msra.mxu0 %v103
  %246 = vmatprep.subr.mxu0 0.0
  %247 = vmatpush2.msra.mxu0 %v102
  %248 = vmatprep.subr.mxu0 0.0
  %249 = vmatpush2.msra.mxu0 %v101
  %250 = vmatprep.subr.mxu0 0.0
  %251 = vmatpush2.msra.mxu0 %v100
  %252 = vmatprep.subr.mxu0 0.0
  %253 = vmatpush2.msra.mxu0 %v99
  %254 = vmatprep.subr.mxu0 0.0
  %255 = vmatpush2.msra.mxu0 %v98
  %256 = vmatprep.subr.mxu0 0.0
  %257 = vmatpush2.msra.mxu0 %v97
  %258 = vmatprep.subr.mxu0 0.0
  %259 = vmatpush2.msra.mxu0 %v96
  %260 = vmatprep.subr.mxu0 0.0
  %261 = vmatpush2.msra.mxu0 %v95
  %262 = vmatprep.mubr.f32.mxu0 %v15
  %263 = vmatmul.mubr.f32.gmra.mxu0 %v14
  %v264 = vpop.f32.mrf.mxu0
  %v265 = vadd.f32 %v156, %v264
  %v266 = vpop.f32.mrf.mxu0
  %267 = vmatprep.mubr.f32.mxu0 %v20
  %268 = vmatmul.mubr.f32.gmra.mxu0 %v19
  %v269 = vpop.f32.mrf.mxu0
  %v270 = vadd.f32 %v156, %v269
  %v271 = vpop.f32.mrf.mxu0
  %272 = vmatprep.mubr.f32.mxu0 %v25
  %273 = vmatmul.mubr.f32.gmra.mxu0 %v24
  %v274 = vpop.f32.mrf.mxu0
  %v275 = vadd.f32 %v156, %v274
  %v276 = vpop.f32.mrf.mxu0
  %277 = vmatprep.mubr.f32.mxu0 %v30
  %278 = vmatmul.mubr.f32.gmra.mxu0 %v29
  %v279 = vpop.f32.mrf.mxu0
  %v280 = vadd.f32 %v156, %v279
  %v281 = vpop.f32.mrf.mxu0
  %282 = vmatprep.mubr.f32.mxu0 %v35
  %283 = vmatmul.mubr.f32.gmra.mxu0 %v34
  %v284 = vpop.f32.mrf.mxu0
  %v285 = vadd.f32 %v156, %v284
  %v286 = vpop.f32.mrf.mxu0
  %287 = vmatprep.mubr.f32.mxu0 %v40
  %288 = vmatmul.mubr.f32.gmra.mxu0 %v39
  %v289 = vpop.f32.mrf.mxu0
  %v290 = vadd.f32 %v156, %v289
  %v291 = vpop.f32.mrf.mxu0
  %292 = vmatprep.mubr.f32.mxu0 %v45
  %293 = vmatmul.mubr.f32.gmra.mxu0 %v44
  %v294 = vpop.f32.mrf.mxu0
  %v295 = vadd.f32 %v156, %v294
  %v296 = vpop.f32.mrf.mxu0
  %297 = vmatprep.mubr.f32.mxu0 %v50
  %298 = vmatmul.mubr.f32.gmra.mxu0 %v49
  %v299 = vpop.f32.mrf.mxu0
  %v300 = vadd.f32 %v156, %v299
  %v301 = vpop.f32.mrf.mxu0
  %302 = vmatprep.mubr.f32.mxu0 %v55
  %303 = vmatmul.mubr.f32.gmra.mxu0 %v54
  %v304 = vpop.f32.mrf.mxu0
  %v305 = vadd.f32 %v156, %v304
  %v306 = vpop.f32.mrf.mxu0
  %307 = vmatprep.mubr.f32.mxu0 %v60
  %308 = vmatmul.mubr.f32.gmra.mxu0 %v59
  %v309 = vpop.f32.mrf.mxu0
  %v310 = vadd.f32 %v156, %v309
  %v311 = vpop.f32.mrf.mxu0
  %312 = vmatprep.mubr.f32.mxu0 %v65
  %313 = vmatmul.mubr.f32.gmra.mxu0 %v64
  %v314 = vpop.f32.mrf.mxu0
  %v315 = vadd.f32 %v156, %v314
  %v316 = vpop.f32.mrf.mxu0
  %317 = vmatprep.mubr.f32.mxu0 %v70
  %318 = vmatmul.mubr.f32.gmra.mxu0 %v69
  %v319 = vpop.f32.mrf.mxu0
  %v320 = vadd.f32 %v156, %v319
  %v321 = vpop.f32.mrf.mxu0
  %322 = vmatprep.mubr.f32.mxu0 %v75
  %323 = vmatmul.mubr.f32.gmra.mxu0 %v74
  %v324 = vpop.f32.mrf.mxu0
  %v325 = vadd.f32 %v156, %v324
  %v326 = vpop.f32.mrf.mxu0
  %327 = vdwg.mxu0
  %328 = vmatprep.subr.mxu0 0.0
  %329 = vmatpush1.msra.mxu0 %v126
  %330 = vmatprep.subr.mxu0 0.0
  %331 = vmatpush1.msra.mxu0 %v125
  %332 = vmatprep.subr.mxu0 0.0
  %333 = vmatpush1.msra.mxu0 %v124
  %334 = vmatprep.subr.mxu0 0.0
  %335 = vmatpush1.msra.mxu0 %v123
  %336 = vmatprep.subr.mxu0 0.0
  %337 = vmatpush1.msra.mxu0 %v122
  %338 = vmatprep.subr.mxu0 0.0
  %339 = vmatpush1.msra.mxu0 %v121
  %340 = vmatprep.subr.mxu0 0.0
  %341 = vmatpush1.msra.mxu0 %v120
  %342 = vmatprep.subr.mxu0 0.0
  %343 = vmatpush1.msra.mxu0 %v119
  %344 = vmatprep.subr.mxu0 0.0
  %345 = vmatpush1.msra.mxu0 %v118
  %346 = vmatprep.subr.mxu0 0.0
  %347 = vmatpush1.msra.mxu0 %v117
  %348 = vmatprep.subr.mxu0 0.0
  %349 = vmatpush1.msra.mxu0 %v116
  %350 = vmatprep.subr.mxu0 0.0
  %351 = vmatpush1.msra.mxu0 %v115
  %352 = vmatprep.subr.mxu0 0.0
  %353 = vmatpush1.msra.mxu0 %v114
  %354 = vmatprep.subr.mxu0 0.0
  %355 = vmatpush1.msra.mxu0 %v113
  %356 = vmatprep.subr.mxu0 0.0
  %357 = vmatpush1.msra.mxu0 %v112
  %358 = vmatprep.subr.mxu0 0.0
  %359 = vmatpush1.msra.mxu0 %v111
  %360 = vmatprep.subr.mxu0 0.0
  %361 = vmatpush2.msra.mxu0 %v142
  %362 = vmatprep.subr.mxu0 0.0
  %363 = vmatpush2.msra.mxu0 %v141
  %364 = vmatprep.subr.mxu0 0.0
  %365 = vmatpush2.msra.mxu0 %v140
  %366 = vmatprep.subr.mxu0 0.0
  %367 = vmatpush2.msra.mxu0 %v139
  %368 = vmatprep.subr.mxu0 0.0
  %369 = vmatpush2.msra.mxu0 %v138
  %370 = vmatprep.subr.mxu0 0.0
  %371 = vmatpush2.msra.mxu0 %v137
  %372 = vmatprep.subr.mxu0 0.0
  %373 = vmatpush2.msra.mxu0 %v136
  %374 = vmatprep.subr.mxu0 0.0
  %375 = vmatpush2.msra.mxu0 %v135
  %376 = vmatprep.subr.mxu0 0.0
  %377 = vmatpush2.msra.mxu0 %v134
  %378 = vmatprep.subr.mxu0 0.0
  %379 = vmatpush2.msra.mxu0 %v133
  %380 = vmatprep.subr.mxu0 0.0
  %381 = vmatpush2.msra.mxu0 %v132
  %382 = vmatprep.subr.mxu0 0.0
  %383 = vmatpush2.msra.mxu0 %v131
  %384 = vmatprep.subr.mxu0 0.0
  %385 = vmatpush2.msra.mxu0 %v130
  %386 = vmatprep.subr.mxu0 0.0
  %387 = vmatpush2.msra.mxu0 %v129
  %388 = vmatprep.subr.mxu0 0.0
  %389 = vmatpush2.msra.mxu0 %v128
  %390 = vmatprep.subr.mxu0 0.0
  %391 = vmatpush2.msra.mxu0 %v127
  %392 = vmatprep.mubr.f32.mxu0 %v17
  %393 = vmatmul.mubr.f32.gmra.mxu0 %v16
  %v394 = vpop.f32.mrf.mxu0
  %v395 = vadd.f32 %v265, %v394
  %v396 = vpop.f32.mrf.mxu0
  %397 = vmatprep.mubr.f32.mxu0 %v22
  %398 = vmatmul.mubr.f32.gmra.mxu0 %v21
  %v399 = vpop.f32.mrf.mxu0
  %v400 = vadd.f32 %v270, %v399
  %v401 = vpop.f32.mrf.mxu0
  %402 = vmatprep.mubr.f32.mxu0 %v27
  %403 = vmatmul.mubr.f32.gmra.mxu0 %v26
  %v404 = vpop.f32.mrf.mxu0
  %v405 = vadd.f32 %v275, %v404
  %v406 = vpop.f32.mrf.mxu0
  %407 = vmatprep.mubr.f32.mxu0 %v32
  %408 = vmatmul.mubr.f32.gmra.mxu0 %v31
  %v409 = vpop.f32.mrf.mxu0
  %v410 = vadd.f32 %v280, %v409
  %v411 = vpop.f32.mrf.mxu0
  %412 = vmatprep.mubr.f32.mxu0 %v37
  %413 = vmatmul.mubr.f32.gmra.mxu0 %v36
  %v414 = vpop.f32.mrf.mxu0
  %v415 = vadd.f32 %v285, %v414
  %v416 = vpop.f32.mrf.mxu0
  %417 = vmatprep.mubr.f32.mxu0 %v42
  %418 = vmatmul.mubr.f32.gmra.mxu0 %v41
  %v419 = vpop.f32.mrf.mxu0
  %v420 = vadd.f32 %v290, %v419
  %v421 = vpop.f32.mrf.mxu0
  %422 = vmatprep.mubr.f32.mxu0 %v47
  %423 = vmatmul.mubr.f32.gmra.mxu0 %v46
  %v424 = vpop.f32.mrf.mxu0
  %v425 = vadd.f32 %v295, %v424
  %v426 = vpop.f32.mrf.mxu0
  %427 = vmatprep.mubr.f32.mxu0 %v52
  %428 = vmatmul.mubr.f32.gmra.mxu0 %v51
  %v429 = vpop.f32.mrf.mxu0
  %v430 = vadd.f32 %v300, %v429
  %v431 = vpop.f32.mrf.mxu0
  %432 = vmatprep.mubr.f32.mxu0 %v57
  %433 = vmatmul.mubr.f32.gmra.mxu0 %v56
  %v434 = vpop.f32.mrf.mxu0
  %v435 = vadd.f32 %v305, %v434
  %v436 = vpop.f32.mrf.mxu0
  %437 = vmatprep.mubr.f32.mxu0 %v62
  %438 = vmatmul.mubr.f32.gmra.mxu0 %v61
  %v439 = vpop.f32.mrf.mxu0
  %v440 = vadd.f32 %v310, %v439
  %v441 = vpop.f32.mrf.mxu0
  %442 = vmatprep.mubr.f32.mxu0 %v67
  %443 = vmatmul.mubr.f32.gmra.mxu0 %v66
  %v444 = vpop.f32.mrf.mxu0
  %v445 = vadd.f32 %v315, %v444
  %v446 = vpop.f32.mrf.mxu0
  %447 = vmatprep.mubr.f32.mxu0 %v72
  %448 = vmatmul.mubr.f32.gmra.mxu0 %v71
  %v449 = vpop.f32.mrf.mxu0
  %v450 = vadd.f32 %v320, %v449
  %v451 = vpop.f32.mrf.mxu0
  %452 = vmatprep.mubr.f32.mxu0 %v77
  %453 = vmatmul.mubr.f32.gmra.mxu0 %v76
  %v454 = vpop.f32.mrf.mxu0
  %v455 = vadd.f32 %v325, %v454
  %v456 = vpop.f32.mrf.mxu0
  %457 = vdwg.mxu0
  %458 = vmatprep.subr.mxu0 0.0
  %459 = vmatpush1.msra.mxu0 0.0
  %460 = vmatprep.subr.mxu0 0.0
  %461 = vmatpush1.msra.mxu0 0.0
  %462 = vmatprep.subr.mxu0 0.0
  %463 = vmatpush1.msra.mxu0 0.0
  %464 = vmatprep.subr.mxu0 0.0
  %465 = vmatpush1.msra.mxu0 0.0
  %466 = vmatprep.subr.mxu0 0.0
  %467 = vmatpush1.msra.mxu0 0.0
  %468 = vmatprep.subr.mxu0 0.0
  %469 = vmatpush1.msra.mxu0 0.0
  %470 = vmatprep.subr.mxu0 0.0
  %471 = vmatpush1.msra.mxu0 0.0
  %472 = vmatprep.subr.mxu0 0.0
  %473 = vmatpush1.msra.mxu0 0.0
  %474 = vmatprep.subr.mxu0 0.0
  %475 = vmatpush1.msra.mxu0 %v150
  %476 = vmatprep.subr.mxu0 0.0
  %477 = vmatpush1.msra.mxu0 %v149
  %478 = vmatprep.subr.mxu0 0.0
  %479 = vmatpush1.msra.mxu0 %v148
  %480 = vmatprep.subr.mxu0 0.0
  %481 = vmatpush1.msra.mxu0 %v147
  %482 = vmatprep.subr.mxu0 0.0
  %483 = vmatpush1.msra.mxu0 %v146
  %484 = vmatprep.subr.mxu0 0.0
  %485 = vmatpush1.msra.mxu0 %v145
  %486 = vmatprep.subr.mxu0 0.0
  %487 = vmatpush1.msra.mxu0 %v144
  %488 = vmatprep.subr.mxu0 0.0
  %489 = vmatpush1.msra.mxu0 %v143
  %490 = vmatprep.subr.mxu0 0.0
  %491 = vmatpush2.msra.mxu0 0.0
  %492 = vmatprep.subr.mxu0 0.0
  %493 = vmatpush2.msra.mxu0 0.0
  %494 = vmatprep.subr.mxu0 0.0
  %495 = vmatpush2.msra.mxu0 0.0
  %496 = vmatprep.subr.mxu0 0.0
  %497 = vmatpush2.msra.mxu0 0.0
  %498 = vmatprep.subr.mxu0 0.0
  %499 = vmatpush2.msra.mxu0 0.0
  %500 = vmatprep.subr.mxu0 0.0
  %501 = vmatpush2.msra.mxu0 0.0
  %502 = vmatprep.subr.mxu0 0.0
  %503 = vmatpush2.msra.mxu0 0.0
  %504 = vmatprep.subr.mxu0 0.0
  %505 = vmatpush2.msra.mxu0 0.0
  %506 = vmatprep.subr.mxu0 0.0
  %507 = vmatpush2.msra.mxu0 0.0
  %508 = vmatprep.subr.mxu0 0.0
  %509 = vmatpush2.msra.mxu0 0.0
  %510 = vmatprep.subr.mxu0 0.0
  %511 = vmatpush2.msra.mxu0 0.0
  %512 = vmatprep.subr.mxu0 0.0
  %513 = vmatpush2.msra.mxu0 0.0
  %514 = vmatprep.subr.mxu0 0.0
  %515 = vmatpush2.msra.mxu0 0.0
  %516 = vmatprep.subr.mxu0 0.0
  %517 = vmatpush2.msra.mxu0 0.0
  %518 = vmatprep.subr.mxu0 0.0
  %519 = vmatpush2.msra.mxu0 0.0
  %520 = vmatprep.subr.mxu0 0.0
  %521 = vmatpush2.msra.mxu0 0.0
  %522 = vmatprep.mubr.f32.mxu0 0.0
  %523 = vmatmul.mubr.f32.gmra.mxu0 %v160
  %v524 = vpop.f32.mrf.mxu0
  %v525 = vadd.f32 %v395, %v524
  %v526 = vpop.f32.mrf.mxu0
  %527 = vmatprep.mubr.f32.mxu0 0.0
  %528 = vmatmul.mubr.f32.gmra.mxu0 %v163
  %v529 = vpop.f32.mrf.mxu0
  %v530 = vadd.f32 %v400, %v529
  %v531 = vpop.f32.mrf.mxu0
  %532 = vmatprep.mubr.f32.mxu0 0.0
  %533 = vmatmul.mubr.f32.gmra.mxu0 %v166
  %v534 = vpop.f32.mrf.mxu0
  %v535 = vadd.f32 %v405, %v534
  %v536 = vpop.f32.mrf.mxu0
  %537 = vmatprep.mubr.f32.mxu0 0.0
  %538 = vmatmul.mubr.f32.gmra.mxu0 %v169
  %v539 = vpop.f32.mrf.mxu0
  %v540 = vadd.f32 %v410, %v539
  %v541 = vpop.f32.mrf.mxu0
  %542 = vmatprep.mubr.f32.mxu0 0.0
  %543 = vmatmul.mubr.f32.gmra.mxu0 %v172
  %v544 = vpop.f32.mrf.mxu0
  %v545 = vadd.f32 %v415, %v544
  %v546 = vpop.f32.mrf.mxu0
  %547 = vmatprep.mubr.f32.mxu0 0.0
  %548 = vmatmul.mubr.f32.gmra.mxu0 %v175
  %v549 = vpop.f32.mrf.mxu0
  %v550 = vadd.f32 %v420, %v549
  %v551 = vpop.f32.mrf.mxu0
  %552 = vmatprep.mubr.f32.mxu0 0.0
  %553 = vmatmul.mubr.f32.gmra.mxu0 %v178
  %v554 = vpop.f32.mrf.mxu0
  %v555 = vadd.f32 %v425, %v554
  %v556 = vpop.f32.mrf.mxu0
  %557 = vmatprep.mubr.f32.mxu0 0.0
  %558 = vmatmul.mubr.f32.gmra.mxu0 %v181
  %v559 = vpop.f32.mrf.mxu0
  %v560 = vadd.f32 %v430, %v559
  %v561 = vpop.f32.mrf.mxu0
  %562 = vmatprep.mubr.f32.mxu0 0.0
  %563 = vmatmul.mubr.f32.gmra.mxu0 %v184
  %v564 = vpop.f32.mrf.mxu0
  %v565 = vadd.f32 %v435, %v564
  %v566 = vpop.f32.mrf.mxu0
  %567 = vmatprep.mubr.f32.mxu0 0.0
  %568 = vmatmul.mubr.f32.gmra.mxu0 %v187
  %v569 = vpop.f32.mrf.mxu0
  %v570 = vadd.f32 %v440, %v569
  %v571 = vpop.f32.mrf.mxu0
  %572 = vmatprep.mubr.f32.mxu0 0.0
  %573 = vmatmul.mubr.f32.gmra.mxu0 %v190
  %v574 = vpop.f32.mrf.mxu0
  %v575 = vadd.f32 %v445, %v574
  %v576 = vpop.f32.mrf.mxu0
  %577 = vmatprep.mubr.f32.mxu0 0.0
  %578 = vmatmul.mubr.f32.gmra.mxu0 %v193
  %v579 = vpop.f32.mrf.mxu0
  %v580 = vadd.f32 %v450, %v579
  %v581 = vpop.f32.mrf.mxu0
  %582 = vmatprep.mubr.f32.mxu0 0.0
  %583 = vmatmul.mubr.f32.gmra.mxu0 %v196
  %v584 = vpop.f32.mrf.mxu0
  %v585 = vadd.f32 %v455, %v584
  %v586 = vpop.f32.mrf.mxu0
  %587 = vdwg.mxu0
  %v588 = vmax.f32 %v525, 0.0
  %v589 = vmax.f32 %v530, 0.0
  %v590 = vmax.f32 %v535, 0.0
  %v591 = vmax.f32 %v540, 0.0
  %v592 = vmax.f32 %v545, 0.0
  %v593 = vmax.f32 %v550, 0.0
  %v594 = vmax.f32 %v555, 0.0
  %v595 = vmax.f32 %v560, 0.0
  %v596 = vmax.f32 %v565, 0.0
  %v597 = vmax.f32 %v570, 0.0
  %v598 = vmax.f32 %v575, 0.0
  %v599 = vmax.f32 %v580, 0.0
  %v600 = vmax.f32 %v585, 0.0
  %v601 = vpack.c.bf16 %v589, %v588
  %v602 = vpack.c.bf16 %v591, %v590
  %v603 = vpack.c.bf16 %v593, %v592
  %v604 = vpack.c.bf16 %v595, %v594
  %v605 = vpack.c.bf16 %v597, %v596
  %v606 = vpack.c.bf16 %v599, %v598
  %v607 = vpack.c.bf16 %v600, %v600
  %v615 = vunpack.c.l.b16 %v601
  %v616 = vunpack.c.h.b16 %v601
  %v617 = vunpack.c.l.b16 %v602
  %v618 = vunpack.c.h.b16 %v602
  %v619 = vunpack.c.l.b16 %v603
  %v620 = vunpack.c.h.b16 %v603
  %v621 = vunpack.c.l.b16 %v604
  %v622 = vunpack.c.h.b16 %v604
  %v623 = vunpack.c.l.b16 %v605
  %v624 = vunpack.c.h.b16 %v605
  %v625 = vunpack.c.l.b16 %v606
  %v626 = vunpack.c.h.b16 %v606
  %v627 = vunpack.c.l.b16 %v607
  %v628 = vpack.c.b16 %v615, %v615
  %v629 = vpack.c.b16 %v616, %v616
  %v630 = vpack.c.b16 %v617, %v617
  %v631 = vpack.c.b16 %v618, %v618
  %v632 = vpack.c.b16 %v619, %v619
  %v633 = vpack.c.b16 %v620, %v620
  %v634 = vpack.c.b16 %v621, %v621
  %v635 = vpack.c.b16 %v622, %v622
  %v636 = vpack.c.b16 %v623, %v623
  %v637 = vpack.c.b16 %v624, %v624
  %v638 = vpack.c.b16 %v625, %v625
  %v639 = vpack.c.b16 %v626, %v626
  %v640 = vpack.c.b16 %v627, %v627
  %vm654 = vcmask 519168
  %655 = vst.msk [vmem:[%s3] sm:$0xf] %vm654, %v628
  %656 = vst.msk [vmem:[%s3 + $0x4] sm:$0xf] %vm654, %v629
  %657 = vst.msk [vmem:[%s3 + $0x8] sm:$0xf] %vm654, %v630
  %658 = vst.msk [vmem:[%s3 + $0xc] sm:$0xf] %vm654, %v631
  %659 = vst.msk [vmem:[%s3 + $0x10] sm:$0xf] %vm654, %v632
  %660 = vst.msk [vmem:[%s3 + $0x14] sm:$0xf] %vm654, %v633
  %661 = vst.msk [vmem:[%s3 + $0x18] sm:$0xf] %vm654, %v634
  %662 = vst.msk [vmem:[%s3 + $0x1c] sm:$0xf] %vm654, %v635
  %663 = vst.msk [vmem:[%s3 + $0x20] sm:$0xf] %vm654, %v636
  %664 = vst.msk [vmem:[%s3 + $0x24] sm:$0xf] %vm654, %v637
  %665 = vst.msk [vmem:[%s3 + $0x28] sm:$0xf] %vm654, %v638
  %666 = vst.msk [vmem:[%s3 + $0x2c] sm:$0xf] %vm654, %v639
  %vm667 = vcmask 516096
  %668 = vst.msk [vmem:[%s3 + $0x30] sm:$0x1] %vm667, %v640
  // Predicated region
  $region14: #{forward.6} parent=0 // pred_check
    _
  $region15: #{forward.6} parent=0 // pred_check_branch
    %670 = sbr.rel (0) target = $region17
  $region16: #{forward.6} parent=0 // pred_region
    _
  $region17: #{forward.6} parent=0 // pred_fallthru
    _
  // Predicated region
  $region18: #{forward.6} parent=0 // pred_check
    _
  $region19: #{forward.6} parent=0 // pred_check_branch
    %672 = sbr.rel (0) target = $region21
  $region20: #{forward.6} parent=0 // pred_region
    _
  $region21: #{forward.6} parent=0 // pred_fallthru
    _

// kernel: forward.7
$region0: #{forward.7}
  #allocation0 [shape = 'u32[]', space=smem, size = 0x4, offset = 0x4, fixed_abs, tag = 'smem constant byte address 0x4 - core index']
  #allocation1 [shape = 'u32[144,128]{1,0:T(1,128)}', space=vmem, size = 0x12000, scoped, tag = 'internal scratch']
  #allocation2 [shape = 'f32[1,1]{1,0:T(1,128)S(1)}', space=vmem, size = 0x200, scoped, tag = 'scoped memory for forward.7']
  %s0 = inlined_call_operand.vmem [shape: bf16[2,3136], index: 0, kind: input, shape index: {}]
  %s1 = inlined_call_operand.vmem [shape: bf16[3136,1024], index: 1, kind: input, shape index: {}]
  %s2 = inlined_call_operand.vmem [shape: f32[1,1024], index: 2, kind: input, shape index: {}]
  %s3 = inlined_call_operand.vmem [shape: f32[512,6], index: 3, kind: input, shape index: {}]
  %s4 = inlined_call_operand.vmem [shape: f32[1,6], index: 4, kind: input, shape index: {}]
  %s5 = inlined_call_operand.vmem [shape: f32[512,1], index: 5, kind: input, shape index: {}]
  %s6 = inlined_call_operand.<no memory space> [shape: f32[1,1], index: 6, kind: input, shape index: {}]
  %s7 = inlined_call_operand.hbm [shape: f32[2,6], index: 7, kind: output, shape index: {}]
  %s8 = sld [smem:[#allocation0]]
  $region38: #{forward.7} parent=0
    _
  %s10 = ssub.s32 1, %s8
  %s11 = scalar_select 0, %s10, %s8
  %v12 = vstv %s6
  %13 = vst [vmem:[#allocation2] sm:$0x1] %v12
  $region1: #{forward.7} parent=0
    #allocation3 [shape = 'u8[1024]{0}', space=vmem, size = 0x400, scoped, tag = 'output window, operand 0, single buffered']
    #allocation4 [shape = 's32[1]{0}', space=sflag, size = 0x4, scoped, tag = 'scoped memory for forward.7']
    %14 = vsyncpa [#allocation4], 0
    // Predicated region
    $region2: #{forward.7} parent=1 // pred_check
      _
    $region3: #{forward.7} parent=1 // pred_check_branch
      %16 = sbr.rel (0) target = $region5
    $region4: #{forward.7} parent=1 // pred_region
      _
    $region5: #{forward.7} parent=1 // pred_fallthru
      _
    // Predicated region
    $region6: #{forward.7} parent=1 // pred_check
      _
    $region7: #{forward.7} parent=1 // pred_check_branch
      %18 = sbr.rel (0) target = $region9
    $region8: #{forward.7} parent=1 // pred_region
      _
    $region9: #{forward.7} parent=1 // pred_fallthru
      _
    // Predicated region
    $region10: #{forward.7} parent=1 // pred_check
      _
    $region11: #{forward.7} parent=1 // pred_check_branch
      %20 = sbr.rel (0) target = $region13
    $region12: #{forward.7} parent=1 // pred_region
      _
    $region13: #{forward.7} parent=1 // pred_fallthru
      _
    // Predicated region
    $region14: #{forward.7} parent=1 // pred_check
      _
    $region15: #{forward.7} parent=1 // pred_check_branch
      %22 = sbr.rel (0) target = $region17
    $region16: #{forward.7} parent=1 // pred_region
      _
    $region17: #{forward.7} parent=1 // pred_fallthru
      _
    // Predicated region
    $region18: #{forward.7} parent=1 // pred_check
      _
    $region19: #{forward.7} parent=1 // pred_check_branch
      %24 = sbr.rel (0) target = $region21
    $region20: #{forward.7} parent=1 // pred_region
      _
    $region21: #{forward.7} parent=1 // pred_fallthru
      _
    // Predicated region
    $region22: #{forward.7} parent=1 // pred_check
      _
    $region23: #{forward.7} parent=1 // pred_check_branch
      %26 = sbr.rel (0) target = $region25
    $region24: #{forward.7} parent=1 // pred_region
      _
    $region25: #{forward.7} parent=1 // pred_fallthru
      _
    // Predicated region
    $region26: #{forward.7} parent=1 // pred_check
      _
    $region27: #{forward.7} parent=1 // pred_check_branch
      %28 = sbr.rel (0) target = $region29
    $region28: #{forward.7} parent=1 // pred_region
      _
    $region29: #{forward.7} parent=1 // pred_fallthru
      _
    %v30 = vld [vmem:[%s0] sm:$0xff]
    %v31 = vld [vmem:[%s0 + $0x8] sm:$0xff]
    %v32 = vld [vmem:[%s0 + $0x10] sm:$0xff]
    %v33 = vld [vmem:[%s0 + $0x18] sm:$0x1]
    %v34 = vld [vmem:[%s1] sm:$0xff]
    %v35 = vld [vmem:[%s1 + $0x8] sm:$0xff]
    %v36 = vld [vmem:[%s1 + $0x10] sm:$0xff]
    %v37 = vld [vmem:[%s1 + $0x18] sm:$0xff]
    %v38 = vld [vmem:[%s1 + $0x20] sm:$0xff]
    %v39 = vld [vmem:[%s1 + $0x28] sm:$0xff]
    %v40 = vld [vmem:[%s1 + $0x30] sm:$0xff]
    %v41 = vld [vmem:[%s1 + $0x38] sm:$0xff]
    %v42 = vld [vmem:[%s1 + $0x40] sm:$0xff]
    %v43 = vld [vmem:[%s1 + $0x48] sm:$0xff]
    %v44 = vld [vmem:[%s1 + $0x50] sm:$0xff]
    %v45 = vld [vmem:[%s1 + $0x58] sm:$0xff]
    %v46 = vld [vmem:[%s1 + $0x60] sm:$0xff]
    %v47 = vld [vmem:[%s1 + $0x68] sm:$0xff]
    %v48 = vld [vmem:[%s1 + $0x70] sm:$0xff]
    %v49 = vld [vmem:[%s1 + $0x78] sm:$0xff]
    %v50 = vld [vmem:[%s1 + $0x80] sm:$0xff]
    %v51 = vld [vmem:[%s1 + $0x88] sm:$0xff]
    %v52 = vld [vmem:[%s1 + $0x90] sm:$0xff]
    %v53 = vld [vmem:[%s1 + $0x98] sm:$0xff]
    %v54 = vld [vmem:[%s1 + $0xa0] sm:$0xff]
    %v55 = vld [vmem:[%s1 + $0xa8] sm:$0xff]
    %v56 = vld [vmem:[%s1 + $0xb0] sm:$0xff]
    %v57 = vld [vmem:[%s1 + $0xb8] sm:$0xff]
    %v58 = vld [vmem:[%s1 + $0xc0] sm:$0xff]
    %v59 = vld [vmem:[%s1 + $0xc8] sm:$0xff]
    %v60 = vld [vmem:[%s1 + $0xd0] sm:$0xff]
    %v61 = vld [vmem:[%s1 + $0xd8] sm:$0xff]
    %v62 = vld [vmem:[%s1 + $0xe0] sm:$0xff]
    %v63 = vld [vmem:[%s1 + $0xe8] sm:$0xff]
    %v64 = vld [vmem:[%s1 + $0xf0] sm:$0xff]
    %v65 = vld [vmem:[%s1 + $0xf8] sm:$0xff]
    %v66 = vld [vmem:[%s1 + $0x100] sm:$0xff]
    %v67 = vld [vmem:[%s1 + $0x108] sm:$0xff]
    %v68 = vld [vmem:[%s1 + $0x110] sm:$0xff]
    %v69 = vld [vmem:[%s1 + $0x118] sm:$0xff]
    %v70 = vld [vmem:[%s1 + $0x120] sm:$0xff]
    %v71 = vld [vmem:[%s1 + $0x128] sm:$0xff]
    %v72 = vld [vmem:[%s1 + $0x130] sm:$0xff]
    %v73 = vld [vmem:[%s1 + $0x138] sm:$0xff]
    %v74 = vld [vmem:[%s1 + $0x140] sm:$0xff]
    %v75 = vld [vmem:[%s1 + $0x148] sm:$0xff]
    %v76 = vld [vmem:[%s1 + $0x150] sm:$0xff]
    %v77 = vld [vmem:[%s1 + $0x158] sm:$0xff]
    %v78 = vld [vmem:[%s1 + $0x160] sm:$0xff]
    %v79 = vld [vmem:[%s1 + $0x168] sm:$0xff]
    %v80 = vld [vmem:[%s1 + $0x170] sm:$0xff]
    %v81 = vld [vmem:[%s1 + $0x178] sm:$0xff]
    %v82 = vld [vmem:[%s1 + $0x180] sm:$0xff]
    %v83 = vld [vmem:[%s1 + $0x188] sm:$0xff]
    %v84 = vld [vmem:[%s1 + $0x190] sm:$0xff]
    %v85 = vld [vmem:[%s1 + $0x198] sm:$0xff]
    %v86 = vld [vmem:[%s1 + $0x1a0] sm:$0xff]
    %v87 = vld [vmem:[%s1 + $0x1a8] sm:$0xff]
    %v88 = vld [vmem:[%s1 + $0x1b0] sm:$0xff]
    %v89 = vld [vmem:[%s1 + $0x1b8] sm:$0xff]
    %v90 = vld [vmem:[%s1 + $0x1c0] sm:$0xff]
    %v91 = vld [vmem:[%s1 + $0x1c8] sm:$0xff]
    %v92 = vld [vmem:[%s1 + $0x1d0] sm:$0xff]
    %v93 = vld [vmem:[%s1 + $0x1d8] sm:$0xff]
    %v94 = vld [vmem:[%s1 + $0x1e0] sm:$0xff]
    %v95 = vld [vmem:[%s1 + $0x1e8] sm:$0xff]
    %v96 = vld [vmem:[%s1 + $0x1f0] sm:$0xff]
    %v97 = vld [vmem:[%s1 + $0x1f8] sm:$0xff]
    %v98 = vld [vmem:[%s1 + $0x200] sm:$0xff]
    %v99 = vld [vmem:[%s1 + $0x208] sm:$0xff]
    %v100 = vld [vmem:[%s1 + $0x210] sm:$0xff]
    %v101 = vld [vmem:[%s1 + $0x218] sm:$0xff]
    %v102 = vld [vmem:[%s1 + $0x220] sm:$0xff]
    %v103 = vld [vmem:[%s1 + $0x228] sm:$0xff]
    %v104 = vld [vmem:[%s1 + $0x230] sm:$0xff]
    %v105 = vld [vmem:[%s1 + $0x238] sm:$0xff]
    %v106 = vld [vmem:[%s1 + $0x240] sm:$0xff]
    %v107 = vld [vmem:[%s1 + $0x248] sm:$0xff]
    %v108 = vld [vmem:[%s1 + $0x250] sm:$0xff]
    %v109 = vld [vmem:[%s1 + $0x258] sm:$0xff]
    %v110 = vld [vmem:[%s1 + $0x260] sm:$0xff]
    %v111 = vld [vmem:[%s1 + $0x268] sm:$0xff]
    %v112 = vld [vmem:[%s1 + $0x270] sm:$0xff]
    %v113 = vld [vmem:[%s1 + $0x278] sm:$0xff]
    %v114 = vld [vmem:[%s1 + $0x280] sm:$0xff]
    %v115 = vld [vmem:[%s1 + $0x288] sm:$0xff]
    %v116 = vld [vmem:[%s1 + $0x290] sm:$0xff]
    %v117 = vld [vmem:[%s1 + $0x298] sm:$0xff]
    %v118 = vld [vmem:[%s1 + $0x2a0] sm:$0xff]
    %v119 = vld [vmem:[%s1 + $0x2a8] sm:$0xff]
    %v120 = vld [vmem:[%s1 + $0x2b0] sm:$0xff]
    %v121 = vld [vmem:[%s1 + $0x2b8] sm:$0xff]
    %v122 = vld [vmem:[%s1 + $0x2c0] sm:$0xff]
    %v123 = vld [vmem:[%s1 + $0x2c8] sm:$0xff]
    %v124 = vld [vmem:[%s1 + $0x2d0] sm:$0xff]
    %v125 = vld [vmem:[%s1 + $0x2d8] sm:$0xff]
    %v126 = vld [vmem:[%s1 + $0x2e0] sm:$0xff]
    %v127 = vld [vmem:[%s1 + $0x2e8] sm:$0xff]
    %v128 = vld [vmem:[%s1 + $0x2f0] sm:$0xff]
    %v129 = vld [vmem:[%s1 + $0x2f8] sm:$0xff]
    %v130 = vld [vmem:[%s1 + $0x300] sm:$0xff]
    %v131 = vld [vmem:[%s1 + $0x308] sm:$0xff]
    %v132 = vld [vmem:[%s1 + $0x310] sm:$0xff]
    %v133 = vld [vmem:[%s1 + $0x318] sm:$0xff]
    %v134 = vld [vmem:[%s1 + $0x320] sm:$0xff]
    %v135 = vld [vmem:[%s1 + $0x328] sm:$0xff]
    %v136 = vld [vmem:[%s1 + $0x330] sm:$0xff]
    %v137 = vld [vmem:[%s1 + $0x338] sm:$0xff]
    %v138 = vld [vmem:[%s1 + $0x340] sm:$0xff]
    %v139 = vld [vmem:[%s1 + $0x348] sm:$0xff]
    %v140 = vld [vmem:[%s1 + $0x350] sm:$0xff]
    %v141 = vld [vmem:[%s1 + $0x358] sm:$0xff]
    %v142 = vld [vmem:[%s1 + $0x360] sm:$0xff]
    %v143 = vld [vmem:[%s1 + $0x368] sm:$0xff]
    %v144 = vld [vmem:[%s1 + $0x370] sm:$0xff]
    %v145 = vld [vmem:[%s1 + $0x378] sm:$0xff]
    %v146 = vld [vmem:[%s1 + $0x380] sm:$0xff]
    %v147 = vld [vmem:[%s1 + $0x388] sm:$0xff]
    %v148 = vld [vmem:[%s1 + $0x390] sm:$0xff]
    %v149 = vld [vmem:[%s1 + $0x398] sm:$0xff]
    %v150 = vld [vmem:[%s1 + $0x3a0] sm:$0xff]
    %v151 = vld [vmem:[%s1 + $0x3a8] sm:$0xff]
    %v152 = vld [vmem:[%s1 + $0x3b0] sm:$0xff]
    %v153 = vld [vmem:[%s1 + $0x3b8] sm:$0xff]
    %v154 = vld [vmem:[%s1 + $0x3c0] sm:$0xff]
    %v155 = vld [vmem:[%s1 + $0x3c8] sm:$0xff]
    %v156 = vld [vmem:[%s1 + $0x3d0] sm:$0xff]
    %v157 = vld [vmem:[%s1 + $0x3d8] sm:$0xff]
    %v158 = vld [vmem:[%s1 + $0x3e0] sm:$0xff]
    %v159 = vld [vmem:[%s1 + $0x3e8] sm:$0xff]
    %v160 = vld [vmem:[%s1 + $0x3f0] sm:$0xff]
    %v161 = vld [vmem:[%s1 + $0x3f8] sm:$0xff]
    %v162 = vld [vmem:[%s1 + $0x400] sm:$0xff]
    %v163 = vld [vmem:[%s1 + $0x408] sm:$0xff]
    %v164 = vld [vmem:[%s1 + $0x410] sm:$0xff]
    %v165 = vld [vmem:[%s1 + $0x418] sm:$0xff]
    %v166 = vld [vmem:[%s1 + $0x420] sm:$0xff]
    %v167 = vld [vmem:[%s1 + $0x428] sm:$0xff]
    %v168 = vld [vmem:[%s1 + $0x430] sm:$0xff]
    %v169 = vld [vmem:[%s1 + $0x438] sm:$0xff]
    %v170 = vld [vmem:[%s1 + $0x440] sm:$0xff]
    %v171 = vld [vmem:[%s1 + $0x448] sm:$0xff]
    %v172 = vld [vmem:[%s1 + $0x450] sm:$0xff]
    %v173 = vld [vmem:[%s1 + $0x458] sm:$0xff]
    %v174 = vld [vmem:[%s1 + $0x460] sm:$0xff]
    %v175 = vld [vmem:[%s1 + $0x468] sm:$0xff]
    %v176 = vld [vmem:[%s1 + $0x470] sm:$0xff]
    %v177 = vld [vmem:[%s1 + $0x478] sm:$0xff]
    %v178 = vld [vmem:[%s1 + $0x480] sm:$0xff]
    %v179 = vld [vmem:[%s1 + $0x488] sm:$0xff]
    %v180 = vld [vmem:[%s1 + $0x490] sm:$0xff]
    %v181 = vld [vmem:[%s1 + $0x498] sm:$0xff]
    %v182 = vld [vmem:[%s1 + $0x4a0] sm:$0xff]
    %v183 = vld [vmem:[%s1 + $0x4a8] sm:$0xff]
    %v184 = vld [vmem:[%s1 + $0x4b0] sm:$0xff]
    %v185 = vld [vmem:[%s1 + $0x4b8] sm:$0xff]
    %v186 = vld [vmem:[%s1 + $0x4c0] sm:$0xff]
    %v187 = vld [vmem:[%s1 + $0x4c8] sm:$0xff]
    %v188 = vld [vmem:[%s1 + $0x4d0] sm:$0xff]
    %v189 = vld [vmem:[%s1 + $0x4d8] sm:$0xff]
    %v190 = vld [vmem:[%s1 + $0x4e0] sm:$0xff]
    %v191 = vld [vmem:[%s1 + $0x4e8] sm:$0xff]
    %v192 = vld [vmem:[%s1 + $0x4f0] sm:$0xff]
    %v193 = vld [vmem:[%s1 + $0x4f8] sm:$0xff]
    %v194 = vld [vmem:[%s1 + $0x500] sm:$0xff]
    %v195 = vld [vmem:[%s1 + $0x508] sm:$0xff]
    %v196 = vld [vmem:[%s1 + $0x510] sm:$0xff]
    %v197 = vld [vmem:[%s1 + $0x518] sm:$0xff]
    %v198 = vld [vmem:[%s1 + $0x520] sm:$0xff]
    %v199 = vld [vmem:[%s1 + $0x528] sm:$0xff]
    %v200 = vld [vmem:[%s1 + $0x530] sm:$0xff]
    %v201 = vld [vmem:[%s1 + $0x538] sm:$0xff]
    %v202 = vld [vmem:[%s1 + $0x540] sm:$0xff]
    %v203 = vld [vmem:[%s1 + $0x548] sm:$0xff]
    %v204 = vld [vmem:[%s1 + $0x550] sm:$0xff]
    %v205 = vld [vmem:[%s1 + $0x558] sm:$0xff]
    %v206 = vld [vmem:[%s1 + $0x560] sm:$0xff]
    %v207 = vld [vmem:[%s1 + $0x568] sm:$0xff]
    %v208 = vld [vmem:[%s1 + $0x570] sm:$0xff]
    %v209 = vld [vmem:[%s1 + $0x578] sm:$0xff]
    %v210 = vld [vmem:[%s1 + $0x580] sm:$0xff]
    %v211 = vld [vmem:[%s1 + $0x588] sm:$0xff]
    %v212 = vld [vmem:[%s1 + $0x590] sm:$0xff]
    %v213 = vld [vmem:[%s1 + $0x598] sm:$0xff]
    %v214 = vld [vmem:[%s1 + $0x5a0] sm:$0xff]
    %v215 = vld [vmem:[%s1 + $0x5a8] sm:$0xff]
    %v216 = vld [vmem:[%s1 + $0x5b0] sm:$0xff]
    %v217 = vld [vmem:[%s1 + $0x5b8] sm:$0xff]
    %v218 = vld [vmem:[%s1 + $0x5c0] sm:$0xff]
    %v219 = vld [vmem:[%s1 + $0x5c8] sm:$0xff]
    %v220 = vld [vmem:[%s1 + $0x5d0] sm:$0xff]
    %v221 = vld [vmem:[%s1 + $0x5d8] sm:$0xff]
    %v222 = vld [vmem:[%s1 + $0x5e0] sm:$0xff]
    %v223 = vld [vmem:[%s1 + $0x5e8] sm:$0xff]
    %v224 = vld [vmem:[%s1 + $0x5f0] sm:$0xff]
    %v225 = vld [vmem:[%s1 + $0x5f8] sm:$0xff]
    %v226 = vld [vmem:[%s1 + $0x600] sm:$0xff]
    %v227 = vld [vmem:[%s1 + $0x608] sm:$0xff]
    %v228 = vld [vmem:[%s1 + $0x610] sm:$0xff]
    %v229 = vld [vmem:[%s1 + $0x618] sm:$0xff]
    %v230 = vld [vmem:[%s1 + $0x620] sm:$0xff]
    %v231 = vld [vmem:[%s1 + $0x628] sm:$0xff]
    %v232 = vld [vmem:[%s1 + $0x630] sm:$0xff]
    %v233 = vld [vmem:[%s1 + $0x638] sm:$0xff]
    %v234 = vld [vmem:[%s1 + $0x640] sm:$0xff]
    %v235 = vld [vmem:[%s1 + $0x648] sm:$0xff]
    %v236 = vld [vmem:[%s1 + $0x650] sm:$0xff]
    %v237 = vld [vmem:[%s1 + $0x658] sm:$0xff]
    %v238 = vld [vmem:[%s1 + $0x660] sm:$0xff]
    %v239 = vld [vmem:[%s1 + $0x668] sm:$0xff]
    %v240 = vld [vmem:[%s1 + $0x670] sm:$0xff]
    %v241 = vld [vmem:[%s1 + $0x678] sm:$0xff]
    %v242 = vld [vmem:[%s1 + $0x680] sm:$0xff]
    %v243 = vld [vmem:[%s1 + $0x688] sm:$0xff]
    %v244 = vld [vmem:[%s1 + $0x690] sm:$0xff]
    %v245 = vld [vmem:[%s1 + $0x698] sm:$0xff]
    %v246 = vld [vmem:[%s1 + $0x6a0] sm:$0xff]
    %v247 = vld [vmem:[%s1 + $0x6a8] sm:$0xff]
    %v248 = vld [vmem:[%s1 + $0x6b0] sm:$0xff]
    %v249 = vld [vmem:[%s1 + $0x6b8] sm:$0xff]
    %v250 = vld [vmem:[%s1 + $0x6c0] sm:$0xff]
    %v251 = vld [vmem:[%s1 + $0x6c8] sm:$0xff]
    %v252 = vld [vmem:[%s1 + $0x6d0] sm:$0xff]
    %v253 = vld [vmem:[%s1 + $0x6d8] sm:$0xff]
    %v254 = vld [vmem:[%s1 + $0x6e0] sm:$0xff]
    %v255 = vld [vmem:[%s1 + $0x6e8] sm:$0xff]
    %v256 = vld [vmem:[%s1 + $0x6f0] sm:$0xff]
    %v257 = vld [vmem:[%s1 + $0x6f8] sm:$0xff]
    %v258 = vld [vmem:[%s1 + $0x700] sm:$0xff]
    %v259 = vld [vmem:[%s1 + $0x708] sm:$0xff]
    %v260 = vld [vmem:[%s1 + $0x710] sm:$0xff]
    %v261 = vld [vmem:[%s1 + $0x718] sm:$0xff]
    %v262 = vld [vmem:[%s1 + $0x720] sm:$0xff]
    %v263 = vld [vmem:[%s1 + $0x728] sm:$0xff]
    %v264 = vld [vmem:[%s1 + $0x730] sm:$0xff]
    %v265 = vld [vmem:[%s1 + $0x738] sm:$0xff]
    %v266 = vld [vmem:[%s1 + $0x740] sm:$0xff]
    %v267 = vld [vmem:[%s1 + $0x748] sm:$0xff]
    %v268 = vld [vmem:[%s1 + $0x750] sm:$0xff]
    %v269 = vld [vmem:[%s1 + $0x758] sm:$0xff]
    %v270 = vld [vmem:[%s1 + $0x760] sm:$0xff]
    %v271 = vld [vmem:[%s1 + $0x768] sm:$0xff]
    %v272 = vld [vmem:[%s1 + $0x770] sm:$0xff]
    %v273 = vld [vmem:[%s1 + $0x778] sm:$0xff]
    %v274 = vld [vmem:[%s1 + $0x780] sm:$0xff]
    %v275 = vld [vmem:[%s1 + $0x788] sm:$0xff]
    %v276 = vld [vmem:[%s1 + $0x790] sm:$0xff]
    %v277 = vld [vmem:[%s1 + $0x798] sm:$0xff]
    %v278 = vld [vmem:[%s1 + $0x7a0] sm:$0xff]
    %v279 = vld [vmem:[%s1 + $0x7a8] sm:$0xff]
    %v280 = vld [vmem:[%s1 + $0x7b0] sm:$0xff]
    %v281 = vld [vmem:[%s1 + $0x7b8] sm:$0xff]
    %v282 = vld [vmem:[%s1 + $0x7c0] sm:$0xff]
    %v283 = vld [vmem:[%s1 + $0x7c8] sm:$0xff]
    %v284 = vld [vmem:[%s1 + $0x7d0] sm:$0xff]
    %v285 = vld [vmem:[%s1 + $0x7d8] sm:$0xff]
    %v286 = vld [vmem:[%s1 + $0x7e0] sm:$0xff]
    %v287 = vld [vmem:[%s1 + $0x7e8] sm:$0xff]
    %v288 = vld [vmem:[%s1 + $0x7f0] sm:$0xff]
    %v289 = vld [vmem:[%s1 + $0x7f8] sm:$0xff]
    %v290 = vld [vmem:[%s1 + $0x800] sm:$0xff]
    %v291 = vld [vmem:[%s1 + $0x808] sm:$0xff]
    %v292 = vld [vmem:[%s1 + $0x810] sm:$0xff]
    %v293 = vld [vmem:[%s1 + $0x818] sm:$0xff]
    %v294 = vld [vmem:[%s1 + $0x820] sm:$0xff]
    %v295 = vld [vmem:[%s1 + $0x828] sm:$0xff]
    %v296 = vld [vmem:[%s1 + $0x830] sm:$0xff]
    %v297 = vld [vmem:[%s1 + $0x838] sm:$0xff]
    %v298 = vld [vmem:[%s1 + $0x840] sm:$0xff]
    %v299 = vld [vmem:[%s1 + $0x848] sm:$0xff]
    %v300 = vld [vmem:[%s1 + $0x850] sm:$0xff]
    %v301 = vld [vmem:[%s1 + $0x858] sm:$0xff]
    %v302 = vld [vmem:[%s1 + $0x860] sm:$0xff]
    %v303 = vld [vmem:[%s1 + $0x868] sm:$0xff]
    %v304 = vld [vmem:[%s1 + $0x870] sm:$0xff]
    %v305 = vld [vmem:[%s1 + $0x878] sm:$0xff]
    %v306 = vld [vmem:[%s1 + $0x880] sm:$0xff]
    %v307 = vld [vmem:[%s1 + $0x888] sm:$0xff]
    %v308 = vld [vmem:[%s1 + $0x890] sm:$0xff]
    %v309 = vld [vmem:[%s1 + $0x898] sm:$0xff]
    %v310 = vld [vmem:[%s1 + $0x8a0] sm:$0xff]
    %v311 = vld [vmem:[%s1 + $0x8a8] sm:$0xff]
    %v312 = vld [vmem:[%s1 + $0x8b0] sm:$0xff]
    %v313 = vld [vmem:[%s1 + $0x8b8] sm:$0xff]
    %v314 = vld [vmem:[%s1 + $0x8c0] sm:$0xff]
    %v315 = vld [vmem:[%s1 + $0x8c8] sm:$0xff]
    %v316 = vld [vmem:[%s1 + $0x8d0] sm:$0xff]
    %v317 = vld [vmem:[%s1 + $0x8d8] sm:$0xff]
    %v318 = vld [vmem:[%s1 + $0x8e0] sm:$0xff]
    %v319 = vld [vmem:[%s1 + $0x8e8] sm:$0xff]
    %v320 = vld [vmem:[%s1 + $0x8f0] sm:$0xff]
    %v321 = vld [vmem:[%s1 + $0x8f8] sm:$0xff]
    %v322 = vld [vmem:[%s1 + $0x900] sm:$0xff]
    %v323 = vld [vmem:[%s1 + $0x908] sm:$0xff]
    %v324 = vld [vmem:[%s1 + $0x910] sm:$0xff]
    %v325 = vld [vmem:[%s1 + $0x918] sm:$0xff]
    %v326 = vld [vmem:[%s1 + $0x920] sm:$0xff]
    %v327 = vld [vmem:[%s1 + $0x928] sm:$0xff]
    %v328 = vld [vmem:[%s1 + $0x930] sm:$0xff]
    %v329 = vld [vmem:[%s1 + $0x938] sm:$0xff]
    %v330 = vld [vmem:[%s1 + $0x940] sm:$0xff]
    %v331 = vld [vmem:[%s1 + $0x948] sm:$0xff]
    %v332 = vld [vmem:[%s1 + $0x950] sm:$0xff]
    %v333 = vld [vmem:[%s1 + $0x958] sm:$0xff]
    %v334 = vld [vmem:[%s1 + $0x960] sm:$0xff]
    %v335 = vld [vmem:[%s1 + $0x968] sm:$0xff]
    %v336 = vld [vmem:[%s1 + $0x970] sm:$0xff]
    %v337 = vld [vmem:[%s1 + $0x978] sm:$0xff]
    %v338 = vld [vmem:[%s1 + $0x980] sm:$0xff]
    %v339 = vld [vmem:[%s1 + $0x988] sm:$0xff]
    %v340 = vld [vmem:[%s1 + $0x990] sm:$0xff]
    %v341 = vld [vmem:[%s1 + $0x998] sm:$0xff]
    %v342 = vld [vmem:[%s1 + $0x9a0] sm:$0xff]
    %v343 = vld [vmem:[%s1 + $0x9a8] sm:$0xff]
    %v344 = vld [vmem:[%s1 + $0x9b0] sm:$0xff]
    %v345 = vld [vmem:[%s1 + $0x9b8] sm:$0xff]
    %v346 = vld [vmem:[%s1 + $0x9c0] sm:$0xff]
    %v347 = vld [vmem:[%s1 + $0x9c8] sm:$0xff]
    %v348 = vld [vmem:[%s1 + $0x9d0] sm:$0xff]
    %v349 = vld [vmem:[%s1 + $0x9d8] sm:$0xff]
    %v350 = vld [vmem:[%s1 + $0x9e0] sm:$0xff]
    %v351 = vld [vmem:[%s1 + $0x9e8] sm:$0xff]
    %v352 = vld [vmem:[%s1 + $0x9f0] sm:$0xff]
    %v353 = vld [vmem:[%s1 + $0x9f8] sm:$0xff]
    %v354 = vld [vmem:[%s1 + $0xa00] sm:$0xff]
    %v355 = vld [vmem:[%s1 + $0xa08] sm:$0xff]
    %v356 = vld [vmem:[%s1 + $0xa10] sm:$0xff]
    %v357 = vld [vmem:[%s1 + $0xa18] sm:$0xff]
    %v358 = vld [vmem:[%s1 + $0xa20] sm:$0xff]
    %v359 = vld [vmem:[%s1 + $0xa28] sm:$0xff]
    %v360 = vld [vmem:[%s1 + $0xa30] sm:$0xff]
    %v361 = vld [vmem:[%s1 + $0xa38] sm:$0xff]
    %v362 = vld [vmem:[%s1 + $0xa40] sm:$0xff]
    %v363 = vld [vmem:[%s1 + $0xa48] sm:$0xff]
    %v364 = vld [vmem:[%s1 + $0xa50] sm:$0xff]
    %v365 = vld [vmem:[%s1 + $0xa58] sm:$0xff]
    %v366 = vld [vmem:[%s1 + $0xa60] sm:$0xff]
    %v367 = vld [vmem:[%s1 + $0xa68] sm:$0xff]
    %v368 = vld [vmem:[%s1 + $0xa70] sm:$0xff]
    %v369 = vld [vmem:[%s1 + $0xa78] sm:$0xff]
    %v370 = vld [vmem:[%s1 + $0xa80] sm:$0xff]
    %v371 = vld [vmem:[%s1 + $0xa88] sm:$0xff]
    %v372 = vld [vmem:[%s1 + $0xa90] sm:$0xff]
    %v373 = vld [vmem:[%s1 + $0xa98] sm:$0xff]
    %v374 = vld [vmem:[%s1 + $0xaa0] sm:$0xff]
    %v375 = vld [vmem:[%s1 + $0xaa8] sm:$0xff]
    %v376 = vld [vmem:[%s1 + $0xab0] sm:$0xff]
    %v377 = vld [vmem:[%s1 + $0xab8] sm:$0xff]
    %v378 = vld [vmem:[%s1 + $0xac0] sm:$0xff]
    %v379 = vld [vmem:[%s1 + $0xac8] sm:$0xff]
    %v380 = vld [vmem:[%s1 + $0xad0] sm:$0xff]
    %v381 = vld [vmem:[%s1 + $0xad8] sm:$0xff]
    %v382 = vld [vmem:[%s1 + $0xae0] sm:$0xff]
    %v383 = vld [vmem:[%s1 + $0xae8] sm:$0xff]
    %v384 = vld [vmem:[%s1 + $0xaf0] sm:$0xff]
    %v385 = vld [vmem:[%s1 + $0xaf8] sm:$0xff]
    %v386 = vld [vmem:[%s1 + $0xb00] sm:$0xff]
    %v387 = vld [vmem:[%s1 + $0xb08] sm:$0xff]
    %v388 = vld [vmem:[%s1 + $0xb10] sm:$0xff]
    %v389 = vld [vmem:[%s1 + $0xb18] sm:$0xff]
    %v390 = vld [vmem:[%s1 + $0xb20] sm:$0xff]
    %v391 = vld [vmem:[%s1 + $0xb28] sm:$0xff]
    %v392 = vld [vmem:[%s1 + $0xb30] sm:$0xff]
    %v393 = vld [vmem:[%s1 + $0xb38] sm:$0xff]
    %v394 = vld [vmem:[%s1 + $0xb40] sm:$0xff]
    %v395 = vld [vmem:[%s1 + $0xb48] sm:$0xff]
    %v396 = vld [vmem:[%s1 + $0xb50] sm:$0xff]
    %v397 = vld [vmem:[%s1 + $0xb58] sm:$0xff]
    %v398 = vld [vmem:[%s1 + $0xb60] sm:$0xff]
    %v399 = vld [vmem:[%s1 + $0xb68] sm:$0xff]
    %v400 = vld [vmem:[%s1 + $0xb70] sm:$0xff]
    %v401 = vld [vmem:[%s1 + $0xb78] sm:$0xff]
    %v402 = vld [vmem:[%s1 + $0xb80] sm:$0xff]
    %v403 = vld [vmem:[%s1 + $0xb88] sm:$0xff]
    %v404 = vld [vmem:[%s1 + $0xb90] sm:$0xff]
    %v405 = vld [vmem:[%s1 + $0xb98] sm:$0xff]
    %v406 = vld [vmem:[%s1 + $0xba0] sm:$0xff]
    %v407 = vld [vmem:[%s1 + $0xba8] sm:$0xff]
    %v408 = vld [vmem:[%s1 + $0xbb0] sm:$0xff]
    %v409 = vld [vmem:[%s1 + $0xbb8] sm:$0xff]
    %v410 = vld [vmem:[%s1 + $0xbc0] sm:$0xff]
    %v411 = vld [vmem:[%s1 + $0xbc8] sm:$0xff]
    %v412 = vld [vmem:[%s1 + $0xbd0] sm:$0xff]
    %v413 = vld [vmem:[%s1 + $0xbd8] sm:$0xff]
    %v414 = vld [vmem:[%s1 + $0xbe0] sm:$0xff]
    %v415 = vld [vmem:[%s1 + $0xbe8] sm:$0xff]
    %v416 = vld [vmem:[%s1 + $0xbf0] sm:$0xff]
    %v417 = vld [vmem:[%s1 + $0xbf8] sm:$0xff]
    %v418 = vld [vmem:[%s1 + $0xc00] sm:$0xff]
    %v419 = vld [vmem:[%s1 + $0xc08] sm:$0xff]
    %v420 = vld [vmem:[%s1 + $0xc10] sm:$0xff]
    %v421 = vld [vmem:[%s1 + $0xc18] sm:$0xff]
    %v422 = vld [vmem:[%s1 + $0xc20] sm:$0xff]
    %v423 = vld [vmem:[%s1 + $0xc28] sm:$0xff]
    %v424 = vld [vmem:[%s1 + $0xc30] sm:$0xff]
    %v425 = vld [vmem:[%s1 + $0xc38] sm:$0xff]
    %v426 = vld [vmem:[%s1 + $0xc40] sm:$0xff]
    %v427 = vld [vmem:[%s1 + $0xc48] sm:$0xff]
    %v428 = vld [vmem:[%s1 + $0xc50] sm:$0xff]
    %v429 = vld [vmem:[%s1 + $0xc58] sm:$0xff]
    %v430 = vld [vmem:[%s1 + $0xc60] sm:$0xff]
    %v431 = vld [vmem:[%s1 + $0xc68] sm:$0xff]
    %v432 = vld [vmem:[%s1 + $0xc70] sm:$0xff]
    %v433 = vld [vmem:[%s1 + $0xc78] sm:$0xff]
    %v434 = vld [vmem:[%s1 + $0xc80] sm:$0xff]
    %v435 = vld [vmem:[%s1 + $0xc88] sm:$0xff]
    %v436 = vld [vmem:[%s1 + $0xc90] sm:$0xff]
    %v437 = vld [vmem:[%s1 + $0xc98] sm:$0xff]
    %v438 = vld [vmem:[%s1 + $0xca0] sm:$0xff]
    %v439 = vld [vmem:[%s1 + $0xca8] sm:$0xff]
    %v440 = vld [vmem:[%s1 + $0xcb0] sm:$0xff]
    %v441 = vld [vmem:[%s1 + $0xcb8] sm:$0xff]
    %v442 = vld [vmem:[%s1 + $0xcc0] sm:$0xff]
    %v443 = vld [vmem:[%s1 + $0xcc8] sm:$0xff]
    %v444 = vld [vmem:[%s1 + $0xcd0] sm:$0xff]
    %v445 = vld [vmem:[%s1 + $0xcd8] sm:$0xff]
    %v446 = vld [vmem:[%s1 + $0xce0] sm:$0xff]
    %v447 = vld [vmem:[%s1 + $0xce8] sm:$0xff]
    %v448 = vld [vmem:[%s1 + $0xcf0] sm:$0xff]
    %v449 = vld [vmem:[%s1 + $0xcf8] sm:$0xff]
    %v450 = vld [vmem:[%s1 + $0xd00] sm:$0xff]
    %v451 = vld [vmem:[%s1 + $0xd08] sm:$0xff]
    %v452 = vld [vmem:[%s1 + $0xd10] sm:$0xff]
    %v453 = vld [vmem:[%s1 + $0xd18] sm:$0xff]
    %v454 = vld [vmem:[%s1 + $0xd20] sm:$0xff]
    %v455 = vld [vmem:[%s1 + $0xd28] sm:$0xff]
    %v456 = vld [vmem:[%s1 + $0xd30] sm:$0xff]
    %v457 = vld [vmem:[%s1 + $0xd38] sm:$0xff]
    %v458 = vld [vmem:[%s1 + $0xd40] sm:$0xff]
    %v459 = vld [vmem:[%s1 + $0xd48] sm:$0xff]
    %v460 = vld [vmem:[%s1 + $0xd50] sm:$0xff]
    %v461 = vld [vmem:[%s1 + $0xd58] sm:$0xff]
    %v462 = vld [vmem:[%s1 + $0xd60] sm:$0xff]
    %v463 = vld [vmem:[%s1 + $0xd68] sm:$0xff]
    %v464 = vld [vmem:[%s1 + $0xd70] sm:$0xff]
    %v465 = vld [vmem:[%s1 + $0xd78] sm:$0xff]
    %v466 = vld [vmem:[%s1 + $0xd80] sm:$0xff]
    %v467 = vld [vmem:[%s1 + $0xd88] sm:$0xff]
    %v468 = vld [vmem:[%s1 + $0xd90] sm:$0xff]
    %v469 = vld [vmem:[%s1 + $0xd98] sm:$0xff]
    %v470 = vld [vmem:[%s1 + $0xda0] sm:$0xff]
    %v471 = vld [vmem:[%s1 + $0xda8] sm:$0xff]
    %v472 = vld [vmem:[%s1 + $0xdb0] sm:$0xff]
    %v473 = vld [vmem:[%s1 + $0xdb8] sm:$0xff]
    %v474 = vld [vmem:[%s1 + $0xdc0] sm:$0xff]
    %v475 = vld [vmem:[%s1 + $0xdc8] sm:$0xff]
    %v476 = vld [vmem:[%s1 + $0xdd0] sm:$0xff]
    %v477 = vld [vmem:[%s1 + $0xdd8] sm:$0xff]
    %v478 = vld [vmem:[%s1 + $0xde0] sm:$0xff]
    %v479 = vld [vmem:[%s1 + $0xde8] sm:$0xff]
    %v480 = vld [vmem:[%s1 + $0xdf0] sm:$0xff]
    %v481 = vld [vmem:[%s1 + $0xdf8] sm:$0xff]
    %v482 = vld [vmem:[%s1 + $0xe00] sm:$0xff]
    %v483 = vld [vmem:[%s1 + $0xe08] sm:$0xff]
    %v484 = vld [vmem:[%s1 + $0xe10] sm:$0xff]
    %v485 = vld [vmem:[%s1 + $0xe18] sm:$0xff]
    %v486 = vld [vmem:[%s1 + $0xe20] sm:$0xff]
    %v487 = vld [vmem:[%s1 + $0xe28] sm:$0xff]
    %v488 = vld [vmem:[%s1 + $0xe30] sm:$0xff]
    %v489 = vld [vmem:[%s1 + $0xe38] sm:$0xff]
    %v490 = vld [vmem:[%s1 + $0xe40] sm:$0xff]
    %v491 = vld [vmem:[%s1 + $0xe48] sm:$0xff]
    %v492 = vld [vmem:[%s1 + $0xe50] sm:$0xff]
    %v493 = vld [vmem:[%s1 + $0xe58] sm:$0xff]
    %v494 = vld [vmem:[%s1 + $0xe60] sm:$0xff]
    %v495 = vld [vmem:[%s1 + $0xe68] sm:$0xff]
    %v496 = vld [vmem:[%s1 + $0xe70] sm:$0xff]
    %v497 = vld [vmem:[%s1 + $0xe78] sm:$0xff]
    %v498 = vld [vmem:[%s1 + $0xe80] sm:$0xff]
    %v499 = vld [vmem:[%s1 + $0xe88] sm:$0xff]
    %v500 = vld [vmem:[%s1 + $0xe90] sm:$0xff]
    %v501 = vld [vmem:[%s1 + $0xe98] sm:$0xff]
    %v502 = vld [vmem:[%s1 + $0xea0] sm:$0xff]
    %v503 = vld [vmem:[%s1 + $0xea8] sm:$0xff]
    %v504 = vld [vmem:[%s1 + $0xeb0] sm:$0xff]
    %v505 = vld [vmem:[%s1 + $0xeb8] sm:$0xff]
    %v506 = vld [vmem:[%s1 + $0xec0] sm:$0xff]
    %v507 = vld [vmem:[%s1 + $0xec8] sm:$0xff]
    %v508 = vld [vmem:[%s1 + $0xed0] sm:$0xff]
    %v509 = vld [vmem:[%s1 + $0xed8] sm:$0xff]
    %v510 = vld [vmem:[%s1 + $0xee0] sm:$0xff]
    %v511 = vld [vmem:[%s1 + $0xee8] sm:$0xff]
    %v512 = vld [vmem:[%s1 + $0xef0] sm:$0xff]
    %v513 = vld [vmem:[%s1 + $0xef8] sm:$0xff]
    %v514 = vld [vmem:[%s1 + $0xf00] sm:$0xff]
    %v515 = vld [vmem:[%s1 + $0xf08] sm:$0xff]
    %v516 = vld [vmem:[%s1 + $0xf10] sm:$0xff]
    %v517 = vld [vmem:[%s1 + $0xf18] sm:$0xff]
    %v518 = vld [vmem:[%s1 + $0xf20] sm:$0xff]
    %v519 = vld [vmem:[%s1 + $0xf28] sm:$0xff]
    %v520 = vld [vmem:[%s1 + $0xf30] sm:$0xff]
    %v521 = vld [vmem:[%s1 + $0xf38] sm:$0xff]
    %v522 = vld [vmem:[%s1 + $0xf40] sm:$0xff]
    %v523 = vld [vmem:[%s1 + $0xf48] sm:$0xff]
    %v524 = vld [vmem:[%s1 + $0xf50] sm:$0xff]
    %v525 = vld [vmem:[%s1 + $0xf58] sm:$0xff]
    %v526 = vld [vmem:[%s1 + $0xf60] sm:$0xff]
    %v527 = vld [vmem:[%s1 + $0xf68] sm:$0xff]
    %v528 = vld [vmem:[%s1 + $0xf70] sm:$0xff]
    %v529 = vld [vmem:[%s1 + $0xf78] sm:$0xff]
    %v530 = vld [vmem:[%s1 + $0xf80] sm:$0xff]
    %v531 = vld [vmem:[%s1 + $0xf88] sm:$0xff]
    %v532 = vld [vmem:[%s1 + $0xf90] sm:$0xff]
    %v533 = vld [vmem:[%s1 + $0xf98] sm:$0xff]
    %v534 = vld [vmem:[%s1 + $0xfa0] sm:$0xff]
    %v535 = vld [vmem:[%s1 + $0xfa8] sm:$0xff]
    %v536 = vld [vmem:[%s1 + $0xfb0] sm:$0xff]
    %v537 = vld [vmem:[%s1 + $0xfb8] sm:$0xff]
    %v538 = vld [vmem:[%s1 + $0xfc0] sm:$0xff]
    %v539 = vld [vmem:[%s1 + $0xfc8] sm:$0xff]
    %v540 = vld [vmem:[%s1 + $0xfd0] sm:$0xff]
    %v541 = vld [vmem:[%s1 + $0xfd8] sm:$0xff]
    %v542 = vld [vmem:[%s1 + $0xfe0] sm:$0xff]
    %v543 = vld [vmem:[%s1 + $0xfe8] sm:$0xff]
    %v544 = vld [vmem:[%s1 + $0xff0] sm:$0xff]
    %v545 = vld [vmem:[%s1 + $0xff8] sm:$0xff]
    %v546 = vld [vmem:[%s1 + $0x1000] sm:$0xff]
    %v547 = vld [vmem:[%s1 + $0x1008] sm:$0xff]
    %v548 = vld [vmem:[%s1 + $0x1010] sm:$0xff]
    %v549 = vld [vmem:[%s1 + $0x1018] sm:$0xff]
    %v550 = vld [vmem:[%s1 + $0x1020] sm:$0xff]
    %v551 = vld [vmem:[%s1 + $0x1028] sm:$0xff]
    %v552 = vld [vmem:[%s1 + $0x1030] sm:$0xff]
    %v553 = vld [vmem:[%s1 + $0x1038] sm:$0xff]
    %v554 = vld [vmem:[%s1 + $0x1040] sm:$0xff]
    %v555 = vld [vmem:[%s1 + $0x1048] sm:$0xff]
    %v556 = vld [vmem:[%s1 + $0x1050] sm:$0xff]
    %v557 = vld [vmem:[%s1 + $0x1058] sm:$0xff]
    %v558 = vld [vmem:[%s1 + $0x1060] sm:$0xff]
    %v559 = vld [vmem:[%s1 + $0x1068] sm:$0xff]
    %v560 = vld [vmem:[%s1 + $0x1070] sm:$0xff]
    %v561 = vld [vmem:[%s1 + $0x1078] sm:$0xff]
    %v562 = vld [vmem:[%s1 + $0x1080] sm:$0xff]
    %v563 = vld [vmem:[%s1 + $0x1088] sm:$0xff]
    %v564 = vld [vmem:[%s1 + $0x1090] sm:$0xff]
    %v565 = vld [vmem:[%s1 + $0x1098] sm:$0xff]
    %v566 = vld [vmem:[%s1 + $0x10a0] sm:$0xff]
    %v567 = vld [vmem:[%s1 + $0x10a8] sm:$0xff]
    %v568 = vld [vmem:[%s1 + $0x10b0] sm:$0xff]
    %v569 = vld [vmem:[%s1 + $0x10b8] sm:$0xff]
    %v570 = vld [vmem:[%s1 + $0x10c0] sm:$0xff]
    %v571 = vld [vmem:[%s1 + $0x10c8] sm:$0xff]
    %v572 = vld [vmem:[%s1 + $0x10d0] sm:$0xff]
    %v573 = vld [vmem:[%s1 + $0x10d8] sm:$0xff]
    %v574 = vld [vmem:[%s1 + $0x10e0] sm:$0xff]
    %v575 = vld [vmem:[%s1 + $0x10e8] sm:$0xff]
    %v576 = vld [vmem:[%s1 + $0x10f0] sm:$0xff]
    %v577 = vld [vmem:[%s1 + $0x10f8] sm:$0xff]
    %v578 = vld [vmem:[%s1 + $0x1100] sm:$0xff]
    %v579 = vld [vmem:[%s1 + $0x1108] sm:$0xff]
    %v580 = vld [vmem:[%s1 + $0x1110] sm:$0xff]
    %v581 = vld [vmem:[%s1 + $0x1118] sm:$0xff]
    %v582 = vld [vmem:[%s1 + $0x1120] sm:$0xff]
    %v583 = vld [vmem:[%s1 + $0x1128] sm:$0xff]
    %v584 = vld [vmem:[%s1 + $0x1130] sm:$0xff]
    %v585 = vld [vmem:[%s1 + $0x1138] sm:$0xff]
    %v586 = vld [vmem:[%s1 + $0x1140] sm:$0xff]
    %v587 = vld [vmem:[%s1 + $0x1148] sm:$0xff]
    %v588 = vld [vmem:[%s1 + $0x1150] sm:$0xff]
    %v589 = vld [vmem:[%s1 + $0x1158] sm:$0xff]
    %v590 = vld [vmem:[%s1 + $0x1160] sm:$0xff]
    %v591 = vld [vmem:[%s1 + $0x1168] sm:$0xff]
    %v592 = vld [vmem:[%s1 + $0x1170] sm:$0xff]
    %v593 = vld [vmem:[%s1 + $0x1178] sm:$0xff]
    %v594 = vld [vmem:[%s1 + $0x1180] sm:$0xff]
    %v595 = vld [vmem:[%s1 + $0x1188] sm:$0xff]
    %v596 = vld [vmem:[%s1 + $0x1190] sm:$0xff]
    %v597 = vld [vmem:[%s1 + $0x1198] sm:$0xff]
    %v598 = vld [vmem:[%s1 + $0x11a0] sm:$0xff]
    %v599 = vld [vmem:[%s1 + $0x11a8] sm:$0xff]
    %v600 = vld [vmem:[%s1 + $0x11b0] sm:$0xff]
    %v601 = vld [vmem:[%s1 + $0x11b8] sm:$0xff]
    %v602 = vld [vmem:[%s1 + $0x11c0] sm:$0xff]
    %v603 = vld [vmem:[%s1 + $0x11c8] sm:$0xff]
    %v604 = vld [vmem:[%s1 + $0x11d0] sm:$0xff]
    %v605 = vld [vmem:[%s1 + $0x11d8] sm:$0xff]
    %v606 = vld [vmem:[%s1 + $0x11e0] sm:$0xff]
    %v607 = vld [vmem:[%s1 + $0x11e8] sm:$0xff]
    %v608 = vld [vmem:[%s1 + $0x11f0] sm:$0xff]
    %v609 = vld [vmem:[%s1 + $0x11f8] sm:$0xff]
    %v610 = vld [vmem:[%s1 + $0x1200] sm:$0xff]
    %v611 = vld [vmem:[%s1 + $0x1208] sm:$0xff]
    %v612 = vld [vmem:[%s1 + $0x1210] sm:$0xff]
    %v613 = vld [vmem:[%s1 + $0x1218] sm:$0xff]
    %v614 = vld [vmem:[%s1 + $0x1220] sm:$0xff]
    %v615 = vld [vmem:[%s1 + $0x1228] sm:$0xff]
    %v616 = vld [vmem:[%s1 + $0x1230] sm:$0xff]
    %v617 = vld [vmem:[%s1 + $0x1238] sm:$0xff]
    %v618 = vld [vmem:[%s1 + $0x1240] sm:$0xff]
    %v619 = vld [vmem:[%s1 + $0x1248] sm:$0xff]
    %v620 = vld [vmem:[%s1 + $0x1250] sm:$0xff]
    %v621 = vld [vmem:[%s1 + $0x1258] sm:$0xff]
    %v622 = vld [vmem:[%s1 + $0x1260] sm:$0xff]
    %v623 = vld [vmem:[%s1 + $0x1268] sm:$0xff]
    %v624 = vld [vmem:[%s1 + $0x1270] sm:$0xff]
    %v625 = vld [vmem:[%s1 + $0x1278] sm:$0xff]
    %v626 = vld [vmem:[%s1 + $0x1280] sm:$0xff]
    %v627 = vld [vmem:[%s1 + $0x1288] sm:$0xff]
    %v628 = vld [vmem:[%s1 + $0x1290] sm:$0xff]
    %v629 = vld [vmem:[%s1 + $0x1298] sm:$0xff]
    %v630 = vld [vmem:[%s1 + $0x12a0] sm:$0xff]
    %v631 = vld [vmem:[%s1 + $0x12a8] sm:$0xff]
    %v632 = vld [vmem:[%s1 + $0x12b0] sm:$0xff]
    %v633 = vld [vmem:[%s1 + $0x12b8] sm:$0xff]
    %v634 = vld [vmem:[%s1 + $0x12c0] sm:$0xff]
    %v635 = vld [vmem:[%s1 + $0x12c8] sm:$0xff]
    %v636 = vld [vmem:[%s1 + $0x12d0] sm:$0xff]
    %v637 = vld [vmem:[%s1 + $0x12d8] sm:$0xff]
    %v638 = vld [vmem:[%s1 + $0x12e0] sm:$0xff]
    %v639 = vld [vmem:[%s1 + $0x12e8] sm:$0xff]
    %v640 = vld [vmem:[%s1 + $0x12f0] sm:$0xff]
    %v641 = vld [vmem:[%s1 + $0x12f8] sm:$0xff]
    %v642 = vld [vmem:[%s1 + $0x1300] sm:$0xff]
    %v643 = vld [vmem:[%s1 + $0x1308] sm:$0xff]
    %v644 = vld [vmem:[%s1 + $0x1310] sm:$0xff]
    %v645 = vld [vmem:[%s1 + $0x1318] sm:$0xff]
    %v646 = vld [vmem:[%s1 + $0x1320] sm:$0xff]
    %v647 = vld [vmem:[%s1 + $0x1328] sm:$0xff]
    %v648 = vld [vmem:[%s1 + $0x1330] sm:$0xff]
    %v649 = vld [vmem:[%s1 + $0x1338] sm:$0xff]
    %v650 = vld [vmem:[%s1 + $0x1340] sm:$0xff]
    %v651 = vld [vmem:[%s1 + $0x1348] sm:$0xff]
    %v652 = vld [vmem:[%s1 + $0x1350] sm:$0xff]
    %v653 = vld [vmem:[%s1 + $0x1358] sm:$0xff]
    %v654 = vld [vmem:[%s1 + $0x1360] sm:$0xff]
    %v655 = vld [vmem:[%s1 + $0x1368] sm:$0xff]
    %v656 = vld [vmem:[%s1 + $0x1370] sm:$0xff]
    %v657 = vld [vmem:[%s1 + $0x1378] sm:$0xff]
    %v658 = vld [vmem:[%s1 + $0x1380] sm:$0xff]
    %v659 = vld [vmem:[%s1 + $0x1388] sm:$0xff]
    %v660 = vld [vmem:[%s1 + $0x1390] sm:$0xff]
    %v661 = vld [vmem:[%s1 + $0x1398] sm:$0xff]
    %v662 = vld [vmem:[%s1 + $0x13a0] sm:$0xff]
    %v663 = vld [vmem:[%s1 + $0x13a8] sm:$0xff]
    %v664 = vld [vmem:[%s1 + $0x13b0] sm:$0xff]
    %v665 = vld [vmem:[%s1 + $0x13b8] sm:$0xff]
    %v666 = vld [vmem:[%s1 + $0x13c0] sm:$0xff]
    %v667 = vld [vmem:[%s1 + $0x13c8] sm:$0xff]
    %v668 = vld [vmem:[%s1 + $0x13d0] sm:$0xff]
    %v669 = vld [vmem:[%s1 + $0x13d8] sm:$0xff]
    %v670 = vld [vmem:[%s1 + $0x13e0] sm:$0xff]
    %v671 = vld [vmem:[%s1 + $0x13e8] sm:$0xff]
    %v672 = vld [vmem:[%s1 + $0x13f0] sm:$0xff]
    %v673 = vld [vmem:[%s1 + $0x13f8] sm:$0xff]
    %v674 = vld [vmem:[%s1 + $0x1400] sm:$0xff]
    %v675 = vld [vmem:[%s1 + $0x1408] sm:$0xff]
    %v676 = vld [vmem:[%s1 + $0x1410] sm:$0xff]
    %v677 = vld [vmem:[%s1 + $0x1418] sm:$0xff]
    %v678 = vld [vmem:[%s1 + $0x1420] sm:$0xff]
    %v679 = vld [vmem:[%s1 + $0x1428] sm:$0xff]
    %v680 = vld [vmem:[%s1 + $0x1430] sm:$0xff]
    %v681 = vld [vmem:[%s1 + $0x1438] sm:$0xff]
    %v682 = vld [vmem:[%s1 + $0x1440] sm:$0xff]
    %v683 = vld [vmem:[%s1 + $0x1448] sm:$0xff]
    %v684 = vld [vmem:[%s1 + $0x1450] sm:$0xff]
    %v685 = vld [vmem:[%s1 + $0x1458] sm:$0xff]
    %v686 = vld [vmem:[%s1 + $0x1460] sm:$0xff]
    %v687 = vld [vmem:[%s1 + $0x1468] sm:$0xff]
    %v688 = vld [vmem:[%s1 + $0x1470] sm:$0xff]
    %v689 = vld [vmem:[%s1 + $0x1478] sm:$0xff]
    %v690 = vld [vmem:[%s1 + $0x1480] sm:$0xff]
    %v691 = vld [vmem:[%s1 + $0x1488] sm:$0xff]
    %v692 = vld [vmem:[%s1 + $0x1490] sm:$0xff]
    %v693 = vld [vmem:[%s1 + $0x1498] sm:$0xff]
    %v694 = vld [vmem:[%s1 + $0x14a0] sm:$0xff]
    %v695 = vld [vmem:[%s1 + $0x14a8] sm:$0xff]
    %v696 = vld [vmem:[%s1 + $0x14b0] sm:$0xff]
    %v697 = vld [vmem:[%s1 + $0x14b8] sm:$0xff]
    %v698 = vld [vmem:[%s1 + $0x14c0] sm:$0xff]
    %v699 = vld [vmem:[%s1 + $0x14c8] sm:$0xff]
    %v700 = vld [vmem:[%s1 + $0x14d0] sm:$0xff]
    %v701 = vld [vmem:[%s1 + $0x14d8] sm:$0xff]
    %v702 = vld [vmem:[%s1 + $0x14e0] sm:$0xff]
    %v703 = vld [vmem:[%s1 + $0x14e8] sm:$0xff]
    %v704 = vld [vmem:[%s1 + $0x14f0] sm:$0xff]
    %v705 = vld [vmem:[%s1 + $0x14f8] sm:$0xff]
    %v706 = vld [vmem:[%s1 + $0x1500] sm:$0xff]
    %v707 = vld [vmem:[%s1 + $0x1508] sm:$0xff]
    %v708 = vld [vmem:[%s1 + $0x1510] sm:$0xff]
    %v709 = vld [vmem:[%s1 + $0x1518] sm:$0xff]
    %v710 = vld [vmem:[%s1 + $0x1520] sm:$0xff]
    %v711 = vld [vmem:[%s1 + $0x1528] sm:$0xff]
    %v712 = vld [vmem:[%s1 + $0x1530] sm:$0xff]
    %v713 = vld [vmem:[%s1 + $0x1538] sm:$0xff]
    %v714 = vld [vmem:[%s1 + $0x1540] sm:$0xff]
    %v715 = vld [vmem:[%s1 + $0x1548] sm:$0xff]
    %v716 = vld [vmem:[%s1 + $0x1550] sm:$0xff]
    %v717 = vld [vmem:[%s1 + $0x1558] sm:$0xff]
    %v718 = vld [vmem:[%s1 + $0x1560] sm:$0xff]
    %v719 = vld [vmem:[%s1 + $0x1568] sm:$0xff]
    %v720 = vld [vmem:[%s1 + $0x1570] sm:$0xff]
    %v721 = vld [vmem:[%s1 + $0x1578] sm:$0xff]
    %v722 = vld [vmem:[%s1 + $0x1580] sm:$0xff]
    %v723 = vld [vmem:[%s1 + $0x1588] sm:$0xff]
    %v724 = vld [vmem:[%s1 + $0x1590] sm:$0xff]
    %v725 = vld [vmem:[%s1 + $0x1598] sm:$0xff]
    %v726 = vld [vmem:[%s1 + $0x15a0] sm:$0xff]
    %v727 = vld [vmem:[%s1 + $0x15a8] sm:$0xff]
    %v728 = vld [vmem:[%s1 + $0x15b0] sm:$0xff]
    %v729 = vld [vmem:[%s1 + $0x15b8] sm:$0xff]
    %v730 = vld [vmem:[%s1 + $0x15c0] sm:$0xff]
    %v731 = vld [vmem:[%s1 + $0x15c8] sm:$0xff]
    %v732 = vld [vmem:[%s1 + $0x15d0] sm:$0xff]
    %v733 = vld [vmem:[%s1 + $0x15d8] sm:$0xff]
    %v734 = vld [vmem:[%s1 + $0x15e0] sm:$0xff]
    %v735 = vld [vmem:[%s1 + $0x15e8] sm:$0xff]
    %v736 = vld [vmem:[%s1 + $0x15f0] sm:$0xff]
    %v737 = vld [vmem:[%s1 + $0x15f8] sm:$0xff]
    %v738 = vld [vmem:[%s1 + $0x1600] sm:$0xff]
    %v739 = vld [vmem:[%s1 + $0x1608] sm:$0xff]
    %v740 = vld [vmem:[%s1 + $0x1610] sm:$0xff]
    %v741 = vld [vmem:[%s1 + $0x1618] sm:$0xff]
    %v742 = vld [vmem:[%s1 + $0x1620] sm:$0xff]
    %v743 = vld [vmem:[%s1 + $0x1628] sm:$0xff]
    %v744 = vld [vmem:[%s1 + $0x1630] sm:$0xff]
    %v745 = vld [vmem:[%s1 + $0x1638] sm:$0xff]
    %v746 = vld [vmem:[%s1 + $0x1640] sm:$0xff]
    %v747 = vld [vmem:[%s1 + $0x1648] sm:$0xff]
    %v748 = vld [vmem:[%s1 + $0x1650] sm:$0xff]
    %v749 = vld [vmem:[%s1 + $0x1658] sm:$0xff]
    %v750 = vld [vmem:[%s1 + $0x1660] sm:$0xff]
    %v751 = vld [vmem:[%s1 + $0x1668] sm:$0xff]
    %v752 = vld [vmem:[%s1 + $0x1670] sm:$0xff]
    %v753 = vld [vmem:[%s1 + $0x1678] sm:$0xff]
    %v754 = vld [vmem:[%s1 + $0x1680] sm:$0xff]
    %v755 = vld [vmem:[%s1 + $0x1688] sm:$0xff]
    %v756 = vld [vmem:[%s1 + $0x1690] sm:$0xff]
    %v757 = vld [vmem:[%s1 + $0x1698] sm:$0xff]
    %v758 = vld [vmem:[%s1 + $0x16a0] sm:$0xff]
    %v759 = vld [vmem:[%s1 + $0x16a8] sm:$0xff]
    %v760 = vld [vmem:[%s1 + $0x16b0] sm:$0xff]
    %v761 = vld [vmem:[%s1 + $0x16b8] sm:$0xff]
    %v762 = vld [vmem:[%s1 + $0x16c0] sm:$0xff]
    %v763 = vld [vmem:[%s1 + $0x16c8] sm:$0xff]
    %v764 = vld [vmem:[%s1 + $0x16d0] sm:$0xff]
    %v765 = vld [vmem:[%s1 + $0x16d8] sm:$0xff]
    %v766 = vld [vmem:[%s1 + $0x16e0] sm:$0xff]
    %v767 = vld [vmem:[%s1 + $0x16e8] sm:$0xff]
    %v768 = vld [vmem:[%s1 + $0x16f0] sm:$0xff]
    %v769 = vld [vmem:[%s1 + $0x16f8] sm:$0xff]
    %v770 = vld [vmem:[%s1 + $0x1700] sm:$0xff]
    %v771 = vld [vmem:[%s1 + $0x1708] sm:$0xff]
    %v772 = vld [vmem:[%s1 + $0x1710] sm:$0xff]
    %v773 = vld [vmem:[%s1 + $0x1718] sm:$0xff]
    %v774 = vld [vmem:[%s1 + $0x1720] sm:$0xff]
    %v775 = vld [vmem:[%s1 + $0x1728] sm:$0xff]
    %v776 = vld [vmem:[%s1 + $0x1730] sm:$0xff]
    %v777 = vld [vmem:[%s1 + $0x1738] sm:$0xff]
    %v778 = vld [vmem:[%s1 + $0x1740] sm:$0xff]
    %v779 = vld [vmem:[%s1 + $0x1748] sm:$0xff]
    %v780 = vld [vmem:[%s1 + $0x1750] sm:$0xff]
    %v781 = vld [vmem:[%s1 + $0x1758] sm:$0xff]
    %v782 = vld [vmem:[%s1 + $0x1760] sm:$0xff]
    %v783 = vld [vmem:[%s1 + $0x1768] sm:$0xff]
    %v784 = vld [vmem:[%s1 + $0x1770] sm:$0xff]
    %v785 = vld [vmem:[%s1 + $0x1778] sm:$0xff]
    %v786 = vld [vmem:[%s1 + $0x1780] sm:$0xff]
    %v787 = vld [vmem:[%s1 + $0x1788] sm:$0xff]
    %v788 = vld [vmem:[%s1 + $0x1790] sm:$0xff]
    %v789 = vld [vmem:[%s1 + $0x1798] sm:$0xff]
    %v790 = vld [vmem:[%s1 + $0x17a0] sm:$0xff]
    %v791 = vld [vmem:[%s1 + $0x17a8] sm:$0xff]
    %v792 = vld [vmem:[%s1 + $0x17b0] sm:$0xff]
    %v793 = vld [vmem:[%s1 + $0x17b8] sm:$0xff]
    %v794 = vld [vmem:[%s1 + $0x17c0] sm:$0xff]
    %v795 = vld [vmem:[%s1 + $0x17c8] sm:$0xff]
    %v796 = vld [vmem:[%s1 + $0x17d0] sm:$0xff]
    %v797 = vld [vmem:[%s1 + $0x17d8] sm:$0xff]
    %v798 = vld [vmem:[%s1 + $0x17e0] sm:$0xff]
    %v799 = vld [vmem:[%s1 + $0x17e8] sm:$0xff]
    %v800 = vld [vmem:[%s1 + $0x17f0] sm:$0xff]
    %v801 = vld [vmem:[%s1 + $0x17f8] sm:$0xff]
    %v802 = vld [vmem:[%s1 + $0x1800] sm:$0xff]
    %v803 = vld [vmem:[%s1 + $0x1808] sm:$0xff]
    %v804 = vld [vmem:[%s1 + $0x1810] sm:$0xff]
    %v805 = vld [vmem:[%s1 + $0x1818] sm:$0xff]
    %v806 = vld [vmem:[%s1 + $0x1820] sm:$0xff]
    %v807 = vld [vmem:[%s1 + $0x1828] sm:$0xff]
    %v808 = vld [vmem:[%s1 + $0x1830] sm:$0xff]
    %v809 = vld [vmem:[%s1 + $0x1838] sm:$0xff]
    %v810 = vld [vmem:[%s1 + $0x1840] sm:$0xff]
    %v811 = vld [vmem:[%s1 + $0x1848] sm:$0xff]
    %v812 = vld [vmem:[%s1 + $0x1850] sm:$0xff]
    %v813 = vld [vmem:[%s1 + $0x1858] sm:$0xff]
    %v814 = vld [vmem:[%s1 + $0x1860] sm:$0xff]
    %v815 = vld [vmem:[%s1 + $0x1868] sm:$0xff]
    %v816 = vld [vmem:[%s1 + $0x1870] sm:$0xff]
    %v817 = vld [vmem:[%s1 + $0x1878] sm:$0xff]
    %v818 = vld [vmem:[%s1 + $0x1880] sm:$0xff]
    %v819 = vld [vmem:[%s1 + $0x1888] sm:$0xff]
    %v820 = vld [vmem:[%s1 + $0x1890] sm:$0xff]
    %v821 = vld [vmem:[%s1 + $0x1898] sm:$0xff]
    %v822 = vld [vmem:[%s1 + $0x18a0] sm:$0xff]
    %v823 = vld [vmem:[%s1 + $0x18a8] sm:$0xff]
    %v824 = vld [vmem:[%s1 + $0x18b0] sm:$0xff]
    %v825 = vld [vmem:[%s1 + $0x18b8] sm:$0xff]
    %v826 = vld [vmem:[%s1 + $0x18c0] sm:$0xff]
    %v827 = vld [vmem:[%s1 + $0x18c8] sm:$0xff]
    %v828 = vld [vmem:[%s1 + $0x18d0] sm:$0xff]
    %v829 = vld [vmem:[%s1 + $0x18d8] sm:$0xff]
    %v830 = vld [vmem:[%s1 + $0x18e0] sm:$0xff]
    %v831 = vld [vmem:[%s1 + $0x18e8] sm:$0xff]
    %v832 = vld [vmem:[%s1 + $0x18f0] sm:$0xff]
    %v833 = vld [vmem:[%s1 + $0x18f8] sm:$0xff]
    %v834 = vld [vmem:[%s1 + $0x1900] sm:$0xff]
    %v835 = vld [vmem:[%s1 + $0x1908] sm:$0xff]
    %v836 = vld [vmem:[%s1 + $0x1910] sm:$0xff]
    %v837 = vld [vmem:[%s1 + $0x1918] sm:$0xff]
    %v838 = vld [vmem:[%s1 + $0x1920] sm:$0xff]
    %v839 = vld [vmem:[%s1 + $0x1928] sm:$0xff]
    %v840 = vld [vmem:[%s1 + $0x1930] sm:$0xff]
    %v841 = vld [vmem:[%s1 + $0x1938] sm:$0xff]
    %v842 = vld [vmem:[%s1 + $0x1940] sm:$0xff]
    %v843 = vld [vmem:[%s1 + $0x1948] sm:$0xff]
    %v844 = vld [vmem:[%s1 + $0x1950] sm:$0xff]
    %v845 = vld [vmem:[%s1 + $0x1958] sm:$0xff]
    %v846 = vld [vmem:[%s1 + $0x1960] sm:$0xff]
    %v847 = vld [vmem:[%s1 + $0x1968] sm:$0xff]
    %v848 = vld [vmem:[%s1 + $0x1970] sm:$0xff]
    %v849 = vld [vmem:[%s1 + $0x1978] sm:$0xff]
    %v850 = vld [vmem:[%s1 + $0x1980] sm:$0xff]
    %v851 = vld [vmem:[%s1 + $0x1988] sm:$0xff]
    %v852 = vld [vmem:[%s1 + $0x1990] sm:$0xff]
    %v853 = vld [vmem:[%s1 + $0x1998] sm:$0xff]
    %v854 = vld [vmem:[%s1 + $0x19a0] sm:$0xff]
    %v855 = vld [vmem:[%s1 + $0x19a8] sm:$0xff]
    %v856 = vld [vmem:[%s1 + $0x19b0] sm:$0xff]
    %v857 = vld [vmem:[%s1 + $0x19b8] sm:$0xff]
    %v858 = vld [vmem:[%s1 + $0x19c0] sm:$0xff]
    %v859 = vld [vmem:[%s1 + $0x19c8] sm:$0xff]
    %v860 = vld [vmem:[%s1 + $0x19d0] sm:$0xff]
    %v861 = vld [vmem:[%s1 + $0x19d8] sm:$0xff]
    %v862 = vld [vmem:[%s1 + $0x19e0] sm:$0xff]
    %v863 = vld [vmem:[%s1 + $0x19e8] sm:$0xff]
    %v864 = vld [vmem:[%s1 + $0x19f0] sm:$0xff]
    %v865 = vld [vmem:[%s1 + $0x19f8] sm:$0xff]
    %v866 = vld [vmem:[%s1 + $0x1a00] sm:$0xff]
    %v867 = vld [vmem:[%s1 + $0x1a08] sm:$0xff]
    %v868 = vld [vmem:[%s1 + $0x1a10] sm:$0xff]
    %v869 = vld [vmem:[%s1 + $0x1a18] sm:$0xff]
    %v870 = vld [vmem:[%s1 + $0x1a20] sm:$0xff]
    %v871 = vld [vmem:[%s1 + $0x1a28] sm:$0xff]
    %v872 = vld [vmem:[%s1 + $0x1a30] sm:$0xff]
    %v873 = vld [vmem:[%s1 + $0x1a38] sm:$0xff]
    %v874 = vld [vmem:[%s1 + $0x1a40] sm:$0xff]
    %v875 = vld [vmem:[%s1 + $0x1a48] sm:$0xff]
    %v876 = vld [vmem:[%s1 + $0x1a50] sm:$0xff]
    %v877 = vld [vmem:[%s1 + $0x1a58] sm:$0xff]
    %v878 = vld [vmem:[%s1 + $0x1a60] sm:$0xff]
    %v879 = vld [vmem:[%s1 + $0x1a68] sm:$0xff]
    %v880 = vld [vmem:[%s1 + $0x1a70] sm:$0xff]
    %v881 = vld [vmem:[%s1 + $0x1a78] sm:$0xff]
    %v882 = vld [vmem:[%s1 + $0x1a80] sm:$0xff]
    %v883 = vld [vmem:[%s1 + $0x1a88] sm:$0xff]
    %v884 = vld [vmem:[%s1 + $0x1a90] sm:$0xff]
    %v885 = vld [vmem:[%s1 + $0x1a98] sm:$0xff]
    %v886 = vld [vmem:[%s1 + $0x1aa0] sm:$0xff]
    %v887 = vld [vmem:[%s1 + $0x1aa8] sm:$0xff]
    %v888 = vld [vmem:[%s1 + $0x1ab0] sm:$0xff]
    %v889 = vld [vmem:[%s1 + $0x1ab8] sm:$0xff]
    %v890 = vld [vmem:[%s1 + $0x1ac0] sm:$0xff]
    %v891 = vld [vmem:[%s1 + $0x1ac8] sm:$0xff]
    %v892 = vld [vmem:[%s1 + $0x1ad0] sm:$0xff]
    %v893 = vld [vmem:[%s1 + $0x1ad8] sm:$0xff]
    %v894 = vld [vmem:[%s1 + $0x1ae0] sm:$0xff]
    %v895 = vld [vmem:[%s1 + $0x1ae8] sm:$0xff]
    %v896 = vld [vmem:[%s1 + $0x1af0] sm:$0xff]
    %v897 = vld [vmem:[%s1 + $0x1af8] sm:$0xff]
    %v898 = vld [vmem:[%s1 + $0x1b00] sm:$0xff]
    %v899 = vld [vmem:[%s1 + $0x1b08] sm:$0xff]
    %v900 = vld [vmem:[%s1 + $0x1b10] sm:$0xff]
    %v901 = vld [vmem:[%s1 + $0x1b18] sm:$0xff]
    %v902 = vld [vmem:[%s1 + $0x1b20] sm:$0xff]
    %v903 = vld [vmem:[%s1 + $0x1b28] sm:$0xff]
    %v904 = vld [vmem:[%s1 + $0x1b30] sm:$0xff]
    %v905 = vld [vmem:[%s1 + $0x1b38] sm:$0xff]
    %v906 = vld [vmem:[%s1 + $0x1b40] sm:$0xff]
    %v907 = vld [vmem:[%s1 + $0x1b48] sm:$0xff]
    %v908 = vld [vmem:[%s1 + $0x1b50] sm:$0xff]
    %v909 = vld [vmem:[%s1 + $0x1b58] sm:$0xff]
    %v910 = vld [vmem:[%s1 + $0x1b60] sm:$0xff]
    %v911 = vld [vmem:[%s1 + $0x1b68] sm:$0xff]
    %v912 = vld [vmem:[%s1 + $0x1b70] sm:$0xff]
    %v913 = vld [vmem:[%s1 + $0x1b78] sm:$0xff]
    %v914 = vld [vmem:[%s1 + $0x1b80] sm:$0xff]
    %v915 = vld [vmem:[%s1 + $0x1b88] sm:$0xff]
    %v916 = vld [vmem:[%s1 + $0x1b90] sm:$0xff]
    %v917 = vld [vmem:[%s1 + $0x1b98] sm:$0xff]
    %v918 = vld [vmem:[%s1 + $0x1ba0] sm:$0xff]
    %v919 = vld [vmem:[%s1 + $0x1ba8] sm:$0xff]
    %v920 = vld [vmem:[%s1 + $0x1bb0] sm:$0xff]
    %v921 = vld [vmem:[%s1 + $0x1bb8] sm:$0xff]
    %v922 = vld [vmem:[%s1 + $0x1bc0] sm:$0xff]
    %v923 = vld [vmem:[%s1 + $0x1bc8] sm:$0xff]
    %v924 = vld [vmem:[%s1 + $0x1bd0] sm:$0xff]
    %v925 = vld [vmem:[%s1 + $0x1bd8] sm:$0xff]
    %v926 = vld [vmem:[%s1 + $0x1be0] sm:$0xff]
    %v927 = vld [vmem:[%s1 + $0x1be8] sm:$0xff]
    %v928 = vld [vmem:[%s1 + $0x1bf0] sm:$0xff]
    %v929 = vld [vmem:[%s1 + $0x1bf8] sm:$0xff]
    %v930 = vld [vmem:[%s1 + $0x1c00] sm:$0xff]
    %v931 = vld [vmem:[%s1 + $0x1c08] sm:$0xff]
    %v932 = vld [vmem:[%s1 + $0x1c10] sm:$0xff]
    %v933 = vld [vmem:[%s1 + $0x1c18] sm:$0xff]
    %v934 = vld [vmem:[%s1 + $0x1c20] sm:$0xff]
    %v935 = vld [vmem:[%s1 + $0x1c28] sm:$0xff]
    %v936 = vld [vmem:[%s1 + $0x1c30] sm:$0xff]
    %v937 = vld [vmem:[%s1 + $0x1c38] sm:$0xff]
    %v938 = vld [vmem:[%s1 + $0x1c40] sm:$0xff]
    %v939 = vld [vmem:[%s1 + $0x1c48] sm:$0xff]
    %v940 = vld [vmem:[%s1 + $0x1c50] sm:$0xff]
    %v941 = vld [vmem:[%s1 + $0x1c58] sm:$0xff]
    %v942 = vld [vmem:[%s1 + $0x1c60] sm:$0xff]
    %v943 = vld [vmem:[%s1 + $0x1c68] sm:$0xff]
    %v944 = vld [vmem:[%s1 + $0x1c70] sm:$0xff]
    %v945 = vld [vmem:[%s1 + $0x1c78] sm:$0xff]
    %v946 = vld [vmem:[%s1 + $0x1c80] sm:$0xff]
    %v947 = vld [vmem:[%s1 + $0x1c88] sm:$0xff]
    %v948 = vld [vmem:[%s1 + $0x1c90] sm:$0xff]
    %v949 = vld [vmem:[%s1 + $0x1c98] sm:$0xff]
    %v950 = vld [vmem:[%s1 + $0x1ca0] sm:$0xff]
    %v951 = vld [vmem:[%s1 + $0x1ca8] sm:$0xff]
    %v952 = vld [vmem:[%s1 + $0x1cb0] sm:$0xff]
    %v953 = vld [vmem:[%s1 + $0x1cb8] sm:$0xff]
    %v954 = vld [vmem:[%s1 + $0x1cc0] sm:$0xff]
    %v955 = vld [vmem:[%s1 + $0x1cc8] sm:$0xff]
    %v956 = vld [vmem:[%s1 + $0x1cd0] sm:$0xff]
    %v957 = vld [vmem:[%s1 + $0x1cd8] sm:$0xff]
    %v958 = vld [vmem:[%s1 + $0x1ce0] sm:$0xff]
    %v959 = vld [vmem:[%s1 + $0x1ce8] sm:$0xff]
    %v960 = vld [vmem:[%s1 + $0x1cf0] sm:$0xff]
    %v961 = vld [vmem:[%s1 + $0x1cf8] sm:$0xff]
    %v962 = vld [vmem:[%s1 + $0x1d00] sm:$0xff]
    %v963 = vld [vmem:[%s1 + $0x1d08] sm:$0xff]
    %v964 = vld [vmem:[%s1 + $0x1d10] sm:$0xff]
    %v965 = vld [vmem:[%s1 + $0x1d18] sm:$0xff]
    %v966 = vld [vmem:[%s1 + $0x1d20] sm:$0xff]
    %v967 = vld [vmem:[%s1 + $0x1d28] sm:$0xff]
    %v968 = vld [vmem:[%s1 + $0x1d30] sm:$0xff]
    %v969 = vld [vmem:[%s1 + $0x1d38] sm:$0xff]
    %v970 = vld [vmem:[%s1 + $0x1d40] sm:$0xff]
    %v971 = vld [vmem:[%s1 + $0x1d48] sm:$0xff]
    %v972 = vld [vmem:[%s1 + $0x1d50] sm:$0xff]
    %v973 = vld [vmem:[%s1 + $0x1d58] sm:$0xff]
    %v974 = vld [vmem:[%s1 + $0x1d60] sm:$0xff]
    %v975 = vld [vmem:[%s1 + $0x1d68] sm:$0xff]
    %v976 = vld [vmem:[%s1 + $0x1d70] sm:$0xff]
    %v977 = vld [vmem:[%s1 + $0x1d78] sm:$0xff]
    %v978 = vld [vmem:[%s1 + $0x1d80] sm:$0xff]
    %v979 = vld [vmem:[%s1 + $0x1d88] sm:$0xff]
    %v980 = vld [vmem:[%s1 + $0x1d90] sm:$0xff]
    %v981 = vld [vmem:[%s1 + $0x1d98] sm:$0xff]
    %v982 = vld [vmem:[%s1 + $0x1da0] sm:$0xff]
    %v983 = vld [vmem:[%s1 + $0x1da8] sm:$0xff]
    %v984 = vld [vmem:[%s1 + $0x1db0] sm:$0xff]
    %v985 = vld [vmem:[%s1 + $0x1db8] sm:$0xff]
    %v986 = vld [vmem:[%s1 + $0x1dc0] sm:$0xff]
    %v987 = vld [vmem:[%s1 + $0x1dc8] sm:$0xff]
    %v988 = vld [vmem:[%s1 + $0x1dd0] sm:$0xff]
    %v989 = vld [vmem:[%s1 + $0x1dd8] sm:$0xff]
    %v990 = vld [vmem:[%s1 + $0x1de0] sm:$0xff]
    %v991 = vld [vmem:[%s1 + $0x1de8] sm:$0xff]
    %v992 = vld [vmem:[%s1 + $0x1df0] sm:$0xff]
    %v993 = vld [vmem:[%s1 + $0x1df8] sm:$0xff]
    %v994 = vld [vmem:[%s1 + $0x1e00] sm:$0xff]
    %v995 = vld [vmem:[%s1 + $0x1e08] sm:$0xff]
    %v996 = vld [vmem:[%s1 + $0x1e10] sm:$0xff]
    %v997 = vld [vmem:[%s1 + $0x1e18] sm:$0xff]
    %v998 = vld [vmem:[%s1 + $0x1e20] sm:$0xff]
    %v999 = vld [vmem:[%s1 + $0x1e28] sm:$0xff]
    %v1000 = vld [vmem:[%s1 + $0x1e30] sm:$0xff]
    %v1001 = vld [vmem:[%s1 + $0x1e38] sm:$0xff]
    %v1002 = vld [vmem:[%s1 + $0x1e40] sm:$0xff]
    %v1003 = vld [vmem:[%s1 + $0x1e48] sm:$0xff]
    %v1004 = vld [vmem:[%s1 + $0x1e50] sm:$0xff]
    %v1005 = vld [vmem:[%s1 + $0x1e58] sm:$0xff]
    %v1006 = vld [vmem:[%s1 + $0x1e60] sm:$0xff]
    %v1007 = vld [vmem:[%s1 + $0x1e68] sm:$0xff]
    %v1008 = vld [vmem:[%s1 + $0x1e70] sm:$0xff]
    %v1009 = vld [vmem:[%s1 + $0x1e78] sm:$0xff]
    %v1010 = vld [vmem:[%s1 + $0x1e80] sm:$0xff]
    %v1011 = vld [vmem:[%s1 + $0x1e88] sm:$0xff]
    %v1012 = vld [vmem:[%s1 + $0x1e90] sm:$0xff]
    %v1013 = vld [vmem:[%s1 + $0x1e98] sm:$0xff]
    %v1014 = vld [vmem:[%s1 + $0x1ea0] sm:$0xff]
    %v1015 = vld [vmem:[%s1 + $0x1ea8] sm:$0xff]
    %v1016 = vld [vmem:[%s1 + $0x1eb0] sm:$0xff]
    %v1017 = vld [vmem:[%s1 + $0x1eb8] sm:$0xff]
    %v1018 = vld [vmem:[%s1 + $0x1ec0] sm:$0xff]
    %v1019 = vld [vmem:[%s1 + $0x1ec8] sm:$0xff]
    %v1020 = vld [vmem:[%s1 + $0x1ed0] sm:$0xff]
    %v1021 = vld [vmem:[%s1 + $0x1ed8] sm:$0xff]
    %v1022 = vld [vmem:[%s1 + $0x1ee0] sm:$0xff]
    %v1023 = vld [vmem:[%s1 + $0x1ee8] sm:$0xff]
    %v1024 = vld [vmem:[%s1 + $0x1ef0] sm:$0xff]
    %v1025 = vld [vmem:[%s1 + $0x1ef8] sm:$0xff]
    %v1026 = vld [vmem:[%s1 + $0x1f00] sm:$0xff]
    %v1027 = vld [vmem:[%s1 + $0x1f08] sm:$0xff]
    %v1028 = vld [vmem:[%s1 + $0x1f10] sm:$0xff]
    %v1029 = vld [vmem:[%s1 + $0x1f18] sm:$0xff]
    %v1030 = vld [vmem:[%s1 + $0x1f20] sm:$0xff]
    %v1031 = vld [vmem:[%s1 + $0x1f28] sm:$0xff]
    %v1032 = vld [vmem:[%s1 + $0x1f30] sm:$0xff]
    %v1033 = vld [vmem:[%s1 + $0x1f38] sm:$0xff]
    %v1034 = vld [vmem:[%s1 + $0x1f40] sm:$0xff]
    %v1035 = vld [vmem:[%s1 + $0x1f48] sm:$0xff]
    %v1036 = vld [vmem:[%s1 + $0x1f50] sm:$0xff]
    %v1037 = vld [vmem:[%s1 + $0x1f58] sm:$0xff]
    %v1038 = vld [vmem:[%s1 + $0x1f60] sm:$0xff]
    %v1039 = vld [vmem:[%s1 + $0x1f68] sm:$0xff]
    %v1040 = vld [vmem:[%s1 + $0x1f70] sm:$0xff]
    %v1041 = vld [vmem:[%s1 + $0x1f78] sm:$0xff]
    %v1042 = vld [vmem:[%s1 + $0x1f80] sm:$0xff]
    %v1043 = vld [vmem:[%s1 + $0x1f88] sm:$0xff]
    %v1044 = vld [vmem:[%s1 + $0x1f90] sm:$0xff]
    %v1045 = vld [vmem:[%s1 + $0x1f98] sm:$0xff]
    %v1046 = vld [vmem:[%s1 + $0x1fa0] sm:$0xff]
    %v1047 = vld [vmem:[%s1 + $0x1fa8] sm:$0xff]
    %v1048 = vld [vmem:[%s1 + $0x1fb0] sm:$0xff]
    %v1049 = vld [vmem:[%s1 + $0x1fb8] sm:$0xff]
    %v1050 = vld [vmem:[%s1 + $0x1fc0] sm:$0xff]
    %v1051 = vld [vmem:[%s1 + $0x1fc8] sm:$0xff]
    %v1052 = vld [vmem:[%s1 + $0x1fd0] sm:$0xff]
    %v1053 = vld [vmem:[%s1 + $0x1fd8] sm:$0xff]
    %v1054 = vld [vmem:[%s1 + $0x1fe0] sm:$0xff]
    %v1055 = vld [vmem:[%s1 + $0x1fe8] sm:$0xff]
    %v1056 = vld [vmem:[%s1 + $0x1ff0] sm:$0xff]
    %v1057 = vld [vmem:[%s1 + $0x1ff8] sm:$0xff]
    %v1058 = vld [vmem:[%s1 + $0x2000] sm:$0xff]
    %v1059 = vld [vmem:[%s1 + $0x2008] sm:$0xff]
    %v1060 = vld [vmem:[%s1 + $0x2010] sm:$0xff]
    %v1061 = vld [vmem:[%s1 + $0x2018] sm:$0xff]
    %v1062 = vld [vmem:[%s1 + $0x2020] sm:$0xff]
    %v1063 = vld [vmem:[%s1 + $0x2028] sm:$0xff]
    %v1064 = vld [vmem:[%s1 + $0x2030] sm:$0xff]
    %v1065 = vld [vmem:[%s1 + $0x2038] sm:$0xff]
    %v1066 = vld [vmem:[%s1 + $0x2040] sm:$0xff]
    %v1067 = vld [vmem:[%s1 + $0x2048] sm:$0xff]
    %v1068 = vld [vmem:[%s1 + $0x2050] sm:$0xff]
    %v1069 = vld [vmem:[%s1 + $0x2058] sm:$0xff]
    %v1070 = vld [vmem:[%s1 + $0x2060] sm:$0xff]
    %v1071 = vld [vmem:[%s1 + $0x2068] sm:$0xff]
    %v1072 = vld [vmem:[%s1 + $0x2070] sm:$0xff]
    %v1073 = vld [vmem:[%s1 + $0x2078] sm:$0xff]
    %v1074 = vld [vmem:[%s1 + $0x2080] sm:$0xff]
    %v1075 = vld [vmem:[%s1 + $0x2088] sm:$0xff]
    %v1076 = vld [vmem:[%s1 + $0x2090] sm:$0xff]
    %v1077 = vld [vmem:[%s1 + $0x2098] sm:$0xff]
    %v1078 = vld [vmem:[%s1 + $0x20a0] sm:$0xff]
    %v1079 = vld [vmem:[%s1 + $0x20a8] sm:$0xff]
    %v1080 = vld [vmem:[%s1 + $0x20b0] sm:$0xff]
    %v1081 = vld [vmem:[%s1 + $0x20b8] sm:$0xff]
    %v1082 = vld [vmem:[%s1 + $0x20c0] sm:$0xff]
    %v1083 = vld [vmem:[%s1 + $0x20c8] sm:$0xff]
    %v1084 = vld [vmem:[%s1 + $0x20d0] sm:$0xff]
    %v1085 = vld [vmem:[%s1 + $0x20d8] sm:$0xff]
    %v1086 = vld [vmem:[%s1 + $0x20e0] sm:$0xff]
    %v1087 = vld [vmem:[%s1 + $0x20e8] sm:$0xff]
    %v1088 = vld [vmem:[%s1 + $0x20f0] sm:$0xff]
    %v1089 = vld [vmem:[%s1 + $0x20f8] sm:$0xff]
    %v1090 = vld [vmem:[%s1 + $0x2100] sm:$0xff]
    %v1091 = vld [vmem:[%s1 + $0x2108] sm:$0xff]
    %v1092 = vld [vmem:[%s1 + $0x2110] sm:$0xff]
    %v1093 = vld [vmem:[%s1 + $0x2118] sm:$0xff]
    %v1094 = vld [vmem:[%s1 + $0x2120] sm:$0xff]
    %v1095 = vld [vmem:[%s1 + $0x2128] sm:$0xff]
    %v1096 = vld [vmem:[%s1 + $0x2130] sm:$0xff]
    %v1097 = vld [vmem:[%s1 + $0x2138] sm:$0xff]
    %v1098 = vld [vmem:[%s1 + $0x2140] sm:$0xff]
    %v1099 = vld [vmem:[%s1 + $0x2148] sm:$0xff]
    %v1100 = vld [vmem:[%s1 + $0x2150] sm:$0xff]
    %v1101 = vld [vmem:[%s1 + $0x2158] sm:$0xff]
    %v1102 = vld [vmem:[%s1 + $0x2160] sm:$0xff]
    %v1103 = vld [vmem:[%s1 + $0x2168] sm:$0xff]
    %v1104 = vld [vmem:[%s1 + $0x2170] sm:$0xff]
    %v1105 = vld [vmem:[%s1 + $0x2178] sm:$0xff]
    %v1106 = vld [vmem:[%s1 + $0x2180] sm:$0xff]
    %v1107 = vld [vmem:[%s1 + $0x2188] sm:$0xff]
    %v1108 = vld [vmem:[%s1 + $0x2190] sm:$0xff]
    %v1109 = vld [vmem:[%s1 + $0x2198] sm:$0xff]
    %v1110 = vld [vmem:[%s1 + $0x21a0] sm:$0xff]
    %v1111 = vld [vmem:[%s1 + $0x21a8] sm:$0xff]
    %v1112 = vld [vmem:[%s1 + $0x21b0] sm:$0xff]
    %v1113 = vld [vmem:[%s1 + $0x21b8] sm:$0xff]
    %v1114 = vld [vmem:[%s1 + $0x21c0] sm:$0xff]
    %v1115 = vld [vmem:[%s1 + $0x21c8] sm:$0xff]
    %v1116 = vld [vmem:[%s1 + $0x21d0] sm:$0xff]
    %v1117 = vld [vmem:[%s1 + $0x21d8] sm:$0xff]
    %v1118 = vld [vmem:[%s1 + $0x21e0] sm:$0xff]
    %v1119 = vld [vmem:[%s1 + $0x21e8] sm:$0xff]
    %v1120 = vld [vmem:[%s1 + $0x21f0] sm:$0xff]
    %v1121 = vld [vmem:[%s1 + $0x21f8] sm:$0xff]
    %v1122 = vld [vmem:[%s1 + $0x2200] sm:$0xff]
    %v1123 = vld [vmem:[%s1 + $0x2208] sm:$0xff]
    %v1124 = vld [vmem:[%s1 + $0x2210] sm:$0xff]
    %v1125 = vld [vmem:[%s1 + $0x2218] sm:$0xff]
    %v1126 = vld [vmem:[%s1 + $0x2220] sm:$0xff]
    %v1127 = vld [vmem:[%s1 + $0x2228] sm:$0xff]
    %v1128 = vld [vmem:[%s1 + $0x2230] sm:$0xff]
    %v1129 = vld [vmem:[%s1 + $0x2238] sm:$0xff]
    %v1130 = vld [vmem:[%s1 + $0x2240] sm:$0xff]
    %v1131 = vld [vmem:[%s1 + $0x2248] sm:$0xff]
    %v1132 = vld [vmem:[%s1 + $0x2250] sm:$0xff]
    %v1133 = vld [vmem:[%s1 + $0x2258] sm:$0xff]
    %v1134 = vld [vmem:[%s1 + $0x2260] sm:$0xff]
    %v1135 = vld [vmem:[%s1 + $0x2268] sm:$0xff]
    %v1136 = vld [vmem:[%s1 + $0x2270] sm:$0xff]
    %v1137 = vld [vmem:[%s1 + $0x2278] sm:$0xff]
    %v1138 = vld [vmem:[%s1 + $0x2280] sm:$0xff]
    %v1139 = vld [vmem:[%s1 + $0x2288] sm:$0xff]
    %v1140 = vld [vmem:[%s1 + $0x2290] sm:$0xff]
    %v1141 = vld [vmem:[%s1 + $0x2298] sm:$0xff]
    %v1142 = vld [vmem:[%s1 + $0x22a0] sm:$0xff]
    %v1143 = vld [vmem:[%s1 + $0x22a8] sm:$0xff]
    %v1144 = vld [vmem:[%s1 + $0x22b0] sm:$0xff]
    %v1145 = vld [vmem:[%s1 + $0x22b8] sm:$0xff]
    %v1146 = vld [vmem:[%s1 + $0x22c0] sm:$0xff]
    %v1147 = vld [vmem:[%s1 + $0x22c8] sm:$0xff]
    %v1148 = vld [vmem:[%s1 + $0x22d0] sm:$0xff]
    %v1149 = vld [vmem:[%s1 + $0x22d8] sm:$0xff]
    %v1150 = vld [vmem:[%s1 + $0x22e0] sm:$0xff]
    %v1151 = vld [vmem:[%s1 + $0x22e8] sm:$0xff]
    %v1152 = vld [vmem:[%s1 + $0x22f0] sm:$0xff]
    %v1153 = vld [vmem:[%s1 + $0x22f8] sm:$0xff]
    %v1154 = vld [vmem:[%s1 + $0x2300] sm:$0xff]
    %v1155 = vld [vmem:[%s1 + $0x2308] sm:$0xff]
    %v1156 = vld [vmem:[%s1 + $0x2310] sm:$0xff]
    %v1157 = vld [vmem:[%s1 + $0x2318] sm:$0xff]
    %v1158 = vld [vmem:[%s1 + $0x2320] sm:$0xff]
    %v1159 = vld [vmem:[%s1 + $0x2328] sm:$0xff]
    %v1160 = vld [vmem:[%s1 + $0x2330] sm:$0xff]
    %v1161 = vld [vmem:[%s1 + $0x2338] sm:$0xff]
    %v1162 = vld [vmem:[%s1 + $0x2340] sm:$0xff]
    %v1163 = vld [vmem:[%s1 + $0x2348] sm:$0xff]
    %v1164 = vld [vmem:[%s1 + $0x2350] sm:$0xff]
    %v1165 = vld [vmem:[%s1 + $0x2358] sm:$0xff]
    %v1166 = vld [vmem:[%s1 + $0x2360] sm:$0xff]
    %v1167 = vld [vmem:[%s1 + $0x2368] sm:$0xff]
    %v1168 = vld [vmem:[%s1 + $0x2370] sm:$0xff]
    %v1169 = vld [vmem:[%s1 + $0x2378] sm:$0xff]
    %v1170 = vld [vmem:[%s1 + $0x2380] sm:$0xff]
    %v1171 = vld [vmem:[%s1 + $0x2388] sm:$0xff]
    %v1172 = vld [vmem:[%s1 + $0x2390] sm:$0xff]
    %v1173 = vld [vmem:[%s1 + $0x2398] sm:$0xff]
    %v1174 = vld [vmem:[%s1 + $0x23a0] sm:$0xff]
    %v1175 = vld [vmem:[%s1 + $0x23a8] sm:$0xff]
    %v1176 = vld [vmem:[%s1 + $0x23b0] sm:$0xff]
    %v1177 = vld [vmem:[%s1 + $0x23b8] sm:$0xff]
    %v1178 = vld [vmem:[%s1 + $0x23c0] sm:$0xff]
    %v1179 = vld [vmem:[%s1 + $0x23c8] sm:$0xff]
    %v1180 = vld [vmem:[%s1 + $0x23d0] sm:$0xff]
    %v1181 = vld [vmem:[%s1 + $0x23d8] sm:$0xff]
    %v1182 = vld [vmem:[%s1 + $0x23e0] sm:$0xff]
    %v1183 = vld [vmem:[%s1 + $0x23e8] sm:$0xff]
    %v1184 = vld [vmem:[%s1 + $0x23f0] sm:$0xff]
    %v1185 = vld [vmem:[%s1 + $0x23f8] sm:$0xff]
    %v1186 = vld [vmem:[%s1 + $0x2400] sm:$0xff]
    %v1187 = vld [vmem:[%s1 + $0x2408] sm:$0xff]
    %v1188 = vld [vmem:[%s1 + $0x2410] sm:$0xff]
    %v1189 = vld [vmem:[%s1 + $0x2418] sm:$0xff]
    %v1190 = vld [vmem:[%s1 + $0x2420] sm:$0xff]
    %v1191 = vld [vmem:[%s1 + $0x2428] sm:$0xff]
    %v1192 = vld [vmem:[%s1 + $0x2430] sm:$0xff]
    %v1193 = vld [vmem:[%s1 + $0x2438] sm:$0xff]
    %v1194 = vld [vmem:[%s1 + $0x2440] sm:$0xff]
    %v1195 = vld [vmem:[%s1 + $0x2448] sm:$0xff]
    %v1196 = vld [vmem:[%s1 + $0x2450] sm:$0xff]
    %v1197 = vld [vmem:[%s1 + $0x2458] sm:$0xff]
    %v1198 = vld [vmem:[%s1 + $0x2460] sm:$0xff]
    %v1199 = vld [vmem:[%s1 + $0x2468] sm:$0xff]
    %v1200 = vld [vmem:[%s1 + $0x2470] sm:$0xff]
    %v1201 = vld [vmem:[%s1 + $0x2478] sm:$0xff]
    %v1202 = vld [vmem:[%s1 + $0x2480] sm:$0xff]
    %v1203 = vld [vmem:[%s1 + $0x2488] sm:$0xff]
    %v1204 = vld [vmem:[%s1 + $0x2490] sm:$0xff]
    %v1205 = vld [vmem:[%s1 + $0x2498] sm:$0xff]
    %v1206 = vld [vmem:[%s1 + $0x24a0] sm:$0xff]
    %v1207 = vld [vmem:[%s1 + $0x24a8] sm:$0xff]
    %v1208 = vld [vmem:[%s1 + $0x24b0] sm:$0xff]
    %v1209 = vld [vmem:[%s1 + $0x24b8] sm:$0xff]
    %v1210 = vld [vmem:[%s1 + $0x24c0] sm:$0xff]
    %v1211 = vld [vmem:[%s1 + $0x24c8] sm:$0xff]
    %v1212 = vld [vmem:[%s1 + $0x24d0] sm:$0xff]
    %v1213 = vld [vmem:[%s1 + $0x24d8] sm:$0xff]
    %v1214 = vld [vmem:[%s1 + $0x24e0] sm:$0xff]
    %v1215 = vld [vmem:[%s1 + $0x24e8] sm:$0xff]
    %v1216 = vld [vmem:[%s1 + $0x24f0] sm:$0xff]
    %v1217 = vld [vmem:[%s1 + $0x24f8] sm:$0xff]
    %v1218 = vld [vmem:[%s1 + $0x2500] sm:$0xff]
    %v1219 = vld [vmem:[%s1 + $0x2508] sm:$0xff]
    %v1220 = vld [vmem:[%s1 + $0x2510] sm:$0xff]
    %v1221 = vld [vmem:[%s1 + $0x2518] sm:$0xff]
    %v1222 = vld [vmem:[%s1 + $0x2520] sm:$0xff]
    %v1223 = vld [vmem:[%s1 + $0x2528] sm:$0xff]
    %v1224 = vld [vmem:[%s1 + $0x2530] sm:$0xff]
    %v1225 = vld [vmem:[%s1 + $0x2538] sm:$0xff]
    %v1226 = vld [vmem:[%s1 + $0x2540] sm:$0xff]
    %v1227 = vld [vmem:[%s1 + $0x2548] sm:$0xff]
    %v1228 = vld [vmem:[%s1 + $0x2550] sm:$0xff]
    %v1229 = vld [vmem:[%s1 + $0x2558] sm:$0xff]
    %v1230 = vld [vmem:[%s1 + $0x2560] sm:$0xff]
    %v1231 = vld [vmem:[%s1 + $0x2568] sm:$0xff]
    %v1232 = vld [vmem:[%s1 + $0x2570] sm:$0xff]
    %v1233 = vld [vmem:[%s1 + $0x2578] sm:$0xff]
    %v1234 = vld [vmem:[%s1 + $0x2580] sm:$0xff]
    %v1235 = vld [vmem:[%s1 + $0x2588] sm:$0xff]
    %v1236 = vld [vmem:[%s1 + $0x2590] sm:$0xff]
    %v1237 = vld [vmem:[%s1 + $0x2598] sm:$0xff]
    %v1238 = vld [vmem:[%s1 + $0x25a0] sm:$0xff]
    %v1239 = vld [vmem:[%s1 + $0x25a8] sm:$0xff]
    %v1240 = vld [vmem:[%s1 + $0x25b0] sm:$0xff]
    %v1241 = vld [vmem:[%s1 + $0x25b8] sm:$0xff]
    %v1242 = vld [vmem:[%s1 + $0x25c0] sm:$0xff]
    %v1243 = vld [vmem:[%s1 + $0x25c8] sm:$0xff]
    %v1244 = vld [vmem:[%s1 + $0x25d0] sm:$0xff]
    %v1245 = vld [vmem:[%s1 + $0x25d8] sm:$0xff]
    %v1246 = vld [vmem:[%s1 + $0x25e0] sm:$0xff]
    %v1247 = vld [vmem:[%s1 + $0x25e8] sm:$0xff]
    %v1248 = vld [vmem:[%s1 + $0x25f0] sm:$0xff]
    %v1249 = vld [vmem:[%s1 + $0x25f8] sm:$0xff]
    %v1250 = vld [vmem:[%s1 + $0x2600] sm:$0xff]
    %v1251 = vld [vmem:[%s1 + $0x2608] sm:$0xff]
    %v1252 = vld [vmem:[%s1 + $0x2610] sm:$0xff]
    %v1253 = vld [vmem:[%s1 + $0x2618] sm:$0xff]
    %v1254 = vld [vmem:[%s1 + $0x2620] sm:$0xff]
    %v1255 = vld [vmem:[%s1 + $0x2628] sm:$0xff]
    %v1256 = vld [vmem:[%s1 + $0x2630] sm:$0xff]
    %v1257 = vld [vmem:[%s1 + $0x2638] sm:$0xff]
    %v1258 = vld [vmem:[%s1 + $0x2640] sm:$0xff]
    %v1259 = vld [vmem:[%s1 + $0x2648] sm:$0xff]
    %v1260 = vld [vmem:[%s1 + $0x2650] sm:$0xff]
    %v1261 = vld [vmem:[%s1 + $0x2658] sm:$0xff]
    %v1262 = vld [vmem:[%s1 + $0x2660] sm:$0xff]
    %v1263 = vld [vmem:[%s1 + $0x2668] sm:$0xff]
    %v1264 = vld [vmem:[%s1 + $0x2670] sm:$0xff]
    %v1265 = vld [vmem:[%s1 + $0x2678] sm:$0xff]
    %v1266 = vld [vmem:[%s1 + $0x2680] sm:$0xff]
    %v1267 = vld [vmem:[%s1 + $0x2688] sm:$0xff]
    %v1268 = vld [vmem:[%s1 + $0x2690] sm:$0xff]
    %v1269 = vld [vmem:[%s1 + $0x2698] sm:$0xff]
    %v1270 = vld [vmem:[%s1 + $0x26a0] sm:$0xff]
    %v1271 = vld [vmem:[%s1 + $0x26a8] sm:$0xff]
    %v1272 = vld [vmem:[%s1 + $0x26b0] sm:$0xff]
    %v1273 = vld [vmem:[%s1 + $0x26b8] sm:$0xff]
    %v1274 = vld [vmem:[%s1 + $0x26c0] sm:$0xff]
    %v1275 = vld [vmem:[%s1 + $0x26c8] sm:$0xff]
    %v1276 = vld [vmem:[%s1 + $0x26d0] sm:$0xff]
    %v1277 = vld [vmem:[%s1 + $0x26d8] sm:$0xff]
    %v1278 = vld [vmem:[%s1 + $0x26e0] sm:$0xff]
    %v1279 = vld [vmem:[%s1 + $0x26e8] sm:$0xff]
    %v1280 = vld [vmem:[%s1 + $0x26f0] sm:$0xff]
    %v1281 = vld [vmem:[%s1 + $0x26f8] sm:$0xff]
    %v1282 = vld [vmem:[%s1 + $0x2700] sm:$0xff]
    %v1283 = vld [vmem:[%s1 + $0x2708] sm:$0xff]
    %v1284 = vld [vmem:[%s1 + $0x2710] sm:$0xff]
    %v1285 = vld [vmem:[%s1 + $0x2718] sm:$0xff]
    %v1286 = vld [vmem:[%s1 + $0x2720] sm:$0xff]
    %v1287 = vld [vmem:[%s1 + $0x2728] sm:$0xff]
    %v1288 = vld [vmem:[%s1 + $0x2730] sm:$0xff]
    %v1289 = vld [vmem:[%s1 + $0x2738] sm:$0xff]
    %v1290 = vld [vmem:[%s1 + $0x2740] sm:$0xff]
    %v1291 = vld [vmem:[%s1 + $0x2748] sm:$0xff]
    %v1292 = vld [vmem:[%s1 + $0x2750] sm:$0xff]
    %v1293 = vld [vmem:[%s1 + $0x2758] sm:$0xff]
    %v1294 = vld [vmem:[%s1 + $0x2760] sm:$0xff]
    %v1295 = vld [vmem:[%s1 + $0x2768] sm:$0xff]
    %v1296 = vld [vmem:[%s1 + $0x2770] sm:$0xff]
    %v1297 = vld [vmem:[%s1 + $0x2778] sm:$0xff]
    %v1298 = vld [vmem:[%s1 + $0x2780] sm:$0xff]
    %v1299 = vld [vmem:[%s1 + $0x2788] sm:$0xff]
    %v1300 = vld [vmem:[%s1 + $0x2790] sm:$0xff]
    %v1301 = vld [vmem:[%s1 + $0x2798] sm:$0xff]
    %v1302 = vld [vmem:[%s1 + $0x27a0] sm:$0xff]
    %v1303 = vld [vmem:[%s1 + $0x27a8] sm:$0xff]
    %v1304 = vld [vmem:[%s1 + $0x27b0] sm:$0xff]
    %v1305 = vld [vmem:[%s1 + $0x27b8] sm:$0xff]
    %v1306 = vld [vmem:[%s1 + $0x27c0] sm:$0xff]
    %v1307 = vld [vmem:[%s1 + $0x27c8] sm:$0xff]
    %v1308 = vld [vmem:[%s1 + $0x27d0] sm:$0xff]
    %v1309 = vld [vmem:[%s1 + $0x27d8] sm:$0xff]
    %v1310 = vld [vmem:[%s1 + $0x27e0] sm:$0xff]
    %v1311 = vld [vmem:[%s1 + $0x27e8] sm:$0xff]
    %v1312 = vld [vmem:[%s1 + $0x27f0] sm:$0xff]
    %v1313 = vld [vmem:[%s1 + $0x27f8] sm:$0xff]
    %v1314 = vld [vmem:[%s1 + $0x2800] sm:$0xff]
    %v1315 = vld [vmem:[%s1 + $0x2808] sm:$0xff]
    %v1316 = vld [vmem:[%s1 + $0x2810] sm:$0xff]
    %v1317 = vld [vmem:[%s1 + $0x2818] sm:$0xff]
    %v1318 = vld [vmem:[%s1 + $0x2820] sm:$0xff]
    %v1319 = vld [vmem:[%s1 + $0x2828] sm:$0xff]
    %v1320 = vld [vmem:[%s1 + $0x2830] sm:$0xff]
    %v1321 = vld [vmem:[%s1 + $0x2838] sm:$0xff]
    %v1322 = vld [vmem:[%s1 + $0x2840] sm:$0xff]
    %v1323 = vld [vmem:[%s1 + $0x2848] sm:$0xff]
    %v1324 = vld [vmem:[%s1 + $0x2850] sm:$0xff]
    %v1325 = vld [vmem:[%s1 + $0x2858] sm:$0xff]
    %v1326 = vld [vmem:[%s1 + $0x2860] sm:$0xff]
    %v1327 = vld [vmem:[%s1 + $0x2868] sm:$0xff]
    %v1328 = vld [vmem:[%s1 + $0x2870] sm:$0xff]
    %v1329 = vld [vmem:[%s1 + $0x2878] sm:$0xff]
    %v1330 = vld [vmem:[%s1 + $0x2880] sm:$0xff]
    %v1331 = vld [vmem:[%s1 + $0x2888] sm:$0xff]
    %v1332 = vld [vmem:[%s1 + $0x2890] sm:$0xff]
    %v1333 = vld [vmem:[%s1 + $0x2898] sm:$0xff]
    %v1334 = vld [vmem:[%s1 + $0x28a0] sm:$0xff]
    %v1335 = vld [vmem:[%s1 + $0x28a8] sm:$0xff]
    %v1336 = vld [vmem:[%s1 + $0x28b0] sm:$0xff]
    %v1337 = vld [vmem:[%s1 + $0x28b8] sm:$0xff]
    %v1338 = vld [vmem:[%s1 + $0x28c0] sm:$0xff]
    %v1339 = vld [vmem:[%s1 + $0x28c8] sm:$0xff]
    %v1340 = vld [vmem:[%s1 + $0x28d0] sm:$0xff]
    %v1341 = vld [vmem:[%s1 + $0x28d8] sm:$0xff]
    %v1342 = vld [vmem:[%s1 + $0x28e0] sm:$0xff]
    %v1343 = vld [vmem:[%s1 + $0x28e8] sm:$0xff]
    %v1344 = vld [vmem:[%s1 + $0x28f0] sm:$0xff]
    %v1345 = vld [vmem:[%s1 + $0x28f8] sm:$0xff]
    %v1346 = vld [vmem:[%s1 + $0x2900] sm:$0xff]
    %v1347 = vld [vmem:[%s1 + $0x2908] sm:$0xff]
    %v1348 = vld [vmem:[%s1 + $0x2910] sm:$0xff]
    %v1349 = vld [vmem:[%s1 + $0x2918] sm:$0xff]
    %v1350 = vld [vmem:[%s1 + $0x2920] sm:$0xff]
    %v1351 = vld [vmem:[%s1 + $0x2928] sm:$0xff]
    %v1352 = vld [vmem:[%s1 + $0x2930] sm:$0xff]
    %v1353 = vld [vmem:[%s1 + $0x2938] sm:$0xff]
    %v1354 = vld [vmem:[%s1 + $0x2940] sm:$0xff]
    %v1355 = vld [vmem:[%s1 + $0x2948] sm:$0xff]
    %v1356 = vld [vmem:[%s1 + $0x2950] sm:$0xff]
    %v1357 = vld [vmem:[%s1 + $0x2958] sm:$0xff]
    %v1358 = vld [vmem:[%s1 + $0x2960] sm:$0xff]
    %v1359 = vld [vmem:[%s1 + $0x2968] sm:$0xff]
    %v1360 = vld [vmem:[%s1 + $0x2970] sm:$0xff]
    %v1361 = vld [vmem:[%s1 + $0x2978] sm:$0xff]
    %v1362 = vld [vmem:[%s1 + $0x2980] sm:$0xff]
    %v1363 = vld [vmem:[%s1 + $0x2988] sm:$0xff]
    %v1364 = vld [vmem:[%s1 + $0x2990] sm:$0xff]
    %v1365 = vld [vmem:[%s1 + $0x2998] sm:$0xff]
    %v1366 = vld [vmem:[%s1 + $0x29a0] sm:$0xff]
    %v1367 = vld [vmem:[%s1 + $0x29a8] sm:$0xff]
    %v1368 = vld [vmem:[%s1 + $0x29b0] sm:$0xff]
    %v1369 = vld [vmem:[%s1 + $0x29b8] sm:$0xff]
    %v1370 = vld [vmem:[%s1 + $0x29c0] sm:$0xff]
    %v1371 = vld [vmem:[%s1 + $0x29c8] sm:$0xff]
    %v1372 = vld [vmem:[%s1 + $0x29d0] sm:$0xff]
    %v1373 = vld [vmem:[%s1 + $0x29d8] sm:$0xff]
    %v1374 = vld [vmem:[%s1 + $0x29e0] sm:$0xff]
    %v1375 = vld [vmem:[%s1 + $0x29e8] sm:$0xff]
    %v1376 = vld [vmem:[%s1 + $0x29f0] sm:$0xff]
    %v1377 = vld [vmem:[%s1 + $0x29f8] sm:$0xff]
    %v1378 = vld [vmem:[%s1 + $0x2a00] sm:$0xff]
    %v1379 = vld [vmem:[%s1 + $0x2a08] sm:$0xff]
    %v1380 = vld [vmem:[%s1 + $0x2a10] sm:$0xff]
    %v1381 = vld [vmem:[%s1 + $0x2a18] sm:$0xff]
    %v1382 = vld [vmem:[%s1 + $0x2a20] sm:$0xff]
    %v1383 = vld [vmem:[%s1 + $0x2a28] sm:$0xff]
    %v1384 = vld [vmem:[%s1 + $0x2a30] sm:$0xff]
    %v1385 = vld [vmem:[%s1 + $0x2a38] sm:$0xff]
    %v1386 = vld [vmem:[%s1 + $0x2a40] sm:$0xff]
    %v1387 = vld [vmem:[%s1 + $0x2a48] sm:$0xff]
    %v1388 = vld [vmem:[%s1 + $0x2a50] sm:$0xff]
    %v1389 = vld [vmem:[%s1 + $0x2a58] sm:$0xff]
    %v1390 = vld [vmem:[%s1 + $0x2a60] sm:$0xff]
    %v1391 = vld [vmem:[%s1 + $0x2a68] sm:$0xff]
    %v1392 = vld [vmem:[%s1 + $0x2a70] sm:$0xff]
    %v1393 = vld [vmem:[%s1 + $0x2a78] sm:$0xff]
    %v1394 = vld [vmem:[%s1 + $0x2a80] sm:$0xff]
    %v1395 = vld [vmem:[%s1 + $0x2a88] sm:$0xff]
    %v1396 = vld [vmem:[%s1 + $0x2a90] sm:$0xff]
    %v1397 = vld [vmem:[%s1 + $0x2a98] sm:$0xff]
    %v1398 = vld [vmem:[%s1 + $0x2aa0] sm:$0xff]
    %v1399 = vld [vmem:[%s1 + $0x2aa8] sm:$0xff]
    %v1400 = vld [vmem:[%s1 + $0x2ab0] sm:$0xff]
    %v1401 = vld [vmem:[%s1 + $0x2ab8] sm:$0xff]
    %v1402 = vld [vmem:[%s1 + $0x2ac0] sm:$0xff]
    %v1403 = vld [vmem:[%s1 + $0x2ac8] sm:$0xff]
    %v1404 = vld [vmem:[%s1 + $0x2ad0] sm:$0xff]
    %v1405 = vld [vmem:[%s1 + $0x2ad8] sm:$0xff]
    %v1406 = vld [vmem:[%s1 + $0x2ae0] sm:$0xff]
    %v1407 = vld [vmem:[%s1 + $0x2ae8] sm:$0xff]
    %v1408 = vld [vmem:[%s1 + $0x2af0] sm:$0xff]
    %v1409 = vld [vmem:[%s1 + $0x2af8] sm:$0xff]
    %v1410 = vld [vmem:[%s1 + $0x2b00] sm:$0xff]
    %v1411 = vld [vmem:[%s1 + $0x2b08] sm:$0xff]
    %v1412 = vld [vmem:[%s1 + $0x2b10] sm:$0xff]
    %v1413 = vld [vmem:[%s1 + $0x2b18] sm:$0xff]
    %v1414 = vld [vmem:[%s1 + $0x2b20] sm:$0xff]
    %v1415 = vld [vmem:[%s1 + $0x2b28] sm:$0xff]
    %v1416 = vld [vmem:[%s1 + $0x2b30] sm:$0xff]
    %v1417 = vld [vmem:[%s1 + $0x2b38] sm:$0xff]
    %v1418 = vld [vmem:[%s1 + $0x2b40] sm:$0xff]
    %v1419 = vld [vmem:[%s1 + $0x2b48] sm:$0xff]
    %v1420 = vld [vmem:[%s1 + $0x2b50] sm:$0xff]
    %v1421 = vld [vmem:[%s1 + $0x2b58] sm:$0xff]
    %v1422 = vld [vmem:[%s1 + $0x2b60] sm:$0xff]
    %v1423 = vld [vmem:[%s1 + $0x2b68] sm:$0xff]
    %v1424 = vld [vmem:[%s1 + $0x2b70] sm:$0xff]
    %v1425 = vld [vmem:[%s1 + $0x2b78] sm:$0xff]
    %v1426 = vld [vmem:[%s1 + $0x2b80] sm:$0xff]
    %v1427 = vld [vmem:[%s1 + $0x2b88] sm:$0xff]
    %v1428 = vld [vmem:[%s1 + $0x2b90] sm:$0xff]
    %v1429 = vld [vmem:[%s1 + $0x2b98] sm:$0xff]
    %v1430 = vld [vmem:[%s1 + $0x2ba0] sm:$0xff]
    %v1431 = vld [vmem:[%s1 + $0x2ba8] sm:$0xff]
    %v1432 = vld [vmem:[%s1 + $0x2bb0] sm:$0xff]
    %v1433 = vld [vmem:[%s1 + $0x2bb8] sm:$0xff]
    %v1434 = vld [vmem:[%s1 + $0x2bc0] sm:$0xff]
    %v1435 = vld [vmem:[%s1 + $0x2bc8] sm:$0xff]
    %v1436 = vld [vmem:[%s1 + $0x2bd0] sm:$0xff]
    %v1437 = vld [vmem:[%s1 + $0x2bd8] sm:$0xff]
    %v1438 = vld [vmem:[%s1 + $0x2be0] sm:$0xff]
    %v1439 = vld [vmem:[%s1 + $0x2be8] sm:$0xff]
    %v1440 = vld [vmem:[%s1 + $0x2bf0] sm:$0xff]
    %v1441 = vld [vmem:[%s1 + $0x2bf8] sm:$0xff]
    %v1442 = vld [vmem:[%s1 + $0x2c00] sm:$0xff]
    %v1443 = vld [vmem:[%s1 + $0x2c08] sm:$0xff]
    %v1444 = vld [vmem:[%s1 + $0x2c10] sm:$0xff]
    %v1445 = vld [vmem:[%s1 + $0x2c18] sm:$0xff]
    %v1446 = vld [vmem:[%s1 + $0x2c20] sm:$0xff]
    %v1447 = vld [vmem:[%s1 + $0x2c28] sm:$0xff]
    %v1448 = vld [vmem:[%s1 + $0x2c30] sm:$0xff]
    %v1449 = vld [vmem:[%s1 + $0x2c38] sm:$0xff]
    %v1450 = vld [vmem:[%s1 + $0x2c40] sm:$0xff]
    %v1451 = vld [vmem:[%s1 + $0x2c48] sm:$0xff]
    %v1452 = vld [vmem:[%s1 + $0x2c50] sm:$0xff]
    %v1453 = vld [vmem:[%s1 + $0x2c58] sm:$0xff]
    %v1454 = vld [vmem:[%s1 + $0x2c60] sm:$0xff]
    %v1455 = vld [vmem:[%s1 + $0x2c68] sm:$0xff]
    %v1456 = vld [vmem:[%s1 + $0x2c70] sm:$0xff]
    %v1457 = vld [vmem:[%s1 + $0x2c78] sm:$0xff]
    %v1458 = vld [vmem:[%s1 + $0x2c80] sm:$0xff]
    %v1459 = vld [vmem:[%s1 + $0x2c88] sm:$0xff]
    %v1460 = vld [vmem:[%s1 + $0x2c90] sm:$0xff]
    %v1461 = vld [vmem:[%s1 + $0x2c98] sm:$0xff]
    %v1462 = vld [vmem:[%s1 + $0x2ca0] sm:$0xff]
    %v1463 = vld [vmem:[%s1 + $0x2ca8] sm:$0xff]
    %v1464 = vld [vmem:[%s1 + $0x2cb0] sm:$0xff]
    %v1465 = vld [vmem:[%s1 + $0x2cb8] sm:$0xff]
    %v1466 = vld [vmem:[%s1 + $0x2cc0] sm:$0xff]
    %v1467 = vld [vmem:[%s1 + $0x2cc8] sm:$0xff]
    %v1468 = vld [vmem:[%s1 + $0x2cd0] sm:$0xff]
    %v1469 = vld [vmem:[%s1 + $0x2cd8] sm:$0xff]
    %v1470 = vld [vmem:[%s1 + $0x2ce0] sm:$0xff]
    %v1471 = vld [vmem:[%s1 + $0x2ce8] sm:$0xff]
    %v1472 = vld [vmem:[%s1 + $0x2cf0] sm:$0xff]
    %v1473 = vld [vmem:[%s1 + $0x2cf8] sm:$0xff]
    %v1474 = vld [vmem:[%s1 + $0x2d00] sm:$0xff]
    %v1475 = vld [vmem:[%s1 + $0x2d08] sm:$0xff]
    %v1476 = vld [vmem:[%s1 + $0x2d10] sm:$0xff]
    %v1477 = vld [vmem:[%s1 + $0x2d18] sm:$0xff]
    %v1478 = vld [vmem:[%s1 + $0x2d20] sm:$0xff]
    %v1479 = vld [vmem:[%s1 + $0x2d28] sm:$0xff]
    %v1480 = vld [vmem:[%s1 + $0x2d30] sm:$0xff]
    %v1481 = vld [vmem:[%s1 + $0x2d38] sm:$0xff]
    %v1482 = vld [vmem:[%s1 + $0x2d40] sm:$0xff]
    %v1483 = vld [vmem:[%s1 + $0x2d48] sm:$0xff]
    %v1484 = vld [vmem:[%s1 + $0x2d50] sm:$0xff]
    %v1485 = vld [vmem:[%s1 + $0x2d58] sm:$0xff]
    %v1486 = vld [vmem:[%s1 + $0x2d60] sm:$0xff]
    %v1487 = vld [vmem:[%s1 + $0x2d68] sm:$0xff]
    %v1488 = vld [vmem:[%s1 + $0x2d70] sm:$0xff]
    %v1489 = vld [vmem:[%s1 + $0x2d78] sm:$0xff]
    %v1490 = vld [vmem:[%s1 + $0x2d80] sm:$0xff]
    %v1491 = vld [vmem:[%s1 + $0x2d88] sm:$0xff]
    %v1492 = vld [vmem:[%s1 + $0x2d90] sm:$0xff]
    %v1493 = vld [vmem:[%s1 + $0x2d98] sm:$0xff]
    %v1494 = vld [vmem:[%s1 + $0x2da0] sm:$0xff]
    %v1495 = vld [vmem:[%s1 + $0x2da8] sm:$0xff]
    %v1496 = vld [vmem:[%s1 + $0x2db0] sm:$0xff]
    %v1497 = vld [vmem:[%s1 + $0x2db8] sm:$0xff]
    %v1498 = vld [vmem:[%s1 + $0x2dc0] sm:$0xff]
    %v1499 = vld [vmem:[%s1 + $0x2dc8] sm:$0xff]
    %v1500 = vld [vmem:[%s1 + $0x2dd0] sm:$0xff]
    %v1501 = vld [vmem:[%s1 + $0x2dd8] sm:$0xff]
    %v1502 = vld [vmem:[%s1 + $0x2de0] sm:$0xff]
    %v1503 = vld [vmem:[%s1 + $0x2de8] sm:$0xff]
    %v1504 = vld [vmem:[%s1 + $0x2df0] sm:$0xff]
    %v1505 = vld [vmem:[%s1 + $0x2df8] sm:$0xff]
    %v1506 = vld [vmem:[%s1 + $0x2e00] sm:$0xff]
    %v1507 = vld [vmem:[%s1 + $0x2e08] sm:$0xff]
    %v1508 = vld [vmem:[%s1 + $0x2e10] sm:$0xff]
    %v1509 = vld [vmem:[%s1 + $0x2e18] sm:$0xff]
    %v1510 = vld [vmem:[%s1 + $0x2e20] sm:$0xff]
    %v1511 = vld [vmem:[%s1 + $0x2e28] sm:$0xff]
    %v1512 = vld [vmem:[%s1 + $0x2e30] sm:$0xff]
    %v1513 = vld [vmem:[%s1 + $0x2e38] sm:$0xff]
    %v1514 = vld [vmem:[%s1 + $0x2e40] sm:$0xff]
    %v1515 = vld [vmem:[%s1 + $0x2e48] sm:$0xff]
    %v1516 = vld [vmem:[%s1 + $0x2e50] sm:$0xff]
    %v1517 = vld [vmem:[%s1 + $0x2e58] sm:$0xff]
    %v1518 = vld [vmem:[%s1 + $0x2e60] sm:$0xff]
    %v1519 = vld [vmem:[%s1 + $0x2e68] sm:$0xff]
    %v1520 = vld [vmem:[%s1 + $0x2e70] sm:$0xff]
    %v1521 = vld [vmem:[%s1 + $0x2e78] sm:$0xff]
    %v1522 = vld [vmem:[%s1 + $0x2e80] sm:$0xff]
    %v1523 = vld [vmem:[%s1 + $0x2e88] sm:$0xff]
    %v1524 = vld [vmem:[%s1 + $0x2e90] sm:$0xff]
    %v1525 = vld [vmem:[%s1 + $0x2e98] sm:$0xff]
    %v1526 = vld [vmem:[%s1 + $0x2ea0] sm:$0xff]
    %v1527 = vld [vmem:[%s1 + $0x2ea8] sm:$0xff]
    %v1528 = vld [vmem:[%s1 + $0x2eb0] sm:$0xff]
    %v1529 = vld [vmem:[%s1 + $0x2eb8] sm:$0xff]
    %v1530 = vld [vmem:[%s1 + $0x2ec0] sm:$0xff]
    %v1531 = vld [vmem:[%s1 + $0x2ec8] sm:$0xff]
    %v1532 = vld [vmem:[%s1 + $0x2ed0] sm:$0xff]
    %v1533 = vld [vmem:[%s1 + $0x2ed8] sm:$0xff]
    %v1534 = vld [vmem:[%s1 + $0x2ee0] sm:$0xff]
    %v1535 = vld [vmem:[%s1 + $0x2ee8] sm:$0xff]
    %v1536 = vld [vmem:[%s1 + $0x2ef0] sm:$0xff]
    %v1537 = vld [vmem:[%s1 + $0x2ef8] sm:$0xff]
    %v1538 = vld [vmem:[%s1 + $0x2f00] sm:$0xff]
    %v1539 = vld [vmem:[%s1 + $0x2f08] sm:$0xff]
    %v1540 = vld [vmem:[%s1 + $0x2f10] sm:$0xff]
    %v1541 = vld [vmem:[%s1 + $0x2f18] sm:$0xff]
    %v1542 = vld [vmem:[%s1 + $0x2f20] sm:$0xff]
    %v1543 = vld [vmem:[%s1 + $0x2f28] sm:$0xff]
    %v1544 = vld [vmem:[%s1 + $0x2f30] sm:$0xff]
    %v1545 = vld [vmem:[%s1 + $0x2f38] sm:$0xff]
    %v1546 = vld [vmem:[%s1 + $0x2f40] sm:$0xff]
    %v1547 = vld [vmem:[%s1 + $0x2f48] sm:$0xff]
    %v1548 = vld [vmem:[%s1 + $0x2f50] sm:$0xff]
    %v1549 = vld [vmem:[%s1 + $0x2f58] sm:$0xff]
    %v1550 = vld [vmem:[%s1 + $0x2f60] sm:$0xff]
    %v1551 = vld [vmem:[%s1 + $0x2f68] sm:$0xff]
    %v1552 = vld [vmem:[%s1 + $0x2f70] sm:$0xff]
    %v1553 = vld [vmem:[%s1 + $0x2f78] sm:$0xff]
    %v1554 = vld [vmem:[%s1 + $0x2f80] sm:$0xff]
    %v1555 = vld [vmem:[%s1 + $0x2f88] sm:$0xff]
    %v1556 = vld [vmem:[%s1 + $0x2f90] sm:$0xff]
    %v1557 = vld [vmem:[%s1 + $0x2f98] sm:$0xff]
    %v1558 = vld [vmem:[%s1 + $0x2fa0] sm:$0xff]
    %v1559 = vld [vmem:[%s1 + $0x2fa8] sm:$0xff]
    %v1560 = vld [vmem:[%s1 + $0x2fb0] sm:$0xff]
    %v1561 = vld [vmem:[%s1 + $0x2fb8] sm:$0xff]
    %v1562 = vld [vmem:[%s1 + $0x2fc0] sm:$0xff]
    %v1563 = vld [vmem:[%s1 + $0x2fc8] sm:$0xff]
    %v1564 = vld [vmem:[%s1 + $0x2fd0] sm:$0xff]
    %v1565 = vld [vmem:[%s1 + $0x2fd8] sm:$0xff]
    %v1566 = vld [vmem:[%s1 + $0x2fe0] sm:$0xff]
    %v1567 = vld [vmem:[%s1 + $0x2fe8] sm:$0xff]
    %v1568 = vld [vmem:[%s1 + $0x2ff0] sm:$0xff]
    %v1569 = vld [vmem:[%s1 + $0x2ff8] sm:$0xff]
    %v1570 = vld [vmem:[%s1 + $0x3000] sm:$0xff]
    %v1571 = vld [vmem:[%s1 + $0x3008] sm:$0xff]
    %v1572 = vld [vmem:[%s1 + $0x3010] sm:$0xff]
    %v1573 = vld [vmem:[%s1 + $0x3018] sm:$0xff]
    %v1574 = vld [vmem:[%s1 + $0x3020] sm:$0xff]
    %v1575 = vld [vmem:[%s1 + $0x3028] sm:$0xff]
    %v1576 = vld [vmem:[%s1 + $0x3030] sm:$0xff]
    %v1577 = vld [vmem:[%s1 + $0x3038] sm:$0xff]
    %v1578 = vld [vmem:[%s1 + $0x3040] sm:$0xff]
    %v1579 = vld [vmem:[%s1 + $0x3048] sm:$0xff]
    %v1580 = vld [vmem:[%s1 + $0x3050] sm:$0xff]
    %v1581 = vld [vmem:[%s1 + $0x3058] sm:$0xff]
    %v1582 = vld [vmem:[%s1 + $0x3060] sm:$0xff]
    %v1583 = vld [vmem:[%s1 + $0x3068] sm:$0xff]
    %v1584 = vld [vmem:[%s1 + $0x3070] sm:$0xff]
    %v1585 = vld [vmem:[%s1 + $0x3078] sm:$0xff]
    %v1586 = vld [vmem:[%s1 + $0x3080] sm:$0xff]
    %v1587 = vld [vmem:[%s1 + $0x3088] sm:$0xff]
    %v1588 = vld [vmem:[%s1 + $0x3090] sm:$0xff]
    %v1589 = vld [vmem:[%s1 + $0x3098] sm:$0xff]
    %v1590 = vld [vmem:[%s1 + $0x30a0] sm:$0xff]
    %v1591 = vld [vmem:[%s1 + $0x30a8] sm:$0xff]
    %v1592 = vld [vmem:[%s1 + $0x30b0] sm:$0xff]
    %v1593 = vld [vmem:[%s1 + $0x30b8] sm:$0xff]
    %v1594 = vld [vmem:[%s1 + $0x30c0] sm:$0xff]
    %v1595 = vld [vmem:[%s1 + $0x30c8] sm:$0xff]
    %v1596 = vld [vmem:[%s1 + $0x30d0] sm:$0xff]
    %v1597 = vld [vmem:[%s1 + $0x30d8] sm:$0xff]
    %v1598 = vld [vmem:[%s1 + $0x30e0] sm:$0xff]
    %v1599 = vld [vmem:[%s1 + $0x30e8] sm:$0xff]
    %v1600 = vld [vmem:[%s1 + $0x30f0] sm:$0xff]
    %v1601 = vld [vmem:[%s1 + $0x30f8] sm:$0xff]
    %v1602 = vld [vmem:[%s2] sm:$0xff]
    %v1604 = vlaneseq
    %v1605 = vshrl.u32 %v1604, 7
    %v1606 = vsub.s32 0, %v1605
    %v1607 = vrot.slane %v1602, %v1606
    %v1608 = vlaneseq
    %v1609 = vshrl.u32 %v1608, 7
    %v1610 = vsub.s32 1, %v1609
    %v1611 = vrot.slane %v1602, %v1610
    %v1612 = vlaneseq
    %v1613 = vshrl.u32 %v1612, 7
    %v1614 = vsub.s32 2, %v1613
    %v1615 = vrot.slane %v1602, %v1614
    %v1616 = vlaneseq
    %v1617 = vshrl.u32 %v1616, 7
    %v1618 = vsub.s32 3, %v1617
    %v1619 = vrot.slane %v1602, %v1618
    %v1620 = vlaneseq
    %v1621 = vshrl.u32 %v1620, 7
    %v1622 = vsub.s32 4, %v1621
    %v1623 = vrot.slane %v1602, %v1622
    %v1624 = vlaneseq
    %v1625 = vshrl.u32 %v1624, 7
    %v1626 = vsub.s32 5, %v1625
    %v1627 = vrot.slane %v1602, %v1626
    %v1628 = vlaneseq
    %v1629 = vshrl.u32 %v1628, 7
    %v1630 = vsub.s32 6, %v1629
    %v1631 = vrot.slane %v1602, %v1630
    %v1632 = vlaneseq
    %v1633 = vshrl.u32 %v1632, 7
    %v1634 = vsub.s32 7, %v1633
    %v1635 = vrot.slane %v1602, %v1634
    %v1648 = vcombine.high %v30, %v30
    %v1650 = vunpack.c.l.s4 1966171168
    %v1651 = vunpack.c.0.s8 %v1650
    %v1652 = vlaneseq
    %v1653 = vshrl.u32 %v1652, 7
    %v1654 = vsub.s32 %v1651, %v1653
    %v1655 = vrot.slane %v30, %v1654
    %v1657 = vunpack.c.l.s4 1966171168
    %v1658 = vunpack.c.0.s8 %v1657
    %v1659 = vlaneseq
    %v1660 = vshrl.u32 %v1659, 7
    %v1661 = vsub.s32 %v1658, %v1660
    %v1662 = vrot.slane %v1648, %v1661
    %v1663 = vcombine.high %v1655, %v1655
    %v1664 = vcombine.high %v1662, %v1662
    %v1666 = vunpack.c.l.s4 1966171168
    %v1667 = vunpack.c.0.s8 %v1666
    %v1668 = vlaneseq
    %v1669 = vshrl.u32 %v1668, 7
    %v1670 = vsub.s32 %v1667, %v1669
    %v1671 = vrot.slane %v1655, %v1670
    %v1673 = vunpack.c.l.s4 1966171168
    %v1674 = vunpack.c.0.s8 %v1673
    %v1675 = vlaneseq
    %v1676 = vshrl.u32 %v1675, 7
    %v1677 = vsub.s32 %v1674, %v1676
    %v1678 = vrot.slane %v1662, %v1677
    %v1680 = vunpack.c.l.s4 1966171168
    %v1681 = vunpack.c.0.s8 %v1680
    %v1682 = vlaneseq
    %v1683 = vshrl.u32 %v1682, 7
    %v1684 = vsub.s32 %v1681, %v1683
    %v1685 = vrot.slane %v1663, %v1684
    %v1687 = vunpack.c.l.s4 1966171168
    %v1688 = vunpack.c.0.s8 %v1687
    %v1689 = vlaneseq
    %v1690 = vshrl.u32 %v1689, 7
    %v1691 = vsub.s32 %v1688, %v1690
    %v1692 = vrot.slane %v1664, %v1691
    %v1693 = vcombine.high %v1671, %v1671
    %v1694 = vcombine.high %v1678, %v1678
    %v1695 = vcombine.high %v1685, %v1685
    %v1696 = vcombine.high %v1692, %v1692
    %v1697 = vcombine.high %v31, %v31
    %v1699 = vunpack.c.l.s4 1966171168
    %v1700 = vunpack.c.0.s8 %v1699
    %v1701 = vlaneseq
    %v1702 = vshrl.u32 %v1701, 7
    %v1703 = vsub.s32 %v1700, %v1702
    %v1704 = vrot.slane %v31, %v1703
    %v1706 = vunpack.c.l.s4 1966171168
    %v1707 = vunpack.c.0.s8 %v1706
    %v1708 = vlaneseq
    %v1709 = vshrl.u32 %v1708, 7
    %v1710 = vsub.s32 %v1707, %v1709
    %v1711 = vrot.slane %v1697, %v1710
    %v1712 = vcombine.high %v1704, %v1704
    %v1713 = vcombine.high %v1711, %v1711
    %v1715 = vunpack.c.l.s4 1966171168
    %v1716 = vunpack.c.0.s8 %v1715
    %v1717 = vlaneseq
    %v1718 = vshrl.u32 %v1717, 7
    %v1719 = vsub.s32 %v1716, %v1718
    %v1720 = vrot.slane %v1704, %v1719
    %v1722 = vunpack.c.l.s4 1966171168
    %v1723 = vunpack.c.0.s8 %v1722
    %v1724 = vlaneseq
    %v1725 = vshrl.u32 %v1724, 7
    %v1726 = vsub.s32 %v1723, %v1725
    %v1727 = vrot.slane %v1711, %v1726
    %v1729 = vunpack.c.l.s4 1966171168
    %v1730 = vunpack.c.0.s8 %v1729
    %v1731 = vlaneseq
    %v1732 = vshrl.u32 %v1731, 7
    %v1733 = vsub.s32 %v1730, %v1732
    %v1734 = vrot.slane %v1712, %v1733
    %v1736 = vunpack.c.l.s4 1966171168
    %v1737 = vunpack.c.0.s8 %v1736
    %v1738 = vlaneseq
    %v1739 = vshrl.u32 %v1738, 7
    %v1740 = vsub.s32 %v1737, %v1739
    %v1741 = vrot.slane %v1713, %v1740
    %v1742 = vcombine.high %v1720, %v1720
    %v1743 = vcombine.high %v1727, %v1727
    %v1744 = vcombine.high %v1734, %v1734
    %v1745 = vcombine.high %v1741, %v1741
    %v1746 = vcombine.high %v32, %v32
    %v1748 = vunpack.c.l.s4 1966171168
    %v1749 = vunpack.c.0.s8 %v1748
    %v1750 = vlaneseq
    %v1751 = vshrl.u32 %v1750, 7
    %v1752 = vsub.s32 %v1749, %v1751
    %v1753 = vrot.slane %v32, %v1752
    %v1755 = vunpack.c.l.s4 1966171168
    %v1756 = vunpack.c.0.s8 %v1755
    %v1757 = vlaneseq
    %v1758 = vshrl.u32 %v1757, 7
    %v1759 = vsub.s32 %v1756, %v1758
    %v1760 = vrot.slane %v1746, %v1759
    %v1761 = vcombine.high %v1753, %v1753
    %v1762 = vcombine.high %v1760, %v1760
    %v1764 = vunpack.c.l.s4 1966171168
    %v1765 = vunpack.c.0.s8 %v1764
    %v1766 = vlaneseq
    %v1767 = vshrl.u32 %v1766, 7
    %v1768 = vsub.s32 %v1765, %v1767
    %v1769 = vrot.slane %v1753, %v1768
    %v1771 = vunpack.c.l.s4 1966171168
    %v1772 = vunpack.c.0.s8 %v1771
    %v1773 = vlaneseq
    %v1774 = vshrl.u32 %v1773, 7
    %v1775 = vsub.s32 %v1772, %v1774
    %v1776 = vrot.slane %v1760, %v1775
    %v1778 = vunpack.c.l.s4 1966171168
    %v1779 = vunpack.c.0.s8 %v1778
    %v1780 = vlaneseq
    %v1781 = vshrl.u32 %v1780, 7
    %v1782 = vsub.s32 %v1779, %v1781
    %v1783 = vrot.slane %v1761, %v1782
    %v1785 = vunpack.c.l.s4 1966171168
    %v1786 = vunpack.c.0.s8 %v1785
    %v1787 = vlaneseq
    %v1788 = vshrl.u32 %v1787, 7
    %v1789 = vsub.s32 %v1786, %v1788
    %v1790 = vrot.slane %v1762, %v1789
    %v1791 = vcombine.high %v1769, %v1769
    %v1792 = vcombine.high %v1776, %v1776
    %v1793 = vcombine.high %v1783, %v1783
    %v1794 = vcombine.high %v1790, %v1790
    %v1796 = vunpack.c.l.s4 1966171168
    %v1797 = vunpack.c.0.s8 %v1796
    %v1798 = vlaneseq
    %v1799 = vshrl.u32 %v1798, 7
    %v1800 = vsub.s32 %v1797, %v1799
    %v1801 = vrot.slane %v33, %v1800
    %v1803 = vunpack.c.l.s4 1966171168
    %v1804 = vunpack.c.0.s8 %v1803
    %v1805 = vlaneseq
    %v1806 = vshrl.u32 %v1805, 7
    %v1807 = vsub.s32 %v1804, %v1806
    %v1808 = vrot.slane %v1801, %v1807
    %v3401 = vunpack.c.l.b16 %v34
    %v3402 = vunpack.c.h.b16 %v34
    %v3403 = vunpack.c.l.b16 %v35
    %v3404 = vunpack.c.h.b16 %v35
    %v3405 = vunpack.c.l.b16 %v36
    %v3406 = vunpack.c.h.b16 %v36
    %v3407 = vunpack.c.l.b16 %v37
    %v3408 = vunpack.c.h.b16 %v37
    %v3409 = vunpack.c.l.b16 %v38
    %v3410 = vunpack.c.h.b16 %v38
    %v3411 = vunpack.c.l.b16 %v39
    %v3412 = vunpack.c.h.b16 %v39
    %v3413 = vunpack.c.l.b16 %v40
    %v3414 = vunpack.c.h.b16 %v40
    %v3415 = vunpack.c.l.b16 %v41
    %v3416 = vunpack.c.h.b16 %v41
    %v3417 = vunpack.c.l.b16 %v42
    %v3418 = vunpack.c.h.b16 %v42
    %v3419 = vunpack.c.l.b16 %v43
    %v3420 = vunpack.c.h.b16 %v43
    %v3421 = vunpack.c.l.b16 %v44
    %v3422 = vunpack.c.h.b16 %v44
    %v3423 = vunpack.c.l.b16 %v45
    %v3424 = vunpack.c.h.b16 %v45
    %v3425 = vunpack.c.l.b16 %v46
    %v3426 = vunpack.c.h.b16 %v46
    %v3427 = vunpack.c.l.b16 %v47
    %v3428 = vunpack.c.h.b16 %v47
    %v3429 = vunpack.c.l.b16 %v48
    %v3430 = vunpack.c.h.b16 %v48
    %v3431 = vunpack.c.l.b16 %v49
    %v3432 = vunpack.c.h.b16 %v49
    %v3433 = vunpack.c.l.b16 %v50
    %v3434 = vunpack.c.h.b16 %v50
    %v3435 = vunpack.c.l.b16 %v51
    %v3436 = vunpack.c.h.b16 %v51
    %v3437 = vunpack.c.l.b16 %v52
    %v3438 = vunpack.c.h.b16 %v52
    %v3439 = vunpack.c.l.b16 %v53
    %v3440 = vunpack.c.h.b16 %v53
    %v3441 = vunpack.c.l.b16 %v54
    %v3442 = vunpack.c.h.b16 %v54
    %v3443 = vunpack.c.l.b16 %v55
    %v3444 = vunpack.c.h.b16 %v55
    %v3445 = vunpack.c.l.b16 %v56
    %v3446 = vunpack.c.h.b16 %v56
    %v3447 = vunpack.c.l.b16 %v57
    %v3448 = vunpack.c.h.b16 %v57
    %v3449 = vunpack.c.l.b16 %v58
    %v3450 = vunpack.c.h.b16 %v58
    %v3451 = vunpack.c.l.b16 %v59
    %v3452 = vunpack.c.h.b16 %v59
    %v3453 = vunpack.c.l.b16 %v60
    %v3454 = vunpack.c.h.b16 %v60
    %v3455 = vunpack.c.l.b16 %v61
    %v3456 = vunpack.c.h.b16 %v61
    %v3457 = vunpack.c.l.b16 %v62
    %v3458 = vunpack.c.h.b16 %v62
    %v3459 = vunpack.c.l.b16 %v63
    %v3460 = vunpack.c.h.b16 %v63
    %v3461 = vunpack.c.l.b16 %v64
    %v3462 = vunpack.c.h.b16 %v64
    %v3463 = vunpack.c.l.b16 %v65
    %v3464 = vunpack.c.h.b16 %v65
    %v3465 = vunpack.c.l.b16 %v66
    %v3466 = vunpack.c.h.b16 %v66
    %v3467 = vunpack.c.l.b16 %v67
    %v3468 = vunpack.c.h.b16 %v67
    %v3469 = vunpack.c.l.b16 %v68
    %v3470 = vunpack.c.h.b16 %v68
    %v3471 = vunpack.c.l.b16 %v69
    %v3472 = vunpack.c.h.b16 %v69
    %v3473 = vunpack.c.l.b16 %v70
    %v3474 = vunpack.c.h.b16 %v70
    %v3475 = vunpack.c.l.b16 %v71
    %v3476 = vunpack.c.h.b16 %v71
    %v3477 = vunpack.c.l.b16 %v72
    %v3478 = vunpack.c.h.b16 %v72
    %v3479 = vunpack.c.l.b16 %v73
    %v3480 = vunpack.c.h.b16 %v73
    %v3481 = vunpack.c.l.b16 %v74
    %v3482 = vunpack.c.h.b16 %v74
    %v3483 = vunpack.c.l.b16 %v75
    %v3484 = vunpack.c.h.b16 %v75
    %v3485 = vunpack.c.l.b16 %v76
    %v3486 = vunpack.c.h.b16 %v76
    %v3487 = vunpack.c.l.b16 %v77
    %v3488 = vunpack.c.h.b16 %v77
    %v3489 = vunpack.c.l.b16 %v78
    %v3490 = vunpack.c.h.b16 %v78
    %v3491 = vunpack.c.l.b16 %v79
    %v3492 = vunpack.c.h.b16 %v79
    %v3493 = vunpack.c.l.b16 %v80
    %v3494 = vunpack.c.h.b16 %v80
    %v3495 = vunpack.c.l.b16 %v81
    %v3496 = vunpack.c.h.b16 %v81
    %v3497 = vunpack.c.l.b16 %v82
    %v3498 = vunpack.c.h.b16 %v82
    %v3499 = vunpack.c.l.b16 %v83
    %v3500 = vunpack.c.h.b16 %v83
    %v3501 = vunpack.c.l.b16 %v84
    %v3502 = vunpack.c.h.b16 %v84
    %v3503 = vunpack.c.l.b16 %v85
    %v3504 = vunpack.c.h.b16 %v85
    %v3505 = vunpack.c.l.b16 %v86
    %v3506 = vunpack.c.h.b16 %v86
    %v3507 = vunpack.c.l.b16 %v87
    %v3508 = vunpack.c.h.b16 %v87
    %v3509 = vunpack.c.l.b16 %v88
    %v3510 = vunpack.c.h.b16 %v88
    %v3511 = vunpack.c.l.b16 %v89
    %v3512 = vunpack.c.h.b16 %v89
    %v3513 = vunpack.c.l.b16 %v90
    %v3514 = vunpack.c.h.b16 %v90
    %v3515 = vunpack.c.l.b16 %v91
    %v3516 = vunpack.c.h.b16 %v91
    %v3517 = vunpack.c.l.b16 %v92
    %v3518 = vunpack.c.h.b16 %v92
    %v3519 = vunpack.c.l.b16 %v93
    %v3520 = vunpack.c.h.b16 %v93
    %v3521 = vunpack.c.l.b16 %v94
    %v3522 = vunpack.c.h.b16 %v94
    %v3523 = vunpack.c.l.b16 %v95
    %v3524 = vunpack.c.h.b16 %v95
    %v3525 = vunpack.c.l.b16 %v96
    %v3526 = vunpack.c.h.b16 %v96
    %v3527 = vunpack.c.l.b16 %v97
    %v3528 = vunpack.c.h.b16 %v97
    %v3529 = vunpack.c.l.b16 %v98
    %v3530 = vunpack.c.h.b16 %v98
    %v3531 = vunpack.c.l.b16 %v99
    %v3532 = vunpack.c.h.b16 %v99
    %v3533 = vunpack.c.l.b16 %v100
    %v3534 = vunpack.c.h.b16 %v100
    %v3535 = vunpack.c.l.b16 %v101
    %v3536 = vunpack.c.h.b16 %v101
    %v3537 = vunpack.c.l.b16 %v102
    %v3538 = vunpack.c.h.b16 %v102
    %v3539 = vunpack.c.l.b16 %v103
    %v3540 = vunpack.c.h.b16 %v103
    %v3541 = vunpack.c.l.b16 %v104
    %v3542 = vunpack.c.h.b16 %v104
    %v3543 = vunpack.c.l.b16 %v105
    %v3544 = vunpack.c.h.b16 %v105
    %v3545 = vunpack.c.l.b16 %v106
    %v3546 = vunpack.c.h.b16 %v106
    %v3547 = vunpack.c.l.b16 %v107
    %v3548 = vunpack.c.h.b16 %v107
    %v3549 = vunpack.c.l.b16 %v108
    %v3550 = vunpack.c.h.b16 %v108
    %v3551 = vunpack.c.l.b16 %v109
    %v3552 = vunpack.c.h.b16 %v109
    %v3553 = vunpack.c.l.b16 %v110
    %v3554 = vunpack.c.h.b16 %v110
    %v3555 = vunpack.c.l.b16 %v111
    %v3556 = vunpack.c.h.b16 %v111
    %v3557 = vunpack.c.l.b16 %v112
    %v3558 = vunpack.c.h.b16 %v112
    %v3559 = vunpack.c.l.b16 %v113
    %v3560 = vunpack.c.h.b16 %v113
    %v3561 = vunpack.c.l.b16 %v114
    %v3562 = vunpack.c.h.b16 %v114
    %v3563 = vunpack.c.l.b16 %v115
    %v3564 = vunpack.c.h.b16 %v115
    %v3565 = vunpack.c.l.b16 %v116
    %v3566 = vunpack.c.h.b16 %v116
    %v3567 = vunpack.c.l.b16 %v117
    %v3568 = vunpack.c.h.b16 %v117
    %v3569 = vunpack.c.l.b16 %v118
    %v3570 = vunpack.c.h.b16 %v118
    %v3571 = vunpack.c.l.b16 %v119
    %v3572 = vunpack.c.h.b16 %v119
    %v3573 = vunpack.c.l.b16 %v120
    %v3574 = vunpack.c.h.b16 %v120
    %v3575 = vunpack.c.l.b16 %v121
    %v3576 = vunpack.c.h.b16 %v121
    %v3577 = vunpack.c.l.b16 %v122
    %v3578 = vunpack.c.h.b16 %v122
    %v3579 = vunpack.c.l.b16 %v123
    %v3580 = vunpack.c.h.b16 %v123
    %v3581 = vunpack.c.l.b16 %v124
    %v3582 = vunpack.c.h.b16 %v124
    %v3583 = vunpack.c.l.b16 %v125
    %v3584 = vunpack.c.h.b16 %v125
    %v3585 = vunpack.c.l.b16 %v126
    %v3586 = vunpack.c.h.b16 %v126
    %v3587 = vunpack.c.l.b16 %v127
    %v3588 = vunpack.c.h.b16 %v127
    %v3589 = vunpack.c.l.b16 %v128
    %v3590 = vunpack.c.h.b16 %v128
    %v3591 = vunpack.c.l.b16 %v129
    %v3592 = vunpack.c.h.b16 %v129
    %v3593 = vunpack.c.l.b16 %v130
    %v3594 = vunpack.c.h.b16 %v130
    %v3595 = vunpack.c.l.b16 %v131
    %v3596 = vunpack.c.h.b16 %v131
    %v3597 = vunpack.c.l.b16 %v132
    %v3598 = vunpack.c.h.b16 %v132
    %v3599 = vunpack.c.l.b16 %v133
    %v3600 = vunpack.c.h.b16 %v133
    %v3601 = vunpack.c.l.b16 %v134
    %v3602 = vunpack.c.h.b16 %v134
    %v3603 = vunpack.c.l.b16 %v135
    %v3604 = vunpack.c.h.b16 %v135
    %v3605 = vunpack.c.l.b16 %v136
    %v3606 = vunpack.c.h.b16 %v136
    %v3607 = vunpack.c.l.b16 %v137
    %v3608 = vunpack.c.h.b16 %v137
    %v3609 = vunpack.c.l.b16 %v138
    %v3610 = vunpack.c.h.b16 %v138
    %v3611 = vunpack.c.l.b16 %v139
    %v3612 = vunpack.c.h.b16 %v139
    %v3613 = vunpack.c.l.b16 %v140
    %v3614 = vunpack.c.h.b16 %v140
    %v3615 = vunpack.c.l.b16 %v141
    %v3616 = vunpack.c.h.b16 %v141
    %v3617 = vunpack.c.l.b16 %v142
    %v3618 = vunpack.c.h.b16 %v142
    %v3619 = vunpack.c.l.b16 %v143
    %v3620 = vunpack.c.h.b16 %v143
    %v3621 = vunpack.c.l.b16 %v144
    %v3622 = vunpack.c.h.b16 %v144
    %v3623 = vunpack.c.l.b16 %v145
    %v3624 = vunpack.c.h.b16 %v145
    %v3625 = vunpack.c.l.b16 %v146
    %v3626 = vunpack.c.h.b16 %v146
    %v3627 = vunpack.c.l.b16 %v147
    %v3628 = vunpack.c.h.b16 %v147
    %v3629 = vunpack.c.l.b16 %v148
    %v3630 = vunpack.c.h.b16 %v148
    %v3631 = vunpack.c.l.b16 %v149
    %v3632 = vunpack.c.h.b16 %v149
    %v3633 = vunpack.c.l.b16 %v150
    %v3634 = vunpack.c.h.b16 %v150
    %v3635 = vunpack.c.l.b16 %v151
    %v3636 = vunpack.c.h.b16 %v151
    %v3637 = vunpack.c.l.b16 %v152
    %v3638 = vunpack.c.h.b16 %v152
    %v3639 = vunpack.c.l.b16 %v153
    %v3640 = vunpack.c.h.b16 %v153
    %v3641 = vunpack.c.l.b16 %v154
    %v3642 = vunpack.c.h.b16 %v154
    %v3643 = vunpack.c.l.b16 %v155
    %v3644 = vunpack.c.h.b16 %v155
    %v3645 = vunpack.c.l.b16 %v156
    %v3646 = vunpack.c.h.b16 %v156
    %v3647 = vunpack.c.l.b16 %v157
    %v3648 = vunpack.c.h.b16 %v157
    %v3649 = vunpack.c.l.b16 %v158
    %v3650 = vunpack.c.h.b16 %v158
    %v3651 = vunpack.c.l.b16 %v159
    %v3652 = vunpack.c.h.b16 %v159
    %v3653 = vunpack.c.l.b16 %v160
    %v3654 = vunpack.c.h.b16 %v160
    %v3655 = vunpack.c.l.b16 %v161
    %v3656 = vunpack.c.h.b16 %v161
    %v3657 = vunpack.c.l.b16 %v162
    %v3658 = vunpack.c.h.b16 %v162
    %v3659 = vunpack.c.l.b16 %v163
    %v3660 = vunpack.c.h.b16 %v163
    %v3661 = vunpack.c.l.b16 %v164
    %v3662 = vunpack.c.h.b16 %v164
    %v3663 = vunpack.c.l.b16 %v165
    %v3664 = vunpack.c.h.b16 %v165
    %v3665 = vunpack.c.l.b16 %v166
    %v3666 = vunpack.c.h.b16 %v166
    %v3667 = vunpack.c.l.b16 %v167
    %v3668 = vunpack.c.h.b16 %v167
    %v3669 = vunpack.c.l.b16 %v168
    %v3670 = vunpack.c.h.b16 %v168
    %v3671 = vunpack.c.l.b16 %v169
    %v3672 = vunpack.c.h.b16 %v169
    %v3673 = vunpack.c.l.b16 %v170
    %v3674 = vunpack.c.h.b16 %v170
    %v3675 = vunpack.c.l.b16 %v171
    %v3676 = vunpack.c.h.b16 %v171
    %v3677 = vunpack.c.l.b16 %v172
    %v3678 = vunpack.c.h.b16 %v172
    %v3679 = vunpack.c.l.b16 %v173
    %v3680 = vunpack.c.h.b16 %v173
    %v3681 = vunpack.c.l.b16 %v174
    %v3682 = vunpack.c.h.b16 %v174
    %v3683 = vunpack.c.l.b16 %v175
    %v3684 = vunpack.c.h.b16 %v175
    %v3685 = vunpack.c.l.b16 %v176
    %v3686 = vunpack.c.h.b16 %v176
    %v3687 = vunpack.c.l.b16 %v177
    %v3688 = vunpack.c.h.b16 %v177
    %v3689 = vunpack.c.l.b16 %v178
    %v3690 = vunpack.c.h.b16 %v178
    %v3691 = vunpack.c.l.b16 %v179
    %v3692 = vunpack.c.h.b16 %v179
    %v3693 = vunpack.c.l.b16 %v180
    %v3694 = vunpack.c.h.b16 %v180
    %v3695 = vunpack.c.l.b16 %v181
    %v3696 = vunpack.c.h.b16 %v181
    %v3697 = vunpack.c.l.b16 %v182
    %v3698 = vunpack.c.h.b16 %v182
    %v3699 = vunpack.c.l.b16 %v183
    %v3700 = vunpack.c.h.b16 %v183
    %v3701 = vunpack.c.l.b16 %v184
    %v3702 = vunpack.c.h.b16 %v184
    %v3703 = vunpack.c.l.b16 %v185
    %v3704 = vunpack.c.h.b16 %v185
    %v3705 = vunpack.c.l.b16 %v186
    %v3706 = vunpack.c.h.b16 %v186
    %v3707 = vunpack.c.l.b16 %v187
    %v3708 = vunpack.c.h.b16 %v187
    %v3709 = vunpack.c.l.b16 %v188
    %v3710 = vunpack.c.h.b16 %v188
    %v3711 = vunpack.c.l.b16 %v189
    %v3712 = vunpack.c.h.b16 %v189
    %v3713 = vunpack.c.l.b16 %v190
    %v3714 = vunpack.c.h.b16 %v190
    %v3715 = vunpack.c.l.b16 %v191
    %v3716 = vunpack.c.h.b16 %v191
    %v3717 = vunpack.c.l.b16 %v192
    %v3718 = vunpack.c.h.b16 %v192
    %v3719 = vunpack.c.l.b16 %v193
    %v3720 = vunpack.c.h.b16 %v193
    %v3721 = vunpack.c.l.b16 %v194
    %v3722 = vunpack.c.h.b16 %v194
    %v3723 = vunpack.c.l.b16 %v195
    %v3724 = vunpack.c.h.b16 %v195
    %v3725 = vunpack.c.l.b16 %v196
    %v3726 = vunpack.c.h.b16 %v196
    %v3727 = vunpack.c.l.b16 %v197
    %v3728 = vunpack.c.h.b16 %v197
    %v3729 = vunpack.c.l.b16 %v198
    %v3730 = vunpack.c.h.b16 %v198
    %v3731 = vunpack.c.l.b16 %v199
    %v3732 = vunpack.c.h.b16 %v199
    %v3733 = vunpack.c.l.b16 %v200
    %v3734 = vunpack.c.h.b16 %v200
    %v3735 = vunpack.c.l.b16 %v201
    %v3736 = vunpack.c.h.b16 %v201
    %v3737 = vunpack.c.l.b16 %v202
    %v3738 = vunpack.c.h.b16 %v202
    %v3739 = vunpack.c.l.b16 %v203
    %v3740 = vunpack.c.h.b16 %v203
    %v3741 = vunpack.c.l.b16 %v204
    %v3742 = vunpack.c.h.b16 %v204
    %v3743 = vunpack.c.l.b16 %v205
    %v3744 = vunpack.c.h.b16 %v205
    %v3745 = vunpack.c.l.b16 %v206
    %v3746 = vunpack.c.h.b16 %v206
    %v3747 = vunpack.c.l.b16 %v207
    %v3748 = vunpack.c.h.b16 %v207
    %v3749 = vunpack.c.l.b16 %v208
    %v3750 = vunpack.c.h.b16 %v208
    %v3751 = vunpack.c.l.b16 %v209
    %v3752 = vunpack.c.h.b16 %v209
    %v3753 = vunpack.c.l.b16 %v210
    %v3754 = vunpack.c.h.b16 %v210
    %v3755 = vunpack.c.l.b16 %v211
    %v3756 = vunpack.c.h.b16 %v211
    %v3757 = vunpack.c.l.b16 %v212
    %v3758 = vunpack.c.h.b16 %v212
    %v3759 = vunpack.c.l.b16 %v213
    %v3760 = vunpack.c.h.b16 %v213
    %v3761 = vunpack.c.l.b16 %v214
    %v3762 = vunpack.c.h.b16 %v214
    %v3763 = vunpack.c.l.b16 %v215
    %v3764 = vunpack.c.h.b16 %v215
    %v3765 = vunpack.c.l.b16 %v216
    %v3766 = vunpack.c.h.b16 %v216
    %v3767 = vunpack.c.l.b16 %v217
    %v3768 = vunpack.c.h.b16 %v217
    %v3769 = vunpack.c.l.b16 %v218
    %v3770 = vunpack.c.h.b16 %v218
    %v3771 = vunpack.c.l.b16 %v219
    %v3772 = vunpack.c.h.b16 %v219
    %v3773 = vunpack.c.l.b16 %v220
    %v3774 = vunpack.c.h.b16 %v220
    %v3775 = vunpack.c.l.b16 %v221
    %v3776 = vunpack.c.h.b16 %v221
    %v3777 = vunpack.c.l.b16 %v222
    %v3778 = vunpack.c.h.b16 %v222
    %v3779 = vunpack.c.l.b16 %v223
    %v3780 = vunpack.c.h.b16 %v223
    %v3781 = vunpack.c.l.b16 %v224
    %v3782 = vunpack.c.h.b16 %v224
    %v3783 = vunpack.c.l.b16 %v225
    %v3784 = vunpack.c.h.b16 %v225
    %v3785 = vunpack.c.l.b16 %v226
    %v3786 = vunpack.c.h.b16 %v226
    %v3787 = vunpack.c.l.b16 %v227
    %v3788 = vunpack.c.h.b16 %v227
    %v3789 = vunpack.c.l.b16 %v228
    %v3790 = vunpack.c.h.b16 %v228
    %v3791 = vunpack.c.l.b16 %v229
    %v3792 = vunpack.c.h.b16 %v229
    %v3793 = vunpack.c.l.b16 %v230
    %v3794 = vunpack.c.h.b16 %v230
    %v3795 = vunpack.c.l.b16 %v231
    %v3796 = vunpack.c.h.b16 %v231
    %v3797 = vunpack.c.l.b16 %v232
    %v3798 = vunpack.c.h.b16 %v232
    %v3799 = vunpack.c.l.b16 %v233
    %v3800 = vunpack.c.h.b16 %v233
    %v3801 = vunpack.c.l.b16 %v234
    %v3802 = vunpack.c.h.b16 %v234
    %v3803 = vunpack.c.l.b16 %v235
    %v3804 = vunpack.c.h.b16 %v235
    %v3805 = vunpack.c.l.b16 %v236
    %v3806 = vunpack.c.h.b16 %v236
    %v3807 = vunpack.c.l.b16 %v237
    %v3808 = vunpack.c.h.b16 %v237
    %v3809 = vunpack.c.l.b16 %v238
    %v3810 = vunpack.c.h.b16 %v238
    %v3811 = vunpack.c.l.b16 %v239
    %v3812 = vunpack.c.h.b16 %v239
    %v3813 = vunpack.c.l.b16 %v240
    %v3814 = vunpack.c.h.b16 %v240
    %v3815 = vunpack.c.l.b16 %v241
    %v3816 = vunpack.c.h.b16 %v241
    %v3817 = vunpack.c.l.b16 %v242
    %v3818 = vunpack.c.h.b16 %v242
    %v3819 = vunpack.c.l.b16 %v243
    %v3820 = vunpack.c.h.b16 %v243
    %v3821 = vunpack.c.l.b16 %v244
    %v3822 = vunpack.c.h.b16 %v244
    %v3823 = vunpack.c.l.b16 %v245
    %v3824 = vunpack.c.h.b16 %v245
    %v3825 = vunpack.c.l.b16 %v246
    %v3826 = vunpack.c.h.b16 %v246
    %v3827 = vunpack.c.l.b16 %v247
    %v3828 = vunpack.c.h.b16 %v247
    %v3829 = vunpack.c.l.b16 %v248
    %v3830 = vunpack.c.h.b16 %v248
    %v3831 = vunpack.c.l.b16 %v249
    %v3832 = vunpack.c.h.b16 %v249
    %v3833 = vunpack.c.l.b16 %v250
    %v3834 = vunpack.c.h.b16 %v250
    %v3835 = vunpack.c.l.b16 %v251
    %v3836 = vunpack.c.h.b16 %v251
    %v3837 = vunpack.c.l.b16 %v252
    %v3838 = vunpack.c.h.b16 %v252
    %v3839 = vunpack.c.l.b16 %v253
    %v3840 = vunpack.c.h.b16 %v253
    %v3841 = vunpack.c.l.b16 %v254
    %v3842 = vunpack.c.h.b16 %v254
    %v3843 = vunpack.c.l.b16 %v255
    %v3844 = vunpack.c.h.b16 %v255
    %v3845 = vunpack.c.l.b16 %v256
    %v3846 = vunpack.c.h.b16 %v256
    %v3847 = vunpack.c.l.b16 %v257
    %v3848 = vunpack.c.h.b16 %v257
    %v3849 = vunpack.c.l.b16 %v258
    %v3850 = vunpack.c.h.b16 %v258
    %v3851 = vunpack.c.l.b16 %v259
    %v3852 = vunpack.c.h.b16 %v259
    %v3853 = vunpack.c.l.b16 %v260
    %v3854 = vunpack.c.h.b16 %v260
    %v3855 = vunpack.c.l.b16 %v261
    %v3856 = vunpack.c.h.b16 %v261
    %v3857 = vunpack.c.l.b16 %v262
    %v3858 = vunpack.c.h.b16 %v262
    %v3859 = vunpack.c.l.b16 %v263
    %v3860 = vunpack.c.h.b16 %v263
    %v3861 = vunpack.c.l.b16 %v264
    %v3862 = vunpack.c.h.b16 %v264
    %v3863 = vunpack.c.l.b16 %v265
    %v3864 = vunpack.c.h.b16 %v265
    %v3865 = vunpack.c.l.b16 %v266
    %v3866 = vunpack.c.h.b16 %v266
    %v3867 = vunpack.c.l.b16 %v267
    %v3868 = vunpack.c.h.b16 %v267
    %v3869 = vunpack.c.l.b16 %v268
    %v3870 = vunpack.c.h.b16 %v268
    %v3871 = vunpack.c.l.b16 %v269
    %v3872 = vunpack.c.h.b16 %v269
    %v3873 = vunpack.c.l.b16 %v270
    %v3874 = vunpack.c.h.b16 %v270
    %v3875 = vunpack.c.l.b16 %v271
    %v3876 = vunpack.c.h.b16 %v271
    %v3877 = vunpack.c.l.b16 %v272
    %v3878 = vunpack.c.h.b16 %v272
    %v3879 = vunpack.c.l.b16 %v273
    %v3880 = vunpack.c.h.b16 %v273
    %v3881 = vunpack.c.l.b16 %v274
    %v3882 = vunpack.c.h.b16 %v274
    %v3883 = vunpack.c.l.b16 %v275
    %v3884 = vunpack.c.h.b16 %v275
    %v3885 = vunpack.c.l.b16 %v276
    %v3886 = vunpack.c.h.b16 %v276
    %v3887 = vunpack.c.l.b16 %v277
    %v3888 = vunpack.c.h.b16 %v277
    %v3889 = vunpack.c.l.b16 %v278
    %v3890 = vunpack.c.h.b16 %v278
    %v3891 = vunpack.c.l.b16 %v279
    %v3892 = vunpack.c.h.b16 %v279
    %v3893 = vunpack.c.l.b16 %v280
    %v3894 = vunpack.c.h.b16 %v280
    %v3895 = vunpack.c.l.b16 %v281
    %v3896 = vunpack.c.h.b16 %v281
    %v3897 = vunpack.c.l.b16 %v282
    %v3898 = vunpack.c.h.b16 %v282
    %v3899 = vunpack.c.l.b16 %v283
    %v3900 = vunpack.c.h.b16 %v283
    %v3901 = vunpack.c.l.b16 %v284
    %v3902 = vunpack.c.h.b16 %v284
    %v3903 = vunpack.c.l.b16 %v285
    %v3904 = vunpack.c.h.b16 %v285
    %v3905 = vunpack.c.l.b16 %v286
    %v3906 = vunpack.c.h.b16 %v286
    %v3907 = vunpack.c.l.b16 %v287
    %v3908 = vunpack.c.h.b16 %v287
    %v3909 = vunpack.c.l.b16 %v288
    %v3910 = vunpack.c.h.b16 %v288
    %v3911 = vunpack.c.l.b16 %v289
    %v3912 = vunpack.c.h.b16 %v289
    %v3913 = vunpack.c.l.b16 %v290
    %v3914 = vunpack.c.h.b16 %v290
    %v3915 = vunpack.c.l.b16 %v291
    %v3916 = vunpack.c.h.b16 %v291
    %v3917 = vunpack.c.l.b16 %v292
    %v3918 = vunpack.c.h.b16 %v292
    %v3919 = vunpack.c.l.b16 %v293
    %v3920 = vunpack.c.h.b16 %v293
    %v3921 = vunpack.c.l.b16 %v294
    %v3922 = vunpack.c.h.b16 %v294
    %v3923 = vunpack.c.l.b16 %v295
    %v3924 = vunpack.c.h.b16 %v295
    %v3925 = vunpack.c.l.b16 %v296
    %v3926 = vunpack.c.h.b16 %v296
    %v3927 = vunpack.c.l.b16 %v297
    %v3928 = vunpack.c.h.b16 %v297
    %v3929 = vunpack.c.l.b16 %v298
    %v3930 = vunpack.c.h.b16 %v298
    %v3931 = vunpack.c.l.b16 %v299
    %v3932 = vunpack.c.h.b16 %v299
    %v3933 = vunpack.c.l.b16 %v300
    %v3934 = vunpack.c.h.b16 %v300
    %v3935 = vunpack.c.l.b16 %v301
    %v3936 = vunpack.c.h.b16 %v301
    %v3937 = vunpack.c.l.b16 %v302
    %v3938 = vunpack.c.h.b16 %v302
    %v3939 = vunpack.c.l.b16 %v303
    %v3940 = vunpack.c.h.b16 %v303
    %v3941 = vunpack.c.l.b16 %v304
    %v3942 = vunpack.c.h.b16 %v304
    %v3943 = vunpack.c.l.b16 %v305
    %v3944 = vunpack.c.h.b16 %v305
    %v3945 = vunpack.c.l.b16 %v306
    %v3946 = vunpack.c.h.b16 %v306
    %v3947 = vunpack.c.l.b16 %v307
    %v3948 = vunpack.c.h.b16 %v307
    %v3949 = vunpack.c.l.b16 %v308
    %v3950 = vunpack.c.h.b16 %v308
    %v3951 = vunpack.c.l.b16 %v309
    %v3952 = vunpack.c.h.b16 %v309
    %v3953 = vunpack.c.l.b16 %v310
    %v3954 = vunpack.c.h.b16 %v310
    %v3955 = vunpack.c.l.b16 %v311
    %v3956 = vunpack.c.h.b16 %v311
    %v3957 = vunpack.c.l.b16 %v312
    %v3958 = vunpack.c.h.b16 %v312
    %v3959 = vunpack.c.l.b16 %v313
    %v3960 = vunpack.c.h.b16 %v313
    %v3961 = vunpack.c.l.b16 %v314
    %v3962 = vunpack.c.h.b16 %v314
    %v3963 = vunpack.c.l.b16 %v315
    %v3964 = vunpack.c.h.b16 %v315
    %v3965 = vunpack.c.l.b16 %v316
    %v3966 = vunpack.c.h.b16 %v316
    %v3967 = vunpack.c.l.b16 %v317
    %v3968 = vunpack.c.h.b16 %v317
    %v3969 = vunpack.c.l.b16 %v318
    %v3970 = vunpack.c.h.b16 %v318
    %v3971 = vunpack.c.l.b16 %v319
    %v3972 = vunpack.c.h.b16 %v319
    %v3973 = vunpack.c.l.b16 %v320
    %v3974 = vunpack.c.h.b16 %v320
    %v3975 = vunpack.c.l.b16 %v321
    %v3976 = vunpack.c.h.b16 %v321
    %v3977 = vunpack.c.l.b16 %v322
    %v3978 = vunpack.c.h.b16 %v322
    %v3979 = vunpack.c.l.b16 %v323
    %v3980 = vunpack.c.h.b16 %v323
    %v3981 = vunpack.c.l.b16 %v324
    %v3982 = vunpack.c.h.b16 %v324
    %v3983 = vunpack.c.l.b16 %v325
    %v3984 = vunpack.c.h.b16 %v325
    %v3985 = vunpack.c.l.b16 %v326
    %v3986 = vunpack.c.h.b16 %v326
    %v3987 = vunpack.c.l.b16 %v327
    %v3988 = vunpack.c.h.b16 %v327
    %v3989 = vunpack.c.l.b16 %v328
    %v3990 = vunpack.c.h.b16 %v328
    %v3991 = vunpack.c.l.b16 %v329
    %v3992 = vunpack.c.h.b16 %v329
    %v3993 = vunpack.c.l.b16 %v330
    %v3994 = vunpack.c.h.b16 %v330
    %v3995 = vunpack.c.l.b16 %v331
    %v3996 = vunpack.c.h.b16 %v331
    %v3997 = vunpack.c.l.b16 %v332
    %v3998 = vunpack.c.h.b16 %v332
    %v3999 = vunpack.c.l.b16 %v333
    %v4000 = vunpack.c.h.b16 %v333
    %v4001 = vunpack.c.l.b16 %v334
    %v4002 = vunpack.c.h.b16 %v334
    %v4003 = vunpack.c.l.b16 %v335
    %v4004 = vunpack.c.h.b16 %v335
    %v4005 = vunpack.c.l.b16 %v336
    %v4006 = vunpack.c.h.b16 %v336
    %v4007 = vunpack.c.l.b16 %v337
    %v4008 = vunpack.c.h.b16 %v337
    %v4009 = vunpack.c.l.b16 %v338
    %v4010 = vunpack.c.h.b16 %v338
    %v4011 = vunpack.c.l.b16 %v339
    %v4012 = vunpack.c.h.b16 %v339
    %v4013 = vunpack.c.l.b16 %v340
    %v4014 = vunpack.c.h.b16 %v340
    %v4015 = vunpack.c.l.b16 %v341
    %v4016 = vunpack.c.h.b16 %v341
    %v4017 = vunpack.c.l.b16 %v342
    %v4018 = vunpack.c.h.b16 %v342
    %v4019 = vunpack.c.l.b16 %v343
    %v4020 = vunpack.c.h.b16 %v343
    %v4021 = vunpack.c.l.b16 %v344
    %v4022 = vunpack.c.h.b16 %v344
    %v4023 = vunpack.c.l.b16 %v345
    %v4024 = vunpack.c.h.b16 %v345
    %v4025 = vunpack.c.l.b16 %v346
    %v4026 = vunpack.c.h.b16 %v346
    %v4027 = vunpack.c.l.b16 %v347
    %v4028 = vunpack.c.h.b16 %v347
    %v4029 = vunpack.c.l.b16 %v348
    %v4030 = vunpack.c.h.b16 %v348
    %v4031 = vunpack.c.l.b16 %v349
    %v4032 = vunpack.c.h.b16 %v349
    %v4033 = vunpack.c.l.b16 %v350
    %v4034 = vunpack.c.h.b16 %v350
    %v4035 = vunpack.c.l.b16 %v351
    %v4036 = vunpack.c.h.b16 %v351
    %v4037 = vunpack.c.l.b16 %v352
    %v4038 = vunpack.c.h.b16 %v352
    %v4039 = vunpack.c.l.b16 %v353
    %v4040 = vunpack.c.h.b16 %v353
    %v4041 = vunpack.c.l.b16 %v354
    %v4042 = vunpack.c.h.b16 %v354
    %v4043 = vunpack.c.l.b16 %v355
    %v4044 = vunpack.c.h.b16 %v355
    %v4045 = vunpack.c.l.b16 %v356
    %v4046 = vunpack.c.h.b16 %v356
    %v4047 = vunpack.c.l.b16 %v357
    %v4048 = vunpack.c.h.b16 %v357
    %v4049 = vunpack.c.l.b16 %v358
    %v4050 = vunpack.c.h.b16 %v358
    %v4051 = vunpack.c.l.b16 %v359
    %v4052 = vunpack.c.h.b16 %v359
    %v4053 = vunpack.c.l.b16 %v360
    %v4054 = vunpack.c.h.b16 %v360
    %v4055 = vunpack.c.l.b16 %v361
    %v4056 = vunpack.c.h.b16 %v361
    %v4057 = vunpack.c.l.b16 %v362
    %v4058 = vunpack.c.h.b16 %v362
    %v4059 = vunpack.c.l.b16 %v363
    %v4060 = vunpack.c.h.b16 %v363
    %v4061 = vunpack.c.l.b16 %v364
    %v4062 = vunpack.c.h.b16 %v364
    %v4063 = vunpack.c.l.b16 %v365
    %v4064 = vunpack.c.h.b16 %v365
    %v4065 = vunpack.c.l.b16 %v366
    %v4066 = vunpack.c.h.b16 %v366
    %v4067 = vunpack.c.l.b16 %v367
    %v4068 = vunpack.c.h.b16 %v367
    %v4069 = vunpack.c.l.b16 %v368
    %v4070 = vunpack.c.h.b16 %v368
    %v4071 = vunpack.c.l.b16 %v369
    %v4072 = vunpack.c.h.b16 %v369
    %v4073 = vunpack.c.l.b16 %v370
    %v4074 = vunpack.c.h.b16 %v370
    %v4075 = vunpack.c.l.b16 %v371
    %v4076 = vunpack.c.h.b16 %v371
    %v4077 = vunpack.c.l.b16 %v372
    %v4078 = vunpack.c.h.b16 %v372
    %v4079 = vunpack.c.l.b16 %v373
    %v4080 = vunpack.c.h.b16 %v373
    %v4081 = vunpack.c.l.b16 %v374
    %v4082 = vunpack.c.h.b16 %v374
    %v4083 = vunpack.c.l.b16 %v375
    %v4084 = vunpack.c.h.b16 %v375
    %v4085 = vunpack.c.l.b16 %v376
    %v4086 = vunpack.c.h.b16 %v376
    %v4087 = vunpack.c.l.b16 %v377
    %v4088 = vunpack.c.h.b16 %v377
    %v4089 = vunpack.c.l.b16 %v378
    %v4090 = vunpack.c.h.b16 %v378
    %v4091 = vunpack.c.l.b16 %v379
    %v4092 = vunpack.c.h.b16 %v379
    %v4093 = vunpack.c.l.b16 %v380
    %v4094 = vunpack.c.h.b16 %v380
    %v4095 = vunpack.c.l.b16 %v381
    %v4096 = vunpack.c.h.b16 %v381
    %v4097 = vunpack.c.l.b16 %v382
    %v4098 = vunpack.c.h.b16 %v382
    %v4099 = vunpack.c.l.b16 %v383
    %v4100 = vunpack.c.h.b16 %v383
    %v4101 = vunpack.c.l.b16 %v384
    %v4102 = vunpack.c.h.b16 %v384
    %v4103 = vunpack.c.l.b16 %v385
    %v4104 = vunpack.c.h.b16 %v385
    %v4105 = vunpack.c.l.b16 %v386
    %v4106 = vunpack.c.h.b16 %v386
    %v4107 = vunpack.c.l.b16 %v387
    %v4108 = vunpack.c.h.b16 %v387
    %v4109 = vunpack.c.l.b16 %v388
    %v4110 = vunpack.c.h.b16 %v388
    %v4111 = vunpack.c.l.b16 %v389
    %v4112 = vunpack.c.h.b16 %v389
    %v4113 = vunpack.c.l.b16 %v390
    %v4114 = vunpack.c.h.b16 %v390
    %v4115 = vunpack.c.l.b16 %v391
    %v4116 = vunpack.c.h.b16 %v391
    %v4117 = vunpack.c.l.b16 %v392
    %v4118 = vunpack.c.h.b16 %v392
    %v4119 = vunpack.c.l.b16 %v393
    %v4120 = vunpack.c.h.b16 %v393
    %v4121 = vunpack.c.l.b16 %v394
    %v4122 = vunpack.c.h.b16 %v394
    %v4123 = vunpack.c.l.b16 %v395
    %v4124 = vunpack.c.h.b16 %v395
    %v4125 = vunpack.c.l.b16 %v396
    %v4126 = vunpack.c.h.b16 %v396
    %v4127 = vunpack.c.l.b16 %v397
    %v4128 = vunpack.c.h.b16 %v397
    %v4129 = vunpack.c.l.b16 %v398
    %v4130 = vunpack.c.h.b16 %v398
    %v4131 = vunpack.c.l.b16 %v399
    %v4132 = vunpack.c.h.b16 %v399
    %v4133 = vunpack.c.l.b16 %v400
    %v4134 = vunpack.c.h.b16 %v400
    %v4135 = vunpack.c.l.b16 %v401
    %v4136 = vunpack.c.h.b16 %v401
    %v4137 = vunpack.c.l.b16 %v402
    %v4138 = vunpack.c.h.b16 %v402
    %v4139 = vunpack.c.l.b16 %v403
    %v4140 = vunpack.c.h.b16 %v403
    %v4141 = vunpack.c.l.b16 %v404
    %v4142 = vunpack.c.h.b16 %v404
    %v4143 = vunpack.c.l.b16 %v405
    %v4144 = vunpack.c.h.b16 %v405
    %v4145 = vunpack.c.l.b16 %v406
    %v4146 = vunpack.c.h.b16 %v406
    %v4147 = vunpack.c.l.b16 %v407
    %v4148 = vunpack.c.h.b16 %v407
    %v4149 = vunpack.c.l.b16 %v408
    %v4150 = vunpack.c.h.b16 %v408
    %v4151 = vunpack.c.l.b16 %v409
    %v4152 = vunpack.c.h.b16 %v409
    %v4153 = vunpack.c.l.b16 %v410
    %v4154 = vunpack.c.h.b16 %v410
    %v4155 = vunpack.c.l.b16 %v411
    %v4156 = vunpack.c.h.b16 %v411
    %v4157 = vunpack.c.l.b16 %v412
    %v4158 = vunpack.c.h.b16 %v412
    %v4159 = vunpack.c.l.b16 %v413
    %v4160 = vunpack.c.h.b16 %v413
    %v4161 = vunpack.c.l.b16 %v414
    %v4162 = vunpack.c.h.b16 %v414
    %v4163 = vunpack.c.l.b16 %v415
    %v4164 = vunpack.c.h.b16 %v415
    %v4165 = vunpack.c.l.b16 %v416
    %v4166 = vunpack.c.h.b16 %v416
    %v4167 = vunpack.c.l.b16 %v417
    %v4168 = vunpack.c.h.b16 %v417
    %v4169 = vunpack.c.l.b16 %v418
    %v4170 = vunpack.c.h.b16 %v418
    %v4171 = vunpack.c.l.b16 %v419
    %v4172 = vunpack.c.h.b16 %v419
    %v4173 = vunpack.c.l.b16 %v420
    %v4174 = vunpack.c.h.b16 %v420
    %v4175 = vunpack.c.l.b16 %v421
    %v4176 = vunpack.c.h.b16 %v421
    %v4177 = vunpack.c.l.b16 %v422
    %v4178 = vunpack.c.h.b16 %v422
    %v4179 = vunpack.c.l.b16 %v423
    %v4180 = vunpack.c.h.b16 %v423
    %v4181 = vunpack.c.l.b16 %v424
    %v4182 = vunpack.c.h.b16 %v424
    %v4183 = vunpack.c.l.b16 %v425
    %v4184 = vunpack.c.h.b16 %v425
    %v4185 = vunpack.c.l.b16 %v426
    %v4186 = vunpack.c.h.b16 %v426
    %v4187 = vunpack.c.l.b16 %v427
    %v4188 = vunpack.c.h.b16 %v427
    %v4189 = vunpack.c.l.b16 %v428
    %v4190 = vunpack.c.h.b16 %v428
    %v4191 = vunpack.c.l.b16 %v429
    %v4192 = vunpack.c.h.b16 %v429
    %v4193 = vunpack.c.l.b16 %v430
    %v4194 = vunpack.c.h.b16 %v430
    %v4195 = vunpack.c.l.b16 %v431
    %v4196 = vunpack.c.h.b16 %v431
    %v4197 = vunpack.c.l.b16 %v432
    %v4198 = vunpack.c.h.b16 %v432
    %v4199 = vunpack.c.l.b16 %v433
    %v4200 = vunpack.c.h.b16 %v433
    %v4201 = vunpack.c.l.b16 %v434
    %v4202 = vunpack.c.h.b16 %v434
    %v4203 = vunpack.c.l.b16 %v435
    %v4204 = vunpack.c.h.b16 %v435
    %v4205 = vunpack.c.l.b16 %v436
    %v4206 = vunpack.c.h.b16 %v436
    %v4207 = vunpack.c.l.b16 %v437
    %v4208 = vunpack.c.h.b16 %v437
    %v4209 = vunpack.c.l.b16 %v438
    %v4210 = vunpack.c.h.b16 %v438
    %v4211 = vunpack.c.l.b16 %v439
    %v4212 = vunpack.c.h.b16 %v439
    %v4213 = vunpack.c.l.b16 %v440
    %v4214 = vunpack.c.h.b16 %v440
    %v4215 = vunpack.c.l.b16 %v441
    %v4216 = vunpack.c.h.b16 %v441
    %v4217 = vunpack.c.l.b16 %v442
    %v4218 = vunpack.c.h.b16 %v442
    %v4219 = vunpack.c.l.b16 %v443
    %v4220 = vunpack.c.h.b16 %v443
    %v4221 = vunpack.c.l.b16 %v444
    %v4222 = vunpack.c.h.b16 %v444
    %v4223 = vunpack.c.l.b16 %v445
    %v4224 = vunpack.c.h.b16 %v445
    %v4225 = vunpack.c.l.b16 %v446
    %v4226 = vunpack.c.h.b16 %v446
    %v4227 = vunpack.c.l.b16 %v447
    %v4228 = vunpack.c.h.b16 %v447
    %v4229 = vunpack.c.l.b16 %v448
    %v4230 = vunpack.c.h.b16 %v448
    %v4231 = vunpack.c.l.b16 %v449
    %v4232 = vunpack.c.h.b16 %v449
    %v4233 = vunpack.c.l.b16 %v450
    %v4234 = vunpack.c.h.b16 %v450
    %v4235 = vunpack.c.l.b16 %v451
    %v4236 = vunpack.c.h.b16 %v451
    %v4237 = vunpack.c.l.b16 %v452
    %v4238 = vunpack.c.h.b16 %v452
    %v4239 = vunpack.c.l.b16 %v453
    %v4240 = vunpack.c.h.b16 %v453
    %v4241 = vunpack.c.l.b16 %v454
    %v4242 = vunpack.c.h.b16 %v454
    %v4243 = vunpack.c.l.b16 %v455
    %v4244 = vunpack.c.h.b16 %v455
    %v4245 = vunpack.c.l.b16 %v456
    %v4246 = vunpack.c.h.b16 %v456
    %v4247 = vunpack.c.l.b16 %v457
    %v4248 = vunpack.c.h.b16 %v457
    %v4249 = vunpack.c.l.b16 %v458
    %v4250 = vunpack.c.h.b16 %v458
    %v4251 = vunpack.c.l.b16 %v459
    %v4252 = vunpack.c.h.b16 %v459
    %v4253 = vunpack.c.l.b16 %v460
    %v4254 = vunpack.c.h.b16 %v460
    %v4255 = vunpack.c.l.b16 %v461
    %v4256 = vunpack.c.h.b16 %v461
    %v4257 = vunpack.c.l.b16 %v462
    %v4258 = vunpack.c.h.b16 %v462
    %v4259 = vunpack.c.l.b16 %v463
    %v4260 = vunpack.c.h.b16 %v463
    %v4261 = vunpack.c.l.b16 %v464
    %v4262 = vunpack.c.h.b16 %v464
    %v4263 = vunpack.c.l.b16 %v465
    %v4264 = vunpack.c.h.b16 %v465
    %v4265 = vunpack.c.l.b16 %v466
    %v4266 = vunpack.c.h.b16 %v466
    %v4267 = vunpack.c.l.b16 %v467
    %v4268 = vunpack.c.h.b16 %v467
    %v4269 = vunpack.c.l.b16 %v468
    %v4270 = vunpack.c.h.b16 %v468
    %v4271 = vunpack.c.l.b16 %v469
    %v4272 = vunpack.c.h.b16 %v469
    %v4273 = vunpack.c.l.b16 %v470
    %v4274 = vunpack.c.h.b16 %v470
    %v4275 = vunpack.c.l.b16 %v471
    %v4276 = vunpack.c.h.b16 %v471
    %v4277 = vunpack.c.l.b16 %v472
    %v4278 = vunpack.c.h.b16 %v472
    %v4279 = vunpack.c.l.b16 %v473
    %v4280 = vunpack.c.h.b16 %v473
    %v4281 = vunpack.c.l.b16 %v474
    %v4282 = vunpack.c.h.b16 %v474
    %v4283 = vunpack.c.l.b16 %v475
    %v4284 = vunpack.c.h.b16 %v475
    %v4285 = vunpack.c.l.b16 %v476
    %v4286 = vunpack.c.h.b16 %v476
    %v4287 = vunpack.c.l.b16 %v477
    %v4288 = vunpack.c.h.b16 %v477
    %v4289 = vunpack.c.l.b16 %v478
    %v4290 = vunpack.c.h.b16 %v478
    %v4291 = vunpack.c.l.b16 %v479
    %v4292 = vunpack.c.h.b16 %v479
    %v4293 = vunpack.c.l.b16 %v480
    %v4294 = vunpack.c.h.b16 %v480
    %v4295 = vunpack.c.l.b16 %v481
    %v4296 = vunpack.c.h.b16 %v481
    %v4297 = vunpack.c.l.b16 %v482
    %v4298 = vunpack.c.h.b16 %v482
    %v4299 = vunpack.c.l.b16 %v483
    %v4300 = vunpack.c.h.b16 %v483
    %v4301 = vunpack.c.l.b16 %v484
    %v4302 = vunpack.c.h.b16 %v484
    %v4303 = vunpack.c.l.b16 %v485
    %v4304 = vunpack.c.h.b16 %v485
    %v4305 = vunpack.c.l.b16 %v486
    %v4306 = vunpack.c.h.b16 %v486
    %v4307 = vunpack.c.l.b16 %v487
    %v4308 = vunpack.c.h.b16 %v487
    %v4309 = vunpack.c.l.b16 %v488
    %v4310 = vunpack.c.h.b16 %v488
    %v4311 = vunpack.c.l.b16 %v489
    %v4312 = vunpack.c.h.b16 %v489
    %v4313 = vunpack.c.l.b16 %v490
    %v4314 = vunpack.c.h.b16 %v490
    %v4315 = vunpack.c.l.b16 %v491
    %v4316 = vunpack.c.h.b16 %v491
    %v4317 = vunpack.c.l.b16 %v492
    %v4318 = vunpack.c.h.b16 %v492
    %v4319 = vunpack.c.l.b16 %v493
    %v4320 = vunpack.c.h.b16 %v493
    %v4321 = vunpack.c.l.b16 %v494
    %v4322 = vunpack.c.h.b16 %v494
    %v4323 = vunpack.c.l.b16 %v495
    %v4324 = vunpack.c.h.b16 %v495
    %v4325 = vunpack.c.l.b16 %v496
    %v4326 = vunpack.c.h.b16 %v496
    %v4327 = vunpack.c.l.b16 %v497
    %v4328 = vunpack.c.h.b16 %v497
    %v4329 = vunpack.c.l.b16 %v498
    %v4330 = vunpack.c.h.b16 %v498
    %v4331 = vunpack.c.l.b16 %v499
    %v4332 = vunpack.c.h.b16 %v499
    %v4333 = vunpack.c.l.b16 %v500
    %v4334 = vunpack.c.h.b16 %v500
    %v4335 = vunpack.c.l.b16 %v501
    %v4336 = vunpack.c.h.b16 %v501
    %v4337 = vunpack.c.l.b16 %v502
    %v4338 = vunpack.c.h.b16 %v502
    %v4339 = vunpack.c.l.b16 %v503
    %v4340 = vunpack.c.h.b16 %v503
    %v4341 = vunpack.c.l.b16 %v504
    %v4342 = vunpack.c.h.b16 %v504
    %v4343 = vunpack.c.l.b16 %v505
    %v4344 = vunpack.c.h.b16 %v505
    %v4345 = vunpack.c.l.b16 %v506
    %v4346 = vunpack.c.h.b16 %v506
    %v4347 = vunpack.c.l.b16 %v507
    %v4348 = vunpack.c.h.b16 %v507
    %v4349 = vunpack.c.l.b16 %v508
    %v4350 = vunpack.c.h.b16 %v508
    %v4351 = vunpack.c.l.b16 %v509
    %v4352 = vunpack.c.h.b16 %v509
    %v4353 = vunpack.c.l.b16 %v510
    %v4354 = vunpack.c.h.b16 %v510
    %v4355 = vunpack.c.l.b16 %v511
    %v4356 = vunpack.c.h.b16 %v511
    %v4357 = vunpack.c.l.b16 %v512
    %v4358 = vunpack.c.h.b16 %v512
    %v4359 = vunpack.c.l.b16 %v513
    %v4360 = vunpack.c.h.b16 %v513
    %v4361 = vunpack.c.l.b16 %v514
    %v4362 = vunpack.c.h.b16 %v514
    %v4363 = vunpack.c.l.b16 %v515
    %v4364 = vunpack.c.h.b16 %v515
    %v4365 = vunpack.c.l.b16 %v516
    %v4366 = vunpack.c.h.b16 %v516
    %v4367 = vunpack.c.l.b16 %v517
    %v4368 = vunpack.c.h.b16 %v517
    %v4369 = vunpack.c.l.b16 %v518
    %v4370 = vunpack.c.h.b16 %v518
    %v4371 = vunpack.c.l.b16 %v519
    %v4372 = vunpack.c.h.b16 %v519
    %v4373 = vunpack.c.l.b16 %v520
    %v4374 = vunpack.c.h.b16 %v520
    %v4375 = vunpack.c.l.b16 %v521
    %v4376 = vunpack.c.h.b16 %v521
    %v4377 = vunpack.c.l.b16 %v522
    %v4378 = vunpack.c.h.b16 %v522
    %v4379 = vunpack.c.l.b16 %v523
    %v4380 = vunpack.c.h.b16 %v523
    %v4381 = vunpack.c.l.b16 %v524
    %v4382 = vunpack.c.h.b16 %v524
    %v4383 = vunpack.c.l.b16 %v525
    %v4384 = vunpack.c.h.b16 %v525
    %v4385 = vunpack.c.l.b16 %v526
    %v4386 = vunpack.c.h.b16 %v526
    %v4387 = vunpack.c.l.b16 %v527
    %v4388 = vunpack.c.h.b16 %v527
    %v4389 = vunpack.c.l.b16 %v528
    %v4390 = vunpack.c.h.b16 %v528
    %v4391 = vunpack.c.l.b16 %v529
    %v4392 = vunpack.c.h.b16 %v529
    %v4393 = vunpack.c.l.b16 %v530
    %v4394 = vunpack.c.h.b16 %v530
    %v4395 = vunpack.c.l.b16 %v531
    %v4396 = vunpack.c.h.b16 %v531
    %v4397 = vunpack.c.l.b16 %v532
    %v4398 = vunpack.c.h.b16 %v532
    %v4399 = vunpack.c.l.b16 %v533
    %v4400 = vunpack.c.h.b16 %v533
    %v4401 = vunpack.c.l.b16 %v534
    %v4402 = vunpack.c.h.b16 %v534
    %v4403 = vunpack.c.l.b16 %v535
    %v4404 = vunpack.c.h.b16 %v535
    %v4405 = vunpack.c.l.b16 %v536
    %v4406 = vunpack.c.h.b16 %v536
    %v4407 = vunpack.c.l.b16 %v537
    %v4408 = vunpack.c.h.b16 %v537
    %v4409 = vunpack.c.l.b16 %v538
    %v4410 = vunpack.c.h.b16 %v538
    %v4411 = vunpack.c.l.b16 %v539
    %v4412 = vunpack.c.h.b16 %v539
    %v4413 = vunpack.c.l.b16 %v540
    %v4414 = vunpack.c.h.b16 %v540
    %v4415 = vunpack.c.l.b16 %v541
    %v4416 = vunpack.c.h.b16 %v541
    %v4417 = vunpack.c.l.b16 %v542
    %v4418 = vunpack.c.h.b16 %v542
    %v4419 = vunpack.c.l.b16 %v543
    %v4420 = vunpack.c.h.b16 %v543
    %v4421 = vunpack.c.l.b16 %v544
    %v4422 = vunpack.c.h.b16 %v544
    %v4423 = vunpack.c.l.b16 %v545
    %v4424 = vunpack.c.h.b16 %v545
    %v4425 = vunpack.c.l.b16 %v546
    %v4426 = vunpack.c.h.b16 %v546
    %v4427 = vunpack.c.l.b16 %v547
    %v4428 = vunpack.c.h.b16 %v547
    %v4429 = vunpack.c.l.b16 %v548
    %v4430 = vunpack.c.h.b16 %v548
    %v4431 = vunpack.c.l.b16 %v549
    %v4432 = vunpack.c.h.b16 %v549
    %v4433 = vunpack.c.l.b16 %v550
    %v4434 = vunpack.c.h.b16 %v550
    %v4435 = vunpack.c.l.b16 %v551
    %v4436 = vunpack.c.h.b16 %v551
    %v4437 = vunpack.c.l.b16 %v552
    %v4438 = vunpack.c.h.b16 %v552
    %v4439 = vunpack.c.l.b16 %v553
    %v4440 = vunpack.c.h.b16 %v553
    %v4441 = vunpack.c.l.b16 %v554
    %v4442 = vunpack.c.h.b16 %v554
    %v4443 = vunpack.c.l.b16 %v555
    %v4444 = vunpack.c.h.b16 %v555
    %v4445 = vunpack.c.l.b16 %v556
    %v4446 = vunpack.c.h.b16 %v556
    %v4447 = vunpack.c.l.b16 %v557
    %v4448 = vunpack.c.h.b16 %v557
    %v4449 = vunpack.c.l.b16 %v558
    %v4450 = vunpack.c.h.b16 %v558
    %v4451 = vunpack.c.l.b16 %v559
    %v4452 = vunpack.c.h.b16 %v559
    %v4453 = vunpack.c.l.b16 %v560
    %v4454 = vunpack.c.h.b16 %v560
    %v4455 = vunpack.c.l.b16 %v561
    %v4456 = vunpack.c.h.b16 %v561
    %v4457 = vunpack.c.l.b16 %v562
    %v4458 = vunpack.c.h.b16 %v562
    %v4459 = vunpack.c.l.b16 %v563
    %v4460 = vunpack.c.h.b16 %v563
    %v4461 = vunpack.c.l.b16 %v564
    %v4462 = vunpack.c.h.b16 %v564
    %v4463 = vunpack.c.l.b16 %v565
    %v4464 = vunpack.c.h.b16 %v565
    %v4465 = vunpack.c.l.b16 %v566
    %v4466 = vunpack.c.h.b16 %v566
    %v4467 = vunpack.c.l.b16 %v567
    %v4468 = vunpack.c.h.b16 %v567
    %v4469 = vunpack.c.l.b16 %v568
    %v4470 = vunpack.c.h.b16 %v568
    %v4471 = vunpack.c.l.b16 %v569
    %v4472 = vunpack.c.h.b16 %v569
    %v4473 = vunpack.c.l.b16 %v570
    %v4474 = vunpack.c.h.b16 %v570
    %v4475 = vunpack.c.l.b16 %v571
    %v4476 = vunpack.c.h.b16 %v571
    %v4477 = vunpack.c.l.b16 %v572
    %v4478 = vunpack.c.h.b16 %v572
    %v4479 = vunpack.c.l.b16 %v573
    %v4480 = vunpack.c.h.b16 %v573
    %v4481 = vunpack.c.l.b16 %v574
    %v4482 = vunpack.c.h.b16 %v574
    %v4483 = vunpack.c.l.b16 %v575
    %v4484 = vunpack.c.h.b16 %v575
    %v4485 = vunpack.c.l.b16 %v576
    %v4486 = vunpack.c.h.b16 %v576
    %v4487 = vunpack.c.l.b16 %v577
    %v4488 = vunpack.c.h.b16 %v577
    %v4489 = vunpack.c.l.b16 %v578
    %v4490 = vunpack.c.h.b16 %v578
    %v4491 = vunpack.c.l.b16 %v579
    %v4492 = vunpack.c.h.b16 %v579
    %v4493 = vunpack.c.l.b16 %v580
    %v4494 = vunpack.c.h.b16 %v580
    %v4495 = vunpack.c.l.b16 %v581
    %v4496 = vunpack.c.h.b16 %v581
    %v4497 = vunpack.c.l.b16 %v582
    %v4498 = vunpack.c.h.b16 %v582
    %v4499 = vunpack.c.l.b16 %v583
    %v4500 = vunpack.c.h.b16 %v583
    %v4501 = vunpack.c.l.b16 %v584
    %v4502 = vunpack.c.h.b16 %v584
    %v4503 = vunpack.c.l.b16 %v585
    %v4504 = vunpack.c.h.b16 %v585
    %v4505 = vunpack.c.l.b16 %v586
    %v4506 = vunpack.c.h.b16 %v586
    %v4507 = vunpack.c.l.b16 %v587
    %v4508 = vunpack.c.h.b16 %v587
    %v4509 = vunpack.c.l.b16 %v588
    %v4510 = vunpack.c.h.b16 %v588
    %v4511 = vunpack.c.l.b16 %v589
    %v4512 = vunpack.c.h.b16 %v589
    %v4513 = vunpack.c.l.b16 %v590
    %v4514 = vunpack.c.h.b16 %v590
    %v4515 = vunpack.c.l.b16 %v591
    %v4516 = vunpack.c.h.b16 %v591
    %v4517 = vunpack.c.l.b16 %v592
    %v4518 = vunpack.c.h.b16 %v592
    %v4519 = vunpack.c.l.b16 %v593
    %v4520 = vunpack.c.h.b16 %v593
    %v4521 = vunpack.c.l.b16 %v594
    %v4522 = vunpack.c.h.b16 %v594
    %v4523 = vunpack.c.l.b16 %v595
    %v4524 = vunpack.c.h.b16 %v595
    %v4525 = vunpack.c.l.b16 %v596
    %v4526 = vunpack.c.h.b16 %v596
    %v4527 = vunpack.c.l.b16 %v597
    %v4528 = vunpack.c.h.b16 %v597
    %v4529 = vunpack.c.l.b16 %v598
    %v4530 = vunpack.c.h.b16 %v598
    %v4531 = vunpack.c.l.b16 %v599
    %v4532 = vunpack.c.h.b16 %v599
    %v4533 = vunpack.c.l.b16 %v600
    %v4534 = vunpack.c.h.b16 %v600
    %v4535 = vunpack.c.l.b16 %v601
    %v4536 = vunpack.c.h.b16 %v601
    %v4537 = vunpack.c.l.b16 %v602
    %v4538 = vunpack.c.h.b16 %v602
    %v4539 = vunpack.c.l.b16 %v603
    %v4540 = vunpack.c.h.b16 %v603
    %v4541 = vunpack.c.l.b16 %v604
    %v4542 = vunpack.c.h.b16 %v604
    %v4543 = vunpack.c.l.b16 %v605
    %v4544 = vunpack.c.h.b16 %v605
    %v4545 = vunpack.c.l.b16 %v606
    %v4546 = vunpack.c.h.b16 %v606
    %v4547 = vunpack.c.l.b16 %v607
    %v4548 = vunpack.c.h.b16 %v607
    %v4549 = vunpack.c.l.b16 %v608
    %v4550 = vunpack.c.h.b16 %v608
    %v4551 = vunpack.c.l.b16 %v609
    %v4552 = vunpack.c.h.b16 %v609
    %v4553 = vunpack.c.l.b16 %v610
    %v4554 = vunpack.c.h.b16 %v610
    %v4555 = vunpack.c.l.b16 %v611
    %v4556 = vunpack.c.h.b16 %v611
    %v4557 = vunpack.c.l.b16 %v612
    %v4558 = vunpack.c.h.b16 %v612
    %v4559 = vunpack.c.l.b16 %v613
    %v4560 = vunpack.c.h.b16 %v613
    %v4561 = vunpack.c.l.b16 %v614
    %v4562 = vunpack.c.h.b16 %v614
    %v4563 = vunpack.c.l.b16 %v615
    %v4564 = vunpack.c.h.b16 %v615
    %v4565 = vunpack.c.l.b16 %v616
    %v4566 = vunpack.c.h.b16 %v616
    %v4567 = vunpack.c.l.b16 %v617
    %v4568 = vunpack.c.h.b16 %v617
    %v4569 = vunpack.c.l.b16 %v618
    %v4570 = vunpack.c.h.b16 %v618
    %v4571 = vunpack.c.l.b16 %v619
    %v4572 = vunpack.c.h.b16 %v619
    %v4573 = vunpack.c.l.b16 %v620
    %v4574 = vunpack.c.h.b16 %v620
    %v4575 = vunpack.c.l.b16 %v621
    %v4576 = vunpack.c.h.b16 %v621
    %v4577 = vunpack.c.l.b16 %v622
    %v4578 = vunpack.c.h.b16 %v622
    %v4579 = vunpack.c.l.b16 %v623
    %v4580 = vunpack.c.h.b16 %v623
    %v4581 = vunpack.c.l.b16 %v624
    %v4582 = vunpack.c.h.b16 %v624
    %v4583 = vunpack.c.l.b16 %v625
    %v4584 = vunpack.c.h.b16 %v625
    %v4585 = vunpack.c.l.b16 %v626
    %v4586 = vunpack.c.h.b16 %v626
    %v4587 = vunpack.c.l.b16 %v627
    %v4588 = vunpack.c.h.b16 %v627
    %v4589 = vunpack.c.l.b16 %v628
    %v4590 = vunpack.c.h.b16 %v628
    %v4591 = vunpack.c.l.b16 %v629
    %v4592 = vunpack.c.h.b16 %v629
    %v4593 = vunpack.c.l.b16 %v630
    %v4594 = vunpack.c.h.b16 %v630
    %v4595 = vunpack.c.l.b16 %v631
    %v4596 = vunpack.c.h.b16 %v631
    %v4597 = vunpack.c.l.b16 %v632
    %v4598 = vunpack.c.h.b16 %v632
    %v4599 = vunpack.c.l.b16 %v633
    %v4600 = vunpack.c.h.b16 %v633
    %v4601 = vunpack.c.l.b16 %v634
    %v4602 = vunpack.c.h.b16 %v634
    %v4603 = vunpack.c.l.b16 %v635
    %v4604 = vunpack.c.h.b16 %v635
    %v4605 = vunpack.c.l.b16 %v636
    %v4606 = vunpack.c.h.b16 %v636
    %v4607 = vunpack.c.l.b16 %v637
    %v4608 = vunpack.c.h.b16 %v637
    %v4609 = vunpack.c.l.b16 %v638
    %v4610 = vunpack.c.h.b16 %v638
    %v4611 = vunpack.c.l.b16 %v639
    %v4612 = vunpack.c.h.b16 %v639
    %v4613 = vunpack.c.l.b16 %v640
    %v4614 = vunpack.c.h.b16 %v640
    %v4615 = vunpack.c.l.b16 %v641
    %v4616 = vunpack.c.h.b16 %v641
    %v4617 = vunpack.c.l.b16 %v642
    %v4618 = vunpack.c.h.b16 %v642
    %v4619 = vunpack.c.l.b16 %v643
    %v4620 = vunpack.c.h.b16 %v643
    %v4621 = vunpack.c.l.b16 %v644
    %v4622 = vunpack.c.h.b16 %v644
    %v4623 = vunpack.c.l.b16 %v645
    %v4624 = vunpack.c.h.b16 %v645
    %v4625 = vunpack.c.l.b16 %v646
    %v4626 = vunpack.c.h.b16 %v646
    %v4627 = vunpack.c.l.b16 %v647
    %v4628 = vunpack.c.h.b16 %v647
    %v4629 = vunpack.c.l.b16 %v648
    %v4630 = vunpack.c.h.b16 %v648
    %v4631 = vunpack.c.l.b16 %v649
    %v4632 = vunpack.c.h.b16 %v649
    %v4633 = vunpack.c.l.b16 %v650
    %v4634 = vunpack.c.h.b16 %v650
    %v4635 = vunpack.c.l.b16 %v651
    %v4636 = vunpack.c.h.b16 %v651
    %v4637 = vunpack.c.l.b16 %v652
    %v4638 = vunpack.c.h.b16 %v652
    %v4639 = vunpack.c.l.b16 %v653
    %v4640 = vunpack.c.h.b16 %v653
    %v4641 = vunpack.c.l.b16 %v654
    %v4642 = vunpack.c.h.b16 %v654
    %v4643 = vunpack.c.l.b16 %v655
    %v4644 = vunpack.c.h.b16 %v655
    %v4645 = vunpack.c.l.b16 %v656
    %v4646 = vunpack.c.h.b16 %v656
    %v4647 = vunpack.c.l.b16 %v657
    %v4648 = vunpack.c.h.b16 %v657
    %v4649 = vunpack.c.l.b16 %v658
    %v4650 = vunpack.c.h.b16 %v658
    %v4651 = vunpack.c.l.b16 %v659
    %v4652 = vunpack.c.h.b16 %v659
    %v4653 = vunpack.c.l.b16 %v660
    %v4654 = vunpack.c.h.b16 %v660
    %v4655 = vunpack.c.l.b16 %v661
    %v4656 = vunpack.c.h.b16 %v661
    %v4657 = vunpack.c.l.b16 %v662
    %v4658 = vunpack.c.h.b16 %v662
    %v4659 = vunpack.c.l.b16 %v663
    %v4660 = vunpack.c.h.b16 %v663
    %v4661 = vunpack.c.l.b16 %v664
    %v4662 = vunpack.c.h.b16 %v664
    %v4663 = vunpack.c.l.b16 %v665
    %v4664 = vunpack.c.h.b16 %v665
    %v4665 = vunpack.c.l.b16 %v666
    %v4666 = vunpack.c.h.b16 %v666
    %v4667 = vunpack.c.l.b16 %v667
    %v4668 = vunpack.c.h.b16 %v667
    %v4669 = vunpack.c.l.b16 %v668
    %v4670 = vunpack.c.h.b16 %v668
    %v4671 = vunpack.c.l.b16 %v669
    %v4672 = vunpack.c.h.b16 %v669
    %v4673 = vunpack.c.l.b16 %v670
    %v4674 = vunpack.c.h.b16 %v670
    %v4675 = vunpack.c.l.b16 %v671
    %v4676 = vunpack.c.h.b16 %v671
    %v4677 = vunpack.c.l.b16 %v672
    %v4678 = vunpack.c.h.b16 %v672
    %v4679 = vunpack.c.l.b16 %v673
    %v4680 = vunpack.c.h.b16 %v673
    %v4681 = vunpack.c.l.b16 %v674
    %v4682 = vunpack.c.h.b16 %v674
    %v4683 = vunpack.c.l.b16 %v675
    %v4684 = vunpack.c.h.b16 %v675
    %v4685 = vunpack.c.l.b16 %v676
    %v4686 = vunpack.c.h.b16 %v676
    %v4687 = vunpack.c.l.b16 %v677
    %v4688 = vunpack.c.h.b16 %v677
    %v4689 = vunpack.c.l.b16 %v678
    %v4690 = vunpack.c.h.b16 %v678
    %v4691 = vunpack.c.l.b16 %v679
    %v4692 = vunpack.c.h.b16 %v679
    %v4693 = vunpack.c.l.b16 %v680
    %v4694 = vunpack.c.h.b16 %v680
    %v4695 = vunpack.c.l.b16 %v681
    %v4696 = vunpack.c.h.b16 %v681
    %v4697 = vunpack.c.l.b16 %v682
    %v4698 = vunpack.c.h.b16 %v682
    %v4699 = vunpack.c.l.b16 %v683
    %v4700 = vunpack.c.h.b16 %v683
    %v4701 = vunpack.c.l.b16 %v684
    %v4702 = vunpack.c.h.b16 %v684
    %v4703 = vunpack.c.l.b16 %v685
    %v4704 = vunpack.c.h.b16 %v685
    %v4705 = vunpack.c.l.b16 %v686
    %v4706 = vunpack.c.h.b16 %v686
    %v4707 = vunpack.c.l.b16 %v687
    %v4708 = vunpack.c.h.b16 %v687
    %v4709 = vunpack.c.l.b16 %v688
    %v4710 = vunpack.c.h.b16 %v688
    %v4711 = vunpack.c.l.b16 %v689
    %v4712 = vunpack.c.h.b16 %v689
    %v4713 = vunpack.c.l.b16 %v690
    %v4714 = vunpack.c.h.b16 %v690
    %v4715 = vunpack.c.l.b16 %v691
    %v4716 = vunpack.c.h.b16 %v691
    %v4717 = vunpack.c.l.b16 %v692
    %v4718 = vunpack.c.h.b16 %v692
    %v4719 = vunpack.c.l.b16 %v693
    %v4720 = vunpack.c.h.b16 %v693
    %v4721 = vunpack.c.l.b16 %v694
    %v4722 = vunpack.c.h.b16 %v694
    %v4723 = vunpack.c.l.b16 %v695
    %v4724 = vunpack.c.h.b16 %v695
    %v4725 = vunpack.c.l.b16 %v696
    %v4726 = vunpack.c.h.b16 %v696
    %v4727 = vunpack.c.l.b16 %v697
    %v4728 = vunpack.c.h.b16 %v697
    %v4729 = vunpack.c.l.b16 %v698
    %v4730 = vunpack.c.h.b16 %v698
    %v4731 = vunpack.c.l.b16 %v699
    %v4732 = vunpack.c.h.b16 %v699
    %v4733 = vunpack.c.l.b16 %v700
    %v4734 = vunpack.c.h.b16 %v700
    %v4735 = vunpack.c.l.b16 %v701
    %v4736 = vunpack.c.h.b16 %v701
    %v4737 = vunpack.c.l.b16 %v702
    %v4738 = vunpack.c.h.b16 %v702
    %v4739 = vunpack.c.l.b16 %v703
    %v4740 = vunpack.c.h.b16 %v703
    %v4741 = vunpack.c.l.b16 %v704
    %v4742 = vunpack.c.h.b16 %v704
    %v4743 = vunpack.c.l.b16 %v705
    %v4744 = vunpack.c.h.b16 %v705
    %v4745 = vunpack.c.l.b16 %v706
    %v4746 = vunpack.c.h.b16 %v706
    %v4747 = vunpack.c.l.b16 %v707
    %v4748 = vunpack.c.h.b16 %v707
    %v4749 = vunpack.c.l.b16 %v708
    %v4750 = vunpack.c.h.b16 %v708
    %v4751 = vunpack.c.l.b16 %v709
    %v4752 = vunpack.c.h.b16 %v709
    %v4753 = vunpack.c.l.b16 %v710
    %v4754 = vunpack.c.h.b16 %v710
    %v4755 = vunpack.c.l.b16 %v711
    %v4756 = vunpack.c.h.b16 %v711
    %v4757 = vunpack.c.l.b16 %v712
    %v4758 = vunpack.c.h.b16 %v712
    %v4759 = vunpack.c.l.b16 %v713
    %v4760 = vunpack.c.h.b16 %v713
    %v4761 = vunpack.c.l.b16 %v714
    %v4762 = vunpack.c.h.b16 %v714
    %v4763 = vunpack.c.l.b16 %v715
    %v4764 = vunpack.c.h.b16 %v715
    %v4765 = vunpack.c.l.b16 %v716
    %v4766 = vunpack.c.h.b16 %v716
    %v4767 = vunpack.c.l.b16 %v717
    %v4768 = vunpack.c.h.b16 %v717
    %v4769 = vunpack.c.l.b16 %v718
    %v4770 = vunpack.c.h.b16 %v718
    %v4771 = vunpack.c.l.b16 %v719
    %v4772 = vunpack.c.h.b16 %v719
    %v4773 = vunpack.c.l.b16 %v720
    %v4774 = vunpack.c.h.b16 %v720
    %v4775 = vunpack.c.l.b16 %v721
    %v4776 = vunpack.c.h.b16 %v721
    %v4777 = vunpack.c.l.b16 %v722
    %v4778 = vunpack.c.h.b16 %v722
    %v4779 = vunpack.c.l.b16 %v723
    %v4780 = vunpack.c.h.b16 %v723
    %v4781 = vunpack.c.l.b16 %v724
    %v4782 = vunpack.c.h.b16 %v724
    %v4783 = vunpack.c.l.b16 %v725
    %v4784 = vunpack.c.h.b16 %v725
    %v4785 = vunpack.c.l.b16 %v726
    %v4786 = vunpack.c.h.b16 %v726
    %v4787 = vunpack.c.l.b16 %v727
    %v4788 = vunpack.c.h.b16 %v727
    %v4789 = vunpack.c.l.b16 %v728
    %v4790 = vunpack.c.h.b16 %v728
    %v4791 = vunpack.c.l.b16 %v729
    %v4792 = vunpack.c.h.b16 %v729
    %v4793 = vunpack.c.l.b16 %v730
    %v4794 = vunpack.c.h.b16 %v730
    %v4795 = vunpack.c.l.b16 %v731
    %v4796 = vunpack.c.h.b16 %v731
    %v4797 = vunpack.c.l.b16 %v732
    %v4798 = vunpack.c.h.b16 %v732
    %v4799 = vunpack.c.l.b16 %v733
    %v4800 = vunpack.c.h.b16 %v733
    %v4801 = vunpack.c.l.b16 %v734
    %v4802 = vunpack.c.h.b16 %v734
    %v4803 = vunpack.c.l.b16 %v735
    %v4804 = vunpack.c.h.b16 %v735
    %v4805 = vunpack.c.l.b16 %v736
    %v4806 = vunpack.c.h.b16 %v736
    %v4807 = vunpack.c.l.b16 %v737
    %v4808 = vunpack.c.h.b16 %v737
    %v4809 = vunpack.c.l.b16 %v738
    %v4810 = vunpack.c.h.b16 %v738
    %v4811 = vunpack.c.l.b16 %v739
    %v4812 = vunpack.c.h.b16 %v739
    %v4813 = vunpack.c.l.b16 %v740
    %v4814 = vunpack.c.h.b16 %v740
    %v4815 = vunpack.c.l.b16 %v741
    %v4816 = vunpack.c.h.b16 %v741
    %v4817 = vunpack.c.l.b16 %v742
    %v4818 = vunpack.c.h.b16 %v742
    %v4819 = vunpack.c.l.b16 %v743
    %v4820 = vunpack.c.h.b16 %v743
    %v4821 = vunpack.c.l.b16 %v744
    %v4822 = vunpack.c.h.b16 %v744
    %v4823 = vunpack.c.l.b16 %v745
    %v4824 = vunpack.c.h.b16 %v745
    %v4825 = vunpack.c.l.b16 %v746
    %v4826 = vunpack.c.h.b16 %v746
    %v4827 = vunpack.c.l.b16 %v747
    %v4828 = vunpack.c.h.b16 %v747
    %v4829 = vunpack.c.l.b16 %v748
    %v4830 = vunpack.c.h.b16 %v748
    %v4831 = vunpack.c.l.b16 %v749
    %v4832 = vunpack.c.h.b16 %v749
    %v4833 = vunpack.c.l.b16 %v750
    %v4834 = vunpack.c.h.b16 %v750
    %v4835 = vunpack.c.l.b16 %v751
    %v4836 = vunpack.c.h.b16 %v751
    %v4837 = vunpack.c.l.b16 %v752
    %v4838 = vunpack.c.h.b16 %v752
    %v4839 = vunpack.c.l.b16 %v753
    %v4840 = vunpack.c.h.b16 %v753
    %v4841 = vunpack.c.l.b16 %v754
    %v4842 = vunpack.c.h.b16 %v754
    %v4843 = vunpack.c.l.b16 %v755
    %v4844 = vunpack.c.h.b16 %v755
    %v4845 = vunpack.c.l.b16 %v756
    %v4846 = vunpack.c.h.b16 %v756
    %v4847 = vunpack.c.l.b16 %v757
    %v4848 = vunpack.c.h.b16 %v757
    %v4849 = vunpack.c.l.b16 %v758
    %v4850 = vunpack.c.h.b16 %v758
    %v4851 = vunpack.c.l.b16 %v759
    %v4852 = vunpack.c.h.b16 %v759
    %v4853 = vunpack.c.l.b16 %v760
    %v4854 = vunpack.c.h.b16 %v760
    %v4855 = vunpack.c.l.b16 %v761
    %v4856 = vunpack.c.h.b16 %v761
    %v4857 = vunpack.c.l.b16 %v762
    %v4858 = vunpack.c.h.b16 %v762
    %v4859 = vunpack.c.l.b16 %v763
    %v4860 = vunpack.c.h.b16 %v763
    %v4861 = vunpack.c.l.b16 %v764
    %v4862 = vunpack.c.h.b16 %v764
    %v4863 = vunpack.c.l.b16 %v765
    %v4864 = vunpack.c.h.b16 %v765
    %v4865 = vunpack.c.l.b16 %v766
    %v4866 = vunpack.c.h.b16 %v766
    %v4867 = vunpack.c.l.b16 %v767
    %v4868 = vunpack.c.h.b16 %v767
    %v4869 = vunpack.c.l.b16 %v768
    %v4870 = vunpack.c.h.b16 %v768
    %v4871 = vunpack.c.l.b16 %v769
    %v4872 = vunpack.c.h.b16 %v769
    %v4873 = vunpack.c.l.b16 %v770
    %v4874 = vunpack.c.h.b16 %v770
    %v4875 = vunpack.c.l.b16 %v771
    %v4876 = vunpack.c.h.b16 %v771
    %v4877 = vunpack.c.l.b16 %v772
    %v4878 = vunpack.c.h.b16 %v772
    %v4879 = vunpack.c.l.b16 %v773
    %v4880 = vunpack.c.h.b16 %v773
    %v4881 = vunpack.c.l.b16 %v774
    %v4882 = vunpack.c.h.b16 %v774
    %v4883 = vunpack.c.l.b16 %v775
    %v4884 = vunpack.c.h.b16 %v775
    %v4885 = vunpack.c.l.b16 %v776
    %v4886 = vunpack.c.h.b16 %v776
    %v4887 = vunpack.c.l.b16 %v777
    %v4888 = vunpack.c.h.b16 %v777
    %v4889 = vunpack.c.l.b16 %v778
    %v4890 = vunpack.c.h.b16 %v778
    %v4891 = vunpack.c.l.b16 %v779
    %v4892 = vunpack.c.h.b16 %v779
    %v4893 = vunpack.c.l.b16 %v780
    %v4894 = vunpack.c.h.b16 %v780
    %v4895 = vunpack.c.l.b16 %v781
    %v4896 = vunpack.c.h.b16 %v781
    %v4897 = vunpack.c.l.b16 %v782
    %v4898 = vunpack.c.h.b16 %v782
    %v4899 = vunpack.c.l.b16 %v783
    %v4900 = vunpack.c.h.b16 %v783
    %v4901 = vunpack.c.l.b16 %v784
    %v4902 = vunpack.c.h.b16 %v784
    %v4903 = vunpack.c.l.b16 %v785
    %v4904 = vunpack.c.h.b16 %v785
    %v4905 = vunpack.c.l.b16 %v786
    %v4906 = vunpack.c.h.b16 %v786
    %v4907 = vunpack.c.l.b16 %v787
    %v4908 = vunpack.c.h.b16 %v787
    %v4909 = vunpack.c.l.b16 %v788
    %v4910 = vunpack.c.h.b16 %v788
    %v4911 = vunpack.c.l.b16 %v789
    %v4912 = vunpack.c.h.b16 %v789
    %v4913 = vunpack.c.l.b16 %v790
    %v4914 = vunpack.c.h.b16 %v790
    %v4915 = vunpack.c.l.b16 %v791
    %v4916 = vunpack.c.h.b16 %v791
    %v4917 = vunpack.c.l.b16 %v792
    %v4918 = vunpack.c.h.b16 %v792
    %v4919 = vunpack.c.l.b16 %v793
    %v4920 = vunpack.c.h.b16 %v793
    %v4921 = vunpack.c.l.b16 %v794
    %v4922 = vunpack.c.h.b16 %v794
    %v4923 = vunpack.c.l.b16 %v795
    %v4924 = vunpack.c.h.b16 %v795
    %v4925 = vunpack.c.l.b16 %v796
    %v4926 = vunpack.c.h.b16 %v796
    %v4927 = vunpack.c.l.b16 %v797
    %v4928 = vunpack.c.h.b16 %v797
    %v4929 = vunpack.c.l.b16 %v798
    %v4930 = vunpack.c.h.b16 %v798
    %v4931 = vunpack.c.l.b16 %v799
    %v4932 = vunpack.c.h.b16 %v799
    %v4933 = vunpack.c.l.b16 %v800
    %v4934 = vunpack.c.h.b16 %v800
    %v4935 = vunpack.c.l.b16 %v801
    %v4936 = vunpack.c.h.b16 %v801
    %v4937 = vunpack.c.l.b16 %v802
    %v4938 = vunpack.c.h.b16 %v802
    %v4939 = vunpack.c.l.b16 %v803
    %v4940 = vunpack.c.h.b16 %v803
    %v4941 = vunpack.c.l.b16 %v804
    %v4942 = vunpack.c.h.b16 %v804
    %v4943 = vunpack.c.l.b16 %v805
    %v4944 = vunpack.c.h.b16 %v805
    %v4945 = vunpack.c.l.b16 %v806
    %v4946 = vunpack.c.h.b16 %v806
    %v4947 = vunpack.c.l.b16 %v807
    %v4948 = vunpack.c.h.b16 %v807
    %v4949 = vunpack.c.l.b16 %v808
    %v4950 = vunpack.c.h.b16 %v808
    %v4951 = vunpack.c.l.b16 %v809
    %v4952 = vunpack.c.h.b16 %v809
    %v4953 = vunpack.c.l.b16 %v810
    %v4954 = vunpack.c.h.b16 %v810
    %v4955 = vunpack.c.l.b16 %v811
    %v4956 = vunpack.c.h.b16 %v811
    %v4957 = vunpack.c.l.b16 %v812
    %v4958 = vunpack.c.h.b16 %v812
    %v4959 = vunpack.c.l.b16 %v813
    %v4960 = vunpack.c.h.b16 %v813
    %v4961 = vunpack.c.l.b16 %v814
    %v4962 = vunpack.c.h.b16 %v814
    %v4963 = vunpack.c.l.b16 %v815
    %v4964 = vunpack.c.h.b16 %v815
    %v4965 = vunpack.c.l.b16 %v816
    %v4966 = vunpack.c.h.b16 %v816
    %v4967 = vunpack.c.l.b16 %v817
    %v4968 = vunpack.c.h.b16 %v817
    %v4969 = vunpack.c.l.b16 %v818
    %v4970 = vunpack.c.h.b16 %v818
    %v4971 = vunpack.c.l.b16 %v819
    %v4972 = vunpack.c.h.b16 %v819
    %v4973 = vunpack.c.l.b16 %v820
    %v4974 = vunpack.c.h.b16 %v820
    %v4975 = vunpack.c.l.b16 %v821
    %v4976 = vunpack.c.h.b16 %v821
    %v4977 = vunpack.c.l.b16 %v822
    %v4978 = vunpack.c.h.b16 %v822
    %v4979 = vunpack.c.l.b16 %v823
    %v4980 = vunpack.c.h.b16 %v823
    %v4981 = vunpack.c.l.b16 %v824
    %v4982 = vunpack.c.h.b16 %v824
    %v4983 = vunpack.c.l.b16 %v825
    %v4984 = vunpack.c.h.b16 %v825
    %v4985 = vunpack.c.l.b16 %v826
    %v4986 = vunpack.c.h.b16 %v826
    %v4987 = vunpack.c.l.b16 %v827
    %v4988 = vunpack.c.h.b16 %v827
    %v4989 = vunpack.c.l.b16 %v828
    %v4990 = vunpack.c.h.b16 %v828
    %v4991 = vunpack.c.l.b16 %v829
    %v4992 = vunpack.c.h.b16 %v829
    %v4993 = vunpack.c.l.b16 %v830
    %v4994 = vunpack.c.h.b16 %v830
    %v4995 = vunpack.c.l.b16 %v831
    %v4996 = vunpack.c.h.b16 %v831
    %v4997 = vunpack.c.l.b16 %v832
    %v4998 = vunpack.c.h.b16 %v832
    %v4999 = vunpack.c.l.b16 %v833
    %v5000 = vunpack.c.h.b16 %v833
    %v5001 = vunpack.c.l.b16 %v834
    %v5002 = vunpack.c.h.b16 %v834
    %v5003 = vunpack.c.l.b16 %v835
    %v5004 = vunpack.c.h.b16 %v835
    %v5005 = vunpack.c.l.b16 %v836
    %v5006 = vunpack.c.h.b16 %v836
    %v5007 = vunpack.c.l.b16 %v837
    %v5008 = vunpack.c.h.b16 %v837
    %v5009 = vunpack.c.l.b16 %v838
    %v5010 = vunpack.c.h.b16 %v838
    %v5011 = vunpack.c.l.b16 %v839
    %v5012 = vunpack.c.h.b16 %v839
    %v5013 = vunpack.c.l.b16 %v840
    %v5014 = vunpack.c.h.b16 %v840
    %v5015 = vunpack.c.l.b16 %v841
    %v5016 = vunpack.c.h.b16 %v841
    %v5017 = vunpack.c.l.b16 %v842
    %v5018 = vunpack.c.h.b16 %v842
    %v5019 = vunpack.c.l.b16 %v843
    %v5020 = vunpack.c.h.b16 %v843
    %v5021 = vunpack.c.l.b16 %v844
    %v5022 = vunpack.c.h.b16 %v844
    %v5023 = vunpack.c.l.b16 %v845
    %v5024 = vunpack.c.h.b16 %v845
    %v5025 = vunpack.c.l.b16 %v846
    %v5026 = vunpack.c.h.b16 %v846
    %v5027 = vunpack.c.l.b16 %v847
    %v5028 = vunpack.c.h.b16 %v847
    %v5029 = vunpack.c.l.b16 %v848
    %v5030 = vunpack.c.h.b16 %v848
    %v5031 = vunpack.c.l.b16 %v849
    %v5032 = vunpack.c.h.b16 %v849
    %v5033 = vunpack.c.l.b16 %v850
    %v5034 = vunpack.c.h.b16 %v850
    %v5035 = vunpack.c.l.b16 %v851
    %v5036 = vunpack.c.h.b16 %v851
    %v5037 = vunpack.c.l.b16 %v852
    %v5038 = vunpack.c.h.b16 %v852
    %v5039 = vunpack.c.l.b16 %v853
    %v5040 = vunpack.c.h.b16 %v853
    %v5041 = vunpack.c.l.b16 %v854
    %v5042 = vunpack.c.h.b16 %v854
    %v5043 = vunpack.c.l.b16 %v855
    %v5044 = vunpack.c.h.b16 %v855
    %v5045 = vunpack.c.l.b16 %v856
    %v5046 = vunpack.c.h.b16 %v856
    %v5047 = vunpack.c.l.b16 %v857
    %v5048 = vunpack.c.h.b16 %v857
    %v5049 = vunpack.c.l.b16 %v858
    %v5050 = vunpack.c.h.b16 %v858
    %v5051 = vunpack.c.l.b16 %v859
    %v5052 = vunpack.c.h.b16 %v859
    %v5053 = vunpack.c.l.b16 %v860
    %v5054 = vunpack.c.h.b16 %v860
    %v5055 = vunpack.c.l.b16 %v861
    %v5056 = vunpack.c.h.b16 %v861
    %v5057 = vunpack.c.l.b16 %v862
    %v5058 = vunpack.c.h.b16 %v862
    %v5059 = vunpack.c.l.b16 %v863
    %v5060 = vunpack.c.h.b16 %v863
    %v5061 = vunpack.c.l.b16 %v864
    %v5062 = vunpack.c.h.b16 %v864
    %v5063 = vunpack.c.l.b16 %v865
    %v5064 = vunpack.c.h.b16 %v865
    %v5065 = vunpack.c.l.b16 %v866
    %v5066 = vunpack.c.h.b16 %v866
    %v5067 = vunpack.c.l.b16 %v867
    %v5068 = vunpack.c.h.b16 %v867
    %v5069 = vunpack.c.l.b16 %v868
    %v5070 = vunpack.c.h.b16 %v868
    %v5071 = vunpack.c.l.b16 %v869
    %v5072 = vunpack.c.h.b16 %v869
    %v5073 = vunpack.c.l.b16 %v870
    %v5074 = vunpack.c.h.b16 %v870
    %v5075 = vunpack.c.l.b16 %v871
    %v5076 = vunpack.c.h.b16 %v871
    %v5077 = vunpack.c.l.b16 %v872
    %v5078 = vunpack.c.h.b16 %v872
    %v5079 = vunpack.c.l.b16 %v873
    %v5080 = vunpack.c.h.b16 %v873
    %v5081 = vunpack.c.l.b16 %v874
    %v5082 = vunpack.c.h.b16 %v874
    %v5083 = vunpack.c.l.b16 %v875
    %v5084 = vunpack.c.h.b16 %v875
    %v5085 = vunpack.c.l.b16 %v876
    %v5086 = vunpack.c.h.b16 %v876
    %v5087 = vunpack.c.l.b16 %v877
    %v5088 = vunpack.c.h.b16 %v877
    %v5089 = vunpack.c.l.b16 %v878
    %v5090 = vunpack.c.h.b16 %v878
    %v5091 = vunpack.c.l.b16 %v879
    %v5092 = vunpack.c.h.b16 %v879
    %v5093 = vunpack.c.l.b16 %v880
    %v5094 = vunpack.c.h.b16 %v880
    %v5095 = vunpack.c.l.b16 %v881
    %v5096 = vunpack.c.h.b16 %v881
    %v5097 = vunpack.c.l.b16 %v882
    %v5098 = vunpack.c.h.b16 %v882
    %v5099 = vunpack.c.l.b16 %v883
    %v5100 = vunpack.c.h.b16 %v883
    %v5101 = vunpack.c.l.b16 %v884
    %v5102 = vunpack.c.h.b16 %v884
    %v5103 = vunpack.c.l.b16 %v885
    %v5104 = vunpack.c.h.b16 %v885
    %v5105 = vunpack.c.l.b16 %v886
    %v5106 = vunpack.c.h.b16 %v886
    %v5107 = vunpack.c.l.b16 %v887
    %v5108 = vunpack.c.h.b16 %v887
    %v5109 = vunpack.c.l.b16 %v888
    %v5110 = vunpack.c.h.b16 %v888
    %v5111 = vunpack.c.l.b16 %v889
    %v5112 = vunpack.c.h.b16 %v889
    %v5113 = vunpack.c.l.b16 %v890
    %v5114 = vunpack.c.h.b16 %v890
    %v5115 = vunpack.c.l.b16 %v891
    %v5116 = vunpack.c.h.b16 %v891
    %v5117 = vunpack.c.l.b16 %v892
    %v5118 = vunpack.c.h.b16 %v892
    %v5119 = vunpack.c.l.b16 %v893
    %v5120 = vunpack.c.h.b16 %v893
    %v5121 = vunpack.c.l.b16 %v894
    %v5122 = vunpack.c.h.b16 %v894
    %v5123 = vunpack.c.l.b16 %v895
    %v5124 = vunpack.c.h.b16 %v895
    %v5125 = vunpack.c.l.b16 %v896
    %v5126 = vunpack.c.h.b16 %v896
    %v5127 = vunpack.c.l.b16 %v897
    %v5128 = vunpack.c.h.b16 %v897
    %v5129 = vunpack.c.l.b16 %v898
    %v5130 = vunpack.c.h.b16 %v898
    %v5131 = vunpack.c.l.b16 %v899
    %v5132 = vunpack.c.h.b16 %v899
    %v5133 = vunpack.c.l.b16 %v900
    %v5134 = vunpack.c.h.b16 %v900
    %v5135 = vunpack.c.l.b16 %v901
    %v5136 = vunpack.c.h.b16 %v901
    %v5137 = vunpack.c.l.b16 %v902
    %v5138 = vunpack.c.h.b16 %v902
    %v5139 = vunpack.c.l.b16 %v903
    %v5140 = vunpack.c.h.b16 %v903
    %v5141 = vunpack.c.l.b16 %v904
    %v5142 = vunpack.c.h.b16 %v904
    %v5143 = vunpack.c.l.b16 %v905
    %v5144 = vunpack.c.h.b16 %v905
    %v5145 = vunpack.c.l.b16 %v906
    %v5146 = vunpack.c.h.b16 %v906
    %v5147 = vunpack.c.l.b16 %v907
    %v5148 = vunpack.c.h.b16 %v907
    %v5149 = vunpack.c.l.b16 %v908
    %v5150 = vunpack.c.h.b16 %v908
    %v5151 = vunpack.c.l.b16 %v909
    %v5152 = vunpack.c.h.b16 %v909
    %v5153 = vunpack.c.l.b16 %v910
    %v5154 = vunpack.c.h.b16 %v910
    %v5155 = vunpack.c.l.b16 %v911
    %v5156 = vunpack.c.h.b16 %v911
    %v5157 = vunpack.c.l.b16 %v912
    %v5158 = vunpack.c.h.b16 %v912
    %v5159 = vunpack.c.l.b16 %v913
    %v5160 = vunpack.c.h.b16 %v913
    %v5161 = vunpack.c.l.b16 %v914
    %v5162 = vunpack.c.h.b16 %v914
    %v5163 = vunpack.c.l.b16 %v915
    %v5164 = vunpack.c.h.b16 %v915
    %v5165 = vunpack.c.l.b16 %v916
    %v5166 = vunpack.c.h.b16 %v916
    %v5167 = vunpack.c.l.b16 %v917
    %v5168 = vunpack.c.h.b16 %v917
    %v5169 = vunpack.c.l.b16 %v918
    %v5170 = vunpack.c.h.b16 %v918
    %v5171 = vunpack.c.l.b16 %v919
    %v5172 = vunpack.c.h.b16 %v919
    %v5173 = vunpack.c.l.b16 %v920
    %v5174 = vunpack.c.h.b16 %v920
    %v5175 = vunpack.c.l.b16 %v921
    %v5176 = vunpack.c.h.b16 %v921
    %v5177 = vunpack.c.l.b16 %v922
    %v5178 = vunpack.c.h.b16 %v922
    %v5179 = vunpack.c.l.b16 %v923
    %v5180 = vunpack.c.h.b16 %v923
    %v5181 = vunpack.c.l.b16 %v924
    %v5182 = vunpack.c.h.b16 %v924
    %v5183 = vunpack.c.l.b16 %v925
    %v5184 = vunpack.c.h.b16 %v925
    %v5185 = vunpack.c.l.b16 %v926
    %v5186 = vunpack.c.h.b16 %v926
    %v5187 = vunpack.c.l.b16 %v927
    %v5188 = vunpack.c.h.b16 %v927
    %v5189 = vunpack.c.l.b16 %v928
    %v5190 = vunpack.c.h.b16 %v928
    %v5191 = vunpack.c.l.b16 %v929
    %v5192 = vunpack.c.h.b16 %v929
    %v5193 = vunpack.c.l.b16 %v930
    %v5194 = vunpack.c.h.b16 %v930
    %v5195 = vunpack.c.l.b16 %v931
    %v5196 = vunpack.c.h.b16 %v931
    %v5197 = vunpack.c.l.b16 %v932
    %v5198 = vunpack.c.h.b16 %v932
    %v5199 = vunpack.c.l.b16 %v933
    %v5200 = vunpack.c.h.b16 %v933
    %v5201 = vunpack.c.l.b16 %v934
    %v5202 = vunpack.c.h.b16 %v934
    %v5203 = vunpack.c.l.b16 %v935
    %v5204 = vunpack.c.h.b16 %v935
    %v5205 = vunpack.c.l.b16 %v936
    %v5206 = vunpack.c.h.b16 %v936
    %v5207 = vunpack.c.l.b16 %v937
    %v5208 = vunpack.c.h.b16 %v937
    %v5209 = vunpack.c.l.b16 %v938
    %v5210 = vunpack.c.h.b16 %v938
    %v5211 = vunpack.c.l.b16 %v939
    %v5212 = vunpack.c.h.b16 %v939
    %v5213 = vunpack.c.l.b16 %v940
    %v5214 = vunpack.c.h.b16 %v940
    %v5215 = vunpack.c.l.b16 %v941
    %v5216 = vunpack.c.h.b16 %v941
    %v5217 = vunpack.c.l.b16 %v942
    %v5218 = vunpack.c.h.b16 %v942
    %v5219 = vunpack.c.l.b16 %v943
    %v5220 = vunpack.c.h.b16 %v943
    %v5221 = vunpack.c.l.b16 %v944
    %v5222 = vunpack.c.h.b16 %v944
    %v5223 = vunpack.c.l.b16 %v945
    %v5224 = vunpack.c.h.b16 %v945
    %v5225 = vunpack.c.l.b16 %v946
    %v5226 = vunpack.c.h.b16 %v946
    %v5227 = vunpack.c.l.b16 %v947
    %v5228 = vunpack.c.h.b16 %v947
    %v5229 = vunpack.c.l.b16 %v948
    %v5230 = vunpack.c.h.b16 %v948
    %v5231 = vunpack.c.l.b16 %v949
    %v5232 = vunpack.c.h.b16 %v949
    %v5233 = vunpack.c.l.b16 %v950
    %v5234 = vunpack.c.h.b16 %v950
    %v5235 = vunpack.c.l.b16 %v951
    %v5236 = vunpack.c.h.b16 %v951
    %v5237 = vunpack.c.l.b16 %v952
    %v5238 = vunpack.c.h.b16 %v952
    %v5239 = vunpack.c.l.b16 %v953
    %v5240 = vunpack.c.h.b16 %v953
    %v5241 = vunpack.c.l.b16 %v954
    %v5242 = vunpack.c.h.b16 %v954
    %v5243 = vunpack.c.l.b16 %v955
    %v5244 = vunpack.c.h.b16 %v955
    %v5245 = vunpack.c.l.b16 %v956
    %v5246 = vunpack.c.h.b16 %v956
    %v5247 = vunpack.c.l.b16 %v957
    %v5248 = vunpack.c.h.b16 %v957
    %v5249 = vunpack.c.l.b16 %v958
    %v5250 = vunpack.c.h.b16 %v958
    %v5251 = vunpack.c.l.b16 %v959
    %v5252 = vunpack.c.h.b16 %v959
    %v5253 = vunpack.c.l.b16 %v960
    %v5254 = vunpack.c.h.b16 %v960
    %v5255 = vunpack.c.l.b16 %v961
    %v5256 = vunpack.c.h.b16 %v961
    %v5257 = vunpack.c.l.b16 %v962
    %v5258 = vunpack.c.h.b16 %v962
    %v5259 = vunpack.c.l.b16 %v963
    %v5260 = vunpack.c.h.b16 %v963
    %v5261 = vunpack.c.l.b16 %v964
    %v5262 = vunpack.c.h.b16 %v964
    %v5263 = vunpack.c.l.b16 %v965
    %v5264 = vunpack.c.h.b16 %v965
    %v5265 = vunpack.c.l.b16 %v966
    %v5266 = vunpack.c.h.b16 %v966
    %v5267 = vunpack.c.l.b16 %v967
    %v5268 = vunpack.c.h.b16 %v967
    %v5269 = vunpack.c.l.b16 %v968
    %v5270 = vunpack.c.h.b16 %v968
    %v5271 = vunpack.c.l.b16 %v969
    %v5272 = vunpack.c.h.b16 %v969
    %v5273 = vunpack.c.l.b16 %v970
    %v5274 = vunpack.c.h.b16 %v970
    %v5275 = vunpack.c.l.b16 %v971
    %v5276 = vunpack.c.h.b16 %v971
    %v5277 = vunpack.c.l.b16 %v972
    %v5278 = vunpack.c.h.b16 %v972
    %v5279 = vunpack.c.l.b16 %v973
    %v5280 = vunpack.c.h.b16 %v973
    %v5281 = vunpack.c.l.b16 %v974
    %v5282 = vunpack.c.h.b16 %v974
    %v5283 = vunpack.c.l.b16 %v975
    %v5284 = vunpack.c.h.b16 %v975
    %v5285 = vunpack.c.l.b16 %v976
    %v5286 = vunpack.c.h.b16 %v976
    %v5287 = vunpack.c.l.b16 %v977
    %v5288 = vunpack.c.h.b16 %v977
    %v5289 = vunpack.c.l.b16 %v978
    %v5290 = vunpack.c.h.b16 %v978
    %v5291 = vunpack.c.l.b16 %v979
    %v5292 = vunpack.c.h.b16 %v979
    %v5293 = vunpack.c.l.b16 %v980
    %v5294 = vunpack.c.h.b16 %v980
    %v5295 = vunpack.c.l.b16 %v981
    %v5296 = vunpack.c.h.b16 %v981
    %v5297 = vunpack.c.l.b16 %v982
    %v5298 = vunpack.c.h.b16 %v982
    %v5299 = vunpack.c.l.b16 %v983
    %v5300 = vunpack.c.h.b16 %v983
    %v5301 = vunpack.c.l.b16 %v984
    %v5302 = vunpack.c.h.b16 %v984
    %v5303 = vunpack.c.l.b16 %v985
    %v5304 = vunpack.c.h.b16 %v985
    %v5305 = vunpack.c.l.b16 %v986
    %v5306 = vunpack.c.h.b16 %v986
    %v5307 = vunpack.c.l.b16 %v987
    %v5308 = vunpack.c.h.b16 %v987
    %v5309 = vunpack.c.l.b16 %v988
    %v5310 = vunpack.c.h.b16 %v988
    %v5311 = vunpack.c.l.b16 %v989
    %v5312 = vunpack.c.h.b16 %v989
    %v5313 = vunpack.c.l.b16 %v990
    %v5314 = vunpack.c.h.b16 %v990
    %v5315 = vunpack.c.l.b16 %v991
    %v5316 = vunpack.c.h.b16 %v991
    %v5317 = vunpack.c.l.b16 %v992
    %v5318 = vunpack.c.h.b16 %v992
    %v5319 = vunpack.c.l.b16 %v993
    %v5320 = vunpack.c.h.b16 %v993
    %v5321 = vunpack.c.l.b16 %v994
    %v5322 = vunpack.c.h.b16 %v994
    %v5323 = vunpack.c.l.b16 %v995
    %v5324 = vunpack.c.h.b16 %v995
    %v5325 = vunpack.c.l.b16 %v996
    %v5326 = vunpack.c.h.b16 %v996
    %v5327 = vunpack.c.l.b16 %v997
    %v5328 = vunpack.c.h.b16 %v997
    %v5329 = vunpack.c.l.b16 %v998
    %v5330 = vunpack.c.h.b16 %v998
    %v5331 = vunpack.c.l.b16 %v999
    %v5332 = vunpack.c.h.b16 %v999
    %v5333 = vunpack.c.l.b16 %v1000
    %v5334 = vunpack.c.h.b16 %v1000
    %v5335 = vunpack.c.l.b16 %v1001
    %v5336 = vunpack.c.h.b16 %v1001
    %v5337 = vunpack.c.l.b16 %v1002
    %v5338 = vunpack.c.h.b16 %v1002
    %v5339 = vunpack.c.l.b16 %v1003
    %v5340 = vunpack.c.h.b16 %v1003
    %v5341 = vunpack.c.l.b16 %v1004
    %v5342 = vunpack.c.h.b16 %v1004
    %v5343 = vunpack.c.l.b16 %v1005
    %v5344 = vunpack.c.h.b16 %v1005
    %v5345 = vunpack.c.l.b16 %v1006
    %v5346 = vunpack.c.h.b16 %v1006
    %v5347 = vunpack.c.l.b16 %v1007
    %v5348 = vunpack.c.h.b16 %v1007
    %v5349 = vunpack.c.l.b16 %v1008
    %v5350 = vunpack.c.h.b16 %v1008
    %v5351 = vunpack.c.l.b16 %v1009
    %v5352 = vunpack.c.h.b16 %v1009
    %v5353 = vunpack.c.l.b16 %v1010
    %v5354 = vunpack.c.h.b16 %v1010
    %v5355 = vunpack.c.l.b16 %v1011
    %v5356 = vunpack.c.h.b16 %v1011
    %v5357 = vunpack.c.l.b16 %v1012
    %v5358 = vunpack.c.h.b16 %v1012
    %v5359 = vunpack.c.l.b16 %v1013
    %v5360 = vunpack.c.h.b16 %v1013
    %v5361 = vunpack.c.l.b16 %v1014
    %v5362 = vunpack.c.h.b16 %v1014
    %v5363 = vunpack.c.l.b16 %v1015
    %v5364 = vunpack.c.h.b16 %v1015
    %v5365 = vunpack.c.l.b16 %v1016
    %v5366 = vunpack.c.h.b16 %v1016
    %v5367 = vunpack.c.l.b16 %v1017
    %v5368 = vunpack.c.h.b16 %v1017
    %v5369 = vunpack.c.l.b16 %v1018
    %v5370 = vunpack.c.h.b16 %v1018
    %v5371 = vunpack.c.l.b16 %v1019
    %v5372 = vunpack.c.h.b16 %v1019
    %v5373 = vunpack.c.l.b16 %v1020
    %v5374 = vunpack.c.h.b16 %v1020
    %v5375 = vunpack.c.l.b16 %v1021
    %v5376 = vunpack.c.h.b16 %v1021
    %v5377 = vunpack.c.l.b16 %v1022
    %v5378 = vunpack.c.h.b16 %v1022
    %v5379 = vunpack.c.l.b16 %v1023
    %v5380 = vunpack.c.h.b16 %v1023
    %v5381 = vunpack.c.l.b16 %v1024
    %v5382 = vunpack.c.h.b16 %v1024
    %v5383 = vunpack.c.l.b16 %v1025
    %v5384 = vunpack.c.h.b16 %v1025
    %v5385 = vunpack.c.l.b16 %v1026
    %v5386 = vunpack.c.h.b16 %v1026
    %v5387 = vunpack.c.l.b16 %v1027
    %v5388 = vunpack.c.h.b16 %v1027
    %v5389 = vunpack.c.l.b16 %v1028
    %v5390 = vunpack.c.h.b16 %v1028
    %v5391 = vunpack.c.l.b16 %v1029
    %v5392 = vunpack.c.h.b16 %v1029
    %v5393 = vunpack.c.l.b16 %v1030
    %v5394 = vunpack.c.h.b16 %v1030
    %v5395 = vunpack.c.l.b16 %v1031
    %v5396 = vunpack.c.h.b16 %v1031
    %v5397 = vunpack.c.l.b16 %v1032
    %v5398 = vunpack.c.h.b16 %v1032
    %v5399 = vunpack.c.l.b16 %v1033
    %v5400 = vunpack.c.h.b16 %v1033
    %v5401 = vunpack.c.l.b16 %v1034
    %v5402 = vunpack.c.h.b16 %v1034
    %v5403 = vunpack.c.l.b16 %v1035
    %v5404 = vunpack.c.h.b16 %v1035
    %v5405 = vunpack.c.l.b16 %v1036
    %v5406 = vunpack.c.h.b16 %v1036
    %v5407 = vunpack.c.l.b16 %v1037
    %v5408 = vunpack.c.h.b16 %v1037
    %v5409 = vunpack.c.l.b16 %v1038
    %v5410 = vunpack.c.h.b16 %v1038
    %v5411 = vunpack.c.l.b16 %v1039
    %v5412 = vunpack.c.h.b16 %v1039
    %v5413 = vunpack.c.l.b16 %v1040
    %v5414 = vunpack.c.h.b16 %v1040
    %v5415 = vunpack.c.l.b16 %v1041
    %v5416 = vunpack.c.h.b16 %v1041
    %v5417 = vunpack.c.l.b16 %v1042
    %v5418 = vunpack.c.h.b16 %v1042
    %v5419 = vunpack.c.l.b16 %v1043
    %v5420 = vunpack.c.h.b16 %v1043
    %v5421 = vunpack.c.l.b16 %v1044
    %v5422 = vunpack.c.h.b16 %v1044
    %v5423 = vunpack.c.l.b16 %v1045
    %v5424 = vunpack.c.h.b16 %v1045
    %v5425 = vunpack.c.l.b16 %v1046
    %v5426 = vunpack.c.h.b16 %v1046
    %v5427 = vunpack.c.l.b16 %v1047
    %v5428 = vunpack.c.h.b16 %v1047
    %v5429 = vunpack.c.l.b16 %v1048
    %v5430 = vunpack.c.h.b16 %v1048
    %v5431 = vunpack.c.l.b16 %v1049
    %v5432 = vunpack.c.h.b16 %v1049
    %v5433 = vunpack.c.l.b16 %v1050
    %v5434 = vunpack.c.h.b16 %v1050
    %v5435 = vunpack.c.l.b16 %v1051
    %v5436 = vunpack.c.h.b16 %v1051
    %v5437 = vunpack.c.l.b16 %v1052
    %v5438 = vunpack.c.h.b16 %v1052
    %v5439 = vunpack.c.l.b16 %v1053
    %v5440 = vunpack.c.h.b16 %v1053
    %v5441 = vunpack.c.l.b16 %v1054
    %v5442 = vunpack.c.h.b16 %v1054
    %v5443 = vunpack.c.l.b16 %v1055
    %v5444 = vunpack.c.h.b16 %v1055
    %v5445 = vunpack.c.l.b16 %v1056
    %v5446 = vunpack.c.h.b16 %v1056
    %v5447 = vunpack.c.l.b16 %v1057
    %v5448 = vunpack.c.h.b16 %v1057
    %v5449 = vunpack.c.l.b16 %v1058
    %v5450 = vunpack.c.h.b16 %v1058
    %v5451 = vunpack.c.l.b16 %v1059
    %v5452 = vunpack.c.h.b16 %v1059
    %v5453 = vunpack.c.l.b16 %v1060
    %v5454 = vunpack.c.h.b16 %v1060
    %v5455 = vunpack.c.l.b16 %v1061
    %v5456 = vunpack.c.h.b16 %v1061
    %v5457 = vunpack.c.l.b16 %v1062
    %v5458 = vunpack.c.h.b16 %v1062
    %v5459 = vunpack.c.l.b16 %v1063
    %v5460 = vunpack.c.h.b16 %v1063
    %v5461 = vunpack.c.l.b16 %v1064
    %v5462 = vunpack.c.h.b16 %v1064
    %v5463 = vunpack.c.l.b16 %v1065
    %v5464 = vunpack.c.h.b16 %v1065
    %v5465 = vunpack.c.l.b16 %v1066
    %v5466 = vunpack.c.h.b16 %v1066
    %v5467 = vunpack.c.l.b16 %v1067
    %v5468 = vunpack.c.h.b16 %v1067
    %v5469 = vunpack.c.l.b16 %v1068
    %v5470 = vunpack.c.h.b16 %v1068
    %v5471 = vunpack.c.l.b16 %v1069
    %v5472 = vunpack.c.h.b16 %v1069
    %v5473 = vunpack.c.l.b16 %v1070
    %v5474 = vunpack.c.h.b16 %v1070
    %v5475 = vunpack.c.l.b16 %v1071
    %v5476 = vunpack.c.h.b16 %v1071
    %v5477 = vunpack.c.l.b16 %v1072
    %v5478 = vunpack.c.h.b16 %v1072
    %v5479 = vunpack.c.l.b16 %v1073
    %v5480 = vunpack.c.h.b16 %v1073
    %v5481 = vunpack.c.l.b16 %v1074
    %v5482 = vunpack.c.h.b16 %v1074
    %v5483 = vunpack.c.l.b16 %v1075
    %v5484 = vunpack.c.h.b16 %v1075
    %v5485 = vunpack.c.l.b16 %v1076
    %v5486 = vunpack.c.h.b16 %v1076
    %v5487 = vunpack.c.l.b16 %v1077
    %v5488 = vunpack.c.h.b16 %v1077
    %v5489 = vunpack.c.l.b16 %v1078
    %v5490 = vunpack.c.h.b16 %v1078
    %v5491 = vunpack.c.l.b16 %v1079
    %v5492 = vunpack.c.h.b16 %v1079
    %v5493 = vunpack.c.l.b16 %v1080
    %v5494 = vunpack.c.h.b16 %v1080
    %v5495 = vunpack.c.l.b16 %v1081
    %v5496 = vunpack.c.h.b16 %v1081
    %v5497 = vunpack.c.l.b16 %v1082
    %v5498 = vunpack.c.h.b16 %v1082
    %v5499 = vunpack.c.l.b16 %v1083
    %v5500 = vunpack.c.h.b16 %v1083
    %v5501 = vunpack.c.l.b16 %v1084
    %v5502 = vunpack.c.h.b16 %v1084
    %v5503 = vunpack.c.l.b16 %v1085
    %v5504 = vunpack.c.h.b16 %v1085
    %v5505 = vunpack.c.l.b16 %v1086
    %v5506 = vunpack.c.h.b16 %v1086
    %v5507 = vunpack.c.l.b16 %v1087
    %v5508 = vunpack.c.h.b16 %v1087
    %v5509 = vunpack.c.l.b16 %v1088
    %v5510 = vunpack.c.h.b16 %v1088
    %v5511 = vunpack.c.l.b16 %v1089
    %v5512 = vunpack.c.h.b16 %v1089
    %v5513 = vunpack.c.l.b16 %v1090
    %v5514 = vunpack.c.h.b16 %v1090
    %v5515 = vunpack.c.l.b16 %v1091
    %v5516 = vunpack.c.h.b16 %v1091
    %v5517 = vunpack.c.l.b16 %v1092
    %v5518 = vunpack.c.h.b16 %v1092
    %v5519 = vunpack.c.l.b16 %v1093
    %v5520 = vunpack.c.h.b16 %v1093
    %v5521 = vunpack.c.l.b16 %v1094
    %v5522 = vunpack.c.h.b16 %v1094
    %v5523 = vunpack.c.l.b16 %v1095
    %v5524 = vunpack.c.h.b16 %v1095
    %v5525 = vunpack.c.l.b16 %v1096
    %v5526 = vunpack.c.h.b16 %v1096
    %v5527 = vunpack.c.l.b16 %v1097
    %v5528 = vunpack.c.h.b16 %v1097
    %v5529 = vunpack.c.l.b16 %v1098
    %v5530 = vunpack.c.h.b16 %v1098
    %v5531 = vunpack.c.l.b16 %v1099
    %v5532 = vunpack.c.h.b16 %v1099
    %v5533 = vunpack.c.l.b16 %v1100
    %v5534 = vunpack.c.h.b16 %v1100
    %v5535 = vunpack.c.l.b16 %v1101
    %v5536 = vunpack.c.h.b16 %v1101
    %v5537 = vunpack.c.l.b16 %v1102
    %v5538 = vunpack.c.h.b16 %v1102
    %v5539 = vunpack.c.l.b16 %v1103
    %v5540 = vunpack.c.h.b16 %v1103
    %v5541 = vunpack.c.l.b16 %v1104
    %v5542 = vunpack.c.h.b16 %v1104
    %v5543 = vunpack.c.l.b16 %v1105
    %v5544 = vunpack.c.h.b16 %v1105
    %v5545 = vunpack.c.l.b16 %v1106
    %v5546 = vunpack.c.h.b16 %v1106
    %v5547 = vunpack.c.l.b16 %v1107
    %v5548 = vunpack.c.h.b16 %v1107
    %v5549 = vunpack.c.l.b16 %v1108
    %v5550 = vunpack.c.h.b16 %v1108
    %v5551 = vunpack.c.l.b16 %v1109
    %v5552 = vunpack.c.h.b16 %v1109
    %v5553 = vunpack.c.l.b16 %v1110
    %v5554 = vunpack.c.h.b16 %v1110
    %v5555 = vunpack.c.l.b16 %v1111
    %v5556 = vunpack.c.h.b16 %v1111
    %v5557 = vunpack.c.l.b16 %v1112
    %v5558 = vunpack.c.h.b16 %v1112
    %v5559 = vunpack.c.l.b16 %v1113
    %v5560 = vunpack.c.h.b16 %v1113
    %v5561 = vunpack.c.l.b16 %v1114
    %v5562 = vunpack.c.h.b16 %v1114
    %v5563 = vunpack.c.l.b16 %v1115
    %v5564 = vunpack.c.h.b16 %v1115
    %v5565 = vunpack.c.l.b16 %v1116
    %v5566 = vunpack.c.h.b16 %v1116
    %v5567 = vunpack.c.l.b16 %v1117
    %v5568 = vunpack.c.h.b16 %v1117
    %v5569 = vunpack.c.l.b16 %v1118
    %v5570 = vunpack.c.h.b16 %v1118
    %v5571 = vunpack.c.l.b16 %v1119
    %v5572 = vunpack.c.h.b16 %v1119
    %v5573 = vunpack.c.l.b16 %v1120
    %v5574 = vunpack.c.h.b16 %v1120
    %v5575 = vunpack.c.l.b16 %v1121
    %v5576 = vunpack.c.h.b16 %v1121
    %v5577 = vunpack.c.l.b16 %v1122
    %v5578 = vunpack.c.h.b16 %v1122
    %v5579 = vunpack.c.l.b16 %v1123
    %v5580 = vunpack.c.h.b16 %v1123
    %v5581 = vunpack.c.l.b16 %v1124
    %v5582 = vunpack.c.h.b16 %v1124
    %v5583 = vunpack.c.l.b16 %v1125
    %v5584 = vunpack.c.h.b16 %v1125
    %v5585 = vunpack.c.l.b16 %v1126
    %v5586 = vunpack.c.h.b16 %v1126
    %v5587 = vunpack.c.l.b16 %v1127
    %v5588 = vunpack.c.h.b16 %v1127
    %v5589 = vunpack.c.l.b16 %v1128
    %v5590 = vunpack.c.h.b16 %v1128
    %v5591 = vunpack.c.l.b16 %v1129
    %v5592 = vunpack.c.h.b16 %v1129
    %v5593 = vunpack.c.l.b16 %v1130
    %v5594 = vunpack.c.h.b16 %v1130
    %v5595 = vunpack.c.l.b16 %v1131
    %v5596 = vunpack.c.h.b16 %v1131
    %v5597 = vunpack.c.l.b16 %v1132
    %v5598 = vunpack.c.h.b16 %v1132
    %v5599 = vunpack.c.l.b16 %v1133
    %v5600 = vunpack.c.h.b16 %v1133
    %v5601 = vunpack.c.l.b16 %v1134
    %v5602 = vunpack.c.h.b16 %v1134
    %v5603 = vunpack.c.l.b16 %v1135
    %v5604 = vunpack.c.h.b16 %v1135
    %v5605 = vunpack.c.l.b16 %v1136
    %v5606 = vunpack.c.h.b16 %v1136
    %v5607 = vunpack.c.l.b16 %v1137
    %v5608 = vunpack.c.h.b16 %v1137
    %v5609 = vunpack.c.l.b16 %v1138
    %v5610 = vunpack.c.h.b16 %v1138
    %v5611 = vunpack.c.l.b16 %v1139
    %v5612 = vunpack.c.h.b16 %v1139
    %v5613 = vunpack.c.l.b16 %v1140
    %v5614 = vunpack.c.h.b16 %v1140
    %v5615 = vunpack.c.l.b16 %v1141
    %v5616 = vunpack.c.h.b16 %v1141
    %v5617 = vunpack.c.l.b16 %v1142
    %v5618 = vunpack.c.h.b16 %v1142
    %v5619 = vunpack.c.l.b16 %v1143
    %v5620 = vunpack.c.h.b16 %v1143
    %v5621 = vunpack.c.l.b16 %v1144
    %v5622 = vunpack.c.h.b16 %v1144
    %v5623 = vunpack.c.l.b16 %v1145
    %v5624 = vunpack.c.h.b16 %v1145
    %v5625 = vunpack.c.l.b16 %v1146
    %v5626 = vunpack.c.h.b16 %v1146
    %v5627 = vunpack.c.l.b16 %v1147
    %v5628 = vunpack.c.h.b16 %v1147
    %v5629 = vunpack.c.l.b16 %v1148
    %v5630 = vunpack.c.h.b16 %v1148
    %v5631 = vunpack.c.l.b16 %v1149
    %v5632 = vunpack.c.h.b16 %v1149
    %v5633 = vunpack.c.l.b16 %v1150
    %v5634 = vunpack.c.h.b16 %v1150
    %v5635 = vunpack.c.l.b16 %v1151
    %v5636 = vunpack.c.h.b16 %v1151
    %v5637 = vunpack.c.l.b16 %v1152
    %v5638 = vunpack.c.h.b16 %v1152
    %v5639 = vunpack.c.l.b16 %v1153
    %v5640 = vunpack.c.h.b16 %v1153
    %v5641 = vunpack.c.l.b16 %v1154
    %v5642 = vunpack.c.h.b16 %v1154
    %v5643 = vunpack.c.l.b16 %v1155
    %v5644 = vunpack.c.h.b16 %v1155
    %v5645 = vunpack.c.l.b16 %v1156
    %v5646 = vunpack.c.h.b16 %v1156
    %v5647 = vunpack.c.l.b16 %v1157
    %v5648 = vunpack.c.h.b16 %v1157
    %v5649 = vunpack.c.l.b16 %v1158
    %v5650 = vunpack.c.h.b16 %v1158
    %v5651 = vunpack.c.l.b16 %v1159
    %v5652 = vunpack.c.h.b16 %v1159
    %v5653 = vunpack.c.l.b16 %v1160
    %v5654 = vunpack.c.h.b16 %v1160
    %v5655 = vunpack.c.l.b16 %v1161
    %v5656 = vunpack.c.h.b16 %v1161
    %v5657 = vunpack.c.l.b16 %v1162
    %v5658 = vunpack.c.h.b16 %v1162
    %v5659 = vunpack.c.l.b16 %v1163
    %v5660 = vunpack.c.h.b16 %v1163
    %v5661 = vunpack.c.l.b16 %v1164
    %v5662 = vunpack.c.h.b16 %v1164
    %v5663 = vunpack.c.l.b16 %v1165
    %v5664 = vunpack.c.h.b16 %v1165
    %v5665 = vunpack.c.l.b16 %v1166
    %v5666 = vunpack.c.h.b16 %v1166
    %v5667 = vunpack.c.l.b16 %v1167
    %v5668 = vunpack.c.h.b16 %v1167
    %v5669 = vunpack.c.l.b16 %v1168
    %v5670 = vunpack.c.h.b16 %v1168
    %v5671 = vunpack.c.l.b16 %v1169
    %v5672 = vunpack.c.h.b16 %v1169
    %v5673 = vunpack.c.l.b16 %v1170
    %v5674 = vunpack.c.h.b16 %v1170
    %v5675 = vunpack.c.l.b16 %v1171
    %v5676 = vunpack.c.h.b16 %v1171
    %v5677 = vunpack.c.l.b16 %v1172
    %v5678 = vunpack.c.h.b16 %v1172
    %v5679 = vunpack.c.l.b16 %v1173
    %v5680 = vunpack.c.h.b16 %v1173
    %v5681 = vunpack.c.l.b16 %v1174
    %v5682 = vunpack.c.h.b16 %v1174
    %v5683 = vunpack.c.l.b16 %v1175
    %v5684 = vunpack.c.h.b16 %v1175
    %v5685 = vunpack.c.l.b16 %v1176
    %v5686 = vunpack.c.h.b16 %v1176
    %v5687 = vunpack.c.l.b16 %v1177
    %v5688 = vunpack.c.h.b16 %v1177
    %v5689 = vunpack.c.l.b16 %v1178
    %v5690 = vunpack.c.h.b16 %v1178
    %v5691 = vunpack.c.l.b16 %v1179
    %v5692 = vunpack.c.h.b16 %v1179
    %v5693 = vunpack.c.l.b16 %v1180
    %v5694 = vunpack.c.h.b16 %v1180
    %v5695 = vunpack.c.l.b16 %v1181
    %v5696 = vunpack.c.h.b16 %v1181
    %v5697 = vunpack.c.l.b16 %v1182
    %v5698 = vunpack.c.h.b16 %v1182
    %v5699 = vunpack.c.l.b16 %v1183
    %v5700 = vunpack.c.h.b16 %v1183
    %v5701 = vunpack.c.l.b16 %v1184
    %v5702 = vunpack.c.h.b16 %v1184
    %v5703 = vunpack.c.l.b16 %v1185
    %v5704 = vunpack.c.h.b16 %v1185
    %v5705 = vunpack.c.l.b16 %v1186
    %v5706 = vunpack.c.h.b16 %v1186
    %v5707 = vunpack.c.l.b16 %v1187
    %v5708 = vunpack.c.h.b16 %v1187
    %v5709 = vunpack.c.l.b16 %v1188
    %v5710 = vunpack.c.h.b16 %v1188
    %v5711 = vunpack.c.l.b16 %v1189
    %v5712 = vunpack.c.h.b16 %v1189
    %v5713 = vunpack.c.l.b16 %v1190
    %v5714 = vunpack.c.h.b16 %v1190
    %v5715 = vunpack.c.l.b16 %v1191
    %v5716 = vunpack.c.h.b16 %v1191
    %v5717 = vunpack.c.l.b16 %v1192
    %v5718 = vunpack.c.h.b16 %v1192
    %v5719 = vunpack.c.l.b16 %v1193
    %v5720 = vunpack.c.h.b16 %v1193
    %v5721 = vunpack.c.l.b16 %v1194
    %v5722 = vunpack.c.h.b16 %v1194
    %v5723 = vunpack.c.l.b16 %v1195
    %v5724 = vunpack.c.h.b16 %v1195
    %v5725 = vunpack.c.l.b16 %v1196
    %v5726 = vunpack.c.h.b16 %v1196
    %v5727 = vunpack.c.l.b16 %v1197
    %v5728 = vunpack.c.h.b16 %v1197
    %v5729 = vunpack.c.l.b16 %v1198
    %v5730 = vunpack.c.h.b16 %v1198
    %v5731 = vunpack.c.l.b16 %v1199
    %v5732 = vunpack.c.h.b16 %v1199
    %v5733 = vunpack.c.l.b16 %v1200
    %v5734 = vunpack.c.h.b16 %v1200
    %v5735 = vunpack.c.l.b16 %v1201
    %v5736 = vunpack.c.h.b16 %v1201
    %v5737 = vunpack.c.l.b16 %v1202
    %v5738 = vunpack.c.h.b16 %v1202
    %v5739 = vunpack.c.l.b16 %v1203
    %v5740 = vunpack.c.h.b16 %v1203
    %v5741 = vunpack.c.l.b16 %v1204
    %v5742 = vunpack.c.h.b16 %v1204
    %v5743 = vunpack.c.l.b16 %v1205
    %v5744 = vunpack.c.h.b16 %v1205
    %v5745 = vunpack.c.l.b16 %v1206
    %v5746 = vunpack.c.h.b16 %v1206
    %v5747 = vunpack.c.l.b16 %v1207
    %v5748 = vunpack.c.h.b16 %v1207
    %v5749 = vunpack.c.l.b16 %v1208
    %v5750 = vunpack.c.h.b16 %v1208
    %v5751 = vunpack.c.l.b16 %v1209
    %v5752 = vunpack.c.h.b16 %v1209
    %v5753 = vunpack.c.l.b16 %v1210
    %v5754 = vunpack.c.h.b16 %v1210
    %v5755 = vunpack.c.l.b16 %v1211
    %v5756 = vunpack.c.h.b16 %v1211
    %v5757 = vunpack.c.l.b16 %v1212
    %v5758 = vunpack.c.h.b16 %v1212
    %v5759 = vunpack.c.l.b16 %v1213
    %v5760 = vunpack.c.h.b16 %v1213
    %v5761 = vunpack.c.l.b16 %v1214
    %v5762 = vunpack.c.h.b16 %v1214
    %v5763 = vunpack.c.l.b16 %v1215
    %v5764 = vunpack.c.h.b16 %v1215
    %v5765 = vunpack.c.l.b16 %v1216
    %v5766 = vunpack.c.h.b16 %v1216
    %v5767 = vunpack.c.l.b16 %v1217
    %v5768 = vunpack.c.h.b16 %v1217
    %v5769 = vunpack.c.l.b16 %v1218
    %v5770 = vunpack.c.h.b16 %v1218
    %v5771 = vunpack.c.l.b16 %v1219
    %v5772 = vunpack.c.h.b16 %v1219
    %v5773 = vunpack.c.l.b16 %v1220
    %v5774 = vunpack.c.h.b16 %v1220
    %v5775 = vunpack.c.l.b16 %v1221
    %v5776 = vunpack.c.h.b16 %v1221
    %v5777 = vunpack.c.l.b16 %v1222
    %v5778 = vunpack.c.h.b16 %v1222
    %v5779 = vunpack.c.l.b16 %v1223
    %v5780 = vunpack.c.h.b16 %v1223
    %v5781 = vunpack.c.l.b16 %v1224
    %v5782 = vunpack.c.h.b16 %v1224
    %v5783 = vunpack.c.l.b16 %v1225
    %v5784 = vunpack.c.h.b16 %v1225
    %v5785 = vunpack.c.l.b16 %v1226
    %v5786 = vunpack.c.h.b16 %v1226
    %v5787 = vunpack.c.l.b16 %v1227
    %v5788 = vunpack.c.h.b16 %v1227
    %v5789 = vunpack.c.l.b16 %v1228
    %v5790 = vunpack.c.h.b16 %v1228
    %v5791 = vunpack.c.l.b16 %v1229
    %v5792 = vunpack.c.h.b16 %v1229
    %v5793 = vunpack.c.l.b16 %v1230
    %v5794 = vunpack.c.h.b16 %v1230
    %v5795 = vunpack.c.l.b16 %v1231
    %v5796 = vunpack.c.h.b16 %v1231
    %v5797 = vunpack.c.l.b16 %v1232
    %v5798 = vunpack.c.h.b16 %v1232
    %v5799 = vunpack.c.l.b16 %v1233
    %v5800 = vunpack.c.h.b16 %v1233
    %v5801 = vunpack.c.l.b16 %v1234
    %v5802 = vunpack.c.h.b16 %v1234
    %v5803 = vunpack.c.l.b16 %v1235
    %v5804 = vunpack.c.h.b16 %v1235
    %v5805 = vunpack.c.l.b16 %v1236
    %v5806 = vunpack.c.h.b16 %v1236
    %v5807 = vunpack.c.l.b16 %v1237
    %v5808 = vunpack.c.h.b16 %v1237
    %v5809 = vunpack.c.l.b16 %v1238
    %v5810 = vunpack.c.h.b16 %v1238
    %v5811 = vunpack.c.l.b16 %v1239
    %v5812 = vunpack.c.h.b16 %v1239
    %v5813 = vunpack.c.l.b16 %v1240
    %v5814 = vunpack.c.h.b16 %v1240
    %v5815 = vunpack.c.l.b16 %v1241
    %v5816 = vunpack.c.h.b16 %v1241
    %v5817 = vunpack.c.l.b16 %v1242
    %v5818 = vunpack.c.h.b16 %v1242
    %v5819 = vunpack.c.l.b16 %v1243
    %v5820 = vunpack.c.h.b16 %v1243
    %v5821 = vunpack.c.l.b16 %v1244
    %v5822 = vunpack.c.h.b16 %v1244
    %v5823 = vunpack.c.l.b16 %v1245
    %v5824 = vunpack.c.h.b16 %v1245
    %v5825 = vunpack.c.l.b16 %v1246
    %v5826 = vunpack.c.h.b16 %v1246
    %v5827 = vunpack.c.l.b16 %v1247
    %v5828 = vunpack.c.h.b16 %v1247
    %v5829 = vunpack.c.l.b16 %v1248
    %v5830 = vunpack.c.h.b16 %v1248
    %v5831 = vunpack.c.l.b16 %v1249
    %v5832 = vunpack.c.h.b16 %v1249
    %v5833 = vunpack.c.l.b16 %v1250
    %v5834 = vunpack.c.h.b16 %v1250
    %v5835 = vunpack.c.l.b16 %v1251
    %v5836 = vunpack.c.h.b16 %v1251
    %v5837 = vunpack.c.l.b16 %v1252
    %v5838 = vunpack.c.h.b16 %v1252
    %v5839 = vunpack.c.l.b16 %v1253
    %v5840 = vunpack.c.h.b16 %v1253
    %v5841 = vunpack.c.l.b16 %v1254
    %v5842 = vunpack.c.h.b16 %v1254
    %v5843 = vunpack.c.l.b16 %v1255
    %v5844 = vunpack.c.h.b16 %v1255
    %v5845 = vunpack.c.l.b16 %v1256
    %v5846 = vunpack.c.h.b16 %v1256
    %v5847 = vunpack.c.l.b16 %v1257
    %v5848 = vunpack.c.h.b16 %v1257
    %v5849 = vunpack.c.l.b16 %v1258
    %v5850 = vunpack.c.h.b16 %v1258
    %v5851 = vunpack.c.l.b16 %v1259
    %v5852 = vunpack.c.h.b16 %v1259
    %v5853 = vunpack.c.l.b16 %v1260
    %v5854 = vunpack.c.h.b16 %v1260
    %v5855 = vunpack.c.l.b16 %v1261
    %v5856 = vunpack.c.h.b16 %v1261
    %v5857 = vunpack.c.l.b16 %v1262
    %v5858 = vunpack.c.h.b16 %v1262
    %v5859 = vunpack.c.l.b16 %v1263
    %v5860 = vunpack.c.h.b16 %v1263
    %v5861 = vunpack.c.l.b16 %v1264
    %v5862 = vunpack.c.h.b16 %v1264
    %v5863 = vunpack.c.l.b16 %v1265
    %v5864 = vunpack.c.h.b16 %v1265
    %v5865 = vunpack.c.l.b16 %v1266
    %v5866 = vunpack.c.h.b16 %v1266
    %v5867 = vunpack.c.l.b16 %v1267
    %v5868 = vunpack.c.h.b16 %v1267
    %v5869 = vunpack.c.l.b16 %v1268
    %v5870 = vunpack.c.h.b16 %v1268
    %v5871 = vunpack.c.l.b16 %v1269
    %v5872 = vunpack.c.h.b16 %v1269
    %v5873 = vunpack.c.l.b16 %v1270
    %v5874 = vunpack.c.h.b16 %v1270
    %v5875 = vunpack.c.l.b16 %v1271
    %v5876 = vunpack.c.h.b16 %v1271
    %v5877 = vunpack.c.l.b16 %v1272
    %v5878 = vunpack.c.h.b16 %v1272
    %v5879 = vunpack.c.l.b16 %v1273
    %v5880 = vunpack.c.h.b16 %v1273
    %v5881 = vunpack.c.l.b16 %v1274
    %v5882 = vunpack.c.h.b16 %v1274
    %v5883 = vunpack.c.l.b16 %v1275
    %v5884 = vunpack.c.h.b16 %v1275
    %v5885 = vunpack.c.l.b16 %v1276
    %v5886 = vunpack.c.h.b16 %v1276
    %v5887 = vunpack.c.l.b16 %v1277
    %v5888 = vunpack.c.h.b16 %v1277
    %v5889 = vunpack.c.l.b16 %v1278
    %v5890 = vunpack.c.h.b16 %v1278
    %v5891 = vunpack.c.l.b16 %v1279
    %v5892 = vunpack.c.h.b16 %v1279
    %v5893 = vunpack.c.l.b16 %v1280
    %v5894 = vunpack.c.h.b16 %v1280
    %v5895 = vunpack.c.l.b16 %v1281
    %v5896 = vunpack.c.h.b16 %v1281
    %v5897 = vunpack.c.l.b16 %v1282
    %v5898 = vunpack.c.h.b16 %v1282
    %v5899 = vunpack.c.l.b16 %v1283
    %v5900 = vunpack.c.h.b16 %v1283
    %v5901 = vunpack.c.l.b16 %v1284
    %v5902 = vunpack.c.h.b16 %v1284
    %v5903 = vunpack.c.l.b16 %v1285
    %v5904 = vunpack.c.h.b16 %v1285
    %v5905 = vunpack.c.l.b16 %v1286
    %v5906 = vunpack.c.h.b16 %v1286
    %v5907 = vunpack.c.l.b16 %v1287
    %v5908 = vunpack.c.h.b16 %v1287
    %v5909 = vunpack.c.l.b16 %v1288
    %v5910 = vunpack.c.h.b16 %v1288
    %v5911 = vunpack.c.l.b16 %v1289
    %v5912 = vunpack.c.h.b16 %v1289
    %v5913 = vunpack.c.l.b16 %v1290
    %v5914 = vunpack.c.h.b16 %v1290
    %v5915 = vunpack.c.l.b16 %v1291
    %v5916 = vunpack.c.h.b16 %v1291
    %v5917 = vunpack.c.l.b16 %v1292
    %v5918 = vunpack.c.h.b16 %v1292
    %v5919 = vunpack.c.l.b16 %v1293
    %v5920 = vunpack.c.h.b16 %v1293
    %v5921 = vunpack.c.l.b16 %v1294
    %v5922 = vunpack.c.h.b16 %v1294
    %v5923 = vunpack.c.l.b16 %v1295
    %v5924 = vunpack.c.h.b16 %v1295
    %v5925 = vunpack.c.l.b16 %v1296
    %v5926 = vunpack.c.h.b16 %v1296
    %v5927 = vunpack.c.l.b16 %v1297
    %v5928 = vunpack.c.h.b16 %v1297
    %v5929 = vunpack.c.l.b16 %v1298
    %v5930 = vunpack.c.h.b16 %v1298
    %v5931 = vunpack.c.l.b16 %v1299
    %v5932 = vunpack.c.h.b16 %v1299
    %v5933 = vunpack.c.l.b16 %v1300
    %v5934 = vunpack.c.h.b16 %v1300
    %v5935 = vunpack.c.l.b16 %v1301
    %v5936 = vunpack.c.h.b16 %v1301
    %v5937 = vunpack.c.l.b16 %v1302
    %v5938 = vunpack.c.h.b16 %v1302
    %v5939 = vunpack.c.l.b16 %v1303
    %v5940 = vunpack.c.h.b16 %v1303
    %v5941 = vunpack.c.l.b16 %v1304
    %v5942 = vunpack.c.h.b16 %v1304
    %v5943 = vunpack.c.l.b16 %v1305
    %v5944 = vunpack.c.h.b16 %v1305
    %v5945 = vunpack.c.l.b16 %v1306
    %v5946 = vunpack.c.h.b16 %v1306
    %v5947 = vunpack.c.l.b16 %v1307
    %v5948 = vunpack.c.h.b16 %v1307
    %v5949 = vunpack.c.l.b16 %v1308
    %v5950 = vunpack.c.h.b16 %v1308
    %v5951 = vunpack.c.l.b16 %v1309
    %v5952 = vunpack.c.h.b16 %v1309
    %v5953 = vunpack.c.l.b16 %v1310
    %v5954 = vunpack.c.h.b16 %v1310
    %v5955 = vunpack.c.l.b16 %v1311
    %v5956 = vunpack.c.h.b16 %v1311
    %v5957 = vunpack.c.l.b16 %v1312
    %v5958 = vunpack.c.h.b16 %v1312
    %v5959 = vunpack.c.l.b16 %v1313
    %v5960 = vunpack.c.h.b16 %v1313
    %v5961 = vunpack.c.l.b16 %v1314
    %v5962 = vunpack.c.h.b16 %v1314
    %v5963 = vunpack.c.l.b16 %v1315
    %v5964 = vunpack.c.h.b16 %v1315
    %v5965 = vunpack.c.l.b16 %v1316
    %v5966 = vunpack.c.h.b16 %v1316
    %v5967 = vunpack.c.l.b16 %v1317
    %v5968 = vunpack.c.h.b16 %v1317
    %v5969 = vunpack.c.l.b16 %v1318
    %v5970 = vunpack.c.h.b16 %v1318
    %v5971 = vunpack.c.l.b16 %v1319
    %v5972 = vunpack.c.h.b16 %v1319
    %v5973 = vunpack.c.l.b16 %v1320
    %v5974 = vunpack.c.h.b16 %v1320
    %v5975 = vunpack.c.l.b16 %v1321
    %v5976 = vunpack.c.h.b16 %v1321
    %v5977 = vunpack.c.l.b16 %v1322
    %v5978 = vunpack.c.h.b16 %v1322
    %v5979 = vunpack.c.l.b16 %v1323
    %v5980 = vunpack.c.h.b16 %v1323
    %v5981 = vunpack.c.l.b16 %v1324
    %v5982 = vunpack.c.h.b16 %v1324
    %v5983 = vunpack.c.l.b16 %v1325
    %v5984 = vunpack.c.h.b16 %v1325
    %v5985 = vunpack.c.l.b16 %v1326
    %v5986 = vunpack.c.h.b16 %v1326
    %v5987 = vunpack.c.l.b16 %v1327
    %v5988 = vunpack.c.h.b16 %v1327
    %v5989 = vunpack.c.l.b16 %v1328
    %v5990 = vunpack.c.h.b16 %v1328
    %v5991 = vunpack.c.l.b16 %v1329
    %v5992 = vunpack.c.h.b16 %v1329
    %v5993 = vunpack.c.l.b16 %v1330
    %v5994 = vunpack.c.h.b16 %v1330
    %v5995 = vunpack.c.l.b16 %v1331
    %v5996 = vunpack.c.h.b16 %v1331
    %v5997 = vunpack.c.l.b16 %v1332
    %v5998 = vunpack.c.h.b16 %v1332
    %v5999 = vunpack.c.l.b16 %v1333
    %v6000 = vunpack.c.h.b16 %v1333
    %v6001 = vunpack.c.l.b16 %v1334
    %v6002 = vunpack.c.h.b16 %v1334
    %v6003 = vunpack.c.l.b16 %v1335
    %v6004 = vunpack.c.h.b16 %v1335
    %v6005 = vunpack.c.l.b16 %v1336
    %v6006 = vunpack.c.h.b16 %v1336
    %v6007 = vunpack.c.l.b16 %v1337
    %v6008 = vunpack.c.h.b16 %v1337
    %v6009 = vunpack.c.l.b16 %v1338
    %v6010 = vunpack.c.h.b16 %v1338
    %v6011 = vunpack.c.l.b16 %v1339
    %v6012 = vunpack.c.h.b16 %v1339
    %v6013 = vunpack.c.l.b16 %v1340
    %v6014 = vunpack.c.h.b16 %v1340
    %v6015 = vunpack.c.l.b16 %v1341
    %v6016 = vunpack.c.h.b16 %v1341
    %v6017 = vunpack.c.l.b16 %v1342
    %v6018 = vunpack.c.h.b16 %v1342
    %v6019 = vunpack.c.l.b16 %v1343
    %v6020 = vunpack.c.h.b16 %v1343
    %v6021 = vunpack.c.l.b16 %v1344
    %v6022 = vunpack.c.h.b16 %v1344
    %v6023 = vunpack.c.l.b16 %v1345
    %v6024 = vunpack.c.h.b16 %v1345
    %v6025 = vunpack.c.l.b16 %v1346
    %v6026 = vunpack.c.h.b16 %v1346
    %v6027 = vunpack.c.l.b16 %v1347
    %v6028 = vunpack.c.h.b16 %v1347
    %v6029 = vunpack.c.l.b16 %v1348
    %v6030 = vunpack.c.h.b16 %v1348
    %v6031 = vunpack.c.l.b16 %v1349
    %v6032 = vunpack.c.h.b16 %v1349
    %v6033 = vunpack.c.l.b16 %v1350
    %v6034 = vunpack.c.h.b16 %v1350
    %v6035 = vunpack.c.l.b16 %v1351
    %v6036 = vunpack.c.h.b16 %v1351
    %v6037 = vunpack.c.l.b16 %v1352
    %v6038 = vunpack.c.h.b16 %v1352
    %v6039 = vunpack.c.l.b16 %v1353
    %v6040 = vunpack.c.h.b16 %v1353
    %v6041 = vunpack.c.l.b16 %v1354
    %v6042 = vunpack.c.h.b16 %v1354
    %v6043 = vunpack.c.l.b16 %v1355
    %v6044 = vunpack.c.h.b16 %v1355
    %v6045 = vunpack.c.l.b16 %v1356
    %v6046 = vunpack.c.h.b16 %v1356
    %v6047 = vunpack.c.l.b16 %v1357
    %v6048 = vunpack.c.h.b16 %v1357
    %v6049 = vunpack.c.l.b16 %v1358
    %v6050 = vunpack.c.h.b16 %v1358
    %v6051 = vunpack.c.l.b16 %v1359
    %v6052 = vunpack.c.h.b16 %v1359
    %v6053 = vunpack.c.l.b16 %v1360
    %v6054 = vunpack.c.h.b16 %v1360
    %v6055 = vunpack.c.l.b16 %v1361
    %v6056 = vunpack.c.h.b16 %v1361
    %v6057 = vunpack.c.l.b16 %v1362
    %v6058 = vunpack.c.h.b16 %v1362
    %v6059 = vunpack.c.l.b16 %v1363
    %v6060 = vunpack.c.h.b16 %v1363
    %v6061 = vunpack.c.l.b16 %v1364
    %v6062 = vunpack.c.h.b16 %v1364
    %v6063 = vunpack.c.l.b16 %v1365
    %v6064 = vunpack.c.h.b16 %v1365
    %v6065 = vunpack.c.l.b16 %v1366
    %v6066 = vunpack.c.h.b16 %v1366
    %v6067 = vunpack.c.l.b16 %v1367
    %v6068 = vunpack.c.h.b16 %v1367
    %v6069 = vunpack.c.l.b16 %v1368
    %v6070 = vunpack.c.h.b16 %v1368
    %v6071 = vunpack.c.l.b16 %v1369
    %v6072 = vunpack.c.h.b16 %v1369
    %v6073 = vunpack.c.l.b16 %v1370
    %v6074 = vunpack.c.h.b16 %v1370
    %v6075 = vunpack.c.l.b16 %v1371
    %v6076 = vunpack.c.h.b16 %v1371
    %v6077 = vunpack.c.l.b16 %v1372
    %v6078 = vunpack.c.h.b16 %v1372
    %v6079 = vunpack.c.l.b16 %v1373
    %v6080 = vunpack.c.h.b16 %v1373
    %v6081 = vunpack.c.l.b16 %v1374
    %v6082 = vunpack.c.h.b16 %v1374
    %v6083 = vunpack.c.l.b16 %v1375
    %v6084 = vunpack.c.h.b16 %v1375
    %v6085 = vunpack.c.l.b16 %v1376
    %v6086 = vunpack.c.h.b16 %v1376
    %v6087 = vunpack.c.l.b16 %v1377
    %v6088 = vunpack.c.h.b16 %v1377
    %v6089 = vunpack.c.l.b16 %v1378
    %v6090 = vunpack.c.h.b16 %v1378
    %v6091 = vunpack.c.l.b16 %v1379
    %v6092 = vunpack.c.h.b16 %v1379
    %v6093 = vunpack.c.l.b16 %v1380
    %v6094 = vunpack.c.h.b16 %v1380
    %v6095 = vunpack.c.l.b16 %v1381
    %v6096 = vunpack.c.h.b16 %v1381
    %v6097 = vunpack.c.l.b16 %v1382
    %v6098 = vunpack.c.h.b16 %v1382
    %v6099 = vunpack.c.l.b16 %v1383
    %v6100 = vunpack.c.h.b16 %v1383
    %v6101 = vunpack.c.l.b16 %v1384
    %v6102 = vunpack.c.h.b16 %v1384
    %v6103 = vunpack.c.l.b16 %v1385
    %v6104 = vunpack.c.h.b16 %v1385
    %v6105 = vunpack.c.l.b16 %v1386
    %v6106 = vunpack.c.h.b16 %v1386
    %v6107 = vunpack.c.l.b16 %v1387
    %v6108 = vunpack.c.h.b16 %v1387
    %v6109 = vunpack.c.l.b16 %v1388
    %v6110 = vunpack.c.h.b16 %v1388
    %v6111 = vunpack.c.l.b16 %v1389
    %v6112 = vunpack.c.h.b16 %v1389
    %v6113 = vunpack.c.l.b16 %v1390
    %v6114 = vunpack.c.h.b16 %v1390
    %v6115 = vunpack.c.l.b16 %v1391
    %v6116 = vunpack.c.h.b16 %v1391
    %v6117 = vunpack.c.l.b16 %v1392
    %v6118 = vunpack.c.h.b16 %v1392
    %v6119 = vunpack.c.l.b16 %v1393
    %v6120 = vunpack.c.h.b16 %v1393
    %v6121 = vunpack.c.l.b16 %v1394
    %v6122 = vunpack.c.h.b16 %v1394
    %v6123 = vunpack.c.l.b16 %v1395
    %v6124 = vunpack.c.h.b16 %v1395
    %v6125 = vunpack.c.l.b16 %v1396
    %v6126 = vunpack.c.h.b16 %v1396
    %v6127 = vunpack.c.l.b16 %v1397
    %v6128 = vunpack.c.h.b16 %v1397
    %v6129 = vunpack.c.l.b16 %v1398
    %v6130 = vunpack.c.h.b16 %v1398
    %v6131 = vunpack.c.l.b16 %v1399
    %v6132 = vunpack.c.h.b16 %v1399
    %v6133 = vunpack.c.l.b16 %v1400
    %v6134 = vunpack.c.h.b16 %v1400
    %v6135 = vunpack.c.l.b16 %v1401
    %v6136 = vunpack.c.h.b16 %v1401
    %v6137 = vunpack.c.l.b16 %v1402
    %v6138 = vunpack.c.h.b16 %v1402
    %v6139 = vunpack.c.l.b16 %v1403
    %v6140 = vunpack.c.h.b16 %v1403
    %v6141 = vunpack.c.l.b16 %v1404
    %v6142 = vunpack.c.h.b16 %v1404
    %v6143 = vunpack.c.l.b16 %v1405
    %v6144 = vunpack.c.h.b16 %v1405
    %v6145 = vunpack.c.l.b16 %v1406
    %v6146 = vunpack.c.h.b16 %v1406
    %v6147 = vunpack.c.l.b16 %v1407
    %v6148 = vunpack.c.h.b16 %v1407
    %v6149 = vunpack.c.l.b16 %v1408
    %v6150 = vunpack.c.h.b16 %v1408
    %v6151 = vunpack.c.l.b16 %v1409
    %v6152 = vunpack.c.h.b16 %v1409
    %v6153 = vunpack.c.l.b16 %v1410
    %v6154 = vunpack.c.h.b16 %v1410
    %v6155 = vunpack.c.l.b16 %v1411
    %v6156 = vunpack.c.h.b16 %v1411
    %v6157 = vunpack.c.l.b16 %v1412
    %v6158 = vunpack.c.h.b16 %v1412
    %v6159 = vunpack.c.l.b16 %v1413
    %v6160 = vunpack.c.h.b16 %v1413
    %v6161 = vunpack.c.l.b16 %v1414
    %v6162 = vunpack.c.h.b16 %v1414
    %v6163 = vunpack.c.l.b16 %v1415
    %v6164 = vunpack.c.h.b16 %v1415
    %v6165 = vunpack.c.l.b16 %v1416
    %v6166 = vunpack.c.h.b16 %v1416
    %v6167 = vunpack.c.l.b16 %v1417
    %v6168 = vunpack.c.h.b16 %v1417
    %v6169 = vunpack.c.l.b16 %v1418
    %v6170 = vunpack.c.h.b16 %v1418
    %v6171 = vunpack.c.l.b16 %v1419
    %v6172 = vunpack.c.h.b16 %v1419
    %v6173 = vunpack.c.l.b16 %v1420
    %v6174 = vunpack.c.h.b16 %v1420
    %v6175 = vunpack.c.l.b16 %v1421
    %v6176 = vunpack.c.h.b16 %v1421
    %v6177 = vunpack.c.l.b16 %v1422
    %v6178 = vunpack.c.h.b16 %v1422
    %v6179 = vunpack.c.l.b16 %v1423
    %v6180 = vunpack.c.h.b16 %v1423
    %v6181 = vunpack.c.l.b16 %v1424
    %v6182 = vunpack.c.h.b16 %v1424
    %v6183 = vunpack.c.l.b16 %v1425
    %v6184 = vunpack.c.h.b16 %v1425
    %v6185 = vunpack.c.l.b16 %v1426
    %v6186 = vunpack.c.h.b16 %v1426
    %v6187 = vunpack.c.l.b16 %v1427
    %v6188 = vunpack.c.h.b16 %v1427
    %v6189 = vunpack.c.l.b16 %v1428
    %v6190 = vunpack.c.h.b16 %v1428
    %v6191 = vunpack.c.l.b16 %v1429
    %v6192 = vunpack.c.h.b16 %v1429
    %v6193 = vunpack.c.l.b16 %v1430
    %v6194 = vunpack.c.h.b16 %v1430
    %v6195 = vunpack.c.l.b16 %v1431
    %v6196 = vunpack.c.h.b16 %v1431
    %v6197 = vunpack.c.l.b16 %v1432
    %v6198 = vunpack.c.h.b16 %v1432
    %v6199 = vunpack.c.l.b16 %v1433
    %v6200 = vunpack.c.h.b16 %v1433
    %v6201 = vunpack.c.l.b16 %v1434
    %v6202 = vunpack.c.h.b16 %v1434
    %v6203 = vunpack.c.l.b16 %v1435
    %v6204 = vunpack.c.h.b16 %v1435
    %v6205 = vunpack.c.l.b16 %v1436
    %v6206 = vunpack.c.h.b16 %v1436
    %v6207 = vunpack.c.l.b16 %v1437
    %v6208 = vunpack.c.h.b16 %v1437
    %v6209 = vunpack.c.l.b16 %v1438
    %v6210 = vunpack.c.h.b16 %v1438
    %v6211 = vunpack.c.l.b16 %v1439
    %v6212 = vunpack.c.h.b16 %v1439
    %v6213 = vunpack.c.l.b16 %v1440
    %v6214 = vunpack.c.h.b16 %v1440
    %v6215 = vunpack.c.l.b16 %v1441
    %v6216 = vunpack.c.h.b16 %v1441
    %v6217 = vunpack.c.l.b16 %v1442
    %v6218 = vunpack.c.h.b16 %v1442
    %v6219 = vunpack.c.l.b16 %v1443
    %v6220 = vunpack.c.h.b16 %v1443
    %v6221 = vunpack.c.l.b16 %v1444
    %v6222 = vunpack.c.h.b16 %v1444
    %v6223 = vunpack.c.l.b16 %v1445
    %v6224 = vunpack.c.h.b16 %v1445
    %v6225 = vunpack.c.l.b16 %v1446
    %v6226 = vunpack.c.h.b16 %v1446
    %v6227 = vunpack.c.l.b16 %v1447
    %v6228 = vunpack.c.h.b16 %v1447
    %v6229 = vunpack.c.l.b16 %v1448
    %v6230 = vunpack.c.h.b16 %v1448
    %v6231 = vunpack.c.l.b16 %v1449
    %v6232 = vunpack.c.h.b16 %v1449
    %v6233 = vunpack.c.l.b16 %v1450
    %v6234 = vunpack.c.h.b16 %v1450
    %v6235 = vunpack.c.l.b16 %v1451
    %v6236 = vunpack.c.h.b16 %v1451
    %v6237 = vunpack.c.l.b16 %v1452
    %v6238 = vunpack.c.h.b16 %v1452
    %v6239 = vunpack.c.l.b16 %v1453
    %v6240 = vunpack.c.h.b16 %v1453
    %v6241 = vunpack.c.l.b16 %v1454
    %v6242 = vunpack.c.h.b16 %v1454
    %v6243 = vunpack.c.l.b16 %v1455
    %v6244 = vunpack.c.h.b16 %v1455
    %v6245 = vunpack.c.l.b16 %v1456
    %v6246 = vunpack.c.h.b16 %v1456
    %v6247 = vunpack.c.l.b16 %v1457
    %v6248 = vunpack.c.h.b16 %v1457
    %v6249 = vunpack.c.l.b16 %v1458
    %v6250 = vunpack.c.h.b16 %v1458
    %v6251 = vunpack.c.l.b16 %v1459
    %v6252 = vunpack.c.h.b16 %v1459
    %v6253 = vunpack.c.l.b16 %v1460
    %v6254 = vunpack.c.h.b16 %v1460
    %v6255 = vunpack.c.l.b16 %v1461
    %v6256 = vunpack.c.h.b16 %v1461
    %v6257 = vunpack.c.l.b16 %v1462
    %v6258 = vunpack.c.h.b16 %v1462
    %v6259 = vunpack.c.l.b16 %v1463
    %v6260 = vunpack.c.h.b16 %v1463
    %v6261 = vunpack.c.l.b16 %v1464
    %v6262 = vunpack.c.h.b16 %v1464
    %v6263 = vunpack.c.l.b16 %v1465
    %v6264 = vunpack.c.h.b16 %v1465
    %v6265 = vunpack.c.l.b16 %v1466
    %v6266 = vunpack.c.h.b16 %v1466
    %v6267 = vunpack.c.l.b16 %v1467
    %v6268 = vunpack.c.h.b16 %v1467
    %v6269 = vunpack.c.l.b16 %v1468
    %v6270 = vunpack.c.h.b16 %v1468
    %v6271 = vunpack.c.l.b16 %v1469
    %v6272 = vunpack.c.h.b16 %v1469
    %v6273 = vunpack.c.l.b16 %v1470
    %v6274 = vunpack.c.h.b16 %v1470
    %v6275 = vunpack.c.l.b16 %v1471
    %v6276 = vunpack.c.h.b16 %v1471
    %v6277 = vunpack.c.l.b16 %v1472
    %v6278 = vunpack.c.h.b16 %v1472
    %v6279 = vunpack.c.l.b16 %v1473
    %v6280 = vunpack.c.h.b16 %v1473
    %v6281 = vunpack.c.l.b16 %v1474
    %v6282 = vunpack.c.h.b16 %v1474
    %v6283 = vunpack.c.l.b16 %v1475
    %v6284 = vunpack.c.h.b16 %v1475
    %v6285 = vunpack.c.l.b16 %v1476
    %v6286 = vunpack.c.h.b16 %v1476
    %v6287 = vunpack.c.l.b16 %v1477
    %v6288 = vunpack.c.h.b16 %v1477
    %v6289 = vunpack.c.l.b16 %v1478
    %v6290 = vunpack.c.h.b16 %v1478
    %v6291 = vunpack.c.l.b16 %v1479
    %v6292 = vunpack.c.h.b16 %v1479
    %v6293 = vunpack.c.l.b16 %v1480
    %v6294 = vunpack.c.h.b16 %v1480
    %v6295 = vunpack.c.l.b16 %v1481
    %v6296 = vunpack.c.h.b16 %v1481
    %v6297 = vunpack.c.l.b16 %v1482
    %v6298 = vunpack.c.h.b16 %v1482
    %v6299 = vunpack.c.l.b16 %v1483
    %v6300 = vunpack.c.h.b16 %v1483
    %v6301 = vunpack.c.l.b16 %v1484
    %v6302 = vunpack.c.h.b16 %v1484
    %v6303 = vunpack.c.l.b16 %v1485
    %v6304 = vunpack.c.h.b16 %v1485
    %v6305 = vunpack.c.l.b16 %v1486
    %v6306 = vunpack.c.h.b16 %v1486
    %v6307 = vunpack.c.l.b16 %v1487
    %v6308 = vunpack.c.h.b16 %v1487
    %v6309 = vunpack.c.l.b16 %v1488
    %v6310 = vunpack.c.h.b16 %v1488
    %v6311 = vunpack.c.l.b16 %v1489
    %v6312 = vunpack.c.h.b16 %v1489
    %v6313 = vunpack.c.l.b16 %v1490
    %v6314 = vunpack.c.h.b16 %v1490
    %v6315 = vunpack.c.l.b16 %v1491
    %v6316 = vunpack.c.h.b16 %v1491
    %v6317 = vunpack.c.l.b16 %v1492
    %v6318 = vunpack.c.h.b16 %v1492
    %v6319 = vunpack.c.l.b16 %v1493
    %v6320 = vunpack.c.h.b16 %v1493
    %v6321 = vunpack.c.l.b16 %v1494
    %v6322 = vunpack.c.h.b16 %v1494
    %v6323 = vunpack.c.l.b16 %v1495
    %v6324 = vunpack.c.h.b16 %v1495
    %v6325 = vunpack.c.l.b16 %v1496
    %v6326 = vunpack.c.h.b16 %v1496
    %v6327 = vunpack.c.l.b16 %v1497
    %v6328 = vunpack.c.h.b16 %v1497
    %v6329 = vunpack.c.l.b16 %v1498
    %v6330 = vunpack.c.h.b16 %v1498
    %v6331 = vunpack.c.l.b16 %v1499
    %v6332 = vunpack.c.h.b16 %v1499
    %v6333 = vunpack.c.l.b16 %v1500
    %v6334 = vunpack.c.h.b16 %v1500
    %v6335 = vunpack.c.l.b16 %v1501
    %v6336 = vunpack.c.h.b16 %v1501
    %v6337 = vunpack.c.l.b16 %v1502
    %v6338 = vunpack.c.h.b16 %v1502
    %v6339 = vunpack.c.l.b16 %v1503
    %v6340 = vunpack.c.h.b16 %v1503
    %v6341 = vunpack.c.l.b16 %v1504
    %v6342 = vunpack.c.h.b16 %v1504
    %v6343 = vunpack.c.l.b16 %v1505
    %v6344 = vunpack.c.h.b16 %v1505
    %v6345 = vunpack.c.l.b16 %v1506
    %v6346 = vunpack.c.h.b16 %v1506
    %v6347 = vunpack.c.l.b16 %v1507
    %v6348 = vunpack.c.h.b16 %v1507
    %v6349 = vunpack.c.l.b16 %v1508
    %v6350 = vunpack.c.h.b16 %v1508
    %v6351 = vunpack.c.l.b16 %v1509
    %v6352 = vunpack.c.h.b16 %v1509
    %v6353 = vunpack.c.l.b16 %v1510
    %v6354 = vunpack.c.h.b16 %v1510
    %v6355 = vunpack.c.l.b16 %v1511
    %v6356 = vunpack.c.h.b16 %v1511
    %v6357 = vunpack.c.l.b16 %v1512
    %v6358 = vunpack.c.h.b16 %v1512
    %v6359 = vunpack.c.l.b16 %v1513
    %v6360 = vunpack.c.h.b16 %v1513
    %v6361 = vunpack.c.l.b16 %v1514
    %v6362 = vunpack.c.h.b16 %v1514
    %v6363 = vunpack.c.l.b16 %v1515
    %v6364 = vunpack.c.h.b16 %v1515
    %v6365 = vunpack.c.l.b16 %v1516
    %v6366 = vunpack.c.h.b16 %v1516
    %v6367 = vunpack.c.l.b16 %v1517
    %v6368 = vunpack.c.h.b16 %v1517
    %v6369 = vunpack.c.l.b16 %v1518
    %v6370 = vunpack.c.h.b16 %v1518
    %v6371 = vunpack.c.l.b16 %v1519
    %v6372 = vunpack.c.h.b16 %v1519
    %v6373 = vunpack.c.l.b16 %v1520
    %v6374 = vunpack.c.h.b16 %v1520
    %v6375 = vunpack.c.l.b16 %v1521
    %v6376 = vunpack.c.h.b16 %v1521
    %v6377 = vunpack.c.l.b16 %v1522
    %v6378 = vunpack.c.h.b16 %v1522
    %v6379 = vunpack.c.l.b16 %v1523
    %v6380 = vunpack.c.h.b16 %v1523
    %v6381 = vunpack.c.l.b16 %v1524
    %v6382 = vunpack.c.h.b16 %v1524
    %v6383 = vunpack.c.l.b16 %v1525
    %v6384 = vunpack.c.h.b16 %v1525
    %v6385 = vunpack.c.l.b16 %v1526
    %v6386 = vunpack.c.h.b16 %v1526
    %v6387 = vunpack.c.l.b16 %v1527
    %v6388 = vunpack.c.h.b16 %v1527
    %v6389 = vunpack.c.l.b16 %v1528
    %v6390 = vunpack.c.h.b16 %v1528
    %v6391 = vunpack.c.l.b16 %v1529
    %v6392 = vunpack.c.h.b16 %v1529
    %v6393 = vunpack.c.l.b16 %v1530
    %v6394 = vunpack.c.h.b16 %v1530
    %v6395 = vunpack.c.l.b16 %v1531
    %v6396 = vunpack.c.h.b16 %v1531
    %v6397 = vunpack.c.l.b16 %v1532
    %v6398 = vunpack.c.h.b16 %v1532
    %v6399 = vunpack.c.l.b16 %v1533
    %v6400 = vunpack.c.h.b16 %v1533
    %v6401 = vunpack.c.l.b16 %v1534
    %v6402 = vunpack.c.h.b16 %v1534
    %v6403 = vunpack.c.l.b16 %v1535
    %v6404 = vunpack.c.h.b16 %v1535
    %v6405 = vunpack.c.l.b16 %v1536
    %v6406 = vunpack.c.h.b16 %v1536
    %v6407 = vunpack.c.l.b16 %v1537
    %v6408 = vunpack.c.h.b16 %v1537
    %v6409 = vunpack.c.l.b16 %v1538
    %v6410 = vunpack.c.h.b16 %v1538
    %v6411 = vunpack.c.l.b16 %v1539
    %v6412 = vunpack.c.h.b16 %v1539
    %v6413 = vunpack.c.l.b16 %v1540
    %v6414 = vunpack.c.h.b16 %v1540
    %v6415 = vunpack.c.l.b16 %v1541
    %v6416 = vunpack.c.h.b16 %v1541
    %v6417 = vunpack.c.l.b16 %v1542
    %v6418 = vunpack.c.h.b16 %v1542
    %v6419 = vunpack.c.l.b16 %v1543
    %v6420 = vunpack.c.h.b16 %v1543
    %v6421 = vunpack.c.l.b16 %v1544
    %v6422 = vunpack.c.h.b16 %v1544
    %v6423 = vunpack.c.l.b16 %v1545
    %v6424 = vunpack.c.h.b16 %v1545
    %v6425 = vunpack.c.l.b16 %v1546
    %v6426 = vunpack.c.h.b16 %v1546
    %v6427 = vunpack.c.l.b16 %v1547
    %v6428 = vunpack.c.h.b16 %v1547
    %v6429 = vunpack.c.l.b16 %v1548
    %v6430 = vunpack.c.h.b16 %v1548
    %v6431 = vunpack.c.l.b16 %v1549
    %v6432 = vunpack.c.h.b16 %v1549
    %v6433 = vunpack.c.l.b16 %v1550
    %v6434 = vunpack.c.h.b16 %v1550
    %v6435 = vunpack.c.l.b16 %v1551
    %v6436 = vunpack.c.h.b16 %v1551
    %v6437 = vunpack.c.l.b16 %v1552
    %v6438 = vunpack.c.h.b16 %v1552
    %v6439 = vunpack.c.l.b16 %v1553
    %v6440 = vunpack.c.h.b16 %v1553
    %v6441 = vunpack.c.l.b16 %v1554
    %v6442 = vunpack.c.h.b16 %v1554
    %v6443 = vunpack.c.l.b16 %v1555
    %v6444 = vunpack.c.h.b16 %v1555
    %v6445 = vunpack.c.l.b16 %v1556
    %v6446 = vunpack.c.h.b16 %v1556
    %v6447 = vunpack.c.l.b16 %v1557
    %v6448 = vunpack.c.h.b16 %v1557
    %v6449 = vunpack.c.l.b16 %v1558
    %v6450 = vunpack.c.h.b16 %v1558
    %v6451 = vunpack.c.l.b16 %v1559
    %v6452 = vunpack.c.h.b16 %v1559
    %v6453 = vunpack.c.l.b16 %v1560
    %v6454 = vunpack.c.h.b16 %v1560
    %v6455 = vunpack.c.l.b16 %v1561
    %v6456 = vunpack.c.h.b16 %v1561
    %v6457 = vunpack.c.l.b16 %v1562
    %v6458 = vunpack.c.h.b16 %v1562
    %v6459 = vunpack.c.l.b16 %v1563
    %v6460 = vunpack.c.h.b16 %v1563
    %v6461 = vunpack.c.l.b16 %v1564
    %v6462 = vunpack.c.h.b16 %v1564
    %v6463 = vunpack.c.l.b16 %v1565
    %v6464 = vunpack.c.h.b16 %v1565
    %v6465 = vunpack.c.l.b16 %v1566
    %v6466 = vunpack.c.h.b16 %v1566
    %v6467 = vunpack.c.l.b16 %v1567
    %v6468 = vunpack.c.h.b16 %v1567
    %v6469 = vunpack.c.l.b16 %v1568
    %v6470 = vunpack.c.h.b16 %v1568
    %v6471 = vunpack.c.l.b16 %v1569
    %v6472 = vunpack.c.h.b16 %v1569
    %v6473 = vunpack.c.l.b16 %v1570
    %v6474 = vunpack.c.h.b16 %v1570
    %v6475 = vunpack.c.l.b16 %v1571
    %v6476 = vunpack.c.h.b16 %v1571
    %v6477 = vunpack.c.l.b16 %v1572
    %v6478 = vunpack.c.h.b16 %v1572
    %v6479 = vunpack.c.l.b16 %v1573
    %v6480 = vunpack.c.h.b16 %v1573
    %v6481 = vunpack.c.l.b16 %v1574
    %v6482 = vunpack.c.h.b16 %v1574
    %v6483 = vunpack.c.l.b16 %v1575
    %v6484 = vunpack.c.h.b16 %v1575
    %v6485 = vunpack.c.l.b16 %v1576
    %v6486 = vunpack.c.h.b16 %v1576
    %v6487 = vunpack.c.l.b16 %v1577
    %v6488 = vunpack.c.h.b16 %v1577
    %v6489 = vunpack.c.l.b16 %v1578
    %v6490 = vunpack.c.h.b16 %v1578
    %v6491 = vunpack.c.l.b16 %v1579
    %v6492 = vunpack.c.h.b16 %v1579
    %v6493 = vunpack.c.l.b16 %v1580
    %v6494 = vunpack.c.h.b16 %v1580
    %v6495 = vunpack.c.l.b16 %v1581
    %v6496 = vunpack.c.h.b16 %v1581
    %v6497 = vunpack.c.l.b16 %v1582
    %v6498 = vunpack.c.h.b16 %v1582
    %v6499 = vunpack.c.l.b16 %v1583
    %v6500 = vunpack.c.h.b16 %v1583
    %v6501 = vunpack.c.l.b16 %v1584
    %v6502 = vunpack.c.h.b16 %v1584
    %v6503 = vunpack.c.l.b16 %v1585
    %v6504 = vunpack.c.h.b16 %v1585
    %v6505 = vunpack.c.l.b16 %v1586
    %v6506 = vunpack.c.h.b16 %v1586
    %v6507 = vunpack.c.l.b16 %v1587
    %v6508 = vunpack.c.h.b16 %v1587
    %v6509 = vunpack.c.l.b16 %v1588
    %v6510 = vunpack.c.h.b16 %v1588
    %v6511 = vunpack.c.l.b16 %v1589
    %v6512 = vunpack.c.h.b16 %v1589
    %v6513 = vunpack.c.l.b16 %v1590
    %v6514 = vunpack.c.h.b16 %v1590
    %v6515 = vunpack.c.l.b16 %v1591
    %v6516 = vunpack.c.h.b16 %v1591
    %v6517 = vunpack.c.l.b16 %v1592
    %v6518 = vunpack.c.h.b16 %v1592
    %v6519 = vunpack.c.l.b16 %v1593
    %v6520 = vunpack.c.h.b16 %v1593
    %v6521 = vunpack.c.l.b16 %v1594
    %v6522 = vunpack.c.h.b16 %v1594
    %v6523 = vunpack.c.l.b16 %v1595
    %v6524 = vunpack.c.h.b16 %v1595
    %v6525 = vunpack.c.l.b16 %v1596
    %v6526 = vunpack.c.h.b16 %v1596
    %v6527 = vunpack.c.l.b16 %v1597
    %v6528 = vunpack.c.h.b16 %v1597
    %v6529 = vunpack.c.l.b16 %v1598
    %v6530 = vunpack.c.h.b16 %v1598
    %v6531 = vunpack.c.l.b16 %v1599
    %v6532 = vunpack.c.h.b16 %v1599
    %v6533 = vunpack.c.l.b16 %v1600
    %v6534 = vunpack.c.h.b16 %v1600
    %v6535 = vunpack.c.l.b16 %v1601
    %v6536 = vunpack.c.h.b16 %v1601
    %v6537 = vpack.c.b16 %v3409, %v3401
    %v6538 = vpack.c.b16 %v3410, %v3402
    %v6539 = vpack.c.b16 %v3411, %v3403
    %v6540 = vpack.c.b16 %v3412, %v3404
    %v6541 = vpack.c.b16 %v3413, %v3405
    %v6542 = vpack.c.b16 %v3414, %v3406
    %v6543 = vpack.c.b16 %v3415, %v3407
    %v6544 = vpack.c.b16 %v3416, %v3408
    %v6545 = vpack.c.b16 %v3425, %v3417
    %v6546 = vpack.c.b16 %v3426, %v3418
    %v6547 = vpack.c.b16 %v3427, %v3419
    %v6548 = vpack.c.b16 %v3428, %v3420
    %v6549 = vpack.c.b16 %v3429, %v3421
    %v6550 = vpack.c.b16 %v3430, %v3422
    %v6551 = vpack.c.b16 %v3431, %v3423
    %v6552 = vpack.c.b16 %v3432, %v3424
    %v6553 = vpack.c.b16 %v3441, %v3433
    %v6554 = vpack.c.b16 %v3442, %v3434
    %v6555 = vpack.c.b16 %v3443, %v3435
    %v6556 = vpack.c.b16 %v3444, %v3436
    %v6557 = vpack.c.b16 %v3445, %v3437
    %v6558 = vpack.c.b16 %v3446, %v3438
    %v6559 = vpack.c.b16 %v3447, %v3439
    %v6560 = vpack.c.b16 %v3448, %v3440
    %v6561 = vpack.c.b16 %v3457, %v3449
    %v6562 = vpack.c.b16 %v3458, %v3450
    %v6563 = vpack.c.b16 %v3459, %v3451
    %v6564 = vpack.c.b16 %v3460, %v3452
    %v6565 = vpack.c.b16 %v3461, %v3453
    %v6566 = vpack.c.b16 %v3462, %v3454
    %v6567 = vpack.c.b16 %v3463, %v3455
    %v6568 = vpack.c.b16 %v3464, %v3456
    %v6569 = vpack.c.b16 %v3473, %v3465
    %v6570 = vpack.c.b16 %v3474, %v3466
    %v6571 = vpack.c.b16 %v3475, %v3467
    %v6572 = vpack.c.b16 %v3476, %v3468
    %v6573 = vpack.c.b16 %v3477, %v3469
    %v6574 = vpack.c.b16 %v3478, %v3470
    %v6575 = vpack.c.b16 %v3479, %v3471
    %v6576 = vpack.c.b16 %v3480, %v3472
    %v6577 = vpack.c.b16 %v3489, %v3481
    %v6578 = vpack.c.b16 %v3490, %v3482
    %v6579 = vpack.c.b16 %v3491, %v3483
    %v6580 = vpack.c.b16 %v3492, %v3484
    %v6581 = vpack.c.b16 %v3493, %v3485
    %v6582 = vpack.c.b16 %v3494, %v3486
    %v6583 = vpack.c.b16 %v3495, %v3487
    %v6584 = vpack.c.b16 %v3496, %v3488
    %v6585 = vpack.c.b16 %v3505, %v3497
    %v6586 = vpack.c.b16 %v3506, %v3498
    %v6587 = vpack.c.b16 %v3507, %v3499
    %v6588 = vpack.c.b16 %v3508, %v3500
    %v6589 = vpack.c.b16 %v3509, %v3501
    %v6590 = vpack.c.b16 %v3510, %v3502
    %v6591 = vpack.c.b16 %v3511, %v3503
    %v6592 = vpack.c.b16 %v3512, %v3504
    %v6593 = vpack.c.b16 %v3521, %v3513
    %v6594 = vpack.c.b16 %v3522, %v3514
    %v6595 = vpack.c.b16 %v3523, %v3515
    %v6596 = vpack.c.b16 %v3524, %v3516
    %v6597 = vpack.c.b16 %v3525, %v3517
    %v6598 = vpack.c.b16 %v3526, %v3518
    %v6599 = vpack.c.b16 %v3527, %v3519
    %v6600 = vpack.c.b16 %v3528, %v3520
    %v6601 = vpack.c.b16 %v3537, %v3529
    %v6602 = vpack.c.b16 %v3538, %v3530
    %v6603 = vpack.c.b16 %v3539, %v3531
    %v6604 = vpack.c.b16 %v3540, %v3532
    %v6605 = vpack.c.b16 %v3541, %v3533
    %v6606 = vpack.c.b16 %v3542, %v3534
    %v6607 = vpack.c.b16 %v3543, %v3535
    %v6608 = vpack.c.b16 %v3544, %v3536
    %v6609 = vpack.c.b16 %v3553, %v3545
    %v6610 = vpack.c.b16 %v3554, %v3546
    %v6611 = vpack.c.b16 %v3555, %v3547
    %v6612 = vpack.c.b16 %v3556, %v3548
    %v6613 = vpack.c.b16 %v3557, %v3549
    %v6614 = vpack.c.b16 %v3558, %v3550
    %v6615 = vpack.c.b16 %v3559, %v3551
    %v6616 = vpack.c.b16 %v3560, %v3552
    %v6617 = vpack.c.b16 %v3569, %v3561
    %v6618 = vpack.c.b16 %v3570, %v3562
    %v6619 = vpack.c.b16 %v3571, %v3563
    %v6620 = vpack.c.b16 %v3572, %v3564
    %v6621 = vpack.c.b16 %v3573, %v3565
    %v6622 = vpack.c.b16 %v3574, %v3566
    %v6623 = vpack.c.b16 %v3575, %v3567
    %v6624 = vpack.c.b16 %v3576, %v3568
    %v6625 = vpack.c.b16 %v3585, %v3577
    %v6626 = vpack.c.b16 %v3586, %v3578
    %v6627 = vpack.c.b16 %v3587, %v3579
    %v6628 = vpack.c.b16 %v3588, %v3580
    %v6629 = vpack.c.b16 %v3589, %v3581
    %v6630 = vpack.c.b16 %v3590, %v3582
    %v6631 = vpack.c.b16 %v3591, %v3583
    %v6632 = vpack.c.b16 %v3592, %v3584
    %v6633 = vpack.c.b16 %v3601, %v3593
    %v6634 = vpack.c.b16 %v3602, %v3594
    %v6635 = vpack.c.b16 %v3603, %v3595
    %v6636 = vpack.c.b16 %v3604, %v3596
    %v6637 = vpack.c.b16 %v3605, %v3597
    %v6638 = vpack.c.b16 %v3606, %v3598
    %v6639 = vpack.c.b16 %v3607, %v3599
    %v6640 = vpack.c.b16 %v3608, %v3600
    %v6641 = vpack.c.b16 %v3617, %v3609
    %v6642 = vpack.c.b16 %v3618, %v3610
    %v6643 = vpack.c.b16 %v3619, %v3611
    %v6644 = vpack.c.b16 %v3620, %v3612
    %v6645 = vpack.c.b16 %v3621, %v3613
    %v6646 = vpack.c.b16 %v3622, %v3614
    %v6647 = vpack.c.b16 %v3623, %v3615
    %v6648 = vpack.c.b16 %v3624, %v3616
    %v6649 = vpack.c.b16 %v3633, %v3625
    %v6650 = vpack.c.b16 %v3634, %v3626
    %v6651 = vpack.c.b16 %v3635, %v3627
    %v6652 = vpack.c.b16 %v3636, %v3628
    %v6653 = vpack.c.b16 %v3637, %v3629
    %v6654 = vpack.c.b16 %v3638, %v3630
    %v6655 = vpack.c.b16 %v3639, %v3631
    %v6656 = vpack.c.b16 %v3640, %v3632
    %v6657 = vpack.c.b16 %v3649, %v3641
    %v6658 = vpack.c.b16 %v3650, %v3642
    %v6659 = vpack.c.b16 %v3651, %v3643
    %v6660 = vpack.c.b16 %v3652, %v3644
    %v6661 = vpack.c.b16 %v3653, %v3645
    %v6662 = vpack.c.b16 %v3654, %v3646
    %v6663 = vpack.c.b16 %v3655, %v3647
    %v6664 = vpack.c.b16 %v3656, %v3648
    %v6665 = vpack.c.b16 %v3665, %v3657
    %v6666 = vpack.c.b16 %v3666, %v3658
    %v6667 = vpack.c.b16 %v3667, %v3659
    %v6668 = vpack.c.b16 %v3668, %v3660
    %v6669 = vpack.c.b16 %v3669, %v3661
    %v6670 = vpack.c.b16 %v3670, %v3662
    %v6671 = vpack.c.b16 %v3671, %v3663
    %v6672 = vpack.c.b16 %v3672, %v3664
    %v6673 = vpack.c.b16 %v3681, %v3673
    %v6674 = vpack.c.b16 %v3682, %v3674
    %v6675 = vpack.c.b16 %v3683, %v3675
    %v6676 = vpack.c.b16 %v3684, %v3676
    %v6677 = vpack.c.b16 %v3685, %v3677
    %v6678 = vpack.c.b16 %v3686, %v3678
    %v6679 = vpack.c.b16 %v3687, %v3679
    %v6680 = vpack.c.b16 %v3688, %v3680
    %v6681 = vpack.c.b16 %v3697, %v3689
    %v6682 = vpack.c.b16 %v3698, %v3690
    %v6683 = vpack.c.b16 %v3699, %v3691
    %v6684 = vpack.c.b16 %v3700, %v3692
    %v6685 = vpack.c.b16 %v3701, %v3693
    %v6686 = vpack.c.b16 %v3702, %v3694
    %v6687 = vpack.c.b16 %v3703, %v3695
    %v6688 = vpack.c.b16 %v3704, %v3696
    %v6689 = vpack.c.b16 %v3713, %v3705
    %v6690 = vpack.c.b16 %v3714, %v3706
    %v6691 = vpack.c.b16 %v3715, %v3707
    %v6692 = vpack.c.b16 %v3716, %v3708
    %v6693 = vpack.c.b16 %v3717, %v3709
    %v6694 = vpack.c.b16 %v3718, %v3710
    %v6695 = vpack.c.b16 %v3719, %v3711
    %v6696 = vpack.c.b16 %v3720, %v3712
    %v6697 = vpack.c.b16 %v3729, %v3721
    %v6698 = vpack.c.b16 %v3730, %v3722
    %v6699 = vpack.c.b16 %v3731, %v3723
    %v6700 = vpack.c.b16 %v3732, %v3724
    %v6701 = vpack.c.b16 %v3733, %v3725
    %v6702 = vpack.c.b16 %v3734, %v3726
    %v6703 = vpack.c.b16 %v3735, %v3727
    %v6704 = vpack.c.b16 %v3736, %v3728
    %v6705 = vpack.c.b16 %v3745, %v3737
    %v6706 = vpack.c.b16 %v3746, %v3738
    %v6707 = vpack.c.b16 %v3747, %v3739
    %v6708 = vpack.c.b16 %v3748, %v3740
    %v6709 = vpack.c.b16 %v3749, %v3741
    %v6710 = vpack.c.b16 %v3750, %v3742
    %v6711 = vpack.c.b16 %v3751, %v3743
    %v6712 = vpack.c.b16 %v3752, %v3744
    %v6713 = vpack.c.b16 %v3761, %v3753
    %v6714 = vpack.c.b16 %v3762, %v3754
    %v6715 = vpack.c.b16 %v3763, %v3755
    %v6716 = vpack.c.b16 %v3764, %v3756
    %v6717 = vpack.c.b16 %v3765, %v3757
    %v6718 = vpack.c.b16 %v3766, %v3758
    %v6719 = vpack.c.b16 %v3767, %v3759
    %v6720 = vpack.c.b16 %v3768, %v3760
    %v6721 = vpack.c.b16 %v3777, %v3769
    %v6722 = vpack.c.b16 %v3778, %v3770
    %v6723 = vpack.c.b16 %v3779, %v3771
    %v6724 = vpack.c.b16 %v3780, %v3772
    %v6725 = vpack.c.b16 %v3781, %v3773
    %v6726 = vpack.c.b16 %v3782, %v3774
    %v6727 = vpack.c.b16 %v3783, %v3775
    %v6728 = vpack.c.b16 %v3784, %v3776
    %v6729 = vpack.c.b16 %v3793, %v3785
    %v6730 = vpack.c.b16 %v3794, %v3786
    %v6731 = vpack.c.b16 %v3795, %v3787
    %v6732 = vpack.c.b16 %v3796, %v3788
    %v6733 = vpack.c.b16 %v3797, %v3789
    %v6734 = vpack.c.b16 %v3798, %v3790
    %v6735 = vpack.c.b16 %v3799, %v3791
    %v6736 = vpack.c.b16 %v3800, %v3792
    %v6737 = vpack.c.b16 %v3809, %v3801
    %v6738 = vpack.c.b16 %v3810, %v3802
    %v6739 = vpack.c.b16 %v3811, %v3803
    %v6740 = vpack.c.b16 %v3812, %v3804
    %v6741 = vpack.c.b16 %v3813, %v3805
    %v6742 = vpack.c.b16 %v3814, %v3806
    %v6743 = vpack.c.b16 %v3815, %v3807
    %v6744 = vpack.c.b16 %v3816, %v3808
    %v6745 = vpack.c.b16 %v3825, %v3817
    %v6746 = vpack.c.b16 %v3826, %v3818
    %v6747 = vpack.c.b16 %v3827, %v3819
    %v6748 = vpack.c.b16 %v3828, %v3820
    %v6749 = vpack.c.b16 %v3829, %v3821
    %v6750 = vpack.c.b16 %v3830, %v3822
    %v6751 = vpack.c.b16 %v3831, %v3823
    %v6752 = vpack.c.b16 %v3832, %v3824
    %v6753 = vpack.c.b16 %v3841, %v3833
    %v6754 = vpack.c.b16 %v3842, %v3834
    %v6755 = vpack.c.b16 %v3843, %v3835
    %v6756 = vpack.c.b16 %v3844, %v3836
    %v6757 = vpack.c.b16 %v3845, %v3837
    %v6758 = vpack.c.b16 %v3846, %v3838
    %v6759 = vpack.c.b16 %v3847, %v3839
    %v6760 = vpack.c.b16 %v3848, %v3840
    %v6761 = vpack.c.b16 %v3857, %v3849
    %v6762 = vpack.c.b16 %v3858, %v3850
    %v6763 = vpack.c.b16 %v3859, %v3851
    %v6764 = vpack.c.b16 %v3860, %v3852
    %v6765 = vpack.c.b16 %v3861, %v3853
    %v6766 = vpack.c.b16 %v3862, %v3854
    %v6767 = vpack.c.b16 %v3863, %v3855
    %v6768 = vpack.c.b16 %v3864, %v3856
    %v6769 = vpack.c.b16 %v3873, %v3865
    %v6770 = vpack.c.b16 %v3874, %v3866
    %v6771 = vpack.c.b16 %v3875, %v3867
    %v6772 = vpack.c.b16 %v3876, %v3868
    %v6773 = vpack.c.b16 %v3877, %v3869
    %v6774 = vpack.c.b16 %v3878, %v3870
    %v6775 = vpack.c.b16 %v3879, %v3871
    %v6776 = vpack.c.b16 %v3880, %v3872
    %v6777 = vpack.c.b16 %v3889, %v3881
    %v6778 = vpack.c.b16 %v3890, %v3882
    %v6779 = vpack.c.b16 %v3891, %v3883
    %v6780 = vpack.c.b16 %v3892, %v3884
    %v6781 = vpack.c.b16 %v3893, %v3885
    %v6782 = vpack.c.b16 %v3894, %v3886
    %v6783 = vpack.c.b16 %v3895, %v3887
    %v6784 = vpack.c.b16 %v3896, %v3888
    %v6785 = vpack.c.b16 %v3905, %v3897
    %v6786 = vpack.c.b16 %v3906, %v3898
    %v6787 = vpack.c.b16 %v3907, %v3899
    %v6788 = vpack.c.b16 %v3908, %v3900
    %v6789 = vpack.c.b16 %v3909, %v3901
    %v6790 = vpack.c.b16 %v3910, %v3902
    %v6791 = vpack.c.b16 %v3911, %v3903
    %v6792 = vpack.c.b16 %v3912, %v3904
    %v6793 = vpack.c.b16 %v3921, %v3913
    %v6794 = vpack.c.b16 %v3922, %v3914
    %v6795 = vpack.c.b16 %v3923, %v3915
    %v6796 = vpack.c.b16 %v3924, %v3916
    %v6797 = vpack.c.b16 %v3925, %v3917
    %v6798 = vpack.c.b16 %v3926, %v3918
    %v6799 = vpack.c.b16 %v3927, %v3919
    %v6800 = vpack.c.b16 %v3928, %v3920
    %v6801 = vpack.c.b16 %v3937, %v3929
    %v6802 = vpack.c.b16 %v3938, %v3930
    %v6803 = vpack.c.b16 %v3939, %v3931
    %v6804 = vpack.c.b16 %v3940, %v3932
    %v6805 = vpack.c.b16 %v3941, %v3933
    %v6806 = vpack.c.b16 %v3942, %v3934
    %v6807 = vpack.c.b16 %v3943, %v3935
    %v6808 = vpack.c.b16 %v3944, %v3936
    %v6809 = vpack.c.b16 %v3953, %v3945
    %v6810 = vpack.c.b16 %v3954, %v3946
    %v6811 = vpack.c.b16 %v3955, %v3947
    %v6812 = vpack.c.b16 %v3956, %v3948
    %v6813 = vpack.c.b16 %v3957, %v3949
    %v6814 = vpack.c.b16 %v3958, %v3950
    %v6815 = vpack.c.b16 %v3959, %v3951
    %v6816 = vpack.c.b16 %v3960, %v3952
    %v6817 = vpack.c.b16 %v3969, %v3961
    %v6818 = vpack.c.b16 %v3970, %v3962
    %v6819 = vpack.c.b16 %v3971, %v3963
    %v6820 = vpack.c.b16 %v3972, %v3964
    %v6821 = vpack.c.b16 %v3973, %v3965
    %v6822 = vpack.c.b16 %v3974, %v3966
    %v6823 = vpack.c.b16 %v3975, %v3967
    %v6824 = vpack.c.b16 %v3976, %v3968
    %v6825 = vpack.c.b16 %v3985, %v3977
    %v6826 = vpack.c.b16 %v3986, %v3978
    %v6827 = vpack.c.b16 %v3987, %v3979
    %v6828 = vpack.c.b16 %v3988, %v3980
    %v6829 = vpack.c.b16 %v3989, %v3981
    %v6830 = vpack.c.b16 %v3990, %v3982
    %v6831 = vpack.c.b16 %v3991, %v3983
    %v6832 = vpack.c.b16 %v3992, %v3984
    %v6833 = vpack.c.b16 %v4001, %v3993
    %v6834 = vpack.c.b16 %v4002, %v3994
    %v6835 = vpack.c.b16 %v4003, %v3995
    %v6836 = vpack.c.b16 %v4004, %v3996
    %v6837 = vpack.c.b16 %v4005, %v3997
    %v6838 = vpack.c.b16 %v4006, %v3998
    %v6839 = vpack.c.b16 %v4007, %v3999
    %v6840 = vpack.c.b16 %v4008, %v4000
    %v6841 = vpack.c.b16 %v4017, %v4009
    %v6842 = vpack.c.b16 %v4018, %v4010
    %v6843 = vpack.c.b16 %v4019, %v4011
    %v6844 = vpack.c.b16 %v4020, %v4012
    %v6845 = vpack.c.b16 %v4021, %v4013
    %v6846 = vpack.c.b16 %v4022, %v4014
    %v6847 = vpack.c.b16 %v4023, %v4015
    %v6848 = vpack.c.b16 %v4024, %v4016
    %v6849 = vpack.c.b16 %v4033, %v4025
    %v6850 = vpack.c.b16 %v4034, %v4026
    %v6851 = vpack.c.b16 %v4035, %v4027
    %v6852 = vpack.c.b16 %v4036, %v4028
    %v6853 = vpack.c.b16 %v4037, %v4029
    %v6854 = vpack.c.b16 %v4038, %v4030
    %v6855 = vpack.c.b16 %v4039, %v4031
    %v6856 = vpack.c.b16 %v4040, %v4032
    %v6857 = vpack.c.b16 %v4049, %v4041
    %v6858 = vpack.c.b16 %v4050, %v4042
    %v6859 = vpack.c.b16 %v4051, %v4043
    %v6860 = vpack.c.b16 %v4052, %v4044
    %v6861 = vpack.c.b16 %v4053, %v4045
    %v6862 = vpack.c.b16 %v4054, %v4046
    %v6863 = vpack.c.b16 %v4055, %v4047
    %v6864 = vpack.c.b16 %v4056, %v4048
    %v6865 = vpack.c.b16 %v4065, %v4057
    %v6866 = vpack.c.b16 %v4066, %v4058
    %v6867 = vpack.c.b16 %v4067, %v4059
    %v6868 = vpack.c.b16 %v4068, %v4060
    %v6869 = vpack.c.b16 %v4069, %v4061
    %v6870 = vpack.c.b16 %v4070, %v4062
    %v6871 = vpack.c.b16 %v4071, %v4063
    %v6872 = vpack.c.b16 %v4072, %v4064
    %v6873 = vpack.c.b16 %v4081, %v4073
    %v6874 = vpack.c.b16 %v4082, %v4074
    %v6875 = vpack.c.b16 %v4083, %v4075
    %v6876 = vpack.c.b16 %v4084, %v4076
    %v6877 = vpack.c.b16 %v4085, %v4077
    %v6878 = vpack.c.b16 %v4086, %v4078
    %v6879 = vpack.c.b16 %v4087, %v4079
    %v6880 = vpack.c.b16 %v4088, %v4080
    %v6881 = vpack.c.b16 %v4097, %v4089
    %v6882 = vpack.c.b16 %v4098, %v4090
    %v6883 = vpack.c.b16 %v4099, %v4091
    %v6884 = vpack.c.b16 %v4100, %v4092
    %v6885 = vpack.c.b16 %v4101, %v4093
    %v6886 = vpack.c.b16 %v4102, %v4094
    %v6887 = vpack.c.b16 %v4103, %v4095
    %v6888 = vpack.c.b16 %v4104, %v4096
    %v6889 = vpack.c.b16 %v4113, %v4105
    %v6890 = vpack.c.b16 %v4114, %v4106
    %v6891 = vpack.c.b16 %v4115, %v4107
    %v6892 = vpack.c.b16 %v4116, %v4108
    %v6893 = vpack.c.b16 %v4117, %v4109
    %v6894 = vpack.c.b16 %v4118, %v4110
    %v6895 = vpack.c.b16 %v4119, %v4111
    %v6896 = vpack.c.b16 %v4120, %v4112
    %v6897 = vpack.c.b16 %v4129, %v4121
    %v6898 = vpack.c.b16 %v4130, %v4122
    %v6899 = vpack.c.b16 %v4131, %v4123
    %v6900 = vpack.c.b16 %v4132, %v4124
    %v6901 = vpack.c.b16 %v4133, %v4125
    %v6902 = vpack.c.b16 %v4134, %v4126
    %v6903 = vpack.c.b16 %v4135, %v4127
    %v6904 = vpack.c.b16 %v4136, %v4128
    %v6905 = vpack.c.b16 %v4145, %v4137
    %v6906 = vpack.c.b16 %v4146, %v4138
    %v6907 = vpack.c.b16 %v4147, %v4139
    %v6908 = vpack.c.b16 %v4148, %v4140
    %v6909 = vpack.c.b16 %v4149, %v4141
    %v6910 = vpack.c.b16 %v4150, %v4142
    %v6911 = vpack.c.b16 %v4151, %v4143
    %v6912 = vpack.c.b16 %v4152, %v4144
    %v6913 = vpack.c.b16 %v4161, %v4153
    %v6914 = vpack.c.b16 %v4162, %v4154
    %v6915 = vpack.c.b16 %v4163, %v4155
    %v6916 = vpack.c.b16 %v4164, %v4156
    %v6917 = vpack.c.b16 %v4165, %v4157
    %v6918 = vpack.c.b16 %v4166, %v4158
    %v6919 = vpack.c.b16 %v4167, %v4159
    %v6920 = vpack.c.b16 %v4168, %v4160
    %v6921 = vpack.c.b16 %v4177, %v4169
    %v6922 = vpack.c.b16 %v4178, %v4170
    %v6923 = vpack.c.b16 %v4179, %v4171
    %v6924 = vpack.c.b16 %v4180, %v4172
    %v6925 = vpack.c.b16 %v4181, %v4173
    %v6926 = vpack.c.b16 %v4182, %v4174
    %v6927 = vpack.c.b16 %v4183, %v4175
    %v6928 = vpack.c.b16 %v4184, %v4176
    %v6929 = vpack.c.b16 %v4193, %v4185
    %v6930 = vpack.c.b16 %v4194, %v4186
    %v6931 = vpack.c.b16 %v4195, %v4187
    %v6932 = vpack.c.b16 %v4196, %v4188
    %v6933 = vpack.c.b16 %v4197, %v4189
    %v6934 = vpack.c.b16 %v4198, %v4190
    %v6935 = vpack.c.b16 %v4199, %v4191
    %v6936 = vpack.c.b16 %v4200, %v4192
    %v6937 = vpack.c.b16 %v4209, %v4201
    %v6938 = vpack.c.b16 %v4210, %v4202
    %v6939 = vpack.c.b16 %v4211, %v4203
    %v6940 = vpack.c.b16 %v4212, %v4204
    %v6941 = vpack.c.b16 %v4213, %v4205
    %v6942 = vpack.c.b16 %v4214, %v4206
    %v6943 = vpack.c.b16 %v4215, %v4207
    %v6944 = vpack.c.b16 %v4216, %v4208
    %v6945 = vpack.c.b16 %v4225, %v4217
    %v6946 = vpack.c.b16 %v4226, %v4218
    %v6947 = vpack.c.b16 %v4227, %v4219
    %v6948 = vpack.c.b16 %v4228, %v4220
    %v6949 = vpack.c.b16 %v4229, %v4221
    %v6950 = vpack.c.b16 %v4230, %v4222
    %v6951 = vpack.c.b16 %v4231, %v4223
    %v6952 = vpack.c.b16 %v4232, %v4224
    %v6953 = vpack.c.b16 %v4241, %v4233
    %v6954 = vpack.c.b16 %v4242, %v4234
    %v6955 = vpack.c.b16 %v4243, %v4235
    %v6956 = vpack.c.b16 %v4244, %v4236
    %v6957 = vpack.c.b16 %v4245, %v4237
    %v6958 = vpack.c.b16 %v4246, %v4238
    %v6959 = vpack.c.b16 %v4247, %v4239
    %v6960 = vpack.c.b16 %v4248, %v4240
    %v6961 = vpack.c.b16 %v4257, %v4249
    %v6962 = vpack.c.b16 %v4258, %v4250
    %v6963 = vpack.c.b16 %v4259, %v4251
    %v6964 = vpack.c.b16 %v4260, %v4252
    %v6965 = vpack.c.b16 %v4261, %v4253
    %v6966 = vpack.c.b16 %v4262, %v4254
    %v6967 = vpack.c.b16 %v4263, %v4255
    %v6968 = vpack.c.b16 %v4264, %v4256
    %v6969 = vpack.c.b16 %v4273, %v4265
    %v6970 = vpack.c.b16 %v4274, %v4266
    %v6971 = vpack.c.b16 %v4275, %v4267
    %v6972 = vpack.c.b16 %v4276, %v4268
    %v6973 = vpack.c.b16 %v4277, %v4269
    %v6974 = vpack.c.b16 %v4278, %v4270
    %v6975 = vpack.c.b16 %v4279, %v4271
    %v6976 = vpack.c.b16 %v4280, %v4272
    %v6977 = vpack.c.b16 %v4289, %v4281
    %v6978 = vpack.c.b16 %v4290, %v4282
    %v6979 = vpack.c.b16 %v4291, %v4283
    %v6980 = vpack.c.b16 %v4292, %v4284
    %v6981 = vpack.c.b16 %v4293, %v4285
    %v6982 = vpack.c.b16 %v4294, %v4286
    %v6983 = vpack.c.b16 %v4295, %v4287
    %v6984 = vpack.c.b16 %v4296, %v4288
    %v6985 = vpack.c.b16 %v4305, %v4297
    %v6986 = vpack.c.b16 %v4306, %v4298
    %v6987 = vpack.c.b16 %v4307, %v4299
    %v6988 = vpack.c.b16 %v4308, %v4300
    %v6989 = vpack.c.b16 %v4309, %v4301
    %v6990 = vpack.c.b16 %v4310, %v4302
    %v6991 = vpack.c.b16 %v4311, %v4303
    %v6992 = vpack.c.b16 %v4312, %v4304
    %v6993 = vpack.c.b16 %v4321, %v4313
    %v6994 = vpack.c.b16 %v4322, %v4314
    %v6995 = vpack.c.b16 %v4323, %v4315
    %v6996 = vpack.c.b16 %v4324, %v4316
    %v6997 = vpack.c.b16 %v4325, %v4317
    %v6998 = vpack.c.b16 %v4326, %v4318
    %v6999 = vpack.c.b16 %v4327, %v4319
    %v7000 = vpack.c.b16 %v4328, %v4320
    %v7001 = vpack.c.b16 %v4337, %v4329
    %v7002 = vpack.c.b16 %v4338, %v4330
    %v7003 = vpack.c.b16 %v4339, %v4331
    %v7004 = vpack.c.b16 %v4340, %v4332
    %v7005 = vpack.c.b16 %v4341, %v4333
    %v7006 = vpack.c.b16 %v4342, %v4334
    %v7007 = vpack.c.b16 %v4343, %v4335
    %v7008 = vpack.c.b16 %v4344, %v4336
    %v7009 = vpack.c.b16 %v4353, %v4345
    %v7010 = vpack.c.b16 %v4354, %v4346
    %v7011 = vpack.c.b16 %v4355, %v4347
    %v7012 = vpack.c.b16 %v4356, %v4348
    %v7013 = vpack.c.b16 %v4357, %v4349
    %v7014 = vpack.c.b16 %v4358, %v4350
    %v7015 = vpack.c.b16 %v4359, %v4351
    %v7016 = vpack.c.b16 %v4360, %v4352
    %v7017 = vpack.c.b16 %v4369, %v4361
    %v7018 = vpack.c.b16 %v4370, %v4362
    %v7019 = vpack.c.b16 %v4371, %v4363
    %v7020 = vpack.c.b16 %v4372, %v4364
    %v7021 = vpack.c.b16 %v4373, %v4365
    %v7022 = vpack.c.b16 %v4374, %v4366
    %v7023 = vpack.c.b16 %v4375, %v4367
    %v7024 = vpack.c.b16 %v4376, %v4368
    %v7025 = vpack.c.b16 %v4385, %v4377
    %v7026 = vpack.c.b16 %v4386, %v4378
    %v7027 = vpack.c.b16 %v4387, %v4379
    %v7028 = vpack.c.b16 %v4388, %v4380
    %v7029 = vpack.c.b16 %v4389, %v4381
    %v7030 = vpack.c.b16 %v4390, %v4382
    %v7031 = vpack.c.b16 %v4391, %v4383
    %v7032 = vpack.c.b16 %v4392, %v4384
    %v7033 = vpack.c.b16 %v4401, %v4393
    %v7034 = vpack.c.b16 %v4402, %v4394
    %v7035 = vpack.c.b16 %v4403, %v4395
    %v7036 = vpack.c.b16 %v4404, %v4396
    %v7037 = vpack.c.b16 %v4405, %v4397
    %v7038 = vpack.c.b16 %v4406, %v4398
    %v7039 = vpack.c.b16 %v4407, %v4399
    %v7040 = vpack.c.b16 %v4408, %v4400
    %v7041 = vpack.c.b16 %v4417, %v4409
    %v7042 = vpack.c.b16 %v4418, %v4410
    %v7043 = vpack.c.b16 %v4419, %v4411
    %v7044 = vpack.c.b16 %v4420, %v4412
    %v7045 = vpack.c.b16 %v4421, %v4413
    %v7046 = vpack.c.b16 %v4422, %v4414
    %v7047 = vpack.c.b16 %v4423, %v4415
    %v7048 = vpack.c.b16 %v4424, %v4416
    %v7049 = vpack.c.b16 %v4433, %v4425
    %v7050 = vpack.c.b16 %v4434, %v4426
    %v7051 = vpack.c.b16 %v4435, %v4427
    %v7052 = vpack.c.b16 %v4436, %v4428
    %v7053 = vpack.c.b16 %v4437, %v4429
    %v7054 = vpack.c.b16 %v4438, %v4430
    %v7055 = vpack.c.b16 %v4439, %v4431
    %v7056 = vpack.c.b16 %v4440, %v4432
    %v7057 = vpack.c.b16 %v4449, %v4441
    %v7058 = vpack.c.b16 %v4450, %v4442
    %v7059 = vpack.c.b16 %v4451, %v4443
    %v7060 = vpack.c.b16 %v4452, %v4444
    %v7061 = vpack.c.b16 %v4453, %v4445
    %v7062 = vpack.c.b16 %v4454, %v4446
    %v7063 = vpack.c.b16 %v4455, %v4447
    %v7064 = vpack.c.b16 %v4456, %v4448
    %v7065 = vpack.c.b16 %v4465, %v4457
    %v7066 = vpack.c.b16 %v4466, %v4458
    %v7067 = vpack.c.b16 %v4467, %v4459
    %v7068 = vpack.c.b16 %v4468, %v4460
    %v7069 = vpack.c.b16 %v4469, %v4461
    %v7070 = vpack.c.b16 %v4470, %v4462
    %v7071 = vpack.c.b16 %v4471, %v4463
    %v7072 = vpack.c.b16 %v4472, %v4464
    %v7073 = vpack.c.b16 %v4481, %v4473
    %v7074 = vpack.c.b16 %v4482, %v4474
    %v7075 = vpack.c.b16 %v4483, %v4475
    %v7076 = vpack.c.b16 %v4484, %v4476
    %v7077 = vpack.c.b16 %v4485, %v4477
    %v7078 = vpack.c.b16 %v4486, %v4478
    %v7079 = vpack.c.b16 %v4487, %v4479
    %v7080 = vpack.c.b16 %v4488, %v4480
    %v7081 = vpack.c.b16 %v4497, %v4489
    %v7082 = vpack.c.b16 %v4498, %v4490
    %v7083 = vpack.c.b16 %v4499, %v4491
    %v7084 = vpack.c.b16 %v4500, %v4492
    %v7085 = vpack.c.b16 %v4501, %v4493
    %v7086 = vpack.c.b16 %v4502, %v4494
    %v7087 = vpack.c.b16 %v4503, %v4495
    %v7088 = vpack.c.b16 %v4504, %v4496
    %v7089 = vpack.c.b16 %v4513, %v4505
    %v7090 = vpack.c.b16 %v4514, %v4506
    %v7091 = vpack.c.b16 %v4515, %v4507
    %v7092 = vpack.c.b16 %v4516, %v4508
    %v7093 = vpack.c.b16 %v4517, %v4509
    %v7094 = vpack.c.b16 %v4518, %v4510
    %v7095 = vpack.c.b16 %v4519, %v4511
    %v7096 = vpack.c.b16 %v4520, %v4512
    %v7097 = vpack.c.b16 %v4529, %v4521
    %v7098 = vpack.c.b16 %v4530, %v4522
    %v7099 = vpack.c.b16 %v4531, %v4523
    %v7100 = vpack.c.b16 %v4532, %v4524
    %v7101 = vpack.c.b16 %v4533, %v4525
    %v7102 = vpack.c.b16 %v4534, %v4526
    %v7103 = vpack.c.b16 %v4535, %v4527
    %v7104 = vpack.c.b16 %v4536, %v4528
    %v7105 = vpack.c.b16 %v4545, %v4537
    %v7106 = vpack.c.b16 %v4546, %v4538
    %v7107 = vpack.c.b16 %v4547, %v4539
    %v7108 = vpack.c.b16 %v4548, %v4540
    %v7109 = vpack.c.b16 %v4549, %v4541
    %v7110 = vpack.c.b16 %v4550, %v4542
    %v7111 = vpack.c.b16 %v4551, %v4543
    %v7112 = vpack.c.b16 %v4552, %v4544
    %v7113 = vpack.c.b16 %v4561, %v4553
    %v7114 = vpack.c.b16 %v4562, %v4554
    %v7115 = vpack.c.b16 %v4563, %v4555
    %v7116 = vpack.c.b16 %v4564, %v4556
    %v7117 = vpack.c.b16 %v4565, %v4557
    %v7118 = vpack.c.b16 %v4566, %v4558
    %v7119 = vpack.c.b16 %v4567, %v4559
    %v7120 = vpack.c.b16 %v4568, %v4560
    %v7121 = vpack.c.b16 %v4577, %v4569
    %v7122 = vpack.c.b16 %v4578, %v4570
    %v7123 = vpack.c.b16 %v4579, %v4571
    %v7124 = vpack.c.b16 %v4580, %v4572
    %v7125 = vpack.c.b16 %v4581, %v4573
    %v7126 = vpack.c.b16 %v4582, %v4574
    %v7127 = vpack.c.b16 %v4583, %v4575
    %v7128 = vpack.c.b16 %v4584, %v4576
    %v7129 = vpack.c.b16 %v4593, %v4585
    %v7130 = vpack.c.b16 %v4594, %v4586
    %v7131 = vpack.c.b16 %v4595, %v4587
    %v7132 = vpack.c.b16 %v4596, %v4588
    %v7133 = vpack.c.b16 %v4597, %v4589
    %v7134 = vpack.c.b16 %v4598, %v4590
    %v7135 = vpack.c.b16 %v4599, %v4591
    %v7136 = vpack.c.b16 %v4600, %v4592
    %v7137 = vpack.c.b16 %v4609, %v4601
    %v7138 = vpack.c.b16 %v4610, %v4602
    %v7139 = vpack.c.b16 %v4611, %v4603
    %v7140 = vpack.c.b16 %v4612, %v4604
    %v7141 = vpack.c.b16 %v4613, %v4605
    %v7142 = vpack.c.b16 %v4614, %v4606
    %v7143 = vpack.c.b16 %v4615, %v4607
    %v7144 = vpack.c.b16 %v4616, %v4608
    %v7145 = vpack.c.b16 %v4625, %v4617
    %v7146 = vpack.c.b16 %v4626, %v4618
    %v7147 = vpack.c.b16 %v4627, %v4619
    %v7148 = vpack.c.b16 %v4628, %v4620
    %v7149 = vpack.c.b16 %v4629, %v4621
    %v7150 = vpack.c.b16 %v4630, %v4622
    %v7151 = vpack.c.b16 %v4631, %v4623
    %v7152 = vpack.c.b16 %v4632, %v4624
    %v7153 = vpack.c.b16 %v4641, %v4633
    %v7154 = vpack.c.b16 %v4642, %v4634
    %v7155 = vpack.c.b16 %v4643, %v4635
    %v7156 = vpack.c.b16 %v4644, %v4636
    %v7157 = vpack.c.b16 %v4645, %v4637
    %v7158 = vpack.c.b16 %v4646, %v4638
    %v7159 = vpack.c.b16 %v4647, %v4639
    %v7160 = vpack.c.b16 %v4648, %v4640
    %v7161 = vpack.c.b16 %v4657, %v4649
    %v7162 = vpack.c.b16 %v4658, %v4650
    %v7163 = vpack.c.b16 %v4659, %v4651
    %v7164 = vpack.c.b16 %v4660, %v4652
    %v7165 = vpack.c.b16 %v4661, %v4653
    %v7166 = vpack.c.b16 %v4662, %v4654
    %v7167 = vpack.c.b16 %v4663, %v4655
    %v7168 = vpack.c.b16 %v4664, %v4656
    %v7169 = vpack.c.b16 %v4673, %v4665
    %v7170 = vpack.c.b16 %v4674, %v4666
    %v7171 = vpack.c.b16 %v4675, %v4667
    %v7172 = vpack.c.b16 %v4676, %v4668
    %v7173 = vpack.c.b16 %v4677, %v4669
    %v7174 = vpack.c.b16 %v4678, %v4670
    %v7175 = vpack.c.b16 %v4679, %v4671
    %v7176 = vpack.c.b16 %v4680, %v4672
    %v7177 = vpack.c.b16 %v4689, %v4681
    %v7178 = vpack.c.b16 %v4690, %v4682
    %v7179 = vpack.c.b16 %v4691, %v4683
    %v7180 = vpack.c.b16 %v4692, %v4684
    %v7181 = vpack.c.b16 %v4693, %v4685
    %v7182 = vpack.c.b16 %v4694, %v4686
    %v7183 = vpack.c.b16 %v4695, %v4687
    %v7184 = vpack.c.b16 %v4696, %v4688
    %v7185 = vpack.c.b16 %v4705, %v4697
    %v7186 = vpack.c.b16 %v4706, %v4698
    %v7187 = vpack.c.b16 %v4707, %v4699
    %v7188 = vpack.c.b16 %v4708, %v4700
    %v7189 = vpack.c.b16 %v4709, %v4701
    %v7190 = vpack.c.b16 %v4710, %v4702
    %v7191 = vpack.c.b16 %v4711, %v4703
    %v7192 = vpack.c.b16 %v4712, %v4704
    %v7193 = vpack.c.b16 %v4721, %v4713
    %v7194 = vpack.c.b16 %v4722, %v4714
    %v7195 = vpack.c.b16 %v4723, %v4715
    %v7196 = vpack.c.b16 %v4724, %v4716
    %v7197 = vpack.c.b16 %v4725, %v4717
    %v7198 = vpack.c.b16 %v4726, %v4718
    %v7199 = vpack.c.b16 %v4727, %v4719
    %v7200 = vpack.c.b16 %v4728, %v4720
    %v7201 = vpack.c.b16 %v4737, %v4729
    %v7202 = vpack.c.b16 %v4738, %v4730
    %v7203 = vpack.c.b16 %v4739, %v4731
    %v7204 = vpack.c.b16 %v4740, %v4732
    %v7205 = vpack.c.b16 %v4741, %v4733
    %v7206 = vpack.c.b16 %v4742, %v4734
    %v7207 = vpack.c.b16 %v4743, %v4735
    %v7208 = vpack.c.b16 %v4744, %v4736
    %v7209 = vpack.c.b16 %v4753, %v4745
    %v7210 = vpack.c.b16 %v4754, %v4746
    %v7211 = vpack.c.b16 %v4755, %v4747
    %v7212 = vpack.c.b16 %v4756, %v4748
    %v7213 = vpack.c.b16 %v4757, %v4749
    %v7214 = vpack.c.b16 %v4758, %v4750
    %v7215 = vpack.c.b16 %v4759, %v4751
    %v7216 = vpack.c.b16 %v4760, %v4752
    %v7217 = vpack.c.b16 %v4769, %v4761
    %v7218 = vpack.c.b16 %v4770, %v4762
    %v7219 = vpack.c.b16 %v4771, %v4763
    %v7220 = vpack.c.b16 %v4772, %v4764
    %v7221 = vpack.c.b16 %v4773, %v4765
    %v7222 = vpack.c.b16 %v4774, %v4766
    %v7223 = vpack.c.b16 %v4775, %v4767
    %v7224 = vpack.c.b16 %v4776, %v4768
    %v7225 = vpack.c.b16 %v4785, %v4777
    %v7226 = vpack.c.b16 %v4786, %v4778
    %v7227 = vpack.c.b16 %v4787, %v4779
    %v7228 = vpack.c.b16 %v4788, %v4780
    %v7229 = vpack.c.b16 %v4789, %v4781
    %v7230 = vpack.c.b16 %v4790, %v4782
    %v7231 = vpack.c.b16 %v4791, %v4783
    %v7232 = vpack.c.b16 %v4792, %v4784
    %v7233 = vpack.c.b16 %v4801, %v4793
    %v7234 = vpack.c.b16 %v4802, %v4794
    %v7235 = vpack.c.b16 %v4803, %v4795
    %v7236 = vpack.c.b16 %v4804, %v4796
    %v7237 = vpack.c.b16 %v4805, %v4797
    %v7238 = vpack.c.b16 %v4806, %v4798
    %v7239 = vpack.c.b16 %v4807, %v4799
    %v7240 = vpack.c.b16 %v4808, %v4800
    %v7241 = vpack.c.b16 %v4817, %v4809
    %v7242 = vpack.c.b16 %v4818, %v4810
    %v7243 = vpack.c.b16 %v4819, %v4811
    %v7244 = vpack.c.b16 %v4820, %v4812
    %v7245 = vpack.c.b16 %v4821, %v4813
    %v7246 = vpack.c.b16 %v4822, %v4814
    %v7247 = vpack.c.b16 %v4823, %v4815
    %v7248 = vpack.c.b16 %v4824, %v4816
    %v7249 = vpack.c.b16 %v4833, %v4825
    %v7250 = vpack.c.b16 %v4834, %v4826
    %v7251 = vpack.c.b16 %v4835, %v4827
    %v7252 = vpack.c.b16 %v4836, %v4828
    %v7253 = vpack.c.b16 %v4837, %v4829
    %v7254 = vpack.c.b16 %v4838, %v4830
    %v7255 = vpack.c.b16 %v4839, %v4831
    %v7256 = vpack.c.b16 %v4840, %v4832
    %v7257 = vpack.c.b16 %v4849, %v4841
    %v7258 = vpack.c.b16 %v4850, %v4842
    %v7259 = vpack.c.b16 %v4851, %v4843
    %v7260 = vpack.c.b16 %v4852, %v4844
    %v7261 = vpack.c.b16 %v4853, %v4845
    %v7262 = vpack.c.b16 %v4854, %v4846
    %v7263 = vpack.c.b16 %v4855, %v4847
    %v7264 = vpack.c.b16 %v4856, %v4848
    %v7265 = vpack.c.b16 %v4865, %v4857
    %v7266 = vpack.c.b16 %v4866, %v4858
    %v7267 = vpack.c.b16 %v4867, %v4859
    %v7268 = vpack.c.b16 %v4868, %v4860
    %v7269 = vpack.c.b16 %v4869, %v4861
    %v7270 = vpack.c.b16 %v4870, %v4862
    %v7271 = vpack.c.b16 %v4871, %v4863
    %v7272 = vpack.c.b16 %v4872, %v4864
    %v7273 = vpack.c.b16 %v4881, %v4873
    %v7274 = vpack.c.b16 %v4882, %v4874
    %v7275 = vpack.c.b16 %v4883, %v4875
    %v7276 = vpack.c.b16 %v4884, %v4876
    %v7277 = vpack.c.b16 %v4885, %v4877
    %v7278 = vpack.c.b16 %v4886, %v4878
    %v7279 = vpack.c.b16 %v4887, %v4879
    %v7280 = vpack.c.b16 %v4888, %v4880
    %v7281 = vpack.c.b16 %v4897, %v4889
    %v7282 = vpack.c.b16 %v4898, %v4890
    %v7283 = vpack.c.b16 %v4899, %v4891
    %v7284 = vpack.c.b16 %v4900, %v4892
    %v7285 = vpack.c.b16 %v4901, %v4893
    %v7286 = vpack.c.b16 %v4902, %v4894
    %v7287 = vpack.c.b16 %v4903, %v4895
    %v7288 = vpack.c.b16 %v4904, %v4896
    %v7289 = vpack.c.b16 %v4913, %v4905
    %v7290 = vpack.c.b16 %v4914, %v4906
    %v7291 = vpack.c.b16 %v4915, %v4907
    %v7292 = vpack.c.b16 %v4916, %v4908
    %v7293 = vpack.c.b16 %v4917, %v4909
    %v7294 = vpack.c.b16 %v4918, %v4910
    %v7295 = vpack.c.b16 %v4919, %v4911
    %v7296 = vpack.c.b16 %v4920, %v4912
    %v7297 = vpack.c.b16 %v4929, %v4921
    %v7298 = vpack.c.b16 %v4930, %v4922
    %v7299 = vpack.c.b16 %v4931, %v4923
    %v7300 = vpack.c.b16 %v4932, %v4924
    %v7301 = vpack.c.b16 %v4933, %v4925
    %v7302 = vpack.c.b16 %v4934, %v4926
    %v7303 = vpack.c.b16 %v4935, %v4927
    %v7304 = vpack.c.b16 %v4936, %v4928
    %v7305 = vpack.c.b16 %v4945, %v4937
    %v7306 = vpack.c.b16 %v4946, %v4938
    %v7307 = vpack.c.b16 %v4947, %v4939
    %v7308 = vpack.c.b16 %v4948, %v4940
    %v7309 = vpack.c.b16 %v4949, %v4941
    %v7310 = vpack.c.b16 %v4950, %v4942
    %v7311 = vpack.c.b16 %v4951, %v4943
    %v7312 = vpack.c.b16 %v4952, %v4944
    %v7313 = vpack.c.b16 %v4961, %v4953
    %v7314 = vpack.c.b16 %v4962, %v4954
    %v7315 = vpack.c.b16 %v4963, %v4955
    %v7316 = vpack.c.b16 %v4964, %v4956
    %v7317 = vpack.c.b16 %v4965, %v4957
    %v7318 = vpack.c.b16 %v4966, %v4958
    %v7319 = vpack.c.b16 %v4967, %v4959
    %v7320 = vpack.c.b16 %v4968, %v4960
    %v7321 = vpack.c.b16 %v4977, %v4969
    %v7322 = vpack.c.b16 %v4978, %v4970
    %v7323 = vpack.c.b16 %v4979, %v4971
    %v7324 = vpack.c.b16 %v4980, %v4972
    %v7325 = vpack.c.b16 %v4981, %v4973
    %v7326 = vpack.c.b16 %v4982, %v4974
    %v7327 = vpack.c.b16 %v4983, %v4975
    %v7328 = vpack.c.b16 %v4984, %v4976
    %v7329 = vpack.c.b16 %v4993, %v4985
    %v7330 = vpack.c.b16 %v4994, %v4986
    %v7331 = vpack.c.b16 %v4995, %v4987
    %v7332 = vpack.c.b16 %v4996, %v4988
    %v7333 = vpack.c.b16 %v4997, %v4989
    %v7334 = vpack.c.b16 %v4998, %v4990
    %v7335 = vpack.c.b16 %v4999, %v4991
    %v7336 = vpack.c.b16 %v5000, %v4992
    %v7337 = vpack.c.b16 %v5009, %v5001
    %v7338 = vpack.c.b16 %v5010, %v5002
    %v7339 = vpack.c.b16 %v5011, %v5003
    %v7340 = vpack.c.b16 %v5012, %v5004
    %v7341 = vpack.c.b16 %v5013, %v5005
    %v7342 = vpack.c.b16 %v5014, %v5006
    %v7343 = vpack.c.b16 %v5015, %v5007
    %v7344 = vpack.c.b16 %v5016, %v5008
    %v7345 = vpack.c.b16 %v5025, %v5017
    %v7346 = vpack.c.b16 %v5026, %v5018
    %v7347 = vpack.c.b16 %v5027, %v5019
    %v7348 = vpack.c.b16 %v5028, %v5020
    %v7349 = vpack.c.b16 %v5029, %v5021
    %v7350 = vpack.c.b16 %v5030, %v5022
    %v7351 = vpack.c.b16 %v5031, %v5023
    %v7352 = vpack.c.b16 %v5032, %v5024
    %v7353 = vpack.c.b16 %v5041, %v5033
    %v7354 = vpack.c.b16 %v5042, %v5034
    %v7355 = vpack.c.b16 %v5043, %v5035
    %v7356 = vpack.c.b16 %v5044, %v5036
    %v7357 = vpack.c.b16 %v5045, %v5037
    %v7358 = vpack.c.b16 %v5046, %v5038
    %v7359 = vpack.c.b16 %v5047, %v5039
    %v7360 = vpack.c.b16 %v5048, %v5040
    %v7361 = vpack.c.b16 %v5057, %v5049
    %v7362 = vpack.c.b16 %v5058, %v5050
    %v7363 = vpack.c.b16 %v5059, %v5051
    %v7364 = vpack.c.b16 %v5060, %v5052
    %v7365 = vpack.c.b16 %v5061, %v5053
    %v7366 = vpack.c.b16 %v5062, %v5054
    %v7367 = vpack.c.b16 %v5063, %v5055
    %v7368 = vpack.c.b16 %v5064, %v5056
    %v7369 = vpack.c.b16 %v5073, %v5065
    %v7370 = vpack.c.b16 %v5074, %v5066
    %v7371 = vpack.c.b16 %v5075, %v5067
    %v7372 = vpack.c.b16 %v5076, %v5068
    %v7373 = vpack.c.b16 %v5077, %v5069
    %v7374 = vpack.c.b16 %v5078, %v5070
    %v7375 = vpack.c.b16 %v5079, %v5071
    %v7376 = vpack.c.b16 %v5080, %v5072
    %v7377 = vpack.c.b16 %v5089, %v5081
    %v7378 = vpack.c.b16 %v5090, %v5082
    %v7379 = vpack.c.b16 %v5091, %v5083
    %v7380 = vpack.c.b16 %v5092, %v5084
    %v7381 = vpack.c.b16 %v5093, %v5085
    %v7382 = vpack.c.b16 %v5094, %v5086
    %v7383 = vpack.c.b16 %v5095, %v5087
    %v7384 = vpack.c.b16 %v5096, %v5088
    %v7385 = vpack.c.b16 %v5105, %v5097
    %v7386 = vpack.c.b16 %v5106, %v5098
    %v7387 = vpack.c.b16 %v5107, %v5099
    %v7388 = vpack.c.b16 %v5108, %v5100
    %v7389 = vpack.c.b16 %v5109, %v5101
    %v7390 = vpack.c.b16 %v5110, %v5102
    %v7391 = vpack.c.b16 %v5111, %v5103
    %v7392 = vpack.c.b16 %v5112, %v5104
    %v7393 = vpack.c.b16 %v5121, %v5113
    %v7394 = vpack.c.b16 %v5122, %v5114
    %v7395 = vpack.c.b16 %v5123, %v5115
    %v7396 = vpack.c.b16 %v5124, %v5116
    %v7397 = vpack.c.b16 %v5125, %v5117
    %v7398 = vpack.c.b16 %v5126, %v5118
    %v7399 = vpack.c.b16 %v5127, %v5119
    %v7400 = vpack.c.b16 %v5128, %v5120
    %v7401 = vpack.c.b16 %v5137, %v5129
    %v7402 = vpack.c.b16 %v5138, %v5130
    %v7403 = vpack.c.b16 %v5139, %v5131
    %v7404 = vpack.c.b16 %v5140, %v5132
    %v7405 = vpack.c.b16 %v5141, %v5133
    %v7406 = vpack.c.b16 %v5142, %v5134
    %v7407 = vpack.c.b16 %v5143, %v5135
    %v7408 = vpack.c.b16 %v5144, %v5136
    %v7409 = vpack.c.b16 %v5153, %v5145
    %v7410 = vpack.c.b16 %v5154, %v5146
    %v7411 = vpack.c.b16 %v5155, %v5147
    %v7412 = vpack.c.b16 %v5156, %v5148
    %v7413 = vpack.c.b16 %v5157, %v5149
    %v7414 = vpack.c.b16 %v5158, %v5150
    %v7415 = vpack.c.b16 %v5159, %v5151
    %v7416 = vpack.c.b16 %v5160, %v5152
    %v7417 = vpack.c.b16 %v5169, %v5161
    %v7418 = vpack.c.b16 %v5170, %v5162
    %v7419 = vpack.c.b16 %v5171, %v5163
    %v7420 = vpack.c.b16 %v5172, %v5164
    %v7421 = vpack.c.b16 %v5173, %v5165
    %v7422 = vpack.c.b16 %v5174, %v5166
    %v7423 = vpack.c.b16 %v5175, %v5167
    %v7424 = vpack.c.b16 %v5176, %v5168
    %v7425 = vpack.c.b16 %v5185, %v5177
    %v7426 = vpack.c.b16 %v5186, %v5178
    %v7427 = vpack.c.b16 %v5187, %v5179
    %v7428 = vpack.c.b16 %v5188, %v5180
    %v7429 = vpack.c.b16 %v5189, %v5181
    %v7430 = vpack.c.b16 %v5190, %v5182
    %v7431 = vpack.c.b16 %v5191, %v5183
    %v7432 = vpack.c.b16 %v5192, %v5184
    %v7433 = vpack.c.b16 %v5201, %v5193
    %v7434 = vpack.c.b16 %v5202, %v5194
    %v7435 = vpack.c.b16 %v5203, %v5195
    %v7436 = vpack.c.b16 %v5204, %v5196
    %v7437 = vpack.c.b16 %v5205, %v5197
    %v7438 = vpack.c.b16 %v5206, %v5198
    %v7439 = vpack.c.b16 %v5207, %v5199
    %v7440 = vpack.c.b16 %v5208, %v5200
    %v7441 = vpack.c.b16 %v5217, %v5209
    %v7442 = vpack.c.b16 %v5218, %v5210
    %v7443 = vpack.c.b16 %v5219, %v5211
    %v7444 = vpack.c.b16 %v5220, %v5212
    %v7445 = vpack.c.b16 %v5221, %v5213
    %v7446 = vpack.c.b16 %v5222, %v5214
    %v7447 = vpack.c.b16 %v5223, %v5215
    %v7448 = vpack.c.b16 %v5224, %v5216
    %v7449 = vpack.c.b16 %v5233, %v5225
    %v7450 = vpack.c.b16 %v5234, %v5226
    %v7451 = vpack.c.b16 %v5235, %v5227
    %v7452 = vpack.c.b16 %v5236, %v5228
    %v7453 = vpack.c.b16 %v5237, %v5229
    %v7454 = vpack.c.b16 %v5238, %v5230
    %v7455 = vpack.c.b16 %v5239, %v5231
    %v7456 = vpack.c.b16 %v5240, %v5232
    %v7457 = vpack.c.b16 %v5249, %v5241
    %v7458 = vpack.c.b16 %v5250, %v5242
    %v7459 = vpack.c.b16 %v5251, %v5243
    %v7460 = vpack.c.b16 %v5252, %v5244
    %v7461 = vpack.c.b16 %v5253, %v5245
    %v7462 = vpack.c.b16 %v5254, %v5246
    %v7463 = vpack.c.b16 %v5255, %v5247
    %v7464 = vpack.c.b16 %v5256, %v5248
    %v7465 = vpack.c.b16 %v5265, %v5257
    %v7466 = vpack.c.b16 %v5266, %v5258
    %v7467 = vpack.c.b16 %v5267, %v5259
    %v7468 = vpack.c.b16 %v5268, %v5260
    %v7469 = vpack.c.b16 %v5269, %v5261
    %v7470 = vpack.c.b16 %v5270, %v5262
    %v7471 = vpack.c.b16 %v5271, %v5263
    %v7472 = vpack.c.b16 %v5272, %v5264
    %v7473 = vpack.c.b16 %v5281, %v5273
    %v7474 = vpack.c.b16 %v5282, %v5274
    %v7475 = vpack.c.b16 %v5283, %v5275
    %v7476 = vpack.c.b16 %v5284, %v5276
    %v7477 = vpack.c.b16 %v5285, %v5277
    %v7478 = vpack.c.b16 %v5286, %v5278
    %v7479 = vpack.c.b16 %v5287, %v5279
    %v7480 = vpack.c.b16 %v5288, %v5280
    %v7481 = vpack.c.b16 %v5297, %v5289
    %v7482 = vpack.c.b16 %v5298, %v5290
    %v7483 = vpack.c.b16 %v5299, %v5291
    %v7484 = vpack.c.b16 %v5300, %v5292
    %v7485 = vpack.c.b16 %v5301, %v5293
    %v7486 = vpack.c.b16 %v5302, %v5294
    %v7487 = vpack.c.b16 %v5303, %v5295
    %v7488 = vpack.c.b16 %v5304, %v5296
    %v7489 = vpack.c.b16 %v5313, %v5305
    %v7490 = vpack.c.b16 %v5314, %v5306
    %v7491 = vpack.c.b16 %v5315, %v5307
    %v7492 = vpack.c.b16 %v5316, %v5308
    %v7493 = vpack.c.b16 %v5317, %v5309
    %v7494 = vpack.c.b16 %v5318, %v5310
    %v7495 = vpack.c.b16 %v5319, %v5311
    %v7496 = vpack.c.b16 %v5320, %v5312
    %v7497 = vpack.c.b16 %v5329, %v5321
    %v7498 = vpack.c.b16 %v5330, %v5322
    %v7499 = vpack.c.b16 %v5331, %v5323
    %v7500 = vpack.c.b16 %v5332, %v5324
    %v7501 = vpack.c.b16 %v5333, %v5325
    %v7502 = vpack.c.b16 %v5334, %v5326
    %v7503 = vpack.c.b16 %v5335, %v5327
    %v7504 = vpack.c.b16 %v5336, %v5328
    %v7505 = vpack.c.b16 %v5345, %v5337
    %v7506 = vpack.c.b16 %v5346, %v5338
    %v7507 = vpack.c.b16 %v5347, %v5339
    %v7508 = vpack.c.b16 %v5348, %v5340
    %v7509 = vpack.c.b16 %v5349, %v5341
    %v7510 = vpack.c.b16 %v5350, %v5342
    %v7511 = vpack.c.b16 %v5351, %v5343
    %v7512 = vpack.c.b16 %v5352, %v5344
    %v7513 = vpack.c.b16 %v5361, %v5353
    %v7514 = vpack.c.b16 %v5362, %v5354
    %v7515 = vpack.c.b16 %v5363, %v5355
    %v7516 = vpack.c.b16 %v5364, %v5356
    %v7517 = vpack.c.b16 %v5365, %v5357
    %v7518 = vpack.c.b16 %v5366, %v5358
    %v7519 = vpack.c.b16 %v5367, %v5359
    %v7520 = vpack.c.b16 %v5368, %v5360
    %v7521 = vpack.c.b16 %v5377, %v5369
    %v7522 = vpack.c.b16 %v5378, %v5370
    %v7523 = vpack.c.b16 %v5379, %v5371
    %v7524 = vpack.c.b16 %v5380, %v5372
    %v7525 = vpack.c.b16 %v5381, %v5373
    %v7526 = vpack.c.b16 %v5382, %v5374
    %v7527 = vpack.c.b16 %v5383, %v5375
    %v7528 = vpack.c.b16 %v5384, %v5376
    %v7529 = vpack.c.b16 %v5393, %v5385
    %v7530 = vpack.c.b16 %v5394, %v5386
    %v7531 = vpack.c.b16 %v5395, %v5387
    %v7532 = vpack.c.b16 %v5396, %v5388
    %v7533 = vpack.c.b16 %v5397, %v5389
    %v7534 = vpack.c.b16 %v5398, %v5390
    %v7535 = vpack.c.b16 %v5399, %v5391
    %v7536 = vpack.c.b16 %v5400, %v5392
    %v7537 = vpack.c.b16 %v5409, %v5401
    %v7538 = vpack.c.b16 %v5410, %v5402
    %v7539 = vpack.c.b16 %v5411, %v5403
    %v7540 = vpack.c.b16 %v5412, %v5404
    %v7541 = vpack.c.b16 %v5413, %v5405
    %v7542 = vpack.c.b16 %v5414, %v5406
    %v7543 = vpack.c.b16 %v5415, %v5407
    %v7544 = vpack.c.b16 %v5416, %v5408
    %v7545 = vpack.c.b16 %v5425, %v5417
    %v7546 = vpack.c.b16 %v5426, %v5418
    %v7547 = vpack.c.b16 %v5427, %v5419
    %v7548 = vpack.c.b16 %v5428, %v5420
    %v7549 = vpack.c.b16 %v5429, %v5421
    %v7550 = vpack.c.b16 %v5430, %v5422
    %v7551 = vpack.c.b16 %v5431, %v5423
    %v7552 = vpack.c.b16 %v5432, %v5424
    %v7553 = vpack.c.b16 %v5441, %v5433
    %v7554 = vpack.c.b16 %v5442, %v5434
    %v7555 = vpack.c.b16 %v5443, %v5435
    %v7556 = vpack.c.b16 %v5444, %v5436
    %v7557 = vpack.c.b16 %v5445, %v5437
    %v7558 = vpack.c.b16 %v5446, %v5438
    %v7559 = vpack.c.b16 %v5447, %v5439
    %v7560 = vpack.c.b16 %v5448, %v5440
    %v7561 = vpack.c.b16 %v5457, %v5449
    %v7562 = vpack.c.b16 %v5458, %v5450
    %v7563 = vpack.c.b16 %v5459, %v5451
    %v7564 = vpack.c.b16 %v5460, %v5452
    %v7565 = vpack.c.b16 %v5461, %v5453
    %v7566 = vpack.c.b16 %v5462, %v5454
    %v7567 = vpack.c.b16 %v5463, %v5455
    %v7568 = vpack.c.b16 %v5464, %v5456
    %v7569 = vpack.c.b16 %v5473, %v5465
    %v7570 = vpack.c.b16 %v5474, %v5466
    %v7571 = vpack.c.b16 %v5475, %v5467
    %v7572 = vpack.c.b16 %v5476, %v5468
    %v7573 = vpack.c.b16 %v5477, %v5469
    %v7574 = vpack.c.b16 %v5478, %v5470
    %v7575 = vpack.c.b16 %v5479, %v5471
    %v7576 = vpack.c.b16 %v5480, %v5472
    %v7577 = vpack.c.b16 %v5489, %v5481
    %v7578 = vpack.c.b16 %v5490, %v5482
    %v7579 = vpack.c.b16 %v5491, %v5483
    %v7580 = vpack.c.b16 %v5492, %v5484
    %v7581 = vpack.c.b16 %v5493, %v5485
    %v7582 = vpack.c.b16 %v5494, %v5486
    %v7583 = vpack.c.b16 %v5495, %v5487
    %v7584 = vpack.c.b16 %v5496, %v5488
    %v7585 = vpack.c.b16 %v5505, %v5497
    %v7586 = vpack.c.b16 %v5506, %v5498
    %v7587 = vpack.c.b16 %v5507, %v5499
    %v7588 = vpack.c.b16 %v5508, %v5500
    %v7589 = vpack.c.b16 %v5509, %v5501
    %v7590 = vpack.c.b16 %v5510, %v5502
    %v7591 = vpack.c.b16 %v5511, %v5503
    %v7592 = vpack.c.b16 %v5512, %v5504
    %v7593 = vpack.c.b16 %v5521, %v5513
    %v7594 = vpack.c.b16 %v5522, %v5514
    %v7595 = vpack.c.b16 %v5523, %v5515
    %v7596 = vpack.c.b16 %v5524, %v5516
    %v7597 = vpack.c.b16 %v5525, %v5517
    %v7598 = vpack.c.b16 %v5526, %v5518
    %v7599 = vpack.c.b16 %v5527, %v5519
    %v7600 = vpack.c.b16 %v5528, %v5520
    %v7601 = vpack.c.b16 %v5537, %v5529
    %v7602 = vpack.c.b16 %v5538, %v5530
    %v7603 = vpack.c.b16 %v5539, %v5531
    %v7604 = vpack.c.b16 %v5540, %v5532
    %v7605 = vpack.c.b16 %v5541, %v5533
    %v7606 = vpack.c.b16 %v5542, %v5534
    %v7607 = vpack.c.b16 %v5543, %v5535
    %v7608 = vpack.c.b16 %v5544, %v5536
    %v7609 = vpack.c.b16 %v5553, %v5545
    %v7610 = vpack.c.b16 %v5554, %v5546
    %v7611 = vpack.c.b16 %v5555, %v5547
    %v7612 = vpack.c.b16 %v5556, %v5548
    %v7613 = vpack.c.b16 %v5557, %v5549
    %v7614 = vpack.c.b16 %v5558, %v5550
    %v7615 = vpack.c.b16 %v5559, %v5551
    %v7616 = vpack.c.b16 %v5560, %v5552
    %v7617 = vpack.c.b16 %v5569, %v5561
    %v7618 = vpack.c.b16 %v5570, %v5562
    %v7619 = vpack.c.b16 %v5571, %v5563
    %v7620 = vpack.c.b16 %v5572, %v5564
    %v7621 = vpack.c.b16 %v5573, %v5565
    %v7622 = vpack.c.b16 %v5574, %v5566
    %v7623 = vpack.c.b16 %v5575, %v5567
    %v7624 = vpack.c.b16 %v5576, %v5568
    %v7625 = vpack.c.b16 %v5585, %v5577
    %v7626 = vpack.c.b16 %v5586, %v5578
    %v7627 = vpack.c.b16 %v5587, %v5579
    %v7628 = vpack.c.b16 %v5588, %v5580
    %v7629 = vpack.c.b16 %v5589, %v5581
    %v7630 = vpack.c.b16 %v5590, %v5582
    %v7631 = vpack.c.b16 %v5591, %v5583
    %v7632 = vpack.c.b16 %v5592, %v5584
    %v7633 = vpack.c.b16 %v5601, %v5593
    %v7634 = vpack.c.b16 %v5602, %v5594
    %v7635 = vpack.c.b16 %v5603, %v5595
    %v7636 = vpack.c.b16 %v5604, %v5596
    %v7637 = vpack.c.b16 %v5605, %v5597
    %v7638 = vpack.c.b16 %v5606, %v5598
    %v7639 = vpack.c.b16 %v5607, %v5599
    %v7640 = vpack.c.b16 %v5608, %v5600
    %v7641 = vpack.c.b16 %v5617, %v5609
    %v7642 = vpack.c.b16 %v5618, %v5610
    %v7643 = vpack.c.b16 %v5619, %v5611
    %v7644 = vpack.c.b16 %v5620, %v5612
    %v7645 = vpack.c.b16 %v5621, %v5613
    %v7646 = vpack.c.b16 %v5622, %v5614
    %v7647 = vpack.c.b16 %v5623, %v5615
    %v7648 = vpack.c.b16 %v5624, %v5616
    %v7649 = vpack.c.b16 %v5633, %v5625
    %v7650 = vpack.c.b16 %v5634, %v5626
    %v7651 = vpack.c.b16 %v5635, %v5627
    %v7652 = vpack.c.b16 %v5636, %v5628
    %v7653 = vpack.c.b16 %v5637, %v5629
    %v7654 = vpack.c.b16 %v5638, %v5630
    %v7655 = vpack.c.b16 %v5639, %v5631
    %v7656 = vpack.c.b16 %v5640, %v5632
    %v7657 = vpack.c.b16 %v5649, %v5641
    %v7658 = vpack.c.b16 %v5650, %v5642
    %v7659 = vpack.c.b16 %v5651, %v5643
    %v7660 = vpack.c.b16 %v5652, %v5644
    %v7661 = vpack.c.b16 %v5653, %v5645
    %v7662 = vpack.c.b16 %v5654, %v5646
    %v7663 = vpack.c.b16 %v5655, %v5647
    %v7664 = vpack.c.b16 %v5656, %v5648
    %v7665 = vpack.c.b16 %v5665, %v5657
    %v7666 = vpack.c.b16 %v5666, %v5658
    %v7667 = vpack.c.b16 %v5667, %v5659
    %v7668 = vpack.c.b16 %v5668, %v5660
    %v7669 = vpack.c.b16 %v5669, %v5661
    %v7670 = vpack.c.b16 %v5670, %v5662
    %v7671 = vpack.c.b16 %v5671, %v5663
    %v7672 = vpack.c.b16 %v5672, %v5664
    %v7673 = vpack.c.b16 %v5681, %v5673
    %v7674 = vpack.c.b16 %v5682, %v5674
    %v7675 = vpack.c.b16 %v5683, %v5675
    %v7676 = vpack.c.b16 %v5684, %v5676
    %v7677 = vpack.c.b16 %v5685, %v5677
    %v7678 = vpack.c.b16 %v5686, %v5678
    %v7679 = vpack.c.b16 %v5687, %v5679
    %v7680 = vpack.c.b16 %v5688, %v5680
    %v7681 = vpack.c.b16 %v5697, %v5689
    %v7682 = vpack.c.b16 %v5698, %v5690
    %v7683 = vpack.c.b16 %v5699, %v5691
    %v7684 = vpack.c.b16 %v5700, %v5692
    %v7685 = vpack.c.b16 %v5701, %v5693
    %v7686 = vpack.c.b16 %v5702, %v5694
    %v7687 = vpack.c.b16 %v5703, %v5695
    %v7688 = vpack.c.b16 %v5704, %v5696
    %v7689 = vpack.c.b16 %v5713, %v5705
    %v7690 = vpack.c.b16 %v5714, %v5706
    %v7691 = vpack.c.b16 %v5715, %v5707
    %v7692 = vpack.c.b16 %v5716, %v5708
    %v7693 = vpack.c.b16 %v5717, %v5709
    %v7694 = vpack.c.b16 %v5718, %v5710
    %v7695 = vpack.c.b16 %v5719, %v5711
    %v7696 = vpack.c.b16 %v5720, %v5712
    %v7697 = vpack.c.b16 %v5729, %v5721
    %v7698 = vpack.c.b16 %v5730, %v5722
    %v7699 = vpack.c.b16 %v5731, %v5723
    %v7700 = vpack.c.b16 %v5732, %v5724
    %v7701 = vpack.c.b16 %v5733, %v5725
    %v7702 = vpack.c.b16 %v5734, %v5726
    %v7703 = vpack.c.b16 %v5735, %v5727
    %v7704 = vpack.c.b16 %v5736, %v5728
    %v7705 = vpack.c.b16 %v5745, %v5737
    %v7706 = vpack.c.b16 %v5746, %v5738
    %v7707 = vpack.c.b16 %v5747, %v5739
    %v7708 = vpack.c.b16 %v5748, %v5740
    %v7709 = vpack.c.b16 %v5749, %v5741
    %v7710 = vpack.c.b16 %v5750, %v5742
    %v7711 = vpack.c.b16 %v5751, %v5743
    %v7712 = vpack.c.b16 %v5752, %v5744
    %v7713 = vpack.c.b16 %v5761, %v5753
    %v7714 = vpack.c.b16 %v5762, %v5754
    %v7715 = vpack.c.b16 %v5763, %v5755
    %v7716 = vpack.c.b16 %v5764, %v5756
    %v7717 = vpack.c.b16 %v5765, %v5757
    %v7718 = vpack.c.b16 %v5766, %v5758
    %v7719 = vpack.c.b16 %v5767, %v5759
    %v7720 = vpack.c.b16 %v5768, %v5760
    %v7721 = vpack.c.b16 %v5777, %v5769
    %v7722 = vpack.c.b16 %v5778, %v5770
    %v7723 = vpack.c.b16 %v5779, %v5771
    %v7724 = vpack.c.b16 %v5780, %v5772
    %v7725 = vpack.c.b16 %v5781, %v5773
    %v7726 = vpack.c.b16 %v5782, %v5774
    %v7727 = vpack.c.b16 %v5783, %v5775
    %v7728 = vpack.c.b16 %v5784, %v5776
    %v7729 = vpack.c.b16 %v5793, %v5785
    %v7730 = vpack.c.b16 %v5794, %v5786
    %v7731 = vpack.c.b16 %v5795, %v5787
    %v7732 = vpack.c.b16 %v5796, %v5788
    %v7733 = vpack.c.b16 %v5797, %v5789
    %v7734 = vpack.c.b16 %v5798, %v5790
    %v7735 = vpack.c.b16 %v5799, %v5791
    %v7736 = vpack.c.b16 %v5800, %v5792
    %v7737 = vpack.c.b16 %v5809, %v5801
    %v7738 = vpack.c.b16 %v5810, %v5802
    %v7739 = vpack.c.b16 %v5811, %v5803
    %v7740 = vpack.c.b16 %v5812, %v5804
    %v7741 = vpack.c.b16 %v5813, %v5805
    %v7742 = vpack.c.b16 %v5814, %v5806
    %v7743 = vpack.c.b16 %v5815, %v5807
    %v7744 = vpack.c.b16 %v5816, %v5808
    %v7745 = vpack.c.b16 %v5825, %v5817
    %v7746 = vpack.c.b16 %v5826, %v5818
    %v7747 = vpack.c.b16 %v5827, %v5819
    %v7748 = vpack.c.b16 %v5828, %v5820
    %v7749 = vpack.c.b16 %v5829, %v5821
    %v7750 = vpack.c.b16 %v5830, %v5822
    %v7751 = vpack.c.b16 %v5831, %v5823
    %v7752 = vpack.c.b16 %v5832, %v5824
    %v7753 = vpack.c.b16 %v5841, %v5833
    %v7754 = vpack.c.b16 %v5842, %v5834
    %v7755 = vpack.c.b16 %v5843, %v5835
    %v7756 = vpack.c.b16 %v5844, %v5836
    %v7757 = vpack.c.b16 %v5845, %v5837
    %v7758 = vpack.c.b16 %v5846, %v5838
    %v7759 = vpack.c.b16 %v5847, %v5839
    %v7760 = vpack.c.b16 %v5848, %v5840
    %v7761 = vpack.c.b16 %v5857, %v5849
    %v7762 = vpack.c.b16 %v5858, %v5850
    %v7763 = vpack.c.b16 %v5859, %v5851
    %v7764 = vpack.c.b16 %v5860, %v5852
    %v7765 = vpack.c.b16 %v5861, %v5853
    %v7766 = vpack.c.b16 %v5862, %v5854
    %v7767 = vpack.c.b16 %v5863, %v5855
    %v7768 = vpack.c.b16 %v5864, %v5856
    %v7769 = vpack.c.b16 %v5873, %v5865
    %v7770 = vpack.c.b16 %v5874, %v5866
    %v7771 = vpack.c.b16 %v5875, %v5867
    %v7772 = vpack.c.b16 %v5876, %v5868
    %v7773 = vpack.c.b16 %v5877, %v5869
    %v7774 = vpack.c.b16 %v5878, %v5870
    %v7775 = vpack.c.b16 %v5879, %v5871
    %v7776 = vpack.c.b16 %v5880, %v5872
    %v7777 = vpack.c.b16 %v5889, %v5881
    %v7778 = vpack.c.b16 %v5890, %v5882
    %v7779 = vpack.c.b16 %v5891, %v5883
    %v7780 = vpack.c.b16 %v5892, %v5884
    %v7781 = vpack.c.b16 %v5893, %v5885
    %v7782 = vpack.c.b16 %v5894, %v5886
    %v7783 = vpack.c.b16 %v5895, %v5887
    %v7784 = vpack.c.b16 %v5896, %v5888
    %v7785 = vpack.c.b16 %v5905, %v5897
    %v7786 = vpack.c.b16 %v5906, %v5898
    %v7787 = vpack.c.b16 %v5907, %v5899
    %v7788 = vpack.c.b16 %v5908, %v5900
    %v7789 = vpack.c.b16 %v5909, %v5901
    %v7790 = vpack.c.b16 %v5910, %v5902
    %v7791 = vpack.c.b16 %v5911, %v5903
    %v7792 = vpack.c.b16 %v5912, %v5904
    %v7793 = vpack.c.b16 %v5921, %v5913
    %v7794 = vpack.c.b16 %v5922, %v5914
    %v7795 = vpack.c.b16 %v5923, %v5915
    %v7796 = vpack.c.b16 %v5924, %v5916
    %v7797 = vpack.c.b16 %v5925, %v5917
    %v7798 = vpack.c.b16 %v5926, %v5918
    %v7799 = vpack.c.b16 %v5927, %v5919
    %v7800 = vpack.c.b16 %v5928, %v5920
    %v7801 = vpack.c.b16 %v5937, %v5929
    %v7802 = vpack.c.b16 %v5938, %v5930
    %v7803 = vpack.c.b16 %v5939, %v5931
    %v7804 = vpack.c.b16 %v5940, %v5932
    %v7805 = vpack.c.b16 %v5941, %v5933
    %v7806 = vpack.c.b16 %v5942, %v5934
    %v7807 = vpack.c.b16 %v5943, %v5935
    %v7808 = vpack.c.b16 %v5944, %v5936
    %v7809 = vpack.c.b16 %v5953, %v5945
    %v7810 = vpack.c.b16 %v5954, %v5946
    %v7811 = vpack.c.b16 %v5955, %v5947
    %v7812 = vpack.c.b16 %v5956, %v5948
    %v7813 = vpack.c.b16 %v5957, %v5949
    %v7814 = vpack.c.b16 %v5958, %v5950
    %v7815 = vpack.c.b16 %v5959, %v5951
    %v7816 = vpack.c.b16 %v5960, %v5952
    %v7817 = vpack.c.b16 %v5969, %v5961
    %v7818 = vpack.c.b16 %v5970, %v5962
    %v7819 = vpack.c.b16 %v5971, %v5963
    %v7820 = vpack.c.b16 %v5972, %v5964
    %v7821 = vpack.c.b16 %v5973, %v5965
    %v7822 = vpack.c.b16 %v5974, %v5966
    %v7823 = vpack.c.b16 %v5975, %v5967
    %v7824 = vpack.c.b16 %v5976, %v5968
    %v7825 = vpack.c.b16 %v5985, %v5977
    %v7826 = vpack.c.b16 %v5986, %v5978
    %v7827 = vpack.c.b16 %v5987, %v5979
    %v7828 = vpack.c.b16 %v5988, %v5980
    %v7829 = vpack.c.b16 %v5989, %v5981
    %v7830 = vpack.c.b16 %v5990, %v5982
    %v7831 = vpack.c.b16 %v5991, %v5983
    %v7832 = vpack.c.b16 %v5992, %v5984
    %v7833 = vpack.c.b16 %v6001, %v5993
    %v7834 = vpack.c.b16 %v6002, %v5994
    %v7835 = vpack.c.b16 %v6003, %v5995
    %v7836 = vpack.c.b16 %v6004, %v5996
    %v7837 = vpack.c.b16 %v6005, %v5997
    %v7838 = vpack.c.b16 %v6006, %v5998
    %v7839 = vpack.c.b16 %v6007, %v5999
    %v7840 = vpack.c.b16 %v6008, %v6000
    %v7841 = vpack.c.b16 %v6017, %v6009
    %v7842 = vpack.c.b16 %v6018, %v6010
    %v7843 = vpack.c.b16 %v6019, %v6011
    %v7844 = vpack.c.b16 %v6020, %v6012
    %v7845 = vpack.c.b16 %v6021, %v6013
    %v7846 = vpack.c.b16 %v6022, %v6014
    %v7847 = vpack.c.b16 %v6023, %v6015
    %v7848 = vpack.c.b16 %v6024, %v6016
    %v7849 = vpack.c.b16 %v6033, %v6025
    %v7850 = vpack.c.b16 %v6034, %v6026
    %v7851 = vpack.c.b16 %v6035, %v6027
    %v7852 = vpack.c.b16 %v6036, %v6028
    %v7853 = vpack.c.b16 %v6037, %v6029
    %v7854 = vpack.c.b16 %v6038, %v6030
    %v7855 = vpack.c.b16 %v6039, %v6031
    %v7856 = vpack.c.b16 %v6040, %v6032
    %v7857 = vpack.c.b16 %v6049, %v6041
    %v7858 = vpack.c.b16 %v6050, %v6042
    %v7859 = vpack.c.b16 %v6051, %v6043
    %v7860 = vpack.c.b16 %v6052, %v6044
    %v7861 = vpack.c.b16 %v6053, %v6045
    %v7862 = vpack.c.b16 %v6054, %v6046
    %v7863 = vpack.c.b16 %v6055, %v6047
    %v7864 = vpack.c.b16 %v6056, %v6048
    %v7865 = vpack.c.b16 %v6065, %v6057
    %v7866 = vpack.c.b16 %v6066, %v6058
    %v7867 = vpack.c.b16 %v6067, %v6059
    %v7868 = vpack.c.b16 %v6068, %v6060
    %v7869 = vpack.c.b16 %v6069, %v6061
    %v7870 = vpack.c.b16 %v6070, %v6062
    %v7871 = vpack.c.b16 %v6071, %v6063
    %v7872 = vpack.c.b16 %v6072, %v6064
    %v7873 = vpack.c.b16 %v6081, %v6073
    %v7874 = vpack.c.b16 %v6082, %v6074
    %v7875 = vpack.c.b16 %v6083, %v6075
    %v7876 = vpack.c.b16 %v6084, %v6076
    %v7877 = vpack.c.b16 %v6085, %v6077
    %v7878 = vpack.c.b16 %v6086, %v6078
    %v7879 = vpack.c.b16 %v6087, %v6079
    %v7880 = vpack.c.b16 %v6088, %v6080
    %v7881 = vpack.c.b16 %v6097, %v6089
    %v7882 = vpack.c.b16 %v6098, %v6090
    %v7883 = vpack.c.b16 %v6099, %v6091
    %v7884 = vpack.c.b16 %v6100, %v6092
    %v7885 = vpack.c.b16 %v6101, %v6093
    %v7886 = vpack.c.b16 %v6102, %v6094
    %v7887 = vpack.c.b16 %v6103, %v6095
    %v7888 = vpack.c.b16 %v6104, %v6096
    %v7889 = vpack.c.b16 %v6113, %v6105
    %v7890 = vpack.c.b16 %v6114, %v6106
    %v7891 = vpack.c.b16 %v6115, %v6107
    %v7892 = vpack.c.b16 %v6116, %v6108
    %v7893 = vpack.c.b16 %v6117, %v6109
    %v7894 = vpack.c.b16 %v6118, %v6110
    %v7895 = vpack.c.b16 %v6119, %v6111
    %v7896 = vpack.c.b16 %v6120, %v6112
    %v7897 = vpack.c.b16 %v6129, %v6121
    %v7898 = vpack.c.b16 %v6130, %v6122
    %v7899 = vpack.c.b16 %v6131, %v6123
    %v7900 = vpack.c.b16 %v6132, %v6124
    %v7901 = vpack.c.b16 %v6133, %v6125
    %v7902 = vpack.c.b16 %v6134, %v6126
    %v7903 = vpack.c.b16 %v6135, %v6127
    %v7904 = vpack.c.b16 %v6136, %v6128
    %v7905 = vpack.c.b16 %v6145, %v6137
    %v7906 = vpack.c.b16 %v6146, %v6138
    %v7907 = vpack.c.b16 %v6147, %v6139
    %v7908 = vpack.c.b16 %v6148, %v6140
    %v7909 = vpack.c.b16 %v6149, %v6141
    %v7910 = vpack.c.b16 %v6150, %v6142
    %v7911 = vpack.c.b16 %v6151, %v6143
    %v7912 = vpack.c.b16 %v6152, %v6144
    %v7913 = vpack.c.b16 %v6161, %v6153
    %v7914 = vpack.c.b16 %v6162, %v6154
    %v7915 = vpack.c.b16 %v6163, %v6155
    %v7916 = vpack.c.b16 %v6164, %v6156
    %v7917 = vpack.c.b16 %v6165, %v6157
    %v7918 = vpack.c.b16 %v6166, %v6158
    %v7919 = vpack.c.b16 %v6167, %v6159
    %v7920 = vpack.c.b16 %v6168, %v6160
    %v7921 = vpack.c.b16 %v6177, %v6169
    %v7922 = vpack.c.b16 %v6178, %v6170
    %v7923 = vpack.c.b16 %v6179, %v6171
    %v7924 = vpack.c.b16 %v6180, %v6172
    %v7925 = vpack.c.b16 %v6181, %v6173
    %v7926 = vpack.c.b16 %v6182, %v6174
    %v7927 = vpack.c.b16 %v6183, %v6175
    %v7928 = vpack.c.b16 %v6184, %v6176
    %v7929 = vpack.c.b16 %v6193, %v6185
    %v7930 = vpack.c.b16 %v6194, %v6186
    %v7931 = vpack.c.b16 %v6195, %v6187
    %v7932 = vpack.c.b16 %v6196, %v6188
    %v7933 = vpack.c.b16 %v6197, %v6189
    %v7934 = vpack.c.b16 %v6198, %v6190
    %v7935 = vpack.c.b16 %v6199, %v6191
    %v7936 = vpack.c.b16 %v6200, %v6192
    %v7937 = vpack.c.b16 %v6209, %v6201
    %v7938 = vpack.c.b16 %v6210, %v6202
    %v7939 = vpack.c.b16 %v6211, %v6203
    %v7940 = vpack.c.b16 %v6212, %v6204
    %v7941 = vpack.c.b16 %v6213, %v6205
    %v7942 = vpack.c.b16 %v6214, %v6206
    %v7943 = vpack.c.b16 %v6215, %v6207
    %v7944 = vpack.c.b16 %v6216, %v6208
    %v7945 = vpack.c.b16 %v6225, %v6217
    %v7946 = vpack.c.b16 %v6226, %v6218
    %v7947 = vpack.c.b16 %v6227, %v6219
    %v7948 = vpack.c.b16 %v6228, %v6220
    %v7949 = vpack.c.b16 %v6229, %v6221
    %v7950 = vpack.c.b16 %v6230, %v6222
    %v7951 = vpack.c.b16 %v6231, %v6223
    %v7952 = vpack.c.b16 %v6232, %v6224
    %v7953 = vpack.c.b16 %v6241, %v6233
    %v7954 = vpack.c.b16 %v6242, %v6234
    %v7955 = vpack.c.b16 %v6243, %v6235
    %v7956 = vpack.c.b16 %v6244, %v6236
    %v7957 = vpack.c.b16 %v6245, %v6237
    %v7958 = vpack.c.b16 %v6246, %v6238
    %v7959 = vpack.c.b16 %v6247, %v6239
    %v7960 = vpack.c.b16 %v6248, %v6240
    %v7961 = vpack.c.b16 %v6257, %v6249
    %v7962 = vpack.c.b16 %v6258, %v6250
    %v7963 = vpack.c.b16 %v6259, %v6251
    %v7964 = vpack.c.b16 %v6260, %v6252
    %v7965 = vpack.c.b16 %v6261, %v6253
    %v7966 = vpack.c.b16 %v6262, %v6254
    %v7967 = vpack.c.b16 %v6263, %v6255
    %v7968 = vpack.c.b16 %v6264, %v6256
    %v7969 = vpack.c.b16 %v6273, %v6265
    %v7970 = vpack.c.b16 %v6274, %v6266
    %v7971 = vpack.c.b16 %v6275, %v6267
    %v7972 = vpack.c.b16 %v6276, %v6268
    %v7973 = vpack.c.b16 %v6277, %v6269
    %v7974 = vpack.c.b16 %v6278, %v6270
    %v7975 = vpack.c.b16 %v6279, %v6271
    %v7976 = vpack.c.b16 %v6280, %v6272
    %v7977 = vpack.c.b16 %v6289, %v6281
    %v7978 = vpack.c.b16 %v6290, %v6282
    %v7979 = vpack.c.b16 %v6291, %v6283
    %v7980 = vpack.c.b16 %v6292, %v6284
    %v7981 = vpack.c.b16 %v6293, %v6285
    %v7982 = vpack.c.b16 %v6294, %v6286
    %v7983 = vpack.c.b16 %v6295, %v6287
    %v7984 = vpack.c.b16 %v6296, %v6288
    %v7985 = vpack.c.b16 %v6305, %v6297
    %v7986 = vpack.c.b16 %v6306, %v6298
    %v7987 = vpack.c.b16 %v6307, %v6299
    %v7988 = vpack.c.b16 %v6308, %v6300
    %v7989 = vpack.c.b16 %v6309, %v6301
    %v7990 = vpack.c.b16 %v6310, %v6302
    %v7991 = vpack.c.b16 %v6311, %v6303
    %v7992 = vpack.c.b16 %v6312, %v6304
    %v7993 = vpack.c.b16 %v6321, %v6313
    %v7994 = vpack.c.b16 %v6322, %v6314
    %v7995 = vpack.c.b16 %v6323, %v6315
    %v7996 = vpack.c.b16 %v6324, %v6316
    %v7997 = vpack.c.b16 %v6325, %v6317
    %v7998 = vpack.c.b16 %v6326, %v6318
    %v7999 = vpack.c.b16 %v6327, %v6319
    %v8000 = vpack.c.b16 %v6328, %v6320
    %v8001 = vpack.c.b16 %v6337, %v6329
    %v8002 = vpack.c.b16 %v6338, %v6330
    %v8003 = vpack.c.b16 %v6339, %v6331
    %v8004 = vpack.c.b16 %v6340, %v6332
    %v8005 = vpack.c.b16 %v6341, %v6333
    %v8006 = vpack.c.b16 %v6342, %v6334
    %v8007 = vpack.c.b16 %v6343, %v6335
    %v8008 = vpack.c.b16 %v6344, %v6336
    %v8009 = vpack.c.b16 %v6353, %v6345
    %v8010 = vpack.c.b16 %v6354, %v6346
    %v8011 = vpack.c.b16 %v6355, %v6347
    %v8012 = vpack.c.b16 %v6356, %v6348
    %v8013 = vpack.c.b16 %v6357, %v6349
    %v8014 = vpack.c.b16 %v6358, %v6350
    %v8015 = vpack.c.b16 %v6359, %v6351
    %v8016 = vpack.c.b16 %v6360, %v6352
    %v8017 = vpack.c.b16 %v6369, %v6361
    %v8018 = vpack.c.b16 %v6370, %v6362
    %v8019 = vpack.c.b16 %v6371, %v6363
    %v8020 = vpack.c.b16 %v6372, %v6364
    %v8021 = vpack.c.b16 %v6373, %v6365
    %v8022 = vpack.c.b16 %v6374, %v6366
    %v8023 = vpack.c.b16 %v6375, %v6367
    %v8024 = vpack.c.b16 %v6376, %v6368
    %v8025 = vpack.c.b16 %v6385, %v6377
    %v8026 = vpack.c.b16 %v6386, %v6378
    %v8027 = vpack.c.b16 %v6387, %v6379
    %v8028 = vpack.c.b16 %v6388, %v6380
    %v8029 = vpack.c.b16 %v6389, %v6381
    %v8030 = vpack.c.b16 %v6390, %v6382
    %v8031 = vpack.c.b16 %v6391, %v6383
    %v8032 = vpack.c.b16 %v6392, %v6384
    %v8033 = vpack.c.b16 %v6401, %v6393
    %v8034 = vpack.c.b16 %v6402, %v6394
    %v8035 = vpack.c.b16 %v6403, %v6395
    %v8036 = vpack.c.b16 %v6404, %v6396
    %v8037 = vpack.c.b16 %v6405, %v6397
    %v8038 = vpack.c.b16 %v6406, %v6398
    %v8039 = vpack.c.b16 %v6407, %v6399
    %v8040 = vpack.c.b16 %v6408, %v6400
    %v8041 = vpack.c.b16 %v6417, %v6409
    %v8042 = vpack.c.b16 %v6418, %v6410
    %v8043 = vpack.c.b16 %v6419, %v6411
    %v8044 = vpack.c.b16 %v6420, %v6412
    %v8045 = vpack.c.b16 %v6421, %v6413
    %v8046 = vpack.c.b16 %v6422, %v6414
    %v8047 = vpack.c.b16 %v6423, %v6415
    %v8048 = vpack.c.b16 %v6424, %v6416
    %v8049 = vpack.c.b16 %v6433, %v6425
    %v8050 = vpack.c.b16 %v6434, %v6426
    %v8051 = vpack.c.b16 %v6435, %v6427
    %v8052 = vpack.c.b16 %v6436, %v6428
    %v8053 = vpack.c.b16 %v6437, %v6429
    %v8054 = vpack.c.b16 %v6438, %v6430
    %v8055 = vpack.c.b16 %v6439, %v6431
    %v8056 = vpack.c.b16 %v6440, %v6432
    %v8057 = vpack.c.b16 %v6449, %v6441
    %v8058 = vpack.c.b16 %v6450, %v6442
    %v8059 = vpack.c.b16 %v6451, %v6443
    %v8060 = vpack.c.b16 %v6452, %v6444
    %v8061 = vpack.c.b16 %v6453, %v6445
    %v8062 = vpack.c.b16 %v6454, %v6446
    %v8063 = vpack.c.b16 %v6455, %v6447
    %v8064 = vpack.c.b16 %v6456, %v6448
    %v8065 = vpack.c.b16 %v6465, %v6457
    %v8066 = vpack.c.b16 %v6466, %v6458
    %v8067 = vpack.c.b16 %v6467, %v6459
    %v8068 = vpack.c.b16 %v6468, %v6460
    %v8069 = vpack.c.b16 %v6469, %v6461
    %v8070 = vpack.c.b16 %v6470, %v6462
    %v8071 = vpack.c.b16 %v6471, %v6463
    %v8072 = vpack.c.b16 %v6472, %v6464
    %v8073 = vpack.c.b16 %v6481, %v6473
    %v8074 = vpack.c.b16 %v6482, %v6474
    %v8075 = vpack.c.b16 %v6483, %v6475
    %v8076 = vpack.c.b16 %v6484, %v6476
    %v8077 = vpack.c.b16 %v6485, %v6477
    %v8078 = vpack.c.b16 %v6486, %v6478
    %v8079 = vpack.c.b16 %v6487, %v6479
    %v8080 = vpack.c.b16 %v6488, %v6480
    %v8081 = vpack.c.b16 %v6497, %v6489
    %v8082 = vpack.c.b16 %v6498, %v6490
    %v8083 = vpack.c.b16 %v6499, %v6491
    %v8084 = vpack.c.b16 %v6500, %v6492
    %v8085 = vpack.c.b16 %v6501, %v6493
    %v8086 = vpack.c.b16 %v6502, %v6494
    %v8087 = vpack.c.b16 %v6503, %v6495
    %v8088 = vpack.c.b16 %v6504, %v6496
    %v8089 = vpack.c.b16 %v6513, %v6505
    %v8090 = vpack.c.b16 %v6514, %v6506
    %v8091 = vpack.c.b16 %v6515, %v6507
    %v8092 = vpack.c.b16 %v6516, %v6508
    %v8093 = vpack.c.b16 %v6517, %v6509
    %v8094 = vpack.c.b16 %v6518, %v6510
    %v8095 = vpack.c.b16 %v6519, %v6511
    %v8096 = vpack.c.b16 %v6520, %v6512
    %v8097 = vpack.c.b16 %v6529, %v6521
    %v8098 = vpack.c.b16 %v6530, %v6522
    %v8099 = vpack.c.b16 %v6531, %v6523
    %v8100 = vpack.c.b16 %v6532, %v6524
    %v8101 = vpack.c.b16 %v6533, %v6525
    %v8102 = vpack.c.b16 %v6534, %v6526
    %v8103 = vpack.c.b16 %v6535, %v6527
    %v8104 = vpack.c.b16 %v6536, %v6528
    %vm9673 = vcmask 523264
    %v9675 = vsel %vm9673, %v1808, 0
    %9677 = vmatprep.subr.bf16.mxu0 %v6594
    %9678 = vmatpush1.bf16.msra.mxu0 %v6593
    %9679 = vmatprep.subr.bf16.mxu0 %v6586
    %9680 = vmatpush1.bf16.msra.mxu0 %v6585
    %9681 = vmatprep.subr.bf16.mxu0 %v6578
    %9682 = vmatpush1.bf16.msra.mxu0 %v6577
    %9683 = vmatprep.subr.bf16.mxu0 %v6570
    %9684 = vmatpush1.bf16.msra.mxu0 %v6569
    %9685 = vmatprep.subr.bf16.mxu0 %v6562
    %9686 = vmatpush1.bf16.msra.mxu0 %v6561
    %9687 = vmatprep.subr.bf16.mxu0 %v6554
    %9688 = vmatpush1.bf16.msra.mxu0 %v6553
    %9689 = vmatprep.subr.bf16.mxu0 %v6546
    %9690 = vmatpush1.bf16.msra.mxu0 %v6545
    %9691 = vmatprep.subr.bf16.mxu0 %v6538
    %9692 = vmatpush1.bf16.msra.mxu0 %v6537
    %9693 = vmatprep.subr.bf16.mxu0 %v6658
    %9694 = vmatpush2.bf16.msra.mxu0 %v6657
    %9695 = vmatprep.subr.bf16.mxu0 %v6650
    %9696 = vmatpush2.bf16.msra.mxu0 %v6649
    %9697 = vmatprep.subr.bf16.mxu0 %v6642
    %9698 = vmatpush2.bf16.msra.mxu0 %v6641
    %9699 = vmatprep.subr.bf16.mxu0 %v6634
    %9700 = vmatpush2.bf16.msra.mxu0 %v6633
    %9701 = vmatprep.subr.bf16.mxu0 %v6626
    %9702 = vmatpush2.bf16.msra.mxu0 %v6625
    %9703 = vmatprep.subr.bf16.mxu0 %v6618
    %9704 = vmatpush2.bf16.msra.mxu0 %v6617
    %9705 = vmatprep.subr.bf16.mxu0 %v6610
    %9706 = vmatpush2.bf16.msra.mxu0 %v6609
    %9707 = vmatprep.subr.bf16.mxu0 %v6602
    %9708 = vmatpush2.bf16.msra.mxu0 %v6601
    %9709 = vmatprep.mubr.bf16.mxu0 %v1685
    %9710 = vmatmul.mubr.bf16.gmra.mxu0 %v1671
    %v9711 = vpop.f32.mrf.mxu0
    %v9712 = vadd.f32 %v1607, %v9711
    %v9713 = vpop.f32.mrf.mxu0
    %v9714 = vadd.f32 %v1611, %v9713
    %v9715 = vpop.f32.mrf.mxu0
    %v9716 = vpop.f32.mrf.mxu0
    %9717 = vdwg.mxu0
    %9718 = vmatprep.subr.bf16.mxu0 %v6722
    %9719 = vmatpush1.bf16.msra.mxu0 %v6721
    %9720 = vmatprep.subr.bf16.mxu0 %v6714
    %9721 = vmatpush1.bf16.msra.mxu0 %v6713
    %9722 = vmatprep.subr.bf16.mxu0 %v6706
    %9723 = vmatpush1.bf16.msra.mxu0 %v6705
    %9724 = vmatprep.subr.bf16.mxu0 %v6698
    %9725 = vmatpush1.bf16.msra.mxu0 %v6697
    %9726 = vmatprep.subr.bf16.mxu0 %v6690
    %9727 = vmatpush1.bf16.msra.mxu0 %v6689
    %9728 = vmatprep.subr.bf16.mxu0 %v6682
    %9729 = vmatpush1.bf16.msra.mxu0 %v6681
    %9730 = vmatprep.subr.bf16.mxu0 %v6674
    %9731 = vmatpush1.bf16.msra.mxu0 %v6673
    %9732 = vmatprep.subr.bf16.mxu0 %v6666
    %9733 = vmatpush1.bf16.msra.mxu0 %v6665
    %9734 = vmatprep.subr.bf16.mxu0 %v6786
    %9735 = vmatpush2.bf16.msra.mxu0 %v6785
    %9736 = vmatprep.subr.bf16.mxu0 %v6778
    %9737 = vmatpush2.bf16.msra.mxu0 %v6777
    %9738 = vmatprep.subr.bf16.mxu0 %v6770
    %9739 = vmatpush2.bf16.msra.mxu0 %v6769
    %9740 = vmatprep.subr.bf16.mxu0 %v6762
    %9741 = vmatpush2.bf16.msra.mxu0 %v6761
    %9742 = vmatprep.subr.bf16.mxu0 %v6754
    %9743 = vmatpush2.bf16.msra.mxu0 %v6753
    %9744 = vmatprep.subr.bf16.mxu0 %v6746
    %9745 = vmatpush2.bf16.msra.mxu0 %v6745
    %9746 = vmatprep.subr.bf16.mxu0 %v6738
    %9747 = vmatpush2.bf16.msra.mxu0 %v6737
    %9748 = vmatprep.subr.bf16.mxu0 %v6730
    %9749 = vmatpush2.bf16.msra.mxu0 %v6729
    %9750 = vmatprep.mubr.bf16.mxu0 %v1695
    %9751 = vmatmul.mubr.bf16.gmra.mxu0 %v1693
    %v9752 = vpop.f32.mrf.mxu0
    %v9753 = vadd.f32 %v9712, %v9752
    %v9754 = vpop.f32.mrf.mxu0
    %v9755 = vadd.f32 %v9714, %v9754
    %v9756 = vpop.f32.mrf.mxu0
    %v9757 = vpop.f32.mrf.mxu0
    %9758 = vdwg.mxu0
    %9759 = vmatprep.subr.bf16.mxu0 %v6850
    %9760 = vmatpush1.bf16.msra.mxu0 %v6849
    %9761 = vmatprep.subr.bf16.mxu0 %v6842
    %9762 = vmatpush1.bf16.msra.mxu0 %v6841
    %9763 = vmatprep.subr.bf16.mxu0 %v6834
    %9764 = vmatpush1.bf16.msra.mxu0 %v6833
    %9765 = vmatprep.subr.bf16.mxu0 %v6826
    %9766 = vmatpush1.bf16.msra.mxu0 %v6825
    %9767 = vmatprep.subr.bf16.mxu0 %v6818
    %9768 = vmatpush1.bf16.msra.mxu0 %v6817
    %9769 = vmatprep.subr.bf16.mxu0 %v6810
    %9770 = vmatpush1.bf16.msra.mxu0 %v6809
    %9771 = vmatprep.subr.bf16.mxu0 %v6802
    %9772 = vmatpush1.bf16.msra.mxu0 %v6801
    %9773 = vmatprep.subr.bf16.mxu0 %v6794
    %9774 = vmatpush1.bf16.msra.mxu0 %v6793
    %9775 = vmatprep.subr.bf16.mxu0 %v6914
    %9776 = vmatpush2.bf16.msra.mxu0 %v6913
    %9777 = vmatprep.subr.bf16.mxu0 %v6906
    %9778 = vmatpush2.bf16.msra.mxu0 %v6905
    %9779 = vmatprep.subr.bf16.mxu0 %v6898
    %9780 = vmatpush2.bf16.msra.mxu0 %v6897
    %9781 = vmatprep.subr.bf16.mxu0 %v6890
    %9782 = vmatpush2.bf16.msra.mxu0 %v6889
    %9783 = vmatprep.subr.bf16.mxu0 %v6882
    %9784 = vmatpush2.bf16.msra.mxu0 %v6881
    %9785 = vmatprep.subr.bf16.mxu0 %v6874
    %9786 = vmatpush2.bf16.msra.mxu0 %v6873
    %9787 = vmatprep.subr.bf16.mxu0 %v6866
    %9788 = vmatpush2.bf16.msra.mxu0 %v6865
    %9789 = vmatprep.subr.bf16.mxu0 %v6858
    %9790 = vmatpush2.bf16.msra.mxu0 %v6857
    %9791 = vmatprep.mubr.bf16.mxu0 %v1692
    %9792 = vmatmul.mubr.bf16.gmra.mxu0 %v1678
    %v9793 = vpop.f32.mrf.mxu0
    %v9794 = vadd.f32 %v9753, %v9793
    %v9795 = vpop.f32.mrf.mxu0
    %v9796 = vadd.f32 %v9755, %v9795
    %v9797 = vpop.f32.mrf.mxu0
    %v9798 = vpop.f32.mrf.mxu0
    %9799 = vdwg.mxu0
    %9800 = vmatprep.subr.bf16.mxu0 %v6978
    %9801 = vmatpush1.bf16.msra.mxu0 %v6977
    %9802 = vmatprep.subr.bf16.mxu0 %v6970
    %9803 = vmatpush1.bf16.msra.mxu0 %v6969
    %9804 = vmatprep.subr.bf16.mxu0 %v6962
    %9805 = vmatpush1.bf16.msra.mxu0 %v6961
    %9806 = vmatprep.subr.bf16.mxu0 %v6954
    %9807 = vmatpush1.bf16.msra.mxu0 %v6953
    %9808 = vmatprep.subr.bf16.mxu0 %v6946
    %9809 = vmatpush1.bf16.msra.mxu0 %v6945
    %9810 = vmatprep.subr.bf16.mxu0 %v6938
    %9811 = vmatpush1.bf16.msra.mxu0 %v6937
    %9812 = vmatprep.subr.bf16.mxu0 %v6930
    %9813 = vmatpush1.bf16.msra.mxu0 %v6929
    %9814 = vmatprep.subr.bf16.mxu0 %v6922
    %9815 = vmatpush1.bf16.msra.mxu0 %v6921
    %9816 = vmatprep.subr.bf16.mxu0 %v7042
    %9817 = vmatpush2.bf16.msra.mxu0 %v7041
    %9818 = vmatprep.subr.bf16.mxu0 %v7034
    %9819 = vmatpush2.bf16.msra.mxu0 %v7033
    %9820 = vmatprep.subr.bf16.mxu0 %v7026
    %9821 = vmatpush2.bf16.msra.mxu0 %v7025
    %9822 = vmatprep.subr.bf16.mxu0 %v7018
    %9823 = vmatpush2.bf16.msra.mxu0 %v7017
    %9824 = vmatprep.subr.bf16.mxu0 %v7010
    %9825 = vmatpush2.bf16.msra.mxu0 %v7009
    %9826 = vmatprep.subr.bf16.mxu0 %v7002
    %9827 = vmatpush2.bf16.msra.mxu0 %v7001
    %9828 = vmatprep.subr.bf16.mxu0 %v6994
    %9829 = vmatpush2.bf16.msra.mxu0 %v6993
    %9830 = vmatprep.subr.bf16.mxu0 %v6986
    %9831 = vmatpush2.bf16.msra.mxu0 %v6985
    %9832 = vmatprep.mubr.bf16.mxu0 %v1696
    %9833 = vmatmul.mubr.bf16.gmra.mxu0 %v1694
    %v9834 = vpop.f32.mrf.mxu0
    %v9835 = vadd.f32 %v9794, %v9834
    %v9836 = vpop.f32.mrf.mxu0
    %v9837 = vadd.f32 %v9796, %v9836
    %v9838 = vpop.f32.mrf.mxu0
    %v9839 = vpop.f32.mrf.mxu0
    %9840 = vdwg.mxu0
    %9841 = vmatprep.subr.bf16.mxu0 %v7106
    %9842 = vmatpush1.bf16.msra.mxu0 %v7105
    %9843 = vmatprep.subr.bf16.mxu0 %v7098
    %9844 = vmatpush1.bf16.msra.mxu0 %v7097
    %9845 = vmatprep.subr.bf16.mxu0 %v7090
    %9846 = vmatpush1.bf16.msra.mxu0 %v7089
    %9847 = vmatprep.subr.bf16.mxu0 %v7082
    %9848 = vmatpush1.bf16.msra.mxu0 %v7081
    %9849 = vmatprep.subr.bf16.mxu0 %v7074
    %9850 = vmatpush1.bf16.msra.mxu0 %v7073
    %9851 = vmatprep.subr.bf16.mxu0 %v7066
    %9852 = vmatpush1.bf16.msra.mxu0 %v7065
    %9853 = vmatprep.subr.bf16.mxu0 %v7058
    %9854 = vmatpush1.bf16.msra.mxu0 %v7057
    %9855 = vmatprep.subr.bf16.mxu0 %v7050
    %9856 = vmatpush1.bf16.msra.mxu0 %v7049
    %9857 = vmatprep.subr.bf16.mxu0 %v7170
    %9858 = vmatpush2.bf16.msra.mxu0 %v7169
    %9859 = vmatprep.subr.bf16.mxu0 %v7162
    %9860 = vmatpush2.bf16.msra.mxu0 %v7161
    %9861 = vmatprep.subr.bf16.mxu0 %v7154
    %9862 = vmatpush2.bf16.msra.mxu0 %v7153
    %9863 = vmatprep.subr.bf16.mxu0 %v7146
    %9864 = vmatpush2.bf16.msra.mxu0 %v7145
    %9865 = vmatprep.subr.bf16.mxu0 %v7138
    %9866 = vmatpush2.bf16.msra.mxu0 %v7137
    %9867 = vmatprep.subr.bf16.mxu0 %v7130
    %9868 = vmatpush2.bf16.msra.mxu0 %v7129
    %9869 = vmatprep.subr.bf16.mxu0 %v7122
    %9870 = vmatpush2.bf16.msra.mxu0 %v7121
    %9871 = vmatprep.subr.bf16.mxu0 %v7114
    %9872 = vmatpush2.bf16.msra.mxu0 %v7113
    %9873 = vmatprep.mubr.bf16.mxu0 %v1734
    %9874 = vmatmul.mubr.bf16.gmra.mxu0 %v1720
    %v9875 = vpop.f32.mrf.mxu0
    %v9876 = vadd.f32 %v9835, %v9875
    %v9877 = vpop.f32.mrf.mxu0
    %v9878 = vadd.f32 %v9837, %v9877
    %v9879 = vpop.f32.mrf.mxu0
    %v9880 = vpop.f32.mrf.mxu0
    %9881 = vdwg.mxu0
    %9882 = vmatprep.subr.bf16.mxu0 %v7234
    %9883 = vmatpush1.bf16.msra.mxu0 %v7233
    %9884 = vmatprep.subr.bf16.mxu0 %v7226
    %9885 = vmatpush1.bf16.msra.mxu0 %v7225
    %9886 = vmatprep.subr.bf16.mxu0 %v7218
    %9887 = vmatpush1.bf16.msra.mxu0 %v7217
    %9888 = vmatprep.subr.bf16.mxu0 %v7210
    %9889 = vmatpush1.bf16.msra.mxu0 %v7209
    %9890 = vmatprep.subr.bf16.mxu0 %v7202
    %9891 = vmatpush1.bf16.msra.mxu0 %v7201
    %9892 = vmatprep.subr.bf16.mxu0 %v7194
    %9893 = vmatpush1.bf16.msra.mxu0 %v7193
    %9894 = vmatprep.subr.bf16.mxu0 %v7186
    %9895 = vmatpush1.bf16.msra.mxu0 %v7185
    %9896 = vmatprep.subr.bf16.mxu0 %v7178
    %9897 = vmatpush1.bf16.msra.mxu0 %v7177
    %9898 = vmatprep.subr.bf16.mxu0 %v7298
    %9899 = vmatpush2.bf16.msra.mxu0 %v7297
    %9900 = vmatprep.subr.bf16.mxu0 %v7290
    %9901 = vmatpush2.bf16.msra.mxu0 %v7289
    %9902 = vmatprep.subr.bf16.mxu0 %v7282
    %9903 = vmatpush2.bf16.msra.mxu0 %v7281
    %9904 = vmatprep.subr.bf16.mxu0 %v7274
    %9905 = vmatpush2.bf16.msra.mxu0 %v7273
    %9906 = vmatprep.subr.bf16.mxu0 %v7266
    %9907 = vmatpush2.bf16.msra.mxu0 %v7265
    %9908 = vmatprep.subr.bf16.mxu0 %v7258
    %9909 = vmatpush2.bf16.msra.mxu0 %v7257
    %9910 = vmatprep.subr.bf16.mxu0 %v7250
    %9911 = vmatpush2.bf16.msra.mxu0 %v7249
    %9912 = vmatprep.subr.bf16.mxu0 %v7242
    %9913 = vmatpush2.bf16.msra.mxu0 %v7241
    %9914 = vmatprep.mubr.bf16.mxu0 %v1744
    %9915 = vmatmul.mubr.bf16.gmra.mxu0 %v1742
    %v9916 = vpop.f32.mrf.mxu0
    %v9917 = vadd.f32 %v9876, %v9916
    %v9918 = vpop.f32.mrf.mxu0
    %v9919 = vadd.f32 %v9878, %v9918
    %v9920 = vpop.f32.mrf.mxu0
    %v9921 = vpop.f32.mrf.mxu0
    %9922 = vdwg.mxu0
    %9923 = vmatprep.subr.bf16.mxu0 %v7362
    %9924 = vmatpush1.bf16.msra.mxu0 %v7361
    %9925 = vmatprep.subr.bf16.mxu0 %v7354
    %9926 = vmatpush1.bf16.msra.mxu0 %v7353
    %9927 = vmatprep.subr.bf16.mxu0 %v7346
    %9928 = vmatpush1.bf16.msra.mxu0 %v7345
    %9929 = vmatprep.subr.bf16.mxu0 %v7338
    %9930 = vmatpush1.bf16.msra.mxu0 %v7337
    %9931 = vmatprep.subr.bf16.mxu0 %v7330
    %9932 = vmatpush1.bf16.msra.mxu0 %v7329
    %9933 = vmatprep.subr.bf16.mxu0 %v7322
    %9934 = vmatpush1.bf16.msra.mxu0 %v7321
    %9935 = vmatprep.subr.bf16.mxu0 %v7314
    %9936 = vmatpush1.bf16.msra.mxu0 %v7313
    %9937 = vmatprep.subr.bf16.mxu0 %v7306
    %9938 = vmatpush1.bf16.msra.mxu0 %v7305
    %9939 = vmatprep.subr.bf16.mxu0 %v7426
    %9940 = vmatpush2.bf16.msra.mxu0 %v7425
    %9941 = vmatprep.subr.bf16.mxu0 %v7418
    %9942 = vmatpush2.bf16.msra.mxu0 %v7417
    %9943 = vmatprep.subr.bf16.mxu0 %v7410
    %9944 = vmatpush2.bf16.msra.mxu0 %v7409
    %9945 = vmatprep.subr.bf16.mxu0 %v7402
    %9946 = vmatpush2.bf16.msra.mxu0 %v7401
    %9947 = vmatprep.subr.bf16.mxu0 %v7394
    %9948 = vmatpush2.bf16.msra.mxu0 %v7393
    %9949 = vmatprep.subr.bf16.mxu0 %v7386
    %9950 = vmatpush2.bf16.msra.mxu0 %v7385
    %9951 = vmatprep.subr.bf16.mxu0 %v7378
    %9952 = vmatpush2.bf16.msra.mxu0 %v7377
    %9953 = vmatprep.subr.bf16.mxu0 %v7370
    %9954 = vmatpush2.bf16.msra.mxu0 %v7369
    %9955 = vmatprep.mubr.bf16.mxu0 %v1741
    %9956 = vmatmul.mubr.bf16.gmra.mxu0 %v1727
    %v9957 = vpop.f32.mrf.mxu0
    %v9958 = vadd.f32 %v9917, %v9957
    %v9959 = vpop.f32.mrf.mxu0
    %v9960 = vadd.f32 %v9919, %v9959
    %v9961 = vpop.f32.mrf.mxu0
    %v9962 = vpop.f32.mrf.mxu0
    %9963 = vdwg.mxu0
    %9964 = vmatprep.subr.bf16.mxu0 %v7490
    %9965 = vmatpush1.bf16.msra.mxu0 %v7489
    %9966 = vmatprep.subr.bf16.mxu0 %v7482
    %9967 = vmatpush1.bf16.msra.mxu0 %v7481
    %9968 = vmatprep.subr.bf16.mxu0 %v7474
    %9969 = vmatpush1.bf16.msra.mxu0 %v7473
    %9970 = vmatprep.subr.bf16.mxu0 %v7466
    %9971 = vmatpush1.bf16.msra.mxu0 %v7465
    %9972 = vmatprep.subr.bf16.mxu0 %v7458
    %9973 = vmatpush1.bf16.msra.mxu0 %v7457
    %9974 = vmatprep.subr.bf16.mxu0 %v7450
    %9975 = vmatpush1.bf16.msra.mxu0 %v7449
    %9976 = vmatprep.subr.bf16.mxu0 %v7442
    %9977 = vmatpush1.bf16.msra.mxu0 %v7441
    %9978 = vmatprep.subr.bf16.mxu0 %v7434
    %9979 = vmatpush1.bf16.msra.mxu0 %v7433
    %9980 = vmatprep.subr.bf16.mxu0 %v7554
    %9981 = vmatpush2.bf16.msra.mxu0 %v7553
    %9982 = vmatprep.subr.bf16.mxu0 %v7546
    %9983 = vmatpush2.bf16.msra.mxu0 %v7545
    %9984 = vmatprep.subr.bf16.mxu0 %v7538
    %9985 = vmatpush2.bf16.msra.mxu0 %v7537
    %9986 = vmatprep.subr.bf16.mxu0 %v7530
    %9987 = vmatpush2.bf16.msra.mxu0 %v7529
    %9988 = vmatprep.subr.bf16.mxu0 %v7522
    %9989 = vmatpush2.bf16.msra.mxu0 %v7521
    %9990 = vmatprep.subr.bf16.mxu0 %v7514
    %9991 = vmatpush2.bf16.msra.mxu0 %v7513
    %9992 = vmatprep.subr.bf16.mxu0 %v7506
    %9993 = vmatpush2.bf16.msra.mxu0 %v7505
    %9994 = vmatprep.subr.bf16.mxu0 %v7498
    %9995 = vmatpush2.bf16.msra.mxu0 %v7497
    %9996 = vmatprep.mubr.bf16.mxu0 %v1745
    %9997 = vmatmul.mubr.bf16.gmra.mxu0 %v1743
    %v9998 = vpop.f32.mrf.mxu0
    %v9999 = vadd.f32 %v9958, %v9998
    %v10000 = vpop.f32.mrf.mxu0
    %v10001 = vadd.f32 %v9960, %v10000
    %v10002 = vpop.f32.mrf.mxu0
    %v10003 = vpop.f32.mrf.mxu0
    %10004 = vdwg.mxu0
    %10005 = vmatprep.subr.bf16.mxu0 %v7618
    %10006 = vmatpush1.bf16.msra.mxu0 %v7617
    %10007 = vmatprep.subr.bf16.mxu0 %v7610
    %10008 = vmatpush1.bf16.msra.mxu0 %v7609
    %10009 = vmatprep.subr.bf16.mxu0 %v7602
    %10010 = vmatpush1.bf16.msra.mxu0 %v7601
    %10011 = vmatprep.subr.bf16.mxu0 %v7594
    %10012 = vmatpush1.bf16.msra.mxu0 %v7593
    %10013 = vmatprep.subr.bf16.mxu0 %v7586
    %10014 = vmatpush1.bf16.msra.mxu0 %v7585
    %10015 = vmatprep.subr.bf16.mxu0 %v7578
    %10016 = vmatpush1.bf16.msra.mxu0 %v7577
    %10017 = vmatprep.subr.bf16.mxu0 %v7570
    %10018 = vmatpush1.bf16.msra.mxu0 %v7569
    %10019 = vmatprep.subr.bf16.mxu0 %v7562
    %10020 = vmatpush1.bf16.msra.mxu0 %v7561
    %10021 = vmatprep.subr.bf16.mxu0 %v7682
    %10022 = vmatpush2.bf16.msra.mxu0 %v7681
    %10023 = vmatprep.subr.bf16.mxu0 %v7674
    %10024 = vmatpush2.bf16.msra.mxu0 %v7673
    %10025 = vmatprep.subr.bf16.mxu0 %v7666
    %10026 = vmatpush2.bf16.msra.mxu0 %v7665
    %10027 = vmatprep.subr.bf16.mxu0 %v7658
    %10028 = vmatpush2.bf16.msra.mxu0 %v7657
    %10029 = vmatprep.subr.bf16.mxu0 %v7650
    %10030 = vmatpush2.bf16.msra.mxu0 %v7649
    %10031 = vmatprep.subr.bf16.mxu0 %v7642
    %10032 = vmatpush2.bf16.msra.mxu0 %v7641
    %10033 = vmatprep.subr.bf16.mxu0 %v7634
    %10034 = vmatpush2.bf16.msra.mxu0 %v7633
    %10035 = vmatprep.subr.bf16.mxu0 %v7626
    %10036 = vmatpush2.bf16.msra.mxu0 %v7625
    %10037 = vmatprep.mubr.bf16.mxu0 %v1783
    %10038 = vmatmul.mubr.bf16.gmra.mxu0 %v1769
    %v10039 = vpop.f32.mrf.mxu0
    %v10040 = vadd.f32 %v9999, %v10039
    %v10041 = vpop.f32.mrf.mxu0
    %v10042 = vadd.f32 %v10001, %v10041
    %v10043 = vpop.f32.mrf.mxu0
    %v10044 = vpop.f32.mrf.mxu0
    %10045 = vdwg.mxu0
    %10046 = vmatprep.subr.bf16.mxu0 %v7746
    %10047 = vmatpush1.bf16.msra.mxu0 %v7745
    %10048 = vmatprep.subr.bf16.mxu0 %v7738
    %10049 = vmatpush1.bf16.msra.mxu0 %v7737
    %10050 = vmatprep.subr.bf16.mxu0 %v7730
    %10051 = vmatpush1.bf16.msra.mxu0 %v7729
    %10052 = vmatprep.subr.bf16.mxu0 %v7722
    %10053 = vmatpush1.bf16.msra.mxu0 %v7721
    %10054 = vmatprep.subr.bf16.mxu0 %v7714
    %10055 = vmatpush1.bf16.msra.mxu0 %v7713
    %10056 = vmatprep.subr.bf16.mxu0 %v7706
    %10057 = vmatpush1.bf16.msra.mxu0 %v7705
    %10058 = vmatprep.subr.bf16.mxu0 %v7698
    %10059 = vmatpush1.bf16.msra.mxu0 %v7697
    %10060 = vmatprep.subr.bf16.mxu0 %v7690
    %10061 = vmatpush1.bf16.msra.mxu0 %v7689
    %10062 = vmatprep.subr.bf16.mxu0 %v7810
    %10063 = vmatpush2.bf16.msra.mxu0 %v7809
    %10064 = vmatprep.subr.bf16.mxu0 %v7802
    %10065 = vmatpush2.bf16.msra.mxu0 %v7801
    %10066 = vmatprep.subr.bf16.mxu0 %v7794
    %10067 = vmatpush2.bf16.msra.mxu0 %v7793
    %10068 = vmatprep.subr.bf16.mxu0 %v7786
    %10069 = vmatpush2.bf16.msra.mxu0 %v7785
    %10070 = vmatprep.subr.bf16.mxu0 %v7778
    %10071 = vmatpush2.bf16.msra.mxu0 %v7777
    %10072 = vmatprep.subr.bf16.mxu0 %v7770
    %10073 = vmatpush2.bf16.msra.mxu0 %v7769
    %10074 = vmatprep.subr.bf16.mxu0 %v7762
    %10075 = vmatpush2.bf16.msra.mxu0 %v7761
    %10076 = vmatprep.subr.bf16.mxu0 %v7754
    %10077 = vmatpush2.bf16.msra.mxu0 %v7753
    %10078 = vmatprep.mubr.bf16.mxu0 %v1793
    %10079 = vmatmul.mubr.bf16.gmra.mxu0 %v1791
    %v10080 = vpop.f32.mrf.mxu0
    %v10081 = vadd.f32 %v10040, %v10080
    %v10082 = vpop.f32.mrf.mxu0
    %v10083 = vadd.f32 %v10042, %v10082
    %v10084 = vpop.f32.mrf.mxu0
    %v10085 = vpop.f32.mrf.mxu0
    %10086 = vdwg.mxu0
    %10087 = vmatprep.subr.bf16.mxu0 %v7874
    %10088 = vmatpush1.bf16.msra.mxu0 %v7873
    %10089 = vmatprep.subr.bf16.mxu0 %v7866
    %10090 = vmatpush1.bf16.msra.mxu0 %v7865
    %10091 = vmatprep.subr.bf16.mxu0 %v7858
    %10092 = vmatpush1.bf16.msra.mxu0 %v7857
    %10093 = vmatprep.subr.bf16.mxu0 %v7850
    %10094 = vmatpush1.bf16.msra.mxu0 %v7849
    %10095 = vmatprep.subr.bf16.mxu0 %v7842
    %10096 = vmatpush1.bf16.msra.mxu0 %v7841
    %10097 = vmatprep.subr.bf16.mxu0 %v7834
    %10098 = vmatpush1.bf16.msra.mxu0 %v7833
    %10099 = vmatprep.subr.bf16.mxu0 %v7826
    %10100 = vmatpush1.bf16.msra.mxu0 %v7825
    %10101 = vmatprep.subr.bf16.mxu0 %v7818
    %10102 = vmatpush1.bf16.msra.mxu0 %v7817
    %10103 = vmatprep.subr.bf16.mxu0 %v7938
    %10104 = vmatpush2.bf16.msra.mxu0 %v7937
    %10105 = vmatprep.subr.bf16.mxu0 %v7930
    %10106 = vmatpush2.bf16.msra.mxu0 %v7929
    %10107 = vmatprep.subr.bf16.mxu0 %v7922
    %10108 = vmatpush2.bf16.msra.mxu0 %v7921
    %10109 = vmatprep.subr.bf16.mxu0 %v7914
    %10110 = vmatpush2.bf16.msra.mxu0 %v7913
    %10111 = vmatprep.subr.bf16.mxu0 %v7906
    %10112 = vmatpush2.bf16.msra.mxu0 %v7905
    %10113 = vmatprep.subr.bf16.mxu0 %v7898
    %10114 = vmatpush2.bf16.msra.mxu0 %v7897
    %10115 = vmatprep.subr.bf16.mxu0 %v7890
    %10116 = vmatpush2.bf16.msra.mxu0 %v7889
    %10117 = vmatprep.subr.bf16.mxu0 %v7882
    %10118 = vmatpush2.bf16.msra.mxu0 %v7881
    %10119 = vmatprep.mubr.bf16.mxu0 %v1790
    %10120 = vmatmul.mubr.bf16.gmra.mxu0 %v1776
    %v10121 = vpop.f32.mrf.mxu0
    %v10122 = vadd.f32 %v10081, %v10121
    %v10123 = vpop.f32.mrf.mxu0
    %v10124 = vadd.f32 %v10083, %v10123
    %v10125 = vpop.f32.mrf.mxu0
    %v10126 = vpop.f32.mrf.mxu0
    %10127 = vdwg.mxu0
    %10128 = vmatprep.subr.bf16.mxu0 %v8002
    %10129 = vmatpush1.bf16.msra.mxu0 %v8001
    %10130 = vmatprep.subr.bf16.mxu0 %v7994
    %10131 = vmatpush1.bf16.msra.mxu0 %v7993
    %10132 = vmatprep.subr.bf16.mxu0 %v7986
    %10133 = vmatpush1.bf16.msra.mxu0 %v7985
    %10134 = vmatprep.subr.bf16.mxu0 %v7978
    %10135 = vmatpush1.bf16.msra.mxu0 %v7977
    %10136 = vmatprep.subr.bf16.mxu0 %v7970
    %10137 = vmatpush1.bf16.msra.mxu0 %v7969
    %10138 = vmatprep.subr.bf16.mxu0 %v7962
    %10139 = vmatpush1.bf16.msra.mxu0 %v7961
    %10140 = vmatprep.subr.bf16.mxu0 %v7954
    %10141 = vmatpush1.bf16.msra.mxu0 %v7953
    %10142 = vmatprep.subr.bf16.mxu0 %v7946
    %10143 = vmatpush1.bf16.msra.mxu0 %v7945
    %10144 = vmatprep.subr.bf16.mxu0 %v8066
    %10145 = vmatpush2.bf16.msra.mxu0 %v8065
    %10146 = vmatprep.subr.bf16.mxu0 %v8058
    %10147 = vmatpush2.bf16.msra.mxu0 %v8057
    %10148 = vmatprep.subr.bf16.mxu0 %v8050
    %10149 = vmatpush2.bf16.msra.mxu0 %v8049
    %10150 = vmatprep.subr.bf16.mxu0 %v8042
    %10151 = vmatpush2.bf16.msra.mxu0 %v8041
    %10152 = vmatprep.subr.bf16.mxu0 %v8034
    %10153 = vmatpush2.bf16.msra.mxu0 %v8033
    %10154 = vmatprep.subr.bf16.mxu0 %v8026
    %10155 = vmatpush2.bf16.msra.mxu0 %v8025
    %10156 = vmatprep.subr.bf16.mxu0 %v8018
    %10157 = vmatpush2.bf16.msra.mxu0 %v8017
    %10158 = vmatprep.subr.bf16.mxu0 %v8010
    %10159 = vmatpush2.bf16.msra.mxu0 %v8009
    %10160 = vmatprep.mubr.bf16.mxu0 %v1794
    %10161 = vmatmul.mubr.bf16.gmra.mxu0 %v1792
    %v10162 = vpop.f32.mrf.mxu0
    %v10163 = vadd.f32 %v10122, %v10162
    %v10164 = vpop.f32.mrf.mxu0
    %v10165 = vadd.f32 %v10124, %v10164
    %v10166 = vpop.f32.mrf.mxu0
    %v10167 = vpop.f32.mrf.mxu0
    %10168 = vdwg.mxu0
    %10169 = vmatprep.subr.bf16.mxu0 0
    %10170 = vmatpush1.bf16.msra.mxu0 0
    %10171 = vmatprep.subr.bf16.mxu0 0
    %10172 = vmatpush1.bf16.msra.mxu0 0
    %10173 = vmatprep.subr.bf16.mxu0 0
    %10174 = vmatpush1.bf16.msra.mxu0 0
    %10175 = vmatprep.subr.bf16.mxu0 0
    %10176 = vmatpush1.bf16.msra.mxu0 0
    %10177 = vmatprep.subr.bf16.mxu0 %v8098
    %10178 = vmatpush1.bf16.msra.mxu0 %v8097
    %10179 = vmatprep.subr.bf16.mxu0 %v8090
    %10180 = vmatpush1.bf16.msra.mxu0 %v8089
    %10181 = vmatprep.subr.bf16.mxu0 %v8082
    %10182 = vmatpush1.bf16.msra.mxu0 %v8081
    %10183 = vmatprep.subr.bf16.mxu0 %v8074
    %10184 = vmatpush1.bf16.msra.mxu0 %v8073
    %10185 = vmatprep.subr.bf16.mxu0 0
    %10186 = vmatpush2.bf16.msra.mxu0 0
    %10187 = vmatprep.subr.bf16.mxu0 0
    %10188 = vmatpush2.bf16.msra.mxu0 0
    %10189 = vmatprep.subr.bf16.mxu0 0
    %10190 = vmatpush2.bf16.msra.mxu0 0
    %10191 = vmatprep.subr.bf16.mxu0 0
    %10192 = vmatpush2.bf16.msra.mxu0 0
    %10193 = vmatprep.subr.bf16.mxu0 0
    %10194 = vmatpush2.bf16.msra.mxu0 0
    %10195 = vmatprep.subr.bf16.mxu0 0
    %10196 = vmatpush2.bf16.msra.mxu0 0
    %10197 = vmatprep.subr.bf16.mxu0 0
    %10198 = vmatpush2.bf16.msra.mxu0 0
    %10199 = vmatprep.subr.bf16.mxu0 0
    %10200 = vmatpush2.bf16.msra.mxu0 0
    %10201 = vmatprep.mubr.bf16.mxu0 0
    %10202 = vmatmul.mubr.bf16.gmra.mxu0 %v9675
    %v10203 = vpop.f32.mrf.mxu0
    %v10204 = vadd.f32 %v10163, %v10203
    %v10205 = vpop.f32.mrf.mxu0
    %v10206 = vadd.f32 %v10165, %v10205
    %v10207 = vpop.f32.mrf.mxu0
    %v10208 = vpop.f32.mrf.mxu0
    %10209 = vdwg.mxu0
    %10210 = vmatprep.subr.bf16.mxu0 %v6596
    %10211 = vmatpush1.bf16.msra.mxu0 %v6595
    %10212 = vmatprep.subr.bf16.mxu0 %v6588
    %10213 = vmatpush1.bf16.msra.mxu0 %v6587
    %10214 = vmatprep.subr.bf16.mxu0 %v6580
    %10215 = vmatpush1.bf16.msra.mxu0 %v6579
    %10216 = vmatprep.subr.bf16.mxu0 %v6572
    %10217 = vmatpush1.bf16.msra.mxu0 %v6571
    %10218 = vmatprep.subr.bf16.mxu0 %v6564
    %10219 = vmatpush1.bf16.msra.mxu0 %v6563
    %10220 = vmatprep.subr.bf16.mxu0 %v6556
    %10221 = vmatpush1.bf16.msra.mxu0 %v6555
    %10222 = vmatprep.subr.bf16.mxu0 %v6548
    %10223 = vmatpush1.bf16.msra.mxu0 %v6547
    %10224 = vmatprep.subr.bf16.mxu0 %v6540
    %10225 = vmatpush1.bf16.msra.mxu0 %v6539
    %10226 = vmatprep.subr.bf16.mxu0 %v6660
    %10227 = vmatpush2.bf16.msra.mxu0 %v6659
    %10228 = vmatprep.subr.bf16.mxu0 %v6652
    %10229 = vmatpush2.bf16.msra.mxu0 %v6651
    %10230 = vmatprep.subr.bf16.mxu0 %v6644
    %10231 = vmatpush2.bf16.msra.mxu0 %v6643
    %10232 = vmatprep.subr.bf16.mxu0 %v6636
    %10233 = vmatpush2.bf16.msra.mxu0 %v6635
    %10234 = vmatprep.subr.bf16.mxu0 %v6628
    %10235 = vmatpush2.bf16.msra.mxu0 %v6627
    %10236 = vmatprep.subr.bf16.mxu0 %v6620
    %10237 = vmatpush2.bf16.msra.mxu0 %v6619
    %10238 = vmatprep.subr.bf16.mxu0 %v6612
    %10239 = vmatpush2.bf16.msra.mxu0 %v6611
    %10240 = vmatprep.subr.bf16.mxu0 %v6604
    %10241 = vmatpush2.bf16.msra.mxu0 %v6603
    %10242 = vmatprep.mubr.bf16.mxu0 %v1685
    %10243 = vmatmul.mubr.bf16.gmra.mxu0 %v1671
    %v10244 = vpop.f32.mrf.mxu0
    %v10245 = vadd.f32 %v1615, %v10244
    %v10246 = vpop.f32.mrf.mxu0
    %v10247 = vadd.f32 %v1619, %v10246
    %v10248 = vpop.f32.mrf.mxu0
    %v10249 = vpop.f32.mrf.mxu0
    %10250 = vdwg.mxu0
    %10251 = vmatprep.subr.bf16.mxu0 %v6724
    %10252 = vmatpush1.bf16.msra.mxu0 %v6723
    %10253 = vmatprep.subr.bf16.mxu0 %v6716
    %10254 = vmatpush1.bf16.msra.mxu0 %v6715
    %10255 = vmatprep.subr.bf16.mxu0 %v6708
    %10256 = vmatpush1.bf16.msra.mxu0 %v6707
    %10257 = vmatprep.subr.bf16.mxu0 %v6700
    %10258 = vmatpush1.bf16.msra.mxu0 %v6699
    %10259 = vmatprep.subr.bf16.mxu0 %v6692
    %10260 = vmatpush1.bf16.msra.mxu0 %v6691
    %10261 = vmatprep.subr.bf16.mxu0 %v6684
    %10262 = vmatpush1.bf16.msra.mxu0 %v6683
    %10263 = vmatprep.subr.bf16.mxu0 %v6676
    %10264 = vmatpush1.bf16.msra.mxu0 %v6675
    %10265 = vmatprep.subr.bf16.mxu0 %v6668
    %10266 = vmatpush1.bf16.msra.mxu0 %v6667
    %10267 = vmatprep.subr.bf16.mxu0 %v6788
    %10268 = vmatpush2.bf16.msra.mxu0 %v6787
    %10269 = vmatprep.subr.bf16.mxu0 %v6780
    %10270 = vmatpush2.bf16.msra.mxu0 %v6779
    %10271 = vmatprep.subr.bf16.mxu0 %v6772
    %10272 = vmatpush2.bf16.msra.mxu0 %v6771
    %10273 = vmatprep.subr.bf16.mxu0 %v6764
    %10274 = vmatpush2.bf16.msra.mxu0 %v6763
    %10275 = vmatprep.subr.bf16.mxu0 %v6756
    %10276 = vmatpush2.bf16.msra.mxu0 %v6755
    %10277 = vmatprep.subr.bf16.mxu0 %v6748
    %10278 = vmatpush2.bf16.msra.mxu0 %v6747
    %10279 = vmatprep.subr.bf16.mxu0 %v6740
    %10280 = vmatpush2.bf16.msra.mxu0 %v6739
    %10281 = vmatprep.subr.bf16.mxu0 %v6732
    %10282 = vmatpush2.bf16.msra.mxu0 %v6731
    %10283 = vmatprep.mubr.bf16.mxu0 %v1695
    %10284 = vmatmul.mubr.bf16.gmra.mxu0 %v1693
    %v10285 = vpop.f32.mrf.mxu0
    %v10286 = vadd.f32 %v10245, %v10285
    %v10287 = vpop.f32.mrf.mxu0
    %v10288 = vadd.f32 %v10247, %v10287
    %v10289 = vpop.f32.mrf.mxu0
    %v10290 = vpop.f32.mrf.mxu0
    %10291 = vdwg.mxu0
    %10292 = vmatprep.subr.bf16.mxu0 %v6852
    %10293 = vmatpush1.bf16.msra.mxu0 %v6851
    %10294 = vmatprep.subr.bf16.mxu0 %v6844
    %10295 = vmatpush1.bf16.msra.mxu0 %v6843
    %10296 = vmatprep.subr.bf16.mxu0 %v6836
    %10297 = vmatpush1.bf16.msra.mxu0 %v6835
    %10298 = vmatprep.subr.bf16.mxu0 %v6828
    %10299 = vmatpush1.bf16.msra.mxu0 %v6827
    %10300 = vmatprep.subr.bf16.mxu0 %v6820
    %10301 = vmatpush1.bf16.msra.mxu0 %v6819
    %10302 = vmatprep.subr.bf16.mxu0 %v6812
    %10303 = vmatpush1.bf16.msra.mxu0 %v6811
    %10304 = vmatprep.subr.bf16.mxu0 %v6804
    %10305 = vmatpush1.bf16.msra.mxu0 %v6803
    %10306 = vmatprep.subr.bf16.mxu0 %v6796
    %10307 = vmatpush1.bf16.msra.mxu0 %v6795
    %10308 = vmatprep.subr.bf16.mxu0 %v6916
    %10309 = vmatpush2.bf16.msra.mxu0 %v6915
    %10310 = vmatprep.subr.bf16.mxu0 %v6908
    %10311 = vmatpush2.bf16.msra.mxu0 %v6907
    %10312 = vmatprep.subr.bf16.mxu0 %v6900
    %10313 = vmatpush2.bf16.msra.mxu0 %v6899
    %10314 = vmatprep.subr.bf16.mxu0 %v6892
    %10315 = vmatpush2.bf16.msra.mxu0 %v6891
    %10316 = vmatprep.subr.bf16.mxu0 %v6884
    %10317 = vmatpush2.bf16.msra.mxu0 %v6883
    %10318 = vmatprep.subr.bf16.mxu0 %v6876
    %10319 = vmatpush2.bf16.msra.mxu0 %v6875
    %10320 = vmatprep.subr.bf16.mxu0 %v6868
    %10321 = vmatpush2.bf16.msra.mxu0 %v6867
    %10322 = vmatprep.subr.bf16.mxu0 %v6860
    %10323 = vmatpush2.bf16.msra.mxu0 %v6859
    %10324 = vmatprep.mubr.bf16.mxu0 %v1692
    %10325 = vmatmul.mubr.bf16.gmra.mxu0 %v1678
    %v10326 = vpop.f32.mrf.mxu0
    %v10327 = vadd.f32 %v10286, %v10326
    %v10328 = vpop.f32.mrf.mxu0
    %v10329 = vadd.f32 %v10288, %v10328
    %v10330 = vpop.f32.mrf.mxu0
    %v10331 = vpop.f32.mrf.mxu0
    %10332 = vdwg.mxu0
    %10333 = vmatprep.subr.bf16.mxu0 %v6980
    %10334 = vmatpush1.bf16.msra.mxu0 %v6979
    %10335 = vmatprep.subr.bf16.mxu0 %v6972
    %10336 = vmatpush1.bf16.msra.mxu0 %v6971
    %10337 = vmatprep.subr.bf16.mxu0 %v6964
    %10338 = vmatpush1.bf16.msra.mxu0 %v6963
    %10339 = vmatprep.subr.bf16.mxu0 %v6956
    %10340 = vmatpush1.bf16.msra.mxu0 %v6955
    %10341 = vmatprep.subr.bf16.mxu0 %v6948
    %10342 = vmatpush1.bf16.msra.mxu0 %v6947
    %10343 = vmatprep.subr.bf16.mxu0 %v6940
    %10344 = vmatpush1.bf16.msra.mxu0 %v6939
    %10345 = vmatprep.subr.bf16.mxu0 %v6932
    %10346 = vmatpush1.bf16.msra.mxu0 %v6931
    %10347 = vmatprep.subr.bf16.mxu0 %v6924
    %10348 = vmatpush1.bf16.msra.mxu0 %v6923
    %10349 = vmatprep.subr.bf16.mxu0 %v7044
    %10350 = vmatpush2.bf16.msra.mxu0 %v7043
    %10351 = vmatprep.subr.bf16.mxu0 %v7036
    %10352 = vmatpush2.bf16.msra.mxu0 %v7035
    %10353 = vmatprep.subr.bf16.mxu0 %v7028
    %10354 = vmatpush2.bf16.msra.mxu0 %v7027
    %10355 = vmatprep.subr.bf16.mxu0 %v7020
    %10356 = vmatpush2.bf16.msra.mxu0 %v7019
    %10357 = vmatprep.subr.bf16.mxu0 %v7012
    %10358 = vmatpush2.bf16.msra.mxu0 %v7011
    %10359 = vmatprep.subr.bf16.mxu0 %v7004
    %10360 = vmatpush2.bf16.msra.mxu0 %v7003
    %10361 = vmatprep.subr.bf16.mxu0 %v6996
    %10362 = vmatpush2.bf16.msra.mxu0 %v6995
    %10363 = vmatprep.subr.bf16.mxu0 %v6988
    %10364 = vmatpush2.bf16.msra.mxu0 %v6987
    %10365 = vmatprep.mubr.bf16.mxu0 %v1696
    %10366 = vmatmul.mubr.bf16.gmra.mxu0 %v1694
    %v10367 = vpop.f32.mrf.mxu0
    %v10368 = vadd.f32 %v10327, %v10367
    %v10369 = vpop.f32.mrf.mxu0
    %v10370 = vadd.f32 %v10329, %v10369
    %v10371 = vpop.f32.mrf.mxu0
    %v10372 = vpop.f32.mrf.mxu0
    %10373 = vdwg.mxu0
    %10374 = vmatprep.subr.bf16.mxu0 %v7108
    %10375 = vmatpush1.bf16.msra.mxu0 %v7107
    %10376 = vmatprep.subr.bf16.mxu0 %v7100
    %10377 = vmatpush1.bf16.msra.mxu0 %v7099
    %10378 = vmatprep.subr.bf16.mxu0 %v7092
    %10379 = vmatpush1.bf16.msra.mxu0 %v7091
    %10380 = vmatprep.subr.bf16.mxu0 %v7084
    %10381 = vmatpush1.bf16.msra.mxu0 %v7083
    %10382 = vmatprep.subr.bf16.mxu0 %v7076
    %10383 = vmatpush1.bf16.msra.mxu0 %v7075
    %10384 = vmatprep.subr.bf16.mxu0 %v7068
    %10385 = vmatpush1.bf16.msra.mxu0 %v7067
    %10386 = vmatprep.subr.bf16.mxu0 %v7060
    %10387 = vmatpush1.bf16.msra.mxu0 %v7059
    %10388 = vmatprep.subr.bf16.mxu0 %v7052
    %10389 = vmatpush1.bf16.msra.mxu0 %v7051
    %10390 = vmatprep.subr.bf16.mxu0 %v7172
    %10391 = vmatpush2.bf16.msra.mxu0 %v7171
    %10392 = vmatprep.subr.bf16.mxu0 %v7164
    %10393 = vmatpush2.bf16.msra.mxu0 %v7163
    %10394 = vmatprep.subr.bf16.mxu0 %v7156
    %10395 = vmatpush2.bf16.msra.mxu0 %v7155
    %10396 = vmatprep.subr.bf16.mxu0 %v7148
    %10397 = vmatpush2.bf16.msra.mxu0 %v7147
    %10398 = vmatprep.subr.bf16.mxu0 %v7140
    %10399 = vmatpush2.bf16.msra.mxu0 %v7139
    %10400 = vmatprep.subr.bf16.mxu0 %v7132
    %10401 = vmatpush2.bf16.msra.mxu0 %v7131
    %10402 = vmatprep.subr.bf16.mxu0 %v7124
    %10403 = vmatpush2.bf16.msra.mxu0 %v7123
    %10404 = vmatprep.subr.bf16.mxu0 %v7116
    %10405 = vmatpush2.bf16.msra.mxu0 %v7115
    %10406 = vmatprep.mubr.bf16.mxu0 %v1734
    %10407 = vmatmul.mubr.bf16.gmra.mxu0 %v1720
    %v10408 = vpop.f32.mrf.mxu0
    %v10409 = vadd.f32 %v10368, %v10408
    %v10410 = vpop.f32.mrf.mxu0
    %v10411 = vadd.f32 %v10370, %v10410
    %v10412 = vpop.f32.mrf.mxu0
    %v10413 = vpop.f32.mrf.mxu0
    %10414 = vdwg.mxu0
    %10415 = vmatprep.subr.bf16.mxu0 %v7236
    %10416 = vmatpush1.bf16.msra.mxu0 %v7235
    %10417 = vmatprep.subr.bf16.mxu0 %v7228
    %10418 = vmatpush1.bf16.msra.mxu0 %v7227
    %10419 = vmatprep.subr.bf16.mxu0 %v7220
    %10420 = vmatpush1.bf16.msra.mxu0 %v7219
    %10421 = vmatprep.subr.bf16.mxu0 %v7212
    %10422 = vmatpush1.bf16.msra.mxu0 %v7211
    %10423 = vmatprep.subr.bf16.mxu0 %v7204
    %10424 = vmatpush1.bf16.msra.mxu0 %v7203
    %10425 = vmatprep.subr.bf16.mxu0 %v7196
    %10426 = vmatpush1.bf16.msra.mxu0 %v7195
    %10427 = vmatprep.subr.bf16.mxu0 %v7188
    %10428 = vmatpush1.bf16.msra.mxu0 %v7187
    %10429 = vmatprep.subr.bf16.mxu0 %v7180
    %10430 = vmatpush1.bf16.msra.mxu0 %v7179
    %10431 = vmatprep.subr.bf16.mxu0 %v7300
    %10432 = vmatpush2.bf16.msra.mxu0 %v7299
    %10433 = vmatprep.subr.bf16.mxu0 %v7292
    %10434 = vmatpush2.bf16.msra.mxu0 %v7291
    %10435 = vmatprep.subr.bf16.mxu0 %v7284
    %10436 = vmatpush2.bf16.msra.mxu0 %v7283
    %10437 = vmatprep.subr.bf16.mxu0 %v7276
    %10438 = vmatpush2.bf16.msra.mxu0 %v7275
    %10439 = vmatprep.subr.bf16.mxu0 %v7268
    %10440 = vmatpush2.bf16.msra.mxu0 %v7267
    %10441 = vmatprep.subr.bf16.mxu0 %v7260
    %10442 = vmatpush2.bf16.msra.mxu0 %v7259
    %10443 = vmatprep.subr.bf16.mxu0 %v7252
    %10444 = vmatpush2.bf16.msra.mxu0 %v7251
    %10445 = vmatprep.subr.bf16.mxu0 %v7244
    %10446 = vmatpush2.bf16.msra.mxu0 %v7243
    %10447 = vmatprep.mubr.bf16.mxu0 %v1744
    %10448 = vmatmul.mubr.bf16.gmra.mxu0 %v1742
    %v10449 = vpop.f32.mrf.mxu0
    %v10450 = vadd.f32 %v10409, %v10449
    %v10451 = vpop.f32.mrf.mxu0
    %v10452 = vadd.f32 %v10411, %v10451
    %v10453 = vpop.f32.mrf.mxu0
    %v10454 = vpop.f32.mrf.mxu0
    %10455 = vdwg.mxu0
    %10456 = vmatprep.subr.bf16.mxu0 %v7364
    %10457 = vmatpush1.bf16.msra.mxu0 %v7363
    %10458 = vmatprep.subr.bf16.mxu0 %v7356
    %10459 = vmatpush1.bf16.msra.mxu0 %v7355
    %10460 = vmatprep.subr.bf16.mxu0 %v7348
    %10461 = vmatpush1.bf16.msra.mxu0 %v7347
    %10462 = vmatprep.subr.bf16.mxu0 %v7340
    %10463 = vmatpush1.bf16.msra.mxu0 %v7339
    %10464 = vmatprep.subr.bf16.mxu0 %v7332
    %10465 = vmatpush1.bf16.msra.mxu0 %v7331
    %10466 = vmatprep.subr.bf16.mxu0 %v7324
    %10467 = vmatpush1.bf16.msra.mxu0 %v7323
    %10468 = vmatprep.subr.bf16.mxu0 %v7316
    %10469 = vmatpush1.bf16.msra.mxu0 %v7315
    %10470 = vmatprep.subr.bf16.mxu0 %v7308
    %10471 = vmatpush1.bf16.msra.mxu0 %v7307
    %10472 = vmatprep.subr.bf16.mxu0 %v7428
    %10473 = vmatpush2.bf16.msra.mxu0 %v7427
    %10474 = vmatprep.subr.bf16.mxu0 %v7420
    %10475 = vmatpush2.bf16.msra.mxu0 %v7419
    %10476 = vmatprep.subr.bf16.mxu0 %v7412
    %10477 = vmatpush2.bf16.msra.mxu0 %v7411
    %10478 = vmatprep.subr.bf16.mxu0 %v7404
    %10479 = vmatpush2.bf16.msra.mxu0 %v7403
    %10480 = vmatprep.subr.bf16.mxu0 %v7396
    %10481 = vmatpush2.bf16.msra.mxu0 %v7395
    %10482 = vmatprep.subr.bf16.mxu0 %v7388
    %10483 = vmatpush2.bf16.msra.mxu0 %v7387
    %10484 = vmatprep.subr.bf16.mxu0 %v7380
    %10485 = vmatpush2.bf16.msra.mxu0 %v7379
    %10486 = vmatprep.subr.bf16.mxu0 %v7372
    %10487 = vmatpush2.bf16.msra.mxu0 %v7371
    %10488 = vmatprep.mubr.bf16.mxu0 %v1741
    %10489 = vmatmul.mubr.bf16.gmra.mxu0 %v1727
    %v10490 = vpop.f32.mrf.mxu0
    %v10491 = vadd.f32 %v10450, %v10490
    %v10492 = vpop.f32.mrf.mxu0
    %v10493 = vadd.f32 %v10452, %v10492
    %v10494 = vpop.f32.mrf.mxu0
    %v10495 = vpop.f32.mrf.mxu0
    %10496 = vdwg.mxu0
    %10497 = vmatprep.subr.bf16.mxu0 %v7492
    %10498 = vmatpush1.bf16.msra.mxu0 %v7491
    %10499 = vmatprep.subr.bf16.mxu0 %v7484
    %10500 = vmatpush1.bf16.msra.mxu0 %v7483
    %10501 = vmatprep.subr.bf16.mxu0 %v7476
    %10502 = vmatpush1.bf16.msra.mxu0 %v7475
    %10503 = vmatprep.subr.bf16.mxu0 %v7468
    %10504 = vmatpush1.bf16.msra.mxu0 %v7467
    %10505 = vmatprep.subr.bf16.mxu0 %v7460
    %10506 = vmatpush1.bf16.msra.mxu0 %v7459
    %10507 = vmatprep.subr.bf16.mxu0 %v7452
    %10508 = vmatpush1.bf16.msra.mxu0 %v7451
    %10509 = vmatprep.subr.bf16.mxu0 %v7444
    %10510 = vmatpush1.bf16.msra.mxu0 %v7443
    %10511 = vmatprep.subr.bf16.mxu0 %v7436
    %10512 = vmatpush1.bf16.msra.mxu0 %v7435
    %10513 = vmatprep.subr.bf16.mxu0 %v7556
    %10514 = vmatpush2.bf16.msra.mxu0 %v7555
    %10515 = vmatprep.subr.bf16.mxu0 %v7548
    %10516 = vmatpush2.bf16.msra.mxu0 %v7547
    %10517 = vmatprep.subr.bf16.mxu0 %v7540
    %10518 = vmatpush2.bf16.msra.mxu0 %v7539
    %10519 = vmatprep.subr.bf16.mxu0 %v7532
    %10520 = vmatpush2.bf16.msra.mxu0 %v7531
    %10521 = vmatprep.subr.bf16.mxu0 %v7524
    %10522 = vmatpush2.bf16.msra.mxu0 %v7523
    %10523 = vmatprep.subr.bf16.mxu0 %v7516
    %10524 = vmatpush2.bf16.msra.mxu0 %v7515
    %10525 = vmatprep.subr.bf16.mxu0 %v7508
    %10526 = vmatpush2.bf16.msra.mxu0 %v7507
    %10527 = vmatprep.subr.bf16.mxu0 %v7500
    %10528 = vmatpush2.bf16.msra.mxu0 %v7499
    %10529 = vmatprep.mubr.bf16.mxu0 %v1745
    %10530 = vmatmul.mubr.bf16.gmra.mxu0 %v1743
    %v10531 = vpop.f32.mrf.mxu0
    %v10532 = vadd.f32 %v10491, %v10531
    %v10533 = vpop.f32.mrf.mxu0
    %v10534 = vadd.f32 %v10493, %v10533
    %v10535 = vpop.f32.mrf.mxu0
    %v10536 = vpop.f32.mrf.mxu0
    %10537 = vdwg.mxu0
    %10538 = vmatprep.subr.bf16.mxu0 %v7620
    %10539 = vmatpush1.bf16.msra.mxu0 %v7619
    %10540 = vmatprep.subr.bf16.mxu0 %v7612
    %10541 = vmatpush1.bf16.msra.mxu0 %v7611
    %10542 = vmatprep.subr.bf16.mxu0 %v7604
    %10543 = vmatpush1.bf16.msra.mxu0 %v7603
    %10544 = vmatprep.subr.bf16.mxu0 %v7596
    %10545 = vmatpush1.bf16.msra.mxu0 %v7595
    %10546 = vmatprep.subr.bf16.mxu0 %v7588
    %10547 = vmatpush1.bf16.msra.mxu0 %v7587
    %10548 = vmatprep.subr.bf16.mxu0 %v7580
    %10549 = vmatpush1.bf16.msra.mxu0 %v7579
    %10550 = vmatprep.subr.bf16.mxu0 %v7572
    %10551 = vmatpush1.bf16.msra.mxu0 %v7571
    %10552 = vmatprep.subr.bf16.mxu0 %v7564
    %10553 = vmatpush1.bf16.msra.mxu0 %v7563
    %10554 = vmatprep.subr.bf16.mxu0 %v7684
    %10555 = vmatpush2.bf16.msra.mxu0 %v7683
    %10556 = vmatprep.subr.bf16.mxu0 %v7676
    %10557 = vmatpush2.bf16.msra.mxu0 %v7675
    %10558 = vmatprep.subr.bf16.mxu0 %v7668
    %10559 = vmatpush2.bf16.msra.mxu0 %v7667
    %10560 = vmatprep.subr.bf16.mxu0 %v7660
    %10561 = vmatpush2.bf16.msra.mxu0 %v7659
    %10562 = vmatprep.subr.bf16.mxu0 %v7652
    %10563 = vmatpush2.bf16.msra.mxu0 %v7651
    %10564 = vmatprep.subr.bf16.mxu0 %v7644
    %10565 = vmatpush2.bf16.msra.mxu0 %v7643
    %10566 = vmatprep.subr.bf16.mxu0 %v7636
    %10567 = vmatpush2.bf16.msra.mxu0 %v7635
    %10568 = vmatprep.subr.bf16.mxu0 %v7628
    %10569 = vmatpush2.bf16.msra.mxu0 %v7627
    %10570 = vmatprep.mubr.bf16.mxu0 %v1783
    %10571 = vmatmul.mubr.bf16.gmra.mxu0 %v1769
    %v10572 = vpop.f32.mrf.mxu0
    %v10573 = vadd.f32 %v10532, %v10572
    %v10574 = vpop.f32.mrf.mxu0
    %v10575 = vadd.f32 %v10534, %v10574
    %v10576 = vpop.f32.mrf.mxu0
    %v10577 = vpop.f32.mrf.mxu0
    %10578 = vdwg.mxu0
    %10579 = vmatprep.subr.bf16.mxu0 %v7748
    %10580 = vmatpush1.bf16.msra.mxu0 %v7747
    %10581 = vmatprep.subr.bf16.mxu0 %v7740
    %10582 = vmatpush1.bf16.msra.mxu0 %v7739
    %10583 = vmatprep.subr.bf16.mxu0 %v7732
    %10584 = vmatpush1.bf16.msra.mxu0 %v7731
    %10585 = vmatprep.subr.bf16.mxu0 %v7724
    %10586 = vmatpush1.bf16.msra.mxu0 %v7723
    %10587 = vmatprep.subr.bf16.mxu0 %v7716
    %10588 = vmatpush1.bf16.msra.mxu0 %v7715
    %10589 = vmatprep.subr.bf16.mxu0 %v7708
    %10590 = vmatpush1.bf16.msra.mxu0 %v7707
    %10591 = vmatprep.subr.bf16.mxu0 %v7700
    %10592 = vmatpush1.bf16.msra.mxu0 %v7699
    %10593 = vmatprep.subr.bf16.mxu0 %v7692
    %10594 = vmatpush1.bf16.msra.mxu0 %v7691
    %10595 = vmatprep.subr.bf16.mxu0 %v7812
    %10596 = vmatpush2.bf16.msra.mxu0 %v7811
    %10597 = vmatprep.subr.bf16.mxu0 %v7804
    %10598 = vmatpush2.bf16.msra.mxu0 %v7803
    %10599 = vmatprep.subr.bf16.mxu0 %v7796
    %10600 = vmatpush2.bf16.msra.mxu0 %v7795
    %10601 = vmatprep.subr.bf16.mxu0 %v7788
    %10602 = vmatpush2.bf16.msra.mxu0 %v7787
    %10603 = vmatprep.subr.bf16.mxu0 %v7780
    %10604 = vmatpush2.bf16.msra.mxu0 %v7779
    %10605 = vmatprep.subr.bf16.mxu0 %v7772
    %10606 = vmatpush2.bf16.msra.mxu0 %v7771
    %10607 = vmatprep.subr.bf16.mxu0 %v7764
    %10608 = vmatpush2.bf16.msra.mxu0 %v7763
    %10609 = vmatprep.subr.bf16.mxu0 %v7756
    %10610 = vmatpush2.bf16.msra.mxu0 %v7755
    %10611 = vmatprep.mubr.bf16.mxu0 %v1793
    %10612 = vmatmul.mubr.bf16.gmra.mxu0 %v1791
    %v10613 = vpop.f32.mrf.mxu0
    %v10614 = vadd.f32 %v10573, %v10613
    %v10615 = vpop.f32.mrf.mxu0
    %v10616 = vadd.f32 %v10575, %v10615
    %v10617 = vpop.f32.mrf.mxu0
    %v10618 = vpop.f32.mrf.mxu0
    %10619 = vdwg.mxu0
    %10620 = vmatprep.subr.bf16.mxu0 %v7876
    %10621 = vmatpush1.bf16.msra.mxu0 %v7875
    %10622 = vmatprep.subr.bf16.mxu0 %v7868
    %10623 = vmatpush1.bf16.msra.mxu0 %v7867
    %10624 = vmatprep.subr.bf16.mxu0 %v7860
    %10625 = vmatpush1.bf16.msra.mxu0 %v7859
    %10626 = vmatprep.subr.bf16.mxu0 %v7852
    %10627 = vmatpush1.bf16.msra.mxu0 %v7851
    %10628 = vmatprep.subr.bf16.mxu0 %v7844
    %10629 = vmatpush1.bf16.msra.mxu0 %v7843
    %10630 = vmatprep.subr.bf16.mxu0 %v7836
    %10631 = vmatpush1.bf16.msra.mxu0 %v7835
    %10632 = vmatprep.subr.bf16.mxu0 %v7828
    %10633 = vmatpush1.bf16.msra.mxu0 %v7827
    %10634 = vmatprep.subr.bf16.mxu0 %v7820
    %10635 = vmatpush1.bf16.msra.mxu0 %v7819
    %10636 = vmatprep.subr.bf16.mxu0 %v7940
    %10637 = vmatpush2.bf16.msra.mxu0 %v7939
    %10638 = vmatprep.subr.bf16.mxu0 %v7932
    %10639 = vmatpush2.bf16.msra.mxu0 %v7931
    %10640 = vmatprep.subr.bf16.mxu0 %v7924
    %10641 = vmatpush2.bf16.msra.mxu0 %v7923
    %10642 = vmatprep.subr.bf16.mxu0 %v7916
    %10643 = vmatpush2.bf16.msra.mxu0 %v7915
    %10644 = vmatprep.subr.bf16.mxu0 %v7908
    %10645 = vmatpush2.bf16.msra.mxu0 %v7907
    %10646 = vmatprep.subr.bf16.mxu0 %v7900
    %10647 = vmatpush2.bf16.msra.mxu0 %v7899
    %10648 = vmatprep.subr.bf16.mxu0 %v7892
    %10649 = vmatpush2.bf16.msra.mxu0 %v7891
    %10650 = vmatprep.subr.bf16.mxu0 %v7884
    %10651 = vmatpush2.bf16.msra.mxu0 %v7883
    %10652 = vmatprep.mubr.bf16.mxu0 %v1790
    %10653 = vmatmul.mubr.bf16.gmra.mxu0 %v1776
    %v10654 = vpop.f32.mrf.mxu0
    %v10655 = vadd.f32 %v10614, %v10654
    %v10656 = vpop.f32.mrf.mxu0
    %v10657 = vadd.f32 %v10616, %v10656
    %v10658 = vpop.f32.mrf.mxu0
    %v10659 = vpop.f32.mrf.mxu0
    %10660 = vdwg.mxu0
    %10661 = vmatprep.subr.bf16.mxu0 %v8004
    %10662 = vmatpush1.bf16.msra.mxu0 %v8003
    %10663 = vmatprep.subr.bf16.mxu0 %v7996
    %10664 = vmatpush1.bf16.msra.mxu0 %v7995
    %10665 = vmatprep.subr.bf16.mxu0 %v7988
    %10666 = vmatpush1.bf16.msra.mxu0 %v7987
    %10667 = vmatprep.subr.bf16.mxu0 %v7980
    %10668 = vmatpush1.bf16.msra.mxu0 %v7979
    %10669 = vmatprep.subr.bf16.mxu0 %v7972
    %10670 = vmatpush1.bf16.msra.mxu0 %v7971
    %10671 = vmatprep.subr.bf16.mxu0 %v7964
    %10672 = vmatpush1.bf16.msra.mxu0 %v7963
    %10673 = vmatprep.subr.bf16.mxu0 %v7956
    %10674 = vmatpush1.bf16.msra.mxu0 %v7955
    %10675 = vmatprep.subr.bf16.mxu0 %v7948
    %10676 = vmatpush1.bf16.msra.mxu0 %v7947
    %10677 = vmatprep.subr.bf16.mxu0 %v8068
    %10678 = vmatpush2.bf16.msra.mxu0 %v8067
    %10679 = vmatprep.subr.bf16.mxu0 %v8060
    %10680 = vmatpush2.bf16.msra.mxu0 %v8059
    %10681 = vmatprep.subr.bf16.mxu0 %v8052
    %10682 = vmatpush2.bf16.msra.mxu0 %v8051
    %10683 = vmatprep.subr.bf16.mxu0 %v8044
    %10684 = vmatpush2.bf16.msra.mxu0 %v8043
    %10685 = vmatprep.subr.bf16.mxu0 %v8036
    %10686 = vmatpush2.bf16.msra.mxu0 %v8035
    %10687 = vmatprep.subr.bf16.mxu0 %v8028
    %10688 = vmatpush2.bf16.msra.mxu0 %v8027
    %10689 = vmatprep.subr.bf16.mxu0 %v8020
    %10690 = vmatpush2.bf16.msra.mxu0 %v8019
    %10691 = vmatprep.subr.bf16.mxu0 %v8012
    %10692 = vmatpush2.bf16.msra.mxu0 %v8011
    %10693 = vmatprep.mubr.bf16.mxu0 %v1794
    %10694 = vmatmul.mubr.bf16.gmra.mxu0 %v1792
    %v10695 = vpop.f32.mrf.mxu0
    %v10696 = vadd.f32 %v10655, %v10695
    %v10697 = vpop.f32.mrf.mxu0
    %v10698 = vadd.f32 %v10657, %v10697
    %v10699 = vpop.f32.mrf.mxu0
    %v10700 = vpop.f32.mrf.mxu0
    %10701 = vdwg.mxu0
    %10702 = vmatprep.subr.bf16.mxu0 0
    %10703 = vmatpush1.bf16.msra.mxu0 0
    %10704 = vmatprep.subr.bf16.mxu0 0
    %10705 = vmatpush1.bf16.msra.mxu0 0
    %10706 = vmatprep.subr.bf16.mxu0 0
    %10707 = vmatpush1.bf16.msra.mxu0 0
    %10708 = vmatprep.subr.bf16.mxu0 0
    %10709 = vmatpush1.bf16.msra.mxu0 0
    %10710 = vmatprep.subr.bf16.mxu0 %v8100
    %10711 = vmatpush1.bf16.msra.mxu0 %v8099
    %10712 = vmatprep.subr.bf16.mxu0 %v8092
    %10713 = vmatpush1.bf16.msra.mxu0 %v8091
    %10714 = vmatprep.subr.bf16.mxu0 %v8084
    %10715 = vmatpush1.bf16.msra.mxu0 %v8083
    %10716 = vmatprep.subr.bf16.mxu0 %v8076
    %10717 = vmatpush1.bf16.msra.mxu0 %v8075
    %10718 = vmatprep.subr.bf16.mxu0 0
    %10719 = vmatpush2.bf16.msra.mxu0 0
    %10720 = vmatprep.subr.bf16.mxu0 0
    %10721 = vmatpush2.bf16.msra.mxu0 0
    %10722 = vmatprep.subr.bf16.mxu0 0
    %10723 = vmatpush2.bf16.msra.mxu0 0
    %10724 = vmatprep.subr.bf16.mxu0 0
    %10725 = vmatpush2.bf16.msra.mxu0 0
    %10726 = vmatprep.subr.bf16.mxu0 0
    %10727 = vmatpush2.bf16.msra.mxu0 0
    %10728 = vmatprep.subr.bf16.mxu0 0
    %10729 = vmatpush2.bf16.msra.mxu0 0
    %10730 = vmatprep.subr.bf16.mxu0 0
    %10731 = vmatpush2.bf16.msra.mxu0 0
    %10732 = vmatprep.subr.bf16.mxu0 0
    %10733 = vmatpush2.bf16.msra.mxu0 0
    %10734 = vmatprep.mubr.bf16.mxu0 0
    %10735 = vmatmul.mubr.bf16.gmra.mxu0 %v9675
    %v10736 = vpop.f32.mrf.mxu0
    %v10737 = vadd.f32 %v10696, %v10736
    %v10738 = vpop.f32.mrf.mxu0
    %v10739 = vadd.f32 %v10698, %v10738
    %v10740 = vpop.f32.mrf.mxu0
    %v10741 = vpop.f32.mrf.mxu0
    %10742 = vdwg.mxu0
    %10743 = vmatprep.subr.bf16.mxu0 %v6598
    %10744 = vmatpush1.bf16.msra.mxu0 %v6597
    %10745 = vmatprep.subr.bf16.mxu0 %v6590
    %10746 = vmatpush1.bf16.msra.mxu0 %v6589
    %10747 = vmatprep.subr.bf16.mxu0 %v6582
    %10748 = vmatpush1.bf16.msra.mxu0 %v6581
    %10749 = vmatprep.subr.bf16.mxu0 %v6574
    %10750 = vmatpush1.bf16.msra.mxu0 %v6573
    %10751 = vmatprep.subr.bf16.mxu0 %v6566
    %10752 = vmatpush1.bf16.msra.mxu0 %v6565
    %10753 = vmatprep.subr.bf16.mxu0 %v6558
    %10754 = vmatpush1.bf16.msra.mxu0 %v6557
    %10755 = vmatprep.subr.bf16.mxu0 %v6550
    %10756 = vmatpush1.bf16.msra.mxu0 %v6549
    %10757 = vmatprep.subr.bf16.mxu0 %v6542
    %10758 = vmatpush1.bf16.msra.mxu0 %v6541
    %10759 = vmatprep.subr.bf16.mxu0 %v6662
    %10760 = vmatpush2.bf16.msra.mxu0 %v6661
    %10761 = vmatprep.subr.bf16.mxu0 %v6654
    %10762 = vmatpush2.bf16.msra.mxu0 %v6653
    %10763 = vmatprep.subr.bf16.mxu0 %v6646
    %10764 = vmatpush2.bf16.msra.mxu0 %v6645
    %10765 = vmatprep.subr.bf16.mxu0 %v6638
    %10766 = vmatpush2.bf16.msra.mxu0 %v6637
    %10767 = vmatprep.subr.bf16.mxu0 %v6630
    %10768 = vmatpush2.bf16.msra.mxu0 %v6629
    %10769 = vmatprep.subr.bf16.mxu0 %v6622
    %10770 = vmatpush2.bf16.msra.mxu0 %v6621
    %10771 = vmatprep.subr.bf16.mxu0 %v6614
    %10772 = vmatpush2.bf16.msra.mxu0 %v6613
    %10773 = vmatprep.subr.bf16.mxu0 %v6606
    %10774 = vmatpush2.bf16.msra.mxu0 %v6605
    %10775 = vmatprep.mubr.bf16.mxu0 %v1685
    %10776 = vmatmul.mubr.bf16.gmra.mxu0 %v1671
    %v10777 = vpop.f32.mrf.mxu0
    %v10778 = vadd.f32 %v1623, %v10777
    %v10779 = vpop.f32.mrf.mxu0
    %v10780 = vadd.f32 %v1627, %v10779
    %v10781 = vpop.f32.mrf.mxu0
    %v10782 = vpop.f32.mrf.mxu0
    %10783 = vdwg.mxu0
    %10784 = vmatprep.subr.bf16.mxu0 %v6726
    %10785 = vmatpush1.bf16.msra.mxu0 %v6725
    %10786 = vmatprep.subr.bf16.mxu0 %v6718
    %10787 = vmatpush1.bf16.msra.mxu0 %v6717
    %10788 = vmatprep.subr.bf16.mxu0 %v6710
    %10789 = vmatpush1.bf16.msra.mxu0 %v6709
    %10790 = vmatprep.subr.bf16.mxu0 %v6702
    %10791 = vmatpush1.bf16.msra.mxu0 %v6701
    %10792 = vmatprep.subr.bf16.mxu0 %v6694
    %10793 = vmatpush1.bf16.msra.mxu0 %v6693
    %10794 = vmatprep.subr.bf16.mxu0 %v6686
    %10795 = vmatpush1.bf16.msra.mxu0 %v6685
    %10796 = vmatprep.subr.bf16.mxu0 %v6678
    %10797 = vmatpush1.bf16.msra.mxu0 %v6677
    %10798 = vmatprep.subr.bf16.mxu0 %v6670
    %10799 = vmatpush1.bf16.msra.mxu0 %v6669
    %10800 = vmatprep.subr.bf16.mxu0 %v6790
    %10801 = vmatpush2.bf16.msra.mxu0 %v6789
    %10802 = vmatprep.subr.bf16.mxu0 %v6782
    %10803 = vmatpush2.bf16.msra.mxu0 %v6781
    %10804 = vmatprep.subr.bf16.mxu0 %v6774
    %10805 = vmatpush2.bf16.msra.mxu0 %v6773
    %10806 = vmatprep.subr.bf16.mxu0 %v6766
    %10807 = vmatpush2.bf16.msra.mxu0 %v6765
    %10808 = vmatprep.subr.bf16.mxu0 %v6758
    %10809 = vmatpush2.bf16.msra.mxu0 %v6757
    %10810 = vmatprep.subr.bf16.mxu0 %v6750
    %10811 = vmatpush2.bf16.msra.mxu0 %v6749
    %10812 = vmatprep.subr.bf16.mxu0 %v6742
    %10813 = vmatpush2.bf16.msra.mxu0 %v6741
    %10814 = vmatprep.subr.bf16.mxu0 %v6734
    %10815 = vmatpush2.bf16.msra.mxu0 %v6733
    %10816 = vmatprep.mubr.bf16.mxu0 %v1695
    %10817 = vmatmul.mubr.bf16.gmra.mxu0 %v1693
    %v10818 = vpop.f32.mrf.mxu0
    %v10819 = vadd.f32 %v10778, %v10818
    %v10820 = vpop.f32.mrf.mxu0
    %v10821 = vadd.f32 %v10780, %v10820
    %v10822 = vpop.f32.mrf.mxu0
    %v10823 = vpop.f32.mrf.mxu0
    %10824 = vdwg.mxu0
    %10825 = vmatprep.subr.bf16.mxu0 %v6854
    %10826 = vmatpush1.bf16.msra.mxu0 %v6853
    %10827 = vmatprep.subr.bf16.mxu0 %v6846
    %10828 = vmatpush1.bf16.msra.mxu0 %v6845
    %10829 = vmatprep.subr.bf16.mxu0 %v6838
    %10830 = vmatpush1.bf16.msra.mxu0 %v6837
    %10831 = vmatprep.subr.bf16.mxu0 %v6830
    %10832 = vmatpush1.bf16.msra.mxu0 %v6829
    %10833 = vmatprep.subr.bf16.mxu0 %v6822
    %10834 = vmatpush1.bf16.msra.mxu0 %v6821
    %10835 = vmatprep.subr.bf16.mxu0 %v6814
    %10836 = vmatpush1.bf16.msra.mxu0 %v6813
    %10837 = vmatprep.subr.bf16.mxu0 %v6806
    %10838 = vmatpush1.bf16.msra.mxu0 %v6805
    %10839 = vmatprep.subr.bf16.mxu0 %v6798
    %10840 = vmatpush1.bf16.msra.mxu0 %v6797
    %10841 = vmatprep.subr.bf16.mxu0 %v6918
    %10842 = vmatpush2.bf16.msra.mxu0 %v6917
    %10843 = vmatprep.subr.bf16.mxu0 %v6910
    %10844 = vmatpush2.bf16.msra.mxu0 %v6909
    %10845 = vmatprep.subr.bf16.mxu0 %v6902
    %10846 = vmatpush2.bf16.msra.mxu0 %v6901
    %10847 = vmatprep.subr.bf16.mxu0 %v6894
    %10848 = vmatpush2.bf16.msra.mxu0 %v6893
    %10849 = vmatprep.subr.bf16.mxu0 %v6886
    %10850 = vmatpush2.bf16.msra.mxu0 %v6885
    %10851 = vmatprep.subr.bf16.mxu0 %v6878
    %10852 = vmatpush2.bf16.msra.mxu0 %v6877
    %10853 = vmatprep.subr.bf16.mxu0 %v6870
    %10854 = vmatpush2.bf16.msra.mxu0 %v6869
    %10855 = vmatprep.subr.bf16.mxu0 %v6862
    %10856 = vmatpush2.bf16.msra.mxu0 %v6861
    %10857 = vmatprep.mubr.bf16.mxu0 %v1692
    %10858 = vmatmul.mubr.bf16.gmra.mxu0 %v1678
    %v10859 = vpop.f32.mrf.mxu0
    %v10860 = vadd.f32 %v10819, %v10859
    %v10861 = vpop.f32.mrf.mxu0
    %v10862 = vadd.f32 %v10821, %v10861
    %v10863 = vpop.f32.mrf.mxu0
    %v10864 = vpop.f32.mrf.mxu0
    %10865 = vdwg.mxu0
    %10866 = vmatprep.subr.bf16.mxu0 %v6982
    %10867 = vmatpush1.bf16.msra.mxu0 %v6981
    %10868 = vmatprep.subr.bf16.mxu0 %v6974
    %10869 = vmatpush1.bf16.msra.mxu0 %v6973
    %10870 = vmatprep.subr.bf16.mxu0 %v6966
    %10871 = vmatpush1.bf16.msra.mxu0 %v6965
    %10872 = vmatprep.subr.bf16.mxu0 %v6958
    %10873 = vmatpush1.bf16.msra.mxu0 %v6957
    %10874 = vmatprep.subr.bf16.mxu0 %v6950
    %10875 = vmatpush1.bf16.msra.mxu0 %v6949
    %10876 = vmatprep.subr.bf16.mxu0 %v6942
    %10877 = vmatpush1.bf16.msra.mxu0 %v6941
    %10878 = vmatprep.subr.bf16.mxu0 %v6934
    %10879 = vmatpush1.bf16.msra.mxu0 %v6933
    %10880 = vmatprep.subr.bf16.mxu0 %v6926
    %10881 = vmatpush1.bf16.msra.mxu0 %v6925
    %10882 = vmatprep.subr.bf16.mxu0 %v7046
    %10883 = vmatpush2.bf16.msra.mxu0 %v7045
    %10884 = vmatprep.subr.bf16.mxu0 %v7038
    %10885 = vmatpush2.bf16.msra.mxu0 %v7037
    %10886 = vmatprep.subr.bf16.mxu0 %v7030
    %10887 = vmatpush2.bf16.msra.mxu0 %v7029
    %10888 = vmatprep.subr.bf16.mxu0 %v7022
    %10889 = vmatpush2.bf16.msra.mxu0 %v7021
    %10890 = vmatprep.subr.bf16.mxu0 %v7014
    %10891 = vmatpush2.bf16.msra.mxu0 %v7013
    %10892 = vmatprep.subr.bf16.mxu0 %v7006
    %10893 = vmatpush2.bf16.msra.mxu0 %v7005
    %10894 = vmatprep.subr.bf16.mxu0 %v6998
    %10895 = vmatpush2.bf16.msra.mxu0 %v6997
    %10896 = vmatprep.subr.bf16.mxu0 %v6990
    %10897 = vmatpush2.bf16.msra.mxu0 %v6989
    %10898 = vmatprep.mubr.bf16.mxu0 %v1696
    %10899 = vmatmul.mubr.bf16.gmra.mxu0 %v1694
    %v10900 = vpop.f32.mrf.mxu0
    %v10901 = vadd.f32 %v10860, %v10900
    %v10902 = vpop.f32.mrf.mxu0
    %v10903 = vadd.f32 %v10862, %v10902
    %v10904 = vpop.f32.mrf.mxu0
    %v10905 = vpop.f32.mrf.mxu0
    %10906 = vdwg.mxu0
    %10907 = vmatprep.subr.bf16.mxu0 %v7110
    %10908 = vmatpush1.bf16.msra.mxu0 %v7109
    %10909 = vmatprep.subr.bf16.mxu0 %v7102
    %10910 = vmatpush1.bf16.msra.mxu0 %v7101
    %10911 = vmatprep.subr.bf16.mxu0 %v7094
    %10912 = vmatpush1.bf16.msra.mxu0 %v7093
    %10913 = vmatprep.subr.bf16.mxu0 %v7086
    %10914 = vmatpush1.bf16.msra.mxu0 %v7085
    %10915 = vmatprep.subr.bf16.mxu0 %v7078
    %10916 = vmatpush1.bf16.msra.mxu0 %v7077
    %10917 = vmatprep.subr.bf16.mxu0 %v7070
    %10918 = vmatpush1.bf16.msra.mxu0 %v7069
    %10919 = vmatprep.subr.bf16.mxu0 %v7062
    %10920 = vmatpush1.bf16.msra.mxu0 %v7061
    %10921 = vmatprep.subr.bf16.mxu0 %v7054
    %10922 = vmatpush1.bf16.msra.mxu0 %v7053
    %10923 = vmatprep.subr.bf16.mxu0 %v7174
    %10924 = vmatpush2.bf16.msra.mxu0 %v7173
    %10925 = vmatprep.subr.bf16.mxu0 %v7166
    %10926 = vmatpush2.bf16.msra.mxu0 %v7165
    %10927 = vmatprep.subr.bf16.mxu0 %v7158
    %10928 = vmatpush2.bf16.msra.mxu0 %v7157
    %10929 = vmatprep.subr.bf16.mxu0 %v7150
    %10930 = vmatpush2.bf16.msra.mxu0 %v7149
    %10931 = vmatprep.subr.bf16.mxu0 %v7142
    %10932 = vmatpush2.bf16.msra.mxu0 %v7141
    %10933 = vmatprep.subr.bf16.mxu0 %v7134
    %10934 = vmatpush2.bf16.msra.mxu0 %v7133
    %10935 = vmatprep.subr.bf16.mxu0 %v7126
    %10936 = vmatpush2.bf16.msra.mxu0 %v7125
    %10937 = vmatprep.subr.bf16.mxu0 %v7118
    %10938 = vmatpush2.bf16.msra.mxu0 %v7117
    %10939 = vmatprep.mubr.bf16.mxu0 %v1734
    %10940 = vmatmul.mubr.bf16.gmra.mxu0 %v1720
    %v10941 = vpop.f32.mrf.mxu0
    %v10942 = vadd.f32 %v10901, %v10941
    %v10943 = vpop.f32.mrf.mxu0
    %v10944 = vadd.f32 %v10903, %v10943
    %v10945 = vpop.f32.mrf.mxu0
    %v10946 = vpop.f32.mrf.mxu0
    %10947 = vdwg.mxu0
    %10948 = vmatprep.subr.bf16.mxu0 %v7238
    %10949 = vmatpush1.bf16.msra.mxu0 %v7237
    %10950 = vmatprep.subr.bf16.mxu0 %v7230
    %10951 = vmatpush1.bf16.msra.mxu0 %v7229
    %10952 = vmatprep.subr.bf16.mxu0 %v7222
    %10953 = vmatpush1.bf16.msra.mxu0 %v7221
    %10954 = vmatprep.subr.bf16.mxu0 %v7214
    %10955 = vmatpush1.bf16.msra.mxu0 %v7213
    %10956 = vmatprep.subr.bf16.mxu0 %v7206
    %10957 = vmatpush1.bf16.msra.mxu0 %v7205
    %10958 = vmatprep.subr.bf16.mxu0 %v7198
    %10959 = vmatpush1.bf16.msra.mxu0 %v7197
    %10960 = vmatprep.subr.bf16.mxu0 %v7190
    %10961 = vmatpush1.bf16.msra.mxu0 %v7189
    %10962 = vmatprep.subr.bf16.mxu0 %v7182
    %10963 = vmatpush1.bf16.msra.mxu0 %v7181
    %10964 = vmatprep.subr.bf16.mxu0 %v7302
    %10965 = vmatpush2.bf16.msra.mxu0 %v7301
    %10966 = vmatprep.subr.bf16.mxu0 %v7294
    %10967 = vmatpush2.bf16.msra.mxu0 %v7293
    %10968 = vmatprep.subr.bf16.mxu0 %v7286
    %10969 = vmatpush2.bf16.msra.mxu0 %v7285
    %10970 = vmatprep.subr.bf16.mxu0 %v7278
    %10971 = vmatpush2.bf16.msra.mxu0 %v7277
    %10972 = vmatprep.subr.bf16.mxu0 %v7270
    %10973 = vmatpush2.bf16.msra.mxu0 %v7269
    %10974 = vmatprep.subr.bf16.mxu0 %v7262
    %10975 = vmatpush2.bf16.msra.mxu0 %v7261
    %10976 = vmatprep.subr.bf16.mxu0 %v7254
    %10977 = vmatpush2.bf16.msra.mxu0 %v7253
    %10978 = vmatprep.subr.bf16.mxu0 %v7246
    %10979 = vmatpush2.bf16.msra.mxu0 %v7245
    %10980 = vmatprep.mubr.bf16.mxu0 %v1744
    %10981 = vmatmul.mubr.bf16.gmra.mxu0 %v1742
    %v10982 = vpop.f32.mrf.mxu0
    %v10983 = vadd.f32 %v10942, %v10982
    %v10984 = vpop.f32.mrf.mxu0
    %v10985 = vadd.f32 %v10944, %v10984
    %v10986 = vpop.f32.mrf.mxu0
    %v10987 = vpop.f32.mrf.mxu0
    %10988 = vdwg.mxu0
    %10989 = vmatprep.subr.bf16.mxu0 %v7366
    %10990 = vmatpush1.bf16.msra.mxu0 %v7365
    %10991 = vmatprep.subr.bf16.mxu0 %v7358
    %10992 = vmatpush1.bf16.msra.mxu0 %v7357
    %10993 = vmatprep.subr.bf16.mxu0 %v7350
    %10994 = vmatpush1.bf16.msra.mxu0 %v7349
    %10995 = vmatprep.subr.bf16.mxu0 %v7342
    %10996 = vmatpush1.bf16.msra.mxu0 %v7341
    %10997 = vmatprep.subr.bf16.mxu0 %v7334
    %10998 = vmatpush1.bf16.msra.mxu0 %v7333
    %10999 = vmatprep.subr.bf16.mxu0 %v7326
    %11000 = vmatpush1.bf16.msra.mxu0 %v7325
    %11001 = vmatprep.subr.bf16.mxu0 %v7318
    %11002 = vmatpush1.bf16.msra.mxu0 %v7317
    %11003 = vmatprep.subr.bf16.mxu0 %v7310
    %11004 = vmatpush1.bf16.msra.mxu0 %v7309
    %11005 = vmatprep.subr.bf16.mxu0 %v7430
    %11006 = vmatpush2.bf16.msra.mxu0 %v7429
    %11007 = vmatprep.subr.bf16.mxu0 %v7422
    %11008 = vmatpush2.bf16.msra.mxu0 %v7421
    %11009 = vmatprep.subr.bf16.mxu0 %v7414
    %11010 = vmatpush2.bf16.msra.mxu0 %v7413
    %11011 = vmatprep.subr.bf16.mxu0 %v7406
    %11012 = vmatpush2.bf16.msra.mxu0 %v7405
    %11013 = vmatprep.subr.bf16.mxu0 %v7398
    %11014 = vmatpush2.bf16.msra.mxu0 %v7397
    %11015 = vmatprep.subr.bf16.mxu0 %v7390
    %11016 = vmatpush2.bf16.msra.mxu0 %v7389
    %11017 = vmatprep.subr.bf16.mxu0 %v7382
    %11018 = vmatpush2.bf16.msra.mxu0 %v7381
    %11019 = vmatprep.subr.bf16.mxu0 %v7374
    %11020 = vmatpush2.bf16.msra.mxu0 %v7373
    %11021 = vmatprep.mubr.bf16.mxu0 %v1741
    %11022 = vmatmul.mubr.bf16.gmra.mxu0 %v1727
    %v11023 = vpop.f32.mrf.mxu0
    %v11024 = vadd.f32 %v10983, %v11023
    %v11025 = vpop.f32.mrf.mxu0
    %v11026 = vadd.f32 %v10985, %v11025
    %v11027 = vpop.f32.mrf.mxu0
    %v11028 = vpop.f32.mrf.mxu0
    %11029 = vdwg.mxu0
    %11030 = vmatprep.subr.bf16.mxu0 %v7494
    %11031 = vmatpush1.bf16.msra.mxu0 %v7493
    %11032 = vmatprep.subr.bf16.mxu0 %v7486
    %11033 = vmatpush1.bf16.msra.mxu0 %v7485
    %11034 = vmatprep.subr.bf16.mxu0 %v7478
    %11035 = vmatpush1.bf16.msra.mxu0 %v7477
    %11036 = vmatprep.subr.bf16.mxu0 %v7470
    %11037 = vmatpush1.bf16.msra.mxu0 %v7469
    %11038 = vmatprep.subr.bf16.mxu0 %v7462
    %11039 = vmatpush1.bf16.msra.mxu0 %v7461
    %11040 = vmatprep.subr.bf16.mxu0 %v7454
    %11041 = vmatpush1.bf16.msra.mxu0 %v7453
    %11042 = vmatprep.subr.bf16.mxu0 %v7446
    %11043 = vmatpush1.bf16.msra.mxu0 %v7445
    %11044 = vmatprep.subr.bf16.mxu0 %v7438
    %11045 = vmatpush1.bf16.msra.mxu0 %v7437
    %11046 = vmatprep.subr.bf16.mxu0 %v7558
    %11047 = vmatpush2.bf16.msra.mxu0 %v7557
    %11048 = vmatprep.subr.bf16.mxu0 %v7550
    %11049 = vmatpush2.bf16.msra.mxu0 %v7549
    %11050 = vmatprep.subr.bf16.mxu0 %v7542
    %11051 = vmatpush2.bf16.msra.mxu0 %v7541
    %11052 = vmatprep.subr.bf16.mxu0 %v7534
    %11053 = vmatpush2.bf16.msra.mxu0 %v7533
    %11054 = vmatprep.subr.bf16.mxu0 %v7526
    %11055 = vmatpush2.bf16.msra.mxu0 %v7525
    %11056 = vmatprep.subr.bf16.mxu0 %v7518
    %11057 = vmatpush2.bf16.msra.mxu0 %v7517
    %11058 = vmatprep.subr.bf16.mxu0 %v7510
    %11059 = vmatpush2.bf16.msra.mxu0 %v7509
    %11060 = vmatprep.subr.bf16.mxu0 %v7502
    %11061 = vmatpush2.bf16.msra.mxu0 %v7501
    %11062 = vmatprep.mubr.bf16.mxu0 %v1745
    %11063 = vmatmul.mubr.bf16.gmra.mxu0 %v1743
    %v11064 = vpop.f32.mrf.mxu0
    %v11065 = vadd.f32 %v11024, %v11064
    %v11066 = vpop.f32.mrf.mxu0
    %v11067 = vadd.f32 %v11026, %v11066
    %v11068 = vpop.f32.mrf.mxu0
    %v11069 = vpop.f32.mrf.mxu0
    %11070 = vdwg.mxu0
    %11071 = vmatprep.subr.bf16.mxu0 %v7622
    %11072 = vmatpush1.bf16.msra.mxu0 %v7621
    %11073 = vmatprep.subr.bf16.mxu0 %v7614
    %11074 = vmatpush1.bf16.msra.mxu0 %v7613
    %11075 = vmatprep.subr.bf16.mxu0 %v7606
    %11076 = vmatpush1.bf16.msra.mxu0 %v7605
    %11077 = vmatprep.subr.bf16.mxu0 %v7598
    %11078 = vmatpush1.bf16.msra.mxu0 %v7597
    %11079 = vmatprep.subr.bf16.mxu0 %v7590
    %11080 = vmatpush1.bf16.msra.mxu0 %v7589
    %11081 = vmatprep.subr.bf16.mxu0 %v7582
    %11082 = vmatpush1.bf16.msra.mxu0 %v7581
    %11083 = vmatprep.subr.bf16.mxu0 %v7574
    %11084 = vmatpush1.bf16.msra.mxu0 %v7573
    %11085 = vmatprep.subr.bf16.mxu0 %v7566
    %11086 = vmatpush1.bf16.msra.mxu0 %v7565
    %11087 = vmatprep.subr.bf16.mxu0 %v7686
    %11088 = vmatpush2.bf16.msra.mxu0 %v7685
    %11089 = vmatprep.subr.bf16.mxu0 %v7678
    %11090 = vmatpush2.bf16.msra.mxu0 %v7677
    %11091 = vmatprep.subr.bf16.mxu0 %v7670
    %11092 = vmatpush2.bf16.msra.mxu0 %v7669
    %11093 = vmatprep.subr.bf16.mxu0 %v7662
    %11094 = vmatpush2.bf16.msra.mxu0 %v7661
    %11095 = vmatprep.subr.bf16.mxu0 %v7654
    %11096 = vmatpush2.bf16.msra.mxu0 %v7653
    %11097 = vmatprep.subr.bf16.mxu0 %v7646
    %11098 = vmatpush2.bf16.msra.mxu0 %v7645
    %11099 = vmatprep.subr.bf16.mxu0 %v7638
    %11100 = vmatpush2.bf16.msra.mxu0 %v7637
    %11101 = vmatprep.subr.bf16.mxu0 %v7630
    %11102 = vmatpush2.bf16.msra.mxu0 %v7629
    %11103 = vmatprep.mubr.bf16.mxu0 %v1783
    %11104 = vmatmul.mubr.bf16.gmra.mxu0 %v1769
    %v11105 = vpop.f32.mrf.mxu0
    %v11106 = vadd.f32 %v11065, %v11105
    %v11107 = vpop.f32.mrf.mxu0
    %v11108 = vadd.f32 %v11067, %v11107
    %v11109 = vpop.f32.mrf.mxu0
    %v11110 = vpop.f32.mrf.mxu0
    %11111 = vdwg.mxu0
    %11112 = vmatprep.subr.bf16.mxu0 %v7750
    %11113 = vmatpush1.bf16.msra.mxu0 %v7749
    %11114 = vmatprep.subr.bf16.mxu0 %v7742
    %11115 = vmatpush1.bf16.msra.mxu0 %v7741
    %11116 = vmatprep.subr.bf16.mxu0 %v7734
    %11117 = vmatpush1.bf16.msra.mxu0 %v7733
    %11118 = vmatprep.subr.bf16.mxu0 %v7726
    %11119 = vmatpush1.bf16.msra.mxu0 %v7725
    %11120 = vmatprep.subr.bf16.mxu0 %v7718
    %11121 = vmatpush1.bf16.msra.mxu0 %v7717
    %11122 = vmatprep.subr.bf16.mxu0 %v7710
    %11123 = vmatpush1.bf16.msra.mxu0 %v7709
    %11124 = vmatprep.subr.bf16.mxu0 %v7702
    %11125 = vmatpush1.bf16.msra.mxu0 %v7701
    %11126 = vmatprep.subr.bf16.mxu0 %v7694
    %11127 = vmatpush1.bf16.msra.mxu0 %v7693
    %11128 = vmatprep.subr.bf16.mxu0 %v7814
    %11129 = vmatpush2.bf16.msra.mxu0 %v7813
    %11130 = vmatprep.subr.bf16.mxu0 %v7806
    %11131 = vmatpush2.bf16.msra.mxu0 %v7805
    %11132 = vmatprep.subr.bf16.mxu0 %v7798
    %11133 = vmatpush2.bf16.msra.mxu0 %v7797
    %11134 = vmatprep.subr.bf16.mxu0 %v7790
    %11135 = vmatpush2.bf16.msra.mxu0 %v7789
    %11136 = vmatprep.subr.bf16.mxu0 %v7782
    %11137 = vmatpush2.bf16.msra.mxu0 %v7781
    %11138 = vmatprep.subr.bf16.mxu0 %v7774
    %11139 = vmatpush2.bf16.msra.mxu0 %v7773
    %11140 = vmatprep.subr.bf16.mxu0 %v7766
    %11141 = vmatpush2.bf16.msra.mxu0 %v7765
    %11142 = vmatprep.subr.bf16.mxu0 %v7758
    %11143 = vmatpush2.bf16.msra.mxu0 %v7757
    %11144 = vmatprep.mubr.bf16.mxu0 %v1793
    %11145 = vmatmul.mubr.bf16.gmra.mxu0 %v1791
    %v11146 = vpop.f32.mrf.mxu0
    %v11147 = vadd.f32 %v11106, %v11146
    %v11148 = vpop.f32.mrf.mxu0
    %v11149 = vadd.f32 %v11108, %v11148
    %v11150 = vpop.f32.mrf.mxu0
    %v11151 = vpop.f32.mrf.mxu0
    %11152 = vdwg.mxu0
    %11153 = vmatprep.subr.bf16.mxu0 %v7878
    %11154 = vmatpush1.bf16.msra.mxu0 %v7877
    %11155 = vmatprep.subr.bf16.mxu0 %v7870
    %11156 = vmatpush1.bf16.msra.mxu0 %v7869
    %11157 = vmatprep.subr.bf16.mxu0 %v7862
    %11158 = vmatpush1.bf16.msra.mxu0 %v7861
    %11159 = vmatprep.subr.bf16.mxu0 %v7854
    %11160 = vmatpush1.bf16.msra.mxu0 %v7853
    %11161 = vmatprep.subr.bf16.mxu0 %v7846
    %11162 = vmatpush1.bf16.msra.mxu0 %v7845
    %11163 = vmatprep.subr.bf16.mxu0 %v7838
    %11164 = vmatpush1.bf16.msra.mxu0 %v7837
    %11165 = vmatprep.subr.bf16.mxu0 %v7830
    %11166 = vmatpush1.bf16.msra.mxu0 %v7829
    %11167 = vmatprep.subr.bf16.mxu0 %v7822
    %11168 = vmatpush1.bf16.msra.mxu0 %v7821
    %11169 = vmatprep.subr.bf16.mxu0 %v7942
    %11170 = vmatpush2.bf16.msra.mxu0 %v7941
    %11171 = vmatprep.subr.bf16.mxu0 %v7934
    %11172 = vmatpush2.bf16.msra.mxu0 %v7933
    %11173 = vmatprep.subr.bf16.mxu0 %v7926
    %11174 = vmatpush2.bf16.msra.mxu0 %v7925
    %11175 = vmatprep.subr.bf16.mxu0 %v7918
    %11176 = vmatpush2.bf16.msra.mxu0 %v7917
    %11177 = vmatprep.subr.bf16.mxu0 %v7910
    %11178 = vmatpush2.bf16.msra.mxu0 %v7909
    %11179 = vmatprep.subr.bf16.mxu0 %v7902
    %11180 = vmatpush2.bf16.msra.mxu0 %v7901
    %11181 = vmatprep.subr.bf16.mxu0 %v7894
    %11182 = vmatpush2.bf16.msra.mxu0 %v7893
    %11183 = vmatprep.subr.bf16.mxu0 %v7886
    %11184 = vmatpush2.bf16.msra.mxu0 %v7885
    %11185 = vmatprep.mubr.bf16.mxu0 %v1790
    %11186 = vmatmul.mubr.bf16.gmra.mxu0 %v1776
    %v11187 = vpop.f32.mrf.mxu0
    %v11188 = vadd.f32 %v11147, %v11187
    %v11189 = vpop.f32.mrf.mxu0
    %v11190 = vadd.f32 %v11149, %v11189
    %v11191 = vpop.f32.mrf.mxu0
    %v11192 = vpop.f32.mrf.mxu0
    %11193 = vdwg.mxu0
    %11194 = vmatprep.subr.bf16.mxu0 %v8006
    %11195 = vmatpush1.bf16.msra.mxu0 %v8005
    %11196 = vmatprep.subr.bf16.mxu0 %v7998
    %11197 = vmatpush1.bf16.msra.mxu0 %v7997
    %11198 = vmatprep.subr.bf16.mxu0 %v7990
    %11199 = vmatpush1.bf16.msra.mxu0 %v7989
    %11200 = vmatprep.subr.bf16.mxu0 %v7982
    %11201 = vmatpush1.bf16.msra.mxu0 %v7981
    %11202 = vmatprep.subr.bf16.mxu0 %v7974
    %11203 = vmatpush1.bf16.msra.mxu0 %v7973
    %11204 = vmatprep.subr.bf16.mxu0 %v7966
    %11205 = vmatpush1.bf16.msra.mxu0 %v7965
    %11206 = vmatprep.subr.bf16.mxu0 %v7958
    %11207 = vmatpush1.bf16.msra.mxu0 %v7957
    %11208 = vmatprep.subr.bf16.mxu0 %v7950
    %11209 = vmatpush1.bf16.msra.mxu0 %v7949
    %11210 = vmatprep.subr.bf16.mxu0 %v8070
    %11211 = vmatpush2.bf16.msra.mxu0 %v8069
    %11212 = vmatprep.subr.bf16.mxu0 %v8062
    %11213 = vmatpush2.bf16.msra.mxu0 %v8061
    %11214 = vmatprep.subr.bf16.mxu0 %v8054
    %11215 = vmatpush2.bf16.msra.mxu0 %v8053
    %11216 = vmatprep.subr.bf16.mxu0 %v8046
    %11217 = vmatpush2.bf16.msra.mxu0 %v8045
    %11218 = vmatprep.subr.bf16.mxu0 %v8038
    %11219 = vmatpush2.bf16.msra.mxu0 %v8037
    %11220 = vmatprep.subr.bf16.mxu0 %v8030
    %11221 = vmatpush2.bf16.msra.mxu0 %v8029
    %11222 = vmatprep.subr.bf16.mxu0 %v8022
    %11223 = vmatpush2.bf16.msra.mxu0 %v8021
    %11224 = vmatprep.subr.bf16.mxu0 %v8014
    %11225 = vmatpush2.bf16.msra.mxu0 %v8013
    %11226 = vmatprep.mubr.bf16.mxu0 %v1794
    %11227 = vmatmul.mubr.bf16.gmra.mxu0 %v1792
    %v11228 = vpop.f32.mrf.mxu0
    %v11229 = vadd.f32 %v11188, %v11228
    %v11230 = vpop.f32.mrf.mxu0
    %v11231 = vadd.f32 %v11190, %v11230
    %v11232 = vpop.f32.mrf.mxu0
    %v11233 = vpop.f32.mrf.mxu0
    %11234 = vdwg.mxu0
    %11235 = vmatprep.subr.bf16.mxu0 0
    %11236 = vmatpush1.bf16.msra.mxu0 0
    %11237 = vmatprep.subr.bf16.mxu0 0
    %11238 = vmatpush1.bf16.msra.mxu0 0
    %11239 = vmatprep.subr.bf16.mxu0 0
    %11240 = vmatpush1.bf16.msra.mxu0 0
    %11241 = vmatprep.subr.bf16.mxu0 0
    %11242 = vmatpush1.bf16.msra.mxu0 0
    %11243 = vmatprep.subr.bf16.mxu0 %v8102
    %11244 = vmatpush1.bf16.msra.mxu0 %v8101
    %11245 = vmatprep.subr.bf16.mxu0 %v8094
    %11246 = vmatpush1.bf16.msra.mxu0 %v8093
    %11247 = vmatprep.subr.bf16.mxu0 %v8086
    %11248 = vmatpush1.bf16.msra.mxu0 %v8085
    %11249 = vmatprep.subr.bf16.mxu0 %v8078
    %11250 = vmatpush1.bf16.msra.mxu0 %v8077
    %11251 = vmatprep.subr.bf16.mxu0 0
    %11252 = vmatpush2.bf16.msra.mxu0 0
    %11253 = vmatprep.subr.bf16.mxu0 0
    %11254 = vmatpush2.bf16.msra.mxu0 0
    %11255 = vmatprep.subr.bf16.mxu0 0
    %11256 = vmatpush2.bf16.msra.mxu0 0
    %11257 = vmatprep.subr.bf16.mxu0 0
    %11258 = vmatpush2.bf16.msra.mxu0 0
    %11259 = vmatprep.subr.bf16.mxu0 0
    %11260 = vmatpush2.bf16.msra.mxu0 0
    %11261 = vmatprep.subr.bf16.mxu0 0
    %11262 = vmatpush2.bf16.msra.mxu0 0
    %11263 = vmatprep.subr.bf16.mxu0 0
    %11264 = vmatpush2.bf16.msra.mxu0 0
    %11265 = vmatprep.subr.bf16.mxu0 0
    %11266 = vmatpush2.bf16.msra.mxu0 0
    %11267 = vmatprep.mubr.bf16.mxu0 0
    %11268 = vmatmul.mubr.bf16.gmra.mxu0 %v9675
    %v11269 = vpop.f32.mrf.mxu0
    %v11270 = vadd.f32 %v11229, %v11269
    %v11271 = vpop.f32.mrf.mxu0
    %v11272 = vadd.f32 %v11231, %v11271
    %v11273 = vpop.f32.mrf.mxu0
    %v11274 = vpop.f32.mrf.mxu0
    %11275 = vdwg.mxu0
    %11276 = vmatprep.subr.bf16.mxu0 %v6600
    %11277 = vmatpush1.bf16.msra.mxu0 %v6599
    %11278 = vmatprep.subr.bf16.mxu0 %v6592
    %11279 = vmatpush1.bf16.msra.mxu0 %v6591
    %11280 = vmatprep.subr.bf16.mxu0 %v6584
    %11281 = vmatpush1.bf16.msra.mxu0 %v6583
    %11282 = vmatprep.subr.bf16.mxu0 %v6576
    %11283 = vmatpush1.bf16.msra.mxu0 %v6575
    %11284 = vmatprep.subr.bf16.mxu0 %v6568
    %11285 = vmatpush1.bf16.msra.mxu0 %v6567
    %11286 = vmatprep.subr.bf16.mxu0 %v6560
    %11287 = vmatpush1.bf16.msra.mxu0 %v6559
    %11288 = vmatprep.subr.bf16.mxu0 %v6552
    %11289 = vmatpush1.bf16.msra.mxu0 %v6551
    %11290 = vmatprep.subr.bf16.mxu0 %v6544
    %11291 = vmatpush1.bf16.msra.mxu0 %v6543
    %11292 = vmatprep.subr.bf16.mxu0 %v6664
    %11293 = vmatpush2.bf16.msra.mxu0 %v6663
    %11294 = vmatprep.subr.bf16.mxu0 %v6656
    %11295 = vmatpush2.bf16.msra.mxu0 %v6655
    %11296 = vmatprep.subr.bf16.mxu0 %v6648
    %11297 = vmatpush2.bf16.msra.mxu0 %v6647
    %11298 = vmatprep.subr.bf16.mxu0 %v6640
    %11299 = vmatpush2.bf16.msra.mxu0 %v6639
    %11300 = vmatprep.subr.bf16.mxu0 %v6632
    %11301 = vmatpush2.bf16.msra.mxu0 %v6631
    %11302 = vmatprep.subr.bf16.mxu0 %v6624
    %11303 = vmatpush2.bf16.msra.mxu0 %v6623
    %11304 = vmatprep.subr.bf16.mxu0 %v6616
    %11305 = vmatpush2.bf16.msra.mxu0 %v6615
    %11306 = vmatprep.subr.bf16.mxu0 %v6608
    %11307 = vmatpush2.bf16.msra.mxu0 %v6607
    %11308 = vmatprep.mubr.bf16.mxu0 %v1685
    %11309 = vmatmul.mubr.bf16.gmra.mxu0 %v1671
    %v11310 = vpop.f32.mrf.mxu0
    %v11311 = vadd.f32 %v1631, %v11310
    %v11312 = vpop.f32.mrf.mxu0
    %v11313 = vadd.f32 %v1635, %v11312
    %v11314 = vpop.f32.mrf.mxu0
    %v11315 = vpop.f32.mrf.mxu0
    %11316 = vdwg.mxu0
    %11317 = vmatprep.subr.bf16.mxu0 %v6728
    %11318 = vmatpush1.bf16.msra.mxu0 %v6727
    %11319 = vmatprep.subr.bf16.mxu0 %v6720
    %11320 = vmatpush1.bf16.msra.mxu0 %v6719
    %11321 = vmatprep.subr.bf16.mxu0 %v6712
    %11322 = vmatpush1.bf16.msra.mxu0 %v6711
    %11323 = vmatprep.subr.bf16.mxu0 %v6704
    %11324 = vmatpush1.bf16.msra.mxu0 %v6703
    %11325 = vmatprep.subr.bf16.mxu0 %v6696
    %11326 = vmatpush1.bf16.msra.mxu0 %v6695
    %11327 = vmatprep.subr.bf16.mxu0 %v6688
    %11328 = vmatpush1.bf16.msra.mxu0 %v6687
    %11329 = vmatprep.subr.bf16.mxu0 %v6680
    %11330 = vmatpush1.bf16.msra.mxu0 %v6679
    %11331 = vmatprep.subr.bf16.mxu0 %v6672
    %11332 = vmatpush1.bf16.msra.mxu0 %v6671
    %11333 = vmatprep.subr.bf16.mxu0 %v6792
    %11334 = vmatpush2.bf16.msra.mxu0 %v6791
    %11335 = vmatprep.subr.bf16.mxu0 %v6784
    %11336 = vmatpush2.bf16.msra.mxu0 %v6783
    %11337 = vmatprep.subr.bf16.mxu0 %v6776
    %11338 = vmatpush2.bf16.msra.mxu0 %v6775
    %11339 = vmatprep.subr.bf16.mxu0 %v6768
    %11340 = vmatpush2.bf16.msra.mxu0 %v6767
    %11341 = vmatprep.subr.bf16.mxu0 %v6760
    %11342 = vmatpush2.bf16.msra.mxu0 %v6759
    %11343 = vmatprep.subr.bf16.mxu0 %v6752
    %11344 = vmatpush2.bf16.msra.mxu0 %v6751
    %11345 = vmatprep.subr.bf16.mxu0 %v6744
    %11346 = vmatpush2.bf16.msra.mxu0 %v6743
    %11347 = vmatprep.subr.bf16.mxu0 %v6736
    %11348 = vmatpush2.bf16.msra.mxu0 %v6735
    %11349 = vmatprep.mubr.bf16.mxu0 %v1695
    %11350 = vmatmul.mubr.bf16.gmra.mxu0 %v1693
    %v11351 = vpop.f32.mrf.mxu0
    %v11352 = vadd.f32 %v11311, %v11351
    %v11353 = vpop.f32.mrf.mxu0
    %v11354 = vadd.f32 %v11313, %v11353
    %v11355 = vpop.f32.mrf.mxu0
    %v11356 = vpop.f32.mrf.mxu0
    %11357 = vdwg.mxu0
    %11358 = vmatprep.subr.bf16.mxu0 %v6856
    %11359 = vmatpush1.bf16.msra.mxu0 %v6855
    %11360 = vmatprep.subr.bf16.mxu0 %v6848
    %11361 = vmatpush1.bf16.msra.mxu0 %v6847
    %11362 = vmatprep.subr.bf16.mxu0 %v6840
    %11363 = vmatpush1.bf16.msra.mxu0 %v6839
    %11364 = vmatprep.subr.bf16.mxu0 %v6832
    %11365 = vmatpush1.bf16.msra.mxu0 %v6831
    %11366 = vmatprep.subr.bf16.mxu0 %v6824
    %11367 = vmatpush1.bf16.msra.mxu0 %v6823
    %11368 = vmatprep.subr.bf16.mxu0 %v6816
    %11369 = vmatpush1.bf16.msra.mxu0 %v6815
    %11370 = vmatprep.subr.bf16.mxu0 %v6808
    %11371 = vmatpush1.bf16.msra.mxu0 %v6807
    %11372 = vmatprep.subr.bf16.mxu0 %v6800
    %11373 = vmatpush1.bf16.msra.mxu0 %v6799
    %11374 = vmatprep.subr.bf16.mxu0 %v6920
    %11375 = vmatpush2.bf16.msra.mxu0 %v6919
    %11376 = vmatprep.subr.bf16.mxu0 %v6912
    %11377 = vmatpush2.bf16.msra.mxu0 %v6911
    %11378 = vmatprep.subr.bf16.mxu0 %v6904
    %11379 = vmatpush2.bf16.msra.mxu0 %v6903
    %11380 = vmatprep.subr.bf16.mxu0 %v6896
    %11381 = vmatpush2.bf16.msra.mxu0 %v6895
    %11382 = vmatprep.subr.bf16.mxu0 %v6888
    %11383 = vmatpush2.bf16.msra.mxu0 %v6887
    %11384 = vmatprep.subr.bf16.mxu0 %v6880
    %11385 = vmatpush2.bf16.msra.mxu0 %v6879
    %11386 = vmatprep.subr.bf16.mxu0 %v6872
    %11387 = vmatpush2.bf16.msra.mxu0 %v6871
    %11388 = vmatprep.subr.bf16.mxu0 %v6864
    %11389 = vmatpush2.bf16.msra.mxu0 %v6863
    %11390 = vmatprep.mubr.bf16.mxu0 %v1692
    %11391 = vmatmul.mubr.bf16.gmra.mxu0 %v1678
    %v11392 = vpop.f32.mrf.mxu0
    %v11393 = vadd.f32 %v11352, %v11392
    %v11394 = vpop.f32.mrf.mxu0
    %v11395 = vadd.f32 %v11354, %v11394
    %v11396 = vpop.f32.mrf.mxu0
    %v11397 = vpop.f32.mrf.mxu0
    %11398 = vdwg.mxu0
    %11399 = vmatprep.subr.bf16.mxu0 %v6984
    %11400 = vmatpush1.bf16.msra.mxu0 %v6983
    %11401 = vmatprep.subr.bf16.mxu0 %v6976
    %11402 = vmatpush1.bf16.msra.mxu0 %v6975
    %11403 = vmatprep.subr.bf16.mxu0 %v6968
    %11404 = vmatpush1.bf16.msra.mxu0 %v6967
    %11405 = vmatprep.subr.bf16.mxu0 %v6960
    %11406 = vmatpush1.bf16.msra.mxu0 %v6959
    %11407 = vmatprep.subr.bf16.mxu0 %v6952
    %11408 = vmatpush1.bf16.msra.mxu0 %v6951
    %11409 = vmatprep.subr.bf16.mxu0 %v6944
    %11410 = vmatpush1.bf16.msra.mxu0 %v6943
    %11411 = vmatprep.subr.bf16.mxu0 %v6936
    %11412 = vmatpush1.bf16.msra.mxu0 %v6935
    %11413 = vmatprep.subr.bf16.mxu0 %v6928
    %11414 = vmatpush1.bf16.msra.mxu0 %v6927
    %11415 = vmatprep.subr.bf16.mxu0 %v7048
    %11416 = vmatpush2.bf16.msra.mxu0 %v7047
    %11417 = vmatprep.subr.bf16.mxu0 %v7040
    %11418 = vmatpush2.bf16.msra.mxu0 %v7039
    %11419 = vmatprep.subr.bf16.mxu0 %v7032
    %11420 = vmatpush2.bf16.msra.mxu0 %v7031
    %11421 = vmatprep.subr.bf16.mxu0 %v7024
    %11422 = vmatpush2.bf16.msra.mxu0 %v7023
    %11423 = vmatprep.subr.bf16.mxu0 %v7016
    %11424 = vmatpush2.bf16.msra.mxu0 %v7015
    %11425 = vmatprep.subr.bf16.mxu0 %v7008
    %11426 = vmatpush2.bf16.msra.mxu0 %v7007
    %11427 = vmatprep.subr.bf16.mxu0 %v7000
    %11428 = vmatpush2.bf16.msra.mxu0 %v6999
    %11429 = vmatprep.subr.bf16.mxu0 %v6992
    %11430 = vmatpush2.bf16.msra.mxu0 %v6991
    %11431 = vmatprep.mubr.bf16.mxu0 %v1696
    %11432 = vmatmul.mubr.bf16.gmra.mxu0 %v1694
    %v11433 = vpop.f32.mrf.mxu0
    %v11434 = vadd.f32 %v11393, %v11433
    %v11435 = vpop.f32.mrf.mxu0
    %v11436 = vadd.f32 %v11395, %v11435
    %v11437 = vpop.f32.mrf.mxu0
    %v11438 = vpop.f32.mrf.mxu0
    %11439 = vdwg.mxu0
    %11440 = vmatprep.subr.bf16.mxu0 %v7112
    %11441 = vmatpush1.bf16.msra.mxu0 %v7111
    %11442 = vmatprep.subr.bf16.mxu0 %v7104
    %11443 = vmatpush1.bf16.msra.mxu0 %v7103
    %11444 = vmatprep.subr.bf16.mxu0 %v7096
    %11445 = vmatpush1.bf16.msra.mxu0 %v7095
    %11446 = vmatprep.subr.bf16.mxu0 %v7088
    %11447 = vmatpush1.bf16.msra.mxu0 %v7087
    %11448 = vmatprep.subr.bf16.mxu0 %v7080
    %11449 = vmatpush1.bf16.msra.mxu0 %v7079
    %11450 = vmatprep.subr.bf16.mxu0 %v7072
    %11451 = vmatpush1.bf16.msra.mxu0 %v7071
    %11452 = vmatprep.subr.bf16.mxu0 %v7064
    %11453 = vmatpush1.bf16.msra.mxu0 %v7063
    %11454 = vmatprep.subr.bf16.mxu0 %v7056
    %11455 = vmatpush1.bf16.msra.mxu0 %v7055
    %11456 = vmatprep.subr.bf16.mxu0 %v7176
    %11457 = vmatpush2.bf16.msra.mxu0 %v7175
    %11458 = vmatprep.subr.bf16.mxu0 %v7168
    %11459 = vmatpush2.bf16.msra.mxu0 %v7167
    %11460 = vmatprep.subr.bf16.mxu0 %v7160
    %11461 = vmatpush2.bf16.msra.mxu0 %v7159
    %11462 = vmatprep.subr.bf16.mxu0 %v7152
    %11463 = vmatpush2.bf16.msra.mxu0 %v7151
    %11464 = vmatprep.subr.bf16.mxu0 %v7144
    %11465 = vmatpush2.bf16.msra.mxu0 %v7143
    %11466 = vmatprep.subr.bf16.mxu0 %v7136
    %11467 = vmatpush2.bf16.msra.mxu0 %v7135
    %11468 = vmatprep.subr.bf16.mxu0 %v7128
    %11469 = vmatpush2.bf16.msra.mxu0 %v7127
    %11470 = vmatprep.subr.bf16.mxu0 %v7120
    %11471 = vmatpush2.bf16.msra.mxu0 %v7119
    %11472 = vmatprep.mubr.bf16.mxu0 %v1734
    %11473 = vmatmul.mubr.bf16.gmra.mxu0 %v1720
    %v11474 = vpop.f32.mrf.mxu0
    %v11475 = vadd.f32 %v11434, %v11474
    %v11476 = vpop.f32.mrf.mxu0
    %v11477 = vadd.f32 %v11436, %v11476
    %v11478 = vpop.f32.mrf.mxu0
    %v11479 = vpop.f32.mrf.mxu0
    %11480 = vdwg.mxu0
    %11481 = vmatprep.subr.bf16.mxu0 %v7240
    %11482 = vmatpush1.bf16.msra.mxu0 %v7239
    %11483 = vmatprep.subr.bf16.mxu0 %v7232
    %11484 = vmatpush1.bf16.msra.mxu0 %v7231
    %11485 = vmatprep.subr.bf16.mxu0 %v7224
    %11486 = vmatpush1.bf16.msra.mxu0 %v7223
    %11487 = vmatprep.subr.bf16.mxu0 %v7216
    %11488 = vmatpush1.bf16.msra.mxu0 %v7215
    %11489 = vmatprep.subr.bf16.mxu0 %v7208
    %11490 = vmatpush1.bf16.msra.mxu0 %v7207
    %11491 = vmatprep.subr.bf16.mxu0 %v7200
    %11492 = vmatpush1.bf16.msra.mxu0 %v7199
    %11493 = vmatprep.subr.bf16.mxu0 %v7192
    %11494 = vmatpush1.bf16.msra.mxu0 %v7191
    %11495 = vmatprep.subr.bf16.mxu0 %v7184
    %11496 = vmatpush1.bf16.msra.mxu0 %v7183
    %11497 = vmatprep.subr.bf16.mxu0 %v7304
    %11498 = vmatpush2.bf16.msra.mxu0 %v7303
    %11499 = vmatprep.subr.bf16.mxu0 %v7296
    %11500 = vmatpush2.bf16.msra.mxu0 %v7295
    %11501 = vmatprep.subr.bf16.mxu0 %v7288
    %11502 = vmatpush2.bf16.msra.mxu0 %v7287
    %11503 = vmatprep.subr.bf16.mxu0 %v7280
    %11504 = vmatpush2.bf16.msra.mxu0 %v7279
    %11505 = vmatprep.subr.bf16.mxu0 %v7272
    %11506 = vmatpush2.bf16.msra.mxu0 %v7271
    %11507 = vmatprep.subr.bf16.mxu0 %v7264
    %11508 = vmatpush2.bf16.msra.mxu0 %v7263
    %11509 = vmatprep.subr.bf16.mxu0 %v7256
    %11510 = vmatpush2.bf16.msra.mxu0 %v7255
    %11511 = vmatprep.subr.bf16.mxu0 %v7248
    %11512 = vmatpush2.bf16.msra.mxu0 %v7247
    %11513 = vmatprep.mubr.bf16.mxu0 %v1744
    %11514 = vmatmul.mubr.bf16.gmra.mxu0 %v1742
    %v11515 = vpop.f32.mrf.mxu0
    %v11516 = vadd.f32 %v11475, %v11515
    %v11517 = vpop.f32.mrf.mxu0
    %v11518 = vadd.f32 %v11477, %v11517
    %v11519 = vpop.f32.mrf.mxu0
    %v11520 = vpop.f32.mrf.mxu0
    %11521 = vdwg.mxu0
    %11522 = vmatprep.subr.bf16.mxu0 %v7368
    %11523 = vmatpush1.bf16.msra.mxu0 %v7367
    %11524 = vmatprep.subr.bf16.mxu0 %v7360
    %11525 = vmatpush1.bf16.msra.mxu0 %v7359
    %11526 = vmatprep.subr.bf16.mxu0 %v7352
    %11527 = vmatpush1.bf16.msra.mxu0 %v7351
    %11528 = vmatprep.subr.bf16.mxu0 %v7344
    %11529 = vmatpush1.bf16.msra.mxu0 %v7343
    %11530 = vmatprep.subr.bf16.mxu0 %v7336
    %11531 = vmatpush1.bf16.msra.mxu0 %v7335
    %11532 = vmatprep.subr.bf16.mxu0 %v7328
    %11533 = vmatpush1.bf16.msra.mxu0 %v7327
    %11534 = vmatprep.subr.bf16.mxu0 %v7320
    %11535 = vmatpush1.bf16.msra.mxu0 %v7319
    %11536 = vmatprep.subr.bf16.mxu0 %v7312
    %11537 = vmatpush1.bf16.msra.mxu0 %v7311
    %11538 = vmatprep.subr.bf16.mxu0 %v7432
    %11539 = vmatpush2.bf16.msra.mxu0 %v7431
    %11540 = vmatprep.subr.bf16.mxu0 %v7424
    %11541 = vmatpush2.bf16.msra.mxu0 %v7423
    %11542 = vmatprep.subr.bf16.mxu0 %v7416
    %11543 = vmatpush2.bf16.msra.mxu0 %v7415
    %11544 = vmatprep.subr.bf16.mxu0 %v7408
    %11545 = vmatpush2.bf16.msra.mxu0 %v7407
    %11546 = vmatprep.subr.bf16.mxu0 %v7400
    %11547 = vmatpush2.bf16.msra.mxu0 %v7399
    %11548 = vmatprep.subr.bf16.mxu0 %v7392
    %11549 = vmatpush2.bf16.msra.mxu0 %v7391
    %11550 = vmatprep.subr.bf16.mxu0 %v7384
    %11551 = vmatpush2.bf16.msra.mxu0 %v7383
    %11552 = vmatprep.subr.bf16.mxu0 %v7376
    %11553 = vmatpush2.bf16.msra.mxu0 %v7375
    %11554 = vmatprep.mubr.bf16.mxu0 %v1741
    %11555 = vmatmul.mubr.bf16.gmra.mxu0 %v1727
    %v11556 = vpop.f32.mrf.mxu0
    %v11557 = vadd.f32 %v11516, %v11556
    %v11558 = vpop.f32.mrf.mxu0
    %v11559 = vadd.f32 %v11518, %v11558
    %v11560 = vpop.f32.mrf.mxu0
    %v11561 = vpop.f32.mrf.mxu0
    %11562 = vdwg.mxu0
    %11563 = vmatprep.subr.bf16.mxu0 %v7496
    %11564 = vmatpush1.bf16.msra.mxu0 %v7495
    %11565 = vmatprep.subr.bf16.mxu0 %v7488
    %11566 = vmatpush1.bf16.msra.mxu0 %v7487
    %11567 = vmatprep.subr.bf16.mxu0 %v7480
    %11568 = vmatpush1.bf16.msra.mxu0 %v7479
    %11569 = vmatprep.subr.bf16.mxu0 %v7472
    %11570 = vmatpush1.bf16.msra.mxu0 %v7471
    %11571 = vmatprep.subr.bf16.mxu0 %v7464
    %11572 = vmatpush1.bf16.msra.mxu0 %v7463
    %11573 = vmatprep.subr.bf16.mxu0 %v7456
    %11574 = vmatpush1.bf16.msra.mxu0 %v7455
    %11575 = vmatprep.subr.bf16.mxu0 %v7448
    %11576 = vmatpush1.bf16.msra.mxu0 %v7447
    %11577 = vmatprep.subr.bf16.mxu0 %v7440
    %11578 = vmatpush1.bf16.msra.mxu0 %v7439
    %11579 = vmatprep.subr.bf16.mxu0 %v7560
    %11580 = vmatpush2.bf16.msra.mxu0 %v7559
    %11581 = vmatprep.subr.bf16.mxu0 %v7552
    %11582 = vmatpush2.bf16.msra.mxu0 %v7551
    %11583 = vmatprep.subr.bf16.mxu0 %v7544
    %11584 = vmatpush2.bf16.msra.mxu0 %v7543
    %11585 = vmatprep.subr.bf16.mxu0 %v7536
    %11586 = vmatpush2.bf16.msra.mxu0 %v7535
    %11587 = vmatprep.subr.bf16.mxu0 %v7528
    %11588 = vmatpush2.bf16.msra.mxu0 %v7527
    %11589 = vmatprep.subr.bf16.mxu0 %v7520
    %11590 = vmatpush2.bf16.msra.mxu0 %v7519
    %11591 = vmatprep.subr.bf16.mxu0 %v7512
    %11592 = vmatpush2.bf16.msra.mxu0 %v7511
    %11593 = vmatprep.subr.bf16.mxu0 %v7504
    %11594 = vmatpush2.bf16.msra.mxu0 %v7503
    %11595 = vmatprep.mubr.bf16.mxu0 %v1745
    %11596 = vmatmul.mubr.bf16.gmra.mxu0 %v1743
    %v11597 = vpop.f32.mrf.mxu0
    %v11598 = vadd.f32 %v11557, %v11597
    %v11599 = vpop.f32.mrf.mxu0
    %v11600 = vadd.f32 %v11559, %v11599
    %v11601 = vpop.f32.mrf.mxu0
    %v11602 = vpop.f32.mrf.mxu0
    %11603 = vdwg.mxu0
    %11604 = vmatprep.subr.bf16.mxu0 %v7624
    %11605 = vmatpush1.bf16.msra.mxu0 %v7623
    %11606 = vmatprep.subr.bf16.mxu0 %v7616
    %11607 = vmatpush1.bf16.msra.mxu0 %v7615
    %11608 = vmatprep.subr.bf16.mxu0 %v7608
    %11609 = vmatpush1.bf16.msra.mxu0 %v7607
    %11610 = vmatprep.subr.bf16.mxu0 %v7600
    %11611 = vmatpush1.bf16.msra.mxu0 %v7599
    %11612 = vmatprep.subr.bf16.mxu0 %v7592
    %11613 = vmatpush1.bf16.msra.mxu0 %v7591
    %11614 = vmatprep.subr.bf16.mxu0 %v7584
    %11615 = vmatpush1.bf16.msra.mxu0 %v7583
    %11616 = vmatprep.subr.bf16.mxu0 %v7576
    %11617 = vmatpush1.bf16.msra.mxu0 %v7575
    %11618 = vmatprep.subr.bf16.mxu0 %v7568
    %11619 = vmatpush1.bf16.msra.mxu0 %v7567
    %11620 = vmatprep.subr.bf16.mxu0 %v7688
    %11621 = vmatpush2.bf16.msra.mxu0 %v7687
    %11622 = vmatprep.subr.bf16.mxu0 %v7680
    %11623 = vmatpush2.bf16.msra.mxu0 %v7679
    %11624 = vmatprep.subr.bf16.mxu0 %v7672
    %11625 = vmatpush2.bf16.msra.mxu0 %v7671
    %11626 = vmatprep.subr.bf16.mxu0 %v7664
    %11627 = vmatpush2.bf16.msra.mxu0 %v7663
    %11628 = vmatprep.subr.bf16.mxu0 %v7656
    %11629 = vmatpush2.bf16.msra.mxu0 %v7655
    %11630 = vmatprep.subr.bf16.mxu0 %v7648
    %11631 = vmatpush2.bf16.msra.mxu0 %v7647
    %11632 = vmatprep.subr.bf16.mxu0 %v7640
    %11633 = vmatpush2.bf16.msra.mxu0 %v7639
    %11634 = vmatprep.subr.bf16.mxu0 %v7632
    %11635 = vmatpush2.bf16.msra.mxu0 %v7631
    %11636 = vmatprep.mubr.bf16.mxu0 %v1783
    %11637 = vmatmul.mubr.bf16.gmra.mxu0 %v1769
    %v11638 = vpop.f32.mrf.mxu0
    %v11639 = vadd.f32 %v11598, %v11638
    %v11640 = vpop.f32.mrf.mxu0
    %v11641 = vadd.f32 %v11600, %v11640
    %v11642 = vpop.f32.mrf.mxu0
    %v11643 = vpop.f32.mrf.mxu0
    %11644 = vdwg.mxu0
    %11645 = vmatprep.subr.bf16.mxu0 %v7752
    %11646 = vmatpush1.bf16.msra.mxu0 %v7751
    %11647 = vmatprep.subr.bf16.mxu0 %v7744
    %11648 = vmatpush1.bf16.msra.mxu0 %v7743
    %11649 = vmatprep.subr.bf16.mxu0 %v7736
    %11650 = vmatpush1.bf16.msra.mxu0 %v7735
    %11651 = vmatprep.subr.bf16.mxu0 %v7728
    %11652 = vmatpush1.bf16.msra.mxu0 %v7727
    %11653 = vmatprep.subr.bf16.mxu0 %v7720
    %11654 = vmatpush1.bf16.msra.mxu0 %v7719
    %11655 = vmatprep.subr.bf16.mxu0 %v7712
    %11656 = vmatpush1.bf16.msra.mxu0 %v7711
    %11657 = vmatprep.subr.bf16.mxu0 %v7704
    %11658 = vmatpush1.bf16.msra.mxu0 %v7703
    %11659 = vmatprep.subr.bf16.mxu0 %v7696
    %11660 = vmatpush1.bf16.msra.mxu0 %v7695
    %11661 = vmatprep.subr.bf16.mxu0 %v7816
    %11662 = vmatpush2.bf16.msra.mxu0 %v7815
    %11663 = vmatprep.subr.bf16.mxu0 %v7808
    %11664 = vmatpush2.bf16.msra.mxu0 %v7807
    %11665 = vmatprep.subr.bf16.mxu0 %v7800
    %11666 = vmatpush2.bf16.msra.mxu0 %v7799
    %11667 = vmatprep.subr.bf16.mxu0 %v7792
    %11668 = vmatpush2.bf16.msra.mxu0 %v7791
    %11669 = vmatprep.subr.bf16.mxu0 %v7784
    %11670 = vmatpush2.bf16.msra.mxu0 %v7783
    %11671 = vmatprep.subr.bf16.mxu0 %v7776
    %11672 = vmatpush2.bf16.msra.mxu0 %v7775
    %11673 = vmatprep.subr.bf16.mxu0 %v7768
    %11674 = vmatpush2.bf16.msra.mxu0 %v7767
    %11675 = vmatprep.subr.bf16.mxu0 %v7760
    %11676 = vmatpush2.bf16.msra.mxu0 %v7759
    %11677 = vmatprep.mubr.bf16.mxu0 %v1793
    %11678 = vmatmul.mubr.bf16.gmra.mxu0 %v1791
    %v11679 = vpop.f32.mrf.mxu0
    %v11680 = vadd.f32 %v11639, %v11679
    %v11681 = vpop.f32.mrf.mxu0
    %v11682 = vadd.f32 %v11641, %v11681
    %v11683 = vpop.f32.mrf.mxu0
    %v11684 = vpop.f32.mrf.mxu0
    %11685 = vdwg.mxu0
    %11686 = vmatprep.subr.bf16.mxu0 %v7880
    %11687 = vmatpush1.bf16.msra.mxu0 %v7879
    %11688 = vmatprep.subr.bf16.mxu0 %v7872
    %11689 = vmatpush1.bf16.msra.mxu0 %v7871
    %11690 = vmatprep.subr.bf16.mxu0 %v7864
    %11691 = vmatpush1.bf16.msra.mxu0 %v7863
    %11692 = vmatprep.subr.bf16.mxu0 %v7856
    %11693 = vmatpush1.bf16.msra.mxu0 %v7855
    %11694 = vmatprep.subr.bf16.mxu0 %v7848
    %11695 = vmatpush1.bf16.msra.mxu0 %v7847
    %11696 = vmatprep.subr.bf16.mxu0 %v7840
    %11697 = vmatpush1.bf16.msra.mxu0 %v7839
    %11698 = vmatprep.subr.bf16.mxu0 %v7832
    %11699 = vmatpush1.bf16.msra.mxu0 %v7831
    %11700 = vmatprep.subr.bf16.mxu0 %v7824
    %11701 = vmatpush1.bf16.msra.mxu0 %v7823
    %11702 = vmatprep.subr.bf16.mxu0 %v7944
    %11703 = vmatpush2.bf16.msra.mxu0 %v7943
    %11704 = vmatprep.subr.bf16.mxu0 %v7936
    %11705 = vmatpush2.bf16.msra.mxu0 %v7935
    %11706 = vmatprep.subr.bf16.mxu0 %v7928
    %11707 = vmatpush2.bf16.msra.mxu0 %v7927
    %11708 = vmatprep.subr.bf16.mxu0 %v7920
    %11709 = vmatpush2.bf16.msra.mxu0 %v7919
    %11710 = vmatprep.subr.bf16.mxu0 %v7912
    %11711 = vmatpush2.bf16.msra.mxu0 %v7911
    %11712 = vmatprep.subr.bf16.mxu0 %v7904
    %11713 = vmatpush2.bf16.msra.mxu0 %v7903
    %11714 = vmatprep.subr.bf16.mxu0 %v7896
    %11715 = vmatpush2.bf16.msra.mxu0 %v7895
    %11716 = vmatprep.subr.bf16.mxu0 %v7888
    %11717 = vmatpush2.bf16.msra.mxu0 %v7887
    %11718 = vmatprep.mubr.bf16.mxu0 %v1790
    %11719 = vmatmul.mubr.bf16.gmra.mxu0 %v1776
    %v11720 = vpop.f32.mrf.mxu0
    %v11721 = vadd.f32 %v11680, %v11720
    %v11722 = vpop.f32.mrf.mxu0
    %v11723 = vadd.f32 %v11682, %v11722
    %v11724 = vpop.f32.mrf.mxu0
    %v11725 = vpop.f32.mrf.mxu0
    %11726 = vdwg.mxu0
    %11727 = vmatprep.subr.bf16.mxu0 %v8008
    %11728 = vmatpush1.bf16.msra.mxu0 %v8007
    %11729 = vmatprep.subr.bf16.mxu0 %v8000
    %11730 = vmatpush1.bf16.msra.mxu0 %v7999
    %11731 = vmatprep.subr.bf16.mxu0 %v7992
    %11732 = vmatpush1.bf16.msra.mxu0 %v7991
    %11733 = vmatprep.subr.bf16.mxu0 %v7984
    %11734 = vmatpush1.bf16.msra.mxu0 %v7983
    %11735 = vmatprep.subr.bf16.mxu0 %v7976
    %11736 = vmatpush1.bf16.msra.mxu0 %v7975
    %11737 = vmatprep.subr.bf16.mxu0 %v7968
    %11738 = vmatpush1.bf16.msra.mxu0 %v7967
    %11739 = vmatprep.subr.bf16.mxu0 %v7960
    %11740 = vmatpush1.bf16.msra.mxu0 %v7959
    %11741 = vmatprep.subr.bf16.mxu0 %v7952
    %11742 = vmatpush1.bf16.msra.mxu0 %v7951
    %11743 = vmatprep.subr.bf16.mxu0 %v8072
    %11744 = vmatpush2.bf16.msra.mxu0 %v8071
    %11745 = vmatprep.subr.bf16.mxu0 %v8064
    %11746 = vmatpush2.bf16.msra.mxu0 %v8063
    %11747 = vmatprep.subr.bf16.mxu0 %v8056
    %11748 = vmatpush2.bf16.msra.mxu0 %v8055
    %11749 = vmatprep.subr.bf16.mxu0 %v8048
    %11750 = vmatpush2.bf16.msra.mxu0 %v8047
    %11751 = vmatprep.subr.bf16.mxu0 %v8040
    %11752 = vmatpush2.bf16.msra.mxu0 %v8039
    %11753 = vmatprep.subr.bf16.mxu0 %v8032
    %11754 = vmatpush2.bf16.msra.mxu0 %v8031
    %11755 = vmatprep.subr.bf16.mxu0 %v8024
    %11756 = vmatpush2.bf16.msra.mxu0 %v8023
    %11757 = vmatprep.subr.bf16.mxu0 %v8016
    %11758 = vmatpush2.bf16.msra.mxu0 %v8015
    %11759 = vmatprep.mubr.bf16.mxu0 %v1794
    %11760 = vmatmul.mubr.bf16.gmra.mxu0 %v1792
    %v11761 = vpop.f32.mrf.mxu0
    %v11762 = vadd.f32 %v11721, %v11761
    %v11763 = vpop.f32.mrf.mxu0
    %v11764 = vadd.f32 %v11723, %v11763
    %v11765 = vpop.f32.mrf.mxu0
    %v11766 = vpop.f32.mrf.mxu0
    %11767 = vdwg.mxu0
    %11768 = vmatprep.subr.bf16.mxu0 0
    %11769 = vmatpush1.bf16.msra.mxu0 0
    %11770 = vmatprep.subr.bf16.mxu0 0
    %11771 = vmatpush1.bf16.msra.mxu0 0
    %11772 = vmatprep.subr.bf16.mxu0 0
    %11773 = vmatpush1.bf16.msra.mxu0 0
    %11774 = vmatprep.subr.bf16.mxu0 0
    %11775 = vmatpush1.bf16.msra.mxu0 0
    %11776 = vmatprep.subr.bf16.mxu0 %v8104
    %11777 = vmatpush1.bf16.msra.mxu0 %v8103
    %11778 = vmatprep.subr.bf16.mxu0 %v8096
    %11779 = vmatpush1.bf16.msra.mxu0 %v8095
    %11780 = vmatprep.subr.bf16.mxu0 %v8088
    %11781 = vmatpush1.bf16.msra.mxu0 %v8087
    %11782 = vmatprep.subr.bf16.mxu0 %v8080
    %11783 = vmatpush1.bf16.msra.mxu0 %v8079
    %11784 = vmatprep.subr.bf16.mxu0 0
    %11785 = vmatpush2.bf16.msra.mxu0 0
    %11786 = vmatprep.subr.bf16.mxu0 0
    %11787 = vmatpush2.bf16.msra.mxu0 0
    %11788 = vmatprep.subr.bf16.mxu0 0
    %11789 = vmatpush2.bf16.msra.mxu0 0
    %11790 = vmatprep.subr.bf16.mxu0 0
    %11791 = vmatpush2.bf16.msra.mxu0 0
    %11792 = vmatprep.subr.bf16.mxu0 0
    %11793 = vmatpush2.bf16.msra.mxu0 0
    %11794 = vmatprep.subr.bf16.mxu0 0
    %11795 = vmatpush2.bf16.msra.mxu0 0
    %11796 = vmatprep.subr.bf16.mxu0 0
    %11797 = vmatpush2.bf16.msra.mxu0 0
    %11798 = vmatprep.subr.bf16.mxu0 0
    %11799 = vmatpush2.bf16.msra.mxu0 0
    %11800 = vmatprep.mubr.bf16.mxu0 0
    %11801 = vmatmul.mubr.bf16.gmra.mxu0 %v9675
    %v11802 = vpop.f32.mrf.mxu0
    %v11803 = vadd.f32 %v11762, %v11802
    %v11804 = vpop.f32.mrf.mxu0
    %v11805 = vadd.f32 %v11764, %v11804
    %v11806 = vpop.f32.mrf.mxu0
    %v11807 = vpop.f32.mrf.mxu0
    %11808 = vdwg.mxu0
    %v11809 = vmax.f32 %v10204, 0.0
    %v11810 = vmax.f32 %v10206, 0.0
    %v11811 = vmax.f32 %v10737, 0.0
    %v11812 = vmax.f32 %v10739, 0.0
    %v11813 = vmax.f32 %v11270, 0.0
    %v11814 = vmax.f32 %v11272, 0.0
    %v11815 = vmax.f32 %v11803, 0.0
    %v11816 = vmax.f32 %v11805, 0.0
    %v11817 = vld [vmem:[%s3] sm:$0xff]
    %v11818 = vld [vmem:[%s3 + $0x8] sm:$0xff]
    %v11819 = vld [vmem:[%s3 + $0x10] sm:$0xff]
    %v11820 = vld [vmem:[%s3 + $0x18] sm:$0xff]
    %v11821 = vld [vmem:[%s3 + $0x20] sm:$0xff]
    %v11822 = vld [vmem:[%s3 + $0x28] sm:$0xff]
    %v11823 = vld [vmem:[%s3 + $0x30] sm:$0xff]
    %v11824 = vld [vmem:[%s3 + $0x38] sm:$0xff]
    %v11825 = vld [vmem:[%s3 + $0x40] sm:$0xff]
    %v11826 = vld [vmem:[%s3 + $0x48] sm:$0xff]
    %v11827 = vld [vmem:[%s3 + $0x50] sm:$0xff]
    %v11828 = vld [vmem:[%s3 + $0x58] sm:$0xff]
    %v11829 = vld [vmem:[%s3 + $0x60] sm:$0xff]
    %v11830 = vld [vmem:[%s3 + $0x68] sm:$0xff]
    %v11831 = vld [vmem:[%s3 + $0x70] sm:$0xff]
    %v11832 = vld [vmem:[%s3 + $0x78] sm:$0xff]
    %v11833 = vld [vmem:[%s3 + $0x80] sm:$0xff]
    %v11834 = vld [vmem:[%s3 + $0x88] sm:$0xff]
    %v11835 = vld [vmem:[%s3 + $0x90] sm:$0xff]
    %v11836 = vld [vmem:[%s3 + $0x98] sm:$0xff]
    %v11837 = vld [vmem:[%s3 + $0xa0] sm:$0xff]
    %v11838 = vld [vmem:[%s3 + $0xa8] sm:$0xff]
    %v11839 = vld [vmem:[%s3 + $0xb0] sm:$0xff]
    %v11840 = vld [vmem:[%s3 + $0xb8] sm:$0xff]
    %v11841 = vld [vmem:[%s3 + $0xc0] sm:$0xff]
    %v11842 = vld [vmem:[%s3 + $0xc8] sm:$0xff]
    %v11843 = vld [vmem:[%s3 + $0xd0] sm:$0xff]
    %v11844 = vld [vmem:[%s3 + $0xd8] sm:$0xff]
    %v11845 = vld [vmem:[%s3 + $0xe0] sm:$0xff]
    %v11846 = vld [vmem:[%s3 + $0xe8] sm:$0xff]
    %v11847 = vld [vmem:[%s3 + $0xf0] sm:$0xff]
    %v11848 = vld [vmem:[%s3 + $0xf8] sm:$0xff]
    %v11849 = vld [vmem:[%s3 + $0x100] sm:$0xff]
    %v11850 = vld [vmem:[%s3 + $0x108] sm:$0xff]
    %v11851 = vld [vmem:[%s3 + $0x110] sm:$0xff]
    %v11852 = vld [vmem:[%s3 + $0x118] sm:$0xff]
    %v11853 = vld [vmem:[%s3 + $0x120] sm:$0xff]
    %v11854 = vld [vmem:[%s3 + $0x128] sm:$0xff]
    %v11855 = vld [vmem:[%s3 + $0x130] sm:$0xff]
    %v11856 = vld [vmem:[%s3 + $0x138] sm:$0xff]
    %v11857 = vld [vmem:[%s3 + $0x140] sm:$0xff]
    %v11858 = vld [vmem:[%s3 + $0x148] sm:$0xff]
    %v11859 = vld [vmem:[%s3 + $0x150] sm:$0xff]
    %v11860 = vld [vmem:[%s3 + $0x158] sm:$0xff]
    %v11861 = vld [vmem:[%s3 + $0x160] sm:$0xff]
    %v11862 = vld [vmem:[%s3 + $0x168] sm:$0xff]
    %v11863 = vld [vmem:[%s3 + $0x170] sm:$0xff]
    %v11864 = vld [vmem:[%s3 + $0x178] sm:$0xff]
    %v11865 = vld [vmem:[%s3 + $0x180] sm:$0xff]
    %v11866 = vld [vmem:[%s3 + $0x188] sm:$0xff]
    %v11867 = vld [vmem:[%s3 + $0x190] sm:$0xff]
    %v11868 = vld [vmem:[%s3 + $0x198] sm:$0xff]
    %v11869 = vld [vmem:[%s3 + $0x1a0] sm:$0xff]
    %v11870 = vld [vmem:[%s3 + $0x1a8] sm:$0xff]
    %v11871 = vld [vmem:[%s3 + $0x1b0] sm:$0xff]
    %v11872 = vld [vmem:[%s3 + $0x1b8] sm:$0xff]
    %v11873 = vld [vmem:[%s3 + $0x1c0] sm:$0xff]
    %v11874 = vld [vmem:[%s3 + $0x1c8] sm:$0xff]
    %v11875 = vld [vmem:[%s3 + $0x1d0] sm:$0xff]
    %v11876 = vld [vmem:[%s3 + $0x1d8] sm:$0xff]
    %v11877 = vld [vmem:[%s3 + $0x1e0] sm:$0xff]
    %v11878 = vld [vmem:[%s3 + $0x1e8] sm:$0xff]
    %v11879 = vld [vmem:[%s3 + $0x1f0] sm:$0xff]
    %v11880 = vld [vmem:[%s3 + $0x1f8] sm:$0xff]
    %v11881 = vld [vmem:[%s4] sm:$0x1]
    %v11883 = vlaneseq
    %v11884 = vshrl.u32 %v11883, 7
    %v11885 = vsub.s32 0, %v11884
    %v11886 = vrot.slane %v11881, %v11885
    %11888 = vmatprep.subr.mxu0 0.0
    %11889 = vmatpush1.msra.mxu0 %v11832
    %11890 = vmatprep.subr.mxu0 0.0
    %11891 = vmatpush1.msra.mxu0 %v11831
    %11892 = vmatprep.subr.mxu0 0.0
    %11893 = vmatpush1.msra.mxu0 %v11830
    %11894 = vmatprep.subr.mxu0 0.0
    %11895 = vmatpush1.msra.mxu0 %v11829
    %11896 = vmatprep.subr.mxu0 0.0
    %11897 = vmatpush1.msra.mxu0 %v11828
    %11898 = vmatprep.subr.mxu0 0.0
    %11899 = vmatpush1.msra.mxu0 %v11827
    %11900 = vmatprep.subr.mxu0 0.0
    %11901 = vmatpush1.msra.mxu0 %v11826
    %11902 = vmatprep.subr.mxu0 0.0
    %11903 = vmatpush1.msra.mxu0 %v11825
    %11904 = vmatprep.subr.mxu0 0.0
    %11905 = vmatpush1.msra.mxu0 %v11824
    %11906 = vmatprep.subr.mxu0 0.0
    %11907 = vmatpush1.msra.mxu0 %v11823
    %11908 = vmatprep.subr.mxu0 0.0
    %11909 = vmatpush1.msra.mxu0 %v11822
    %11910 = vmatprep.subr.mxu0 0.0
    %11911 = vmatpush1.msra.mxu0 %v11821
    %11912 = vmatprep.subr.mxu0 0.0
    %11913 = vmatpush1.msra.mxu0 %v11820
    %11914 = vmatprep.subr.mxu0 0.0
    %11915 = vmatpush1.msra.mxu0 %v11819
    %11916 = vmatprep.subr.mxu0 0.0
    %11917 = vmatpush1.msra.mxu0 %v11818
    %11918 = vmatprep.subr.mxu0 0.0
    %11919 = vmatpush1.msra.mxu0 %v11817
    %11920 = vmatprep.subr.mxu0 0.0
    %11921 = vmatpush2.msra.mxu0 %v11848
    %11922 = vmatprep.subr.mxu0 0.0
    %11923 = vmatpush2.msra.mxu0 %v11847
    %11924 = vmatprep.subr.mxu0 0.0
    %11925 = vmatpush2.msra.mxu0 %v11846
    %11926 = vmatprep.subr.mxu0 0.0
    %11927 = vmatpush2.msra.mxu0 %v11845
    %11928 = vmatprep.subr.mxu0 0.0
    %11929 = vmatpush2.msra.mxu0 %v11844
    %11930 = vmatprep.subr.mxu0 0.0
    %11931 = vmatpush2.msra.mxu0 %v11843
    %11932 = vmatprep.subr.mxu0 0.0
    %11933 = vmatpush2.msra.mxu0 %v11842
    %11934 = vmatprep.subr.mxu0 0.0
    %11935 = vmatpush2.msra.mxu0 %v11841
    %11936 = vmatprep.subr.mxu0 0.0
    %11937 = vmatpush2.msra.mxu0 %v11840
    %11938 = vmatprep.subr.mxu0 0.0
    %11939 = vmatpush2.msra.mxu0 %v11839
    %11940 = vmatprep.subr.mxu0 0.0
    %11941 = vmatpush2.msra.mxu0 %v11838
    %11942 = vmatprep.subr.mxu0 0.0
    %11943 = vmatpush2.msra.mxu0 %v11837
    %11944 = vmatprep.subr.mxu0 0.0
    %11945 = vmatpush2.msra.mxu0 %v11836
    %11946 = vmatprep.subr.mxu0 0.0
    %11947 = vmatpush2.msra.mxu0 %v11835
    %11948 = vmatprep.subr.mxu0 0.0
    %11949 = vmatpush2.msra.mxu0 %v11834
    %11950 = vmatprep.subr.mxu0 0.0
    %11951 = vmatpush2.msra.mxu0 %v11833
    %11952 = vmatprep.mubr.f32.mxu0 %v11810
    %11953 = vmatmul.mubr.f32.gmra.mxu0 %v11809
    %v11954 = vpop.f32.mrf.mxu0
    %v11955 = vadd.f32 %v11886, %v11954
    %v11956 = vpop.f32.mrf.mxu0
    %11957 = vdwg.mxu0
    %11958 = vmatprep.subr.mxu0 0.0
    %11959 = vmatpush1.msra.mxu0 %v11864
    %11960 = vmatprep.subr.mxu0 0.0
    %11961 = vmatpush1.msra.mxu0 %v11863
    %11962 = vmatprep.subr.mxu0 0.0
    %11963 = vmatpush1.msra.mxu0 %v11862
    %11964 = vmatprep.subr.mxu0 0.0
    %11965 = vmatpush1.msra.mxu0 %v11861
    %11966 = vmatprep.subr.mxu0 0.0
    %11967 = vmatpush1.msra.mxu0 %v11860
    %11968 = vmatprep.subr.mxu0 0.0
    %11969 = vmatpush1.msra.mxu0 %v11859
    %11970 = vmatprep.subr.mxu0 0.0
    %11971 = vmatpush1.msra.mxu0 %v11858
    %11972 = vmatprep.subr.mxu0 0.0
    %11973 = vmatpush1.msra.mxu0 %v11857
    %11974 = vmatprep.subr.mxu0 0.0
    %11975 = vmatpush1.msra.mxu0 %v11856
    %11976 = vmatprep.subr.mxu0 0.0
    %11977 = vmatpush1.msra.mxu0 %v11855
    %11978 = vmatprep.subr.mxu0 0.0
    %11979 = vmatpush1.msra.mxu0 %v11854
    %11980 = vmatprep.subr.mxu0 0.0
    %11981 = vmatpush1.msra.mxu0 %v11853
    %11982 = vmatprep.subr.mxu0 0.0
    %11983 = vmatpush1.msra.mxu0 %v11852
    %11984 = vmatprep.subr.mxu0 0.0
    %11985 = vmatpush1.msra.mxu0 %v11851
    %11986 = vmatprep.subr.mxu0 0.0
    %11987 = vmatpush1.msra.mxu0 %v11850
    %11988 = vmatprep.subr.mxu0 0.0
    %11989 = vmatpush1.msra.mxu0 %v11849
    %11990 = vmatprep.subr.mxu0 0.0
    %11991 = vmatpush2.msra.mxu0 %v11880
    %11992 = vmatprep.subr.mxu0 0.0
    %11993 = vmatpush2.msra.mxu0 %v11879
    %11994 = vmatprep.subr.mxu0 0.0
    %11995 = vmatpush2.msra.mxu0 %v11878
    %11996 = vmatprep.subr.mxu0 0.0
    %11997 = vmatpush2.msra.mxu0 %v11877
    %11998 = vmatprep.subr.mxu0 0.0
    %11999 = vmatpush2.msra.mxu0 %v11876
    %12000 = vmatprep.subr.mxu0 0.0
    %12001 = vmatpush2.msra.mxu0 %v11875
    %12002 = vmatprep.subr.mxu0 0.0
    %12003 = vmatpush2.msra.mxu0 %v11874
    %12004 = vmatprep.subr.mxu0 0.0
    %12005 = vmatpush2.msra.mxu0 %v11873
    %12006 = vmatprep.subr.mxu0 0.0
    %12007 = vmatpush2.msra.mxu0 %v11872
    %12008 = vmatprep.subr.mxu0 0.0
    %12009 = vmatpush2.msra.mxu0 %v11871
    %12010 = vmatprep.subr.mxu0 0.0
    %12011 = vmatpush2.msra.mxu0 %v11870
    %12012 = vmatprep.subr.mxu0 0.0
    %12013 = vmatpush2.msra.mxu0 %v11869
    %12014 = vmatprep.subr.mxu0 0.0
    %12015 = vmatpush2.msra.mxu0 %v11868
    %12016 = vmatprep.subr.mxu0 0.0
    %12017 = vmatpush2.msra.mxu0 %v11867
    %12018 = vmatprep.subr.mxu0 0.0
    %12019 = vmatpush2.msra.mxu0 %v11866
    %12020 = vmatprep.subr.mxu0 0.0
    %12021 = vmatpush2.msra.mxu0 %v11865
    %12022 = vmatprep.mubr.f32.mxu0 %v11812
    %12023 = vmatmul.mubr.f32.gmra.mxu0 %v11811
    %v12024 = vpop.f32.mrf.mxu0
    %v12025 = vadd.f32 %v11955, %v12024
    %v12026 = vpop.f32.mrf.mxu0
    %12027 = vdwg.mxu0
    %v12028 = vld [vmem:[%s5] sm:$0xff]
    %v12029 = vld [vmem:[%s5 + $0x8] sm:$0xff]
    %v12030 = vld [vmem:[%s5 + $0x10] sm:$0xff]
    %v12031 = vld [vmem:[%s5 + $0x18] sm:$0xff]
    %v12032 = vld [vmem:[%s5 + $0x20] sm:$0xff]
    %v12033 = vld [vmem:[%s5 + $0x28] sm:$0xff]
    %v12034 = vld [vmem:[%s5 + $0x30] sm:$0xff]
    %v12035 = vld [vmem:[%s5 + $0x38] sm:$0xff]
    %v12036 = vld [vmem:[%s5 + $0x40] sm:$0xff]
    %v12037 = vld [vmem:[%s5 + $0x48] sm:$0xff]
    %v12038 = vld [vmem:[%s5 + $0x50] sm:$0xff]
    %v12039 = vld [vmem:[%s5 + $0x58] sm:$0xff]
    %v12040 = vld [vmem:[%s5 + $0x60] sm:$0xff]
    %v12041 = vld [vmem:[%s5 + $0x68] sm:$0xff]
    %v12042 = vld [vmem:[%s5 + $0x70] sm:$0xff]
    %v12043 = vld [vmem:[%s5 + $0x78] sm:$0xff]
    %v12044 = vld [vmem:[%s5 + $0x80] sm:$0xff]
    %v12045 = vld [vmem:[%s5 + $0x88] sm:$0xff]
    %v12046 = vld [vmem:[%s5 + $0x90] sm:$0xff]
    %v12047 = vld [vmem:[%s5 + $0x98] sm:$0xff]
    %v12048 = vld [vmem:[%s5 + $0xa0] sm:$0xff]
    %v12049 = vld [vmem:[%s5 + $0xa8] sm:$0xff]
    %v12050 = vld [vmem:[%s5 + $0xb0] sm:$0xff]
    %v12051 = vld [vmem:[%s5 + $0xb8] sm:$0xff]
    %v12052 = vld [vmem:[%s5 + $0xc0] sm:$0xff]
    %v12053 = vld [vmem:[%s5 + $0xc8] sm:$0xff]
    %v12054 = vld [vmem:[%s5 + $0xd0] sm:$0xff]
    %v12055 = vld [vmem:[%s5 + $0xd8] sm:$0xff]
    %v12056 = vld [vmem:[%s5 + $0xe0] sm:$0xff]
    %v12057 = vld [vmem:[%s5 + $0xe8] sm:$0xff]
    %v12058 = vld [vmem:[%s5 + $0xf0] sm:$0xff]
    %v12059 = vld [vmem:[%s5 + $0xf8] sm:$0xff]
    %v12060 = vld [vmem:[%s5 + $0x100] sm:$0xff]
    %v12061 = vld [vmem:[%s5 + $0x108] sm:$0xff]
    %v12062 = vld [vmem:[%s5 + $0x110] sm:$0xff]
    %v12063 = vld [vmem:[%s5 + $0x118] sm:$0xff]
    %v12064 = vld [vmem:[%s5 + $0x120] sm:$0xff]
    %v12065 = vld [vmem:[%s5 + $0x128] sm:$0xff]
    %v12066 = vld [vmem:[%s5 + $0x130] sm:$0xff]
    %v12067 = vld [vmem:[%s5 + $0x138] sm:$0xff]
    %v12068 = vld [vmem:[%s5 + $0x140] sm:$0xff]
    %v12069 = vld [vmem:[%s5 + $0x148] sm:$0xff]
    %v12070 = vld [vmem:[%s5 + $0x150] sm:$0xff]
    %v12071 = vld [vmem:[%s5 + $0x158] sm:$0xff]
    %v12072 = vld [vmem:[%s5 + $0x160] sm:$0xff]
    %v12073 = vld [vmem:[%s5 + $0x168] sm:$0xff]
    %v12074 = vld [vmem:[%s5 + $0x170] sm:$0xff]
    %v12075 = vld [vmem:[%s5 + $0x178] sm:$0xff]
    %v12076 = vld [vmem:[%s5 + $0x180] sm:$0xff]
    %v12077 = vld [vmem:[%s5 + $0x188] sm:$0xff]
    %v12078 = vld [vmem:[%s5 + $0x190] sm:$0xff]
    %v12079 = vld [vmem:[%s5 + $0x198] sm:$0xff]
    %v12080 = vld [vmem:[%s5 + $0x1a0] sm:$0xff]
    %v12081 = vld [vmem:[%s5 + $0x1a8] sm:$0xff]
    %v12082 = vld [vmem:[%s5 + $0x1b0] sm:$0xff]
    %v12083 = vld [vmem:[%s5 + $0x1b8] sm:$0xff]
    %v12084 = vld [vmem:[%s5 + $0x1c0] sm:$0xff]
    %v12085 = vld [vmem:[%s5 + $0x1c8] sm:$0xff]
    %v12086 = vld [vmem:[%s5 + $0x1d0] sm:$0xff]
    %v12087 = vld [vmem:[%s5 + $0x1d8] sm:$0xff]
    %v12088 = vld [vmem:[%s5 + $0x1e0] sm:$0xff]
    %v12089 = vld [vmem:[%s5 + $0x1e8] sm:$0xff]
    %v12090 = vld [vmem:[%s5 + $0x1f0] sm:$0xff]
    %v12091 = vld [vmem:[%s5 + $0x1f8] sm:$0xff]
    %v12092 = vld [vmem:[#allocation2] sm:$0x1]
    %v12094 = vlaneseq
    %v12095 = vshrl.u32 %v12094, 7
    %v12096 = vsub.s32 0, %v12095
    %v12097 = vrot.slane %v12092, %v12096
    %12099 = vmatprep.subr.mxu0 0.0
    %12100 = vmatpush1.msra.mxu0 %v12043
    %12101 = vmatprep.subr.mxu0 0.0
    %12102 = vmatpush1.msra.mxu0 %v12042
    %12103 = vmatprep.subr.mxu0 0.0
    %12104 = vmatpush1.msra.mxu0 %v12041
    %12105 = vmatprep.subr.mxu0 0.0
    %12106 = vmatpush1.msra.mxu0 %v12040
    %12107 = vmatprep.subr.mxu0 0.0
    %12108 = vmatpush1.msra.mxu0 %v12039
    %12109 = vmatprep.subr.mxu0 0.0
    %12110 = vmatpush1.msra.mxu0 %v12038
    %12111 = vmatprep.subr.mxu0 0.0
    %12112 = vmatpush1.msra.mxu0 %v12037
    %12113 = vmatprep.subr.mxu0 0.0
    %12114 = vmatpush1.msra.mxu0 %v12036
    %12115 = vmatprep.subr.mxu0 0.0
    %12116 = vmatpush1.msra.mxu0 %v12035
    %12117 = vmatprep.subr.mxu0 0.0
    %12118 = vmatpush1.msra.mxu0 %v12034
    %12119 = vmatprep.subr.mxu0 0.0
    %12120 = vmatpush1.msra.mxu0 %v12033
    %12121 = vmatprep.subr.mxu0 0.0
    %12122 = vmatpush1.msra.mxu0 %v12032
    %12123 = vmatprep.subr.mxu0 0.0
    %12124 = vmatpush1.msra.mxu0 %v12031
    %12125 = vmatprep.subr.mxu0 0.0
    %12126 = vmatpush1.msra.mxu0 %v12030
    %12127 = vmatprep.subr.mxu0 0.0
    %12128 = vmatpush1.msra.mxu0 %v12029
    %12129 = vmatprep.subr.mxu0 0.0
    %12130 = vmatpush1.msra.mxu0 %v12028
    %12131 = vmatprep.subr.mxu0 0.0
    %12132 = vmatpush2.msra.mxu0 %v12059
    %12133 = vmatprep.subr.mxu0 0.0
    %12134 = vmatpush2.msra.mxu0 %v12058
    %12135 = vmatprep.subr.mxu0 0.0
    %12136 = vmatpush2.msra.mxu0 %v12057
    %12137 = vmatprep.subr.mxu0 0.0
    %12138 = vmatpush2.msra.mxu0 %v12056
    %12139 = vmatprep.subr.mxu0 0.0
    %12140 = vmatpush2.msra.mxu0 %v12055
    %12141 = vmatprep.subr.mxu0 0.0
    %12142 = vmatpush2.msra.mxu0 %v12054
    %12143 = vmatprep.subr.mxu0 0.0
    %12144 = vmatpush2.msra.mxu0 %v12053
    %12145 = vmatprep.subr.mxu0 0.0
    %12146 = vmatpush2.msra.mxu0 %v12052
    %12147 = vmatprep.subr.mxu0 0.0
    %12148 = vmatpush2.msra.mxu0 %v12051
    %12149 = vmatprep.subr.mxu0 0.0
    %12150 = vmatpush2.msra.mxu0 %v12050
    %12151 = vmatprep.subr.mxu0 0.0
    %12152 = vmatpush2.msra.mxu0 %v12049
    %12153 = vmatprep.subr.mxu0 0.0
    %12154 = vmatpush2.msra.mxu0 %v12048
    %12155 = vmatprep.subr.mxu0 0.0
    %12156 = vmatpush2.msra.mxu0 %v12047
    %12157 = vmatprep.subr.mxu0 0.0
    %12158 = vmatpush2.msra.mxu0 %v12046
    %12159 = vmatprep.subr.mxu0 0.0
    %12160 = vmatpush2.msra.mxu0 %v12045
    %12161 = vmatprep.subr.mxu0 0.0
    %12162 = vmatpush2.msra.mxu0 %v12044
    %12163 = vmatprep.mubr.f32.mxu0 %v11814
    %12164 = vmatmul.mubr.f32.gmra.mxu0 %v11813
    %v12165 = vpop.f32.mrf.mxu0
    %v12166 = vadd.f32 %v12097, %v12165
    %v12167 = vpop.f32.mrf.mxu0
    %12168 = vdwg.mxu0
    %12169 = vmatprep.subr.mxu0 0.0
    %12170 = vmatpush1.msra.mxu0 %v12075
    %12171 = vmatprep.subr.mxu0 0.0
    %12172 = vmatpush1.msra.mxu0 %v12074
    %12173 = vmatprep.subr.mxu0 0.0
    %12174 = vmatpush1.msra.mxu0 %v12073
    %12175 = vmatprep.subr.mxu0 0.0
    %12176 = vmatpush1.msra.mxu0 %v12072
    %12177 = vmatprep.subr.mxu0 0.0
    %12178 = vmatpush1.msra.mxu0 %v12071
    %12179 = vmatprep.subr.mxu0 0.0
    %12180 = vmatpush1.msra.mxu0 %v12070
    %12181 = vmatprep.subr.mxu0 0.0
    %12182 = vmatpush1.msra.mxu0 %v12069
    %12183 = vmatprep.subr.mxu0 0.0
    %12184 = vmatpush1.msra.mxu0 %v12068
    %12185 = vmatprep.subr.mxu0 0.0
    %12186 = vmatpush1.msra.mxu0 %v12067
    %12187 = vmatprep.subr.mxu0 0.0
    %12188 = vmatpush1.msra.mxu0 %v12066
    %12189 = vmatprep.subr.mxu0 0.0
    %12190 = vmatpush1.msra.mxu0 %v12065
    %12191 = vmatprep.subr.mxu0 0.0
    %12192 = vmatpush1.msra.mxu0 %v12064
    %12193 = vmatprep.subr.mxu0 0.0
    %12194 = vmatpush1.msra.mxu0 %v12063
    %12195 = vmatprep.subr.mxu0 0.0
    %12196 = vmatpush1.msra.mxu0 %v12062
    %12197 = vmatprep.subr.mxu0 0.0
    %12198 = vmatpush1.msra.mxu0 %v12061
    %12199 = vmatprep.subr.mxu0 0.0
    %12200 = vmatpush1.msra.mxu0 %v12060
    %12201 = vmatprep.subr.mxu0 0.0
    %12202 = vmatpush2.msra.mxu0 %v12091
    %12203 = vmatprep.subr.mxu0 0.0
    %12204 = vmatpush2.msra.mxu0 %v12090
    %12205 = vmatprep.subr.mxu0 0.0
    %12206 = vmatpush2.msra.mxu0 %v12089
    %12207 = vmatprep.subr.mxu0 0.0
    %12208 = vmatpush2.msra.mxu0 %v12088
    %12209 = vmatprep.subr.mxu0 0.0
    %12210 = vmatpush2.msra.mxu0 %v12087
    %12211 = vmatprep.subr.mxu0 0.0
    %12212 = vmatpush2.msra.mxu0 %v12086
    %12213 = vmatprep.subr.mxu0 0.0
    %12214 = vmatpush2.msra.mxu0 %v12085
    %12215 = vmatprep.subr.mxu0 0.0
    %12216 = vmatpush2.msra.mxu0 %v12084
    %12217 = vmatprep.subr.mxu0 0.0
    %12218 = vmatpush2.msra.mxu0 %v12083
    %12219 = vmatprep.subr.mxu0 0.0
    %12220 = vmatpush2.msra.mxu0 %v12082
    %12221 = vmatprep.subr.mxu0 0.0
    %12222 = vmatpush2.msra.mxu0 %v12081
    %12223 = vmatprep.subr.mxu0 0.0
    %12224 = vmatpush2.msra.mxu0 %v12080
    %12225 = vmatprep.subr.mxu0 0.0
    %12226 = vmatpush2.msra.mxu0 %v12079
    %12227 = vmatprep.subr.mxu0 0.0
    %12228 = vmatpush2.msra.mxu0 %v12078
    %12229 = vmatprep.subr.mxu0 0.0
    %12230 = vmatpush2.msra.mxu0 %v12077
    %12231 = vmatprep.subr.mxu0 0.0
    %12232 = vmatpush2.msra.mxu0 %v12076
    %12233 = vmatprep.mubr.f32.mxu0 %v11816
    %12234 = vmatmul.mubr.f32.gmra.mxu0 %v11815
    %v12235 = vpop.f32.mrf.mxu0
    %v12236 = vadd.f32 %v12166, %v12235
    %v12237 = vpop.f32.mrf.mxu0
    %12238 = vdwg.mxu0
    %12240 = vset.pattern.permute.xlu0 0
    %12241 = vperm.xlu0 %12240, %v12236
    %v12242 = vpop.permute.xlu0 %12241
    %v12244 = vadd.f32 %v12242, %v12025
    %vm12245 = vcmask 41984
    %v12246 = vsel %vm12245, %v12025, 0.0
    %12247 = vadd.xlane.f32.xlu0 %v12246
    %v12248 = vpop.xlane.xlu0 %12247
    %v12249 = vrot.slane %v12248, 4
    %v12250 = vadd.f32 %v12248, %v12249
    %v12251 = vrot.slane %v12250, 2
    %v12252 = vadd.f32 %v12250, %v12251
    %v12253 = vrot.slane %v12252, 1
    %v12254 = vadd.f32 %v12252, %v12253
    %s12255 = vtos %v12254
    %v12256 = vrcp.pop 12.0
    %s12257 = vtos %v12256
    %s12258 = smul.f32 %s12255, %s12257
    %v12259 = vstv %s12258
    %v12260 = vsub.f32 %v12244, %v12259
    %12261 = vst.msk [vmem:[#allocation3] sm:$0x3] %vm12245, %v12260
    // Predicated region
    $region30: #{forward.7} parent=1 // pred_check
      _
    $region31: #{forward.7} parent=1 // pred_check_branch
      %12263 = sbr.rel (0) target = $region33
    $region32: #{forward.7} parent=1 // pred_region
      %s12265 = ssub.s32 32, 32
      %12266 = vsyncadd [#allocation4], %s12265
      %s12268 = sshll.u32 [#allocation3], 4
      %s12269 = int_to_ptr.vmem [resolvable:$true] %s12268
      %12271 = dma.vmem_to_hbm [thread:$0]  %s12269, 32, %s7, [#allocation4]
    $region33: #{forward.7} parent=1 // pred_fallthru
      _
    // Predicated region
    $region34: #{forward.7} parent=1 // pred_check
      _
    $region35: #{forward.7} parent=1 // pred_check_branch
      %12273 = sbr.rel (0) target = $region37
    $region36: #{forward.7} parent=1 // pred_region
      %12274 = dma.done [#allocation4], 32
    $region37: #{forward.7} parent=1 // pred_fallthru
      _
    %12275 = vsyncpa [#allocation4], 1

</llo_original>
